<compile_context>
chip_gen: v5e
topology: v5e:2x2
jax: 0.10.0
libtpu: 0.0.40
codegen_flags: <defaults>
</compile_context>

<pallas_src>
import jax
import jax.numpy as jnp
from jax.experimental import pallas as pl
from jax.experimental.pallas import tpu as pltpu


def _build_shift_matrices(h, w):
    """S[tap, q, p] = 1 iff flat pixel q is the (kh-1, kw-1) neighbour of flat pixel p
    (zeros outside the image); tap = kh*3 + kw. Then (act @ S[tap])[c, p] reads exactly
    what a padding=1 3x3 cross-correlation reads for output pixel p at that tap."""
    hw = h * w
    p = jnp.arange(hw)
    ph, pw = p // w, p % w
    mats = []
    for kh in range(3):
        for kw in range(3):
            qh, qw = ph + (kh - 1), pw + (kw - 1)
            valid = (qh >= 0) & (qh < h) & (qw >= 0) & (qw < w)
            q = jnp.where(valid, qh * w + qw, 0)
            s = jnp.zeros((hw, hw), jnp.float32)
            s = s.at[q, p].set(jnp.where(valid, 1.0, 0.0))
            mats.append(s)
    return jnp.stack(mats)                                     # (9, hw, hw)


def _stack_taps(w_conv):
    """(depth, Co, Ci, 3, 3) -> (depth, 9*Co, Ci), rows grouped tap-major (kh*3+kw)."""
    d, co, ci, kh, kw = w_conv.shape
    return jnp.transpose(w_conv, (0, 3, 4, 1, 2)).reshape(d, kh * kw * co, ci)


def init_params(key, c_in, hidden, c_out, depth):
    ks = jax.random.split(key, 8)
    s = 0.1
    return {
        "w_in":  s * jax.random.normal(ks[0], (hidden, c_in), jnp.float32),
        "b_in":  0.05 * jax.random.normal(ks[1], (hidden,), jnp.float32),
        "w1":    s * jax.random.normal(ks[2], (depth, hidden, hidden, 3, 3), jnp.float32),
        "b1":    0.05 * jax.random.normal(ks[3], (depth, hidden), jnp.float32),
        "w2":    s * jax.random.normal(ks[4], (depth, hidden, hidden, 3, 3), jnp.float32),
        "b2":    0.05 * jax.random.normal(ks[5], (depth, hidden), jnp.float32),
        # ReZero initializes alpha to 0; nonzero deterministic values here so the residual
        # branch is actually exercised by the correctness check (forward math unchanged).
        "alpha": 0.3 * jax.random.normal(ks[6], (depth, hidden), jnp.float32),
        "w_out": s * jax.random.normal(ks[7], (c_out, hidden), jnp.float32),
        "b_out": jnp.zeros((c_out,), jnp.float32) + 0.02,
    }


def residual_projection_forward(x_nchw, params):
    n, c_in, h, w = x_nchw.shape
    hw = h * w
    hidden = params["w_in"].shape[0]
    depth = params["w1"].shape[0]
    c_out = params["w_out"].shape[0]

    # NCHW -> (N, C, H*W): free reshape; channels on sublanes, spatial on lanes.
    x_flat = x_nchw.reshape(n, c_in, hw).astype(jnp.float32)
    w_in = params["w_in"]

    # pad the tiny input-channel contraction dim up to a sublane multiple (zero-padded)
    c_in_p = max(8, ((c_in + 7) // 8) * 8)
    if c_in_p != c_in:
        x_flat = jnp.pad(x_flat, ((0, 0), (0, c_in_p - c_in), (0, 0)))
        w_in = jnp.pad(w_in, ((0, 0), (0, c_in_p - c_in)))

    shift = _build_shift_matrices(h, w)                        # resident in VMEM across grid
    w1_s = _stack_taps(params["w1"])                           # (depth, 9*hidden, hidden)
    w2_s = _stack_taps(params["w2"])
    b_in = params["b_in"].reshape(hidden, 1)
    b1 = params["b1"].reshape(depth, hidden, 1)
    b2 = params["b2"].reshape(depth, hidden, 1)
    alpha = params["alpha"].reshape(depth, hidden, 1)
    w_out = params["w_out"]
    b_out = params["b_out"].reshape(c_out, 1)

    def kernel(x_ref, s_ref, w_in_ref, b_in_ref, w1_ref, b1_ref, w2_ref, b2_ref,
               alpha_ref, w_out_ref, b_out_ref, y_ref):
        x = x_ref[0]                                                         # (c_in_p, hw)
        out = jnp.dot(w_in_ref[...], x, preferred_element_type=jnp.float32) + b_in_ref[...]

        def conv3x3(act, w_stacked, bias):
            # all 9 tap channel-mixes fused into one stacked matmul, then 9 lane-dense
            # shift matmuls accumulate the spatial taps (zero padding baked into S).
            t_all = jnp.dot(w_stacked, act, preferred_element_type=jnp.float32)  # (9*hid, hw)
            acc = jnp.zeros((hidden, hw), jnp.float32)
            for tap in range(9):
                acc = acc + jnp.dot(t_all[tap * hidden:(tap + 1) * hidden, :], s_ref[tap],
                                    preferred_element_type=jnp.float32)
            return acc + bias

        for d in range(depth):                                  # static, unrolled
            t = jnp.maximum(conv3x3(out, w1_ref[d], b1_ref[d]), 0.0)
            t = jnp.maximum(conv3x3(t, w2_ref[d], b2_ref[d]), 0.0)
            out = out + alpha_ref[d] * t                        # ReZero

        y_ref[0] = (jnp.dot(w_out_ref[...], out, preferred_element_type=jnp.float32)
                    + b_out_ref[...])

    def full(a):
        nd = a.ndim
        return pl.BlockSpec(a.shape, lambda i: (0,) * nd)

    flops = n * (2 * hidden * c_in_p * hw
                 + 2 * depth * (2 * 9 * hidden * hidden * hw + 9 * 2 * hidden * hw * hw)
                 + 2 * c_out * hidden * hw)
    bytes_accessed = 4 * (x_flat.size + shift.size + w_in.size + b_in.size + w1_s.size
                          + b1.size + w2_s.size + b2.size + alpha.size + w_out.size
                          + b_out.size + n * c_out * hw)

    y_flat = pl.pallas_call(
        kernel,
        out_shape=jax.ShapeDtypeStruct((n, c_out, hw), jnp.float32),
        grid_spec=pltpu.PrefetchScalarGridSpec(
            num_scalar_prefetch=0,
            grid=(n,),                                          # one image per step (>= 2 steps)
            in_specs=[
                pl.BlockSpec((1, c_in_p, hw), lambda i: (i, 0, 0)),
                full(shift), full(w_in), full(b_in),
                full(w1_s), full(b1), full(w2_s), full(b2), full(alpha),
                full(w_out), full(b_out),
            ],
            out_specs=pl.BlockSpec((1, c_out, hw), lambda i: (i, 0, 0)),
        ),
        compiler_params=pltpu.CompilerParams(
            dimension_semantics=("parallel",),
            vmem_limit_bytes=32 * 1024 * 1024),
        cost_estimate=pl.CostEstimate(flops=flops, transcendentals=0,
                                      bytes_accessed=bytes_accessed),
    )(x_flat, shift, w_in, b_in, w1_s, b1, w2_s, b2, alpha, w_out, b_out)

    return y_flat.reshape(n, c_out, h, w)


def _reference_forward(x, params):
    """Plain-JAX/XLA reference with true conv semantics (independent of the kernel)."""
    def conv1x1(x, w, b):
        return jnp.einsum('oc,nchw->nohw', w, x) + b[None, :, None, None]

    def conv3x3(x, w, b):
        y = jax.lax.conv_general_dilated(x, w, window_strides=(1, 1),
                                         padding=((1, 1), (1, 1)),
                                         dimension_numbers=('NCHW', 'OIHW', 'NCHW'))
        return y + b[None, :, None, None]

    out = conv1x1(x, params["w_in"], params["b_in"])
    depth = params["w1"].shape[0]
    for d in range(depth):
        t = jax.nn.relu(conv3x3(out, params["w1"][d], params["b1"][d]))
        t = jax.nn.relu(conv3x3(t, params["w2"][d], params["b2"][d]))
        out = out + params["alpha"][d][None, :, None, None] * t
    return conv1x1(out, params["w_out"], params["b_out"])


if __name__ == "__main__":
    N, C_IN, H, W = 2, 4, 16, 16
    HIDDEN, C_OUT, DEPTH = 32, 8, 3

    key = jax.random.PRNGKey(0)
    kx, kp = jax.random.split(key)
    x = jax.random.normal(kx, (N, C_IN, H, W), jnp.float32)
    params = init_params(kp, C_IN, HIDDEN, C_OUT, DEPTH)

    y = residual_projection_forward(x, params)
    jax.block_until_ready(y)

    y_ref = _reference_forward(x, params)
    assert y.shape == (N, C_OUT, H, W)
    assert jnp.allclose(y, y_ref, atol=2e-2, rtol=2e-2), \
        f"mismatch: max abs diff {float(jnp.max(jnp.abs(y - y_ref)))}"

    print("KERNEL_OK")
</pallas_src>

<mosaic_0001>
module attributes {stable_mosaic.version = 11 : i64} {
  func.func @kernel(%arg0: i32, %arg1: memref<1x8x256xf32, #tpu.memory_space<vmem>>, %arg2: memref<9x256x256xf32, #tpu.memory_space<vmem>>, %arg3: memref<32x8xf32, #tpu.memory_space<vmem>>, %arg4: memref<32x1xf32, #tpu.memory_space<vmem>>, %arg5: memref<3x288x32xf32, #tpu.memory_space<vmem>>, %arg6: memref<3x32x1xf32, #tpu.memory_space<vmem>>, %arg7: memref<3x288x32xf32, #tpu.memory_space<vmem>>, %arg8: memref<3x32x1xf32, #tpu.memory_space<vmem>>, %arg9: memref<3x32x1xf32, #tpu.memory_space<vmem>>, %arg10: memref<8x32xf32, #tpu.memory_space<vmem>>, %arg11: memref<8x1xf32, #tpu.memory_space<vmem>>, %arg12: memref<1x8x256xf32, #tpu.memory_space<vmem>>) attributes {dimension_semantics = [#tpu.dimension_semantics<parallel>], iteration_bounds = array<i64: 2>, scalar_prefetch = 0 : i64, scratch_operands = 0 : i64, tpu.core_type = #tpu.core_type<tc>, window_params = [{transform_indices = @transform_0, window_bounds = array<i64: 1, 8, 256>}, {pipeline_mode = #tpu.pipeline_mode<synchronous>, transform_indices = @transform_1, window_bounds = array<i64: 9, 256, 256>}, {pipeline_mode = #tpu.pipeline_mode<synchronous>, transform_indices = @transform_2, window_bounds = array<i64: 32, 8>}, {pipeline_mode = #tpu.pipeline_mode<synchronous>, transform_indices = @transform_3, window_bounds = array<i64: 32, 1>}, {pipeline_mode = #tpu.pipeline_mode<synchronous>, transform_indices = @transform_4, window_bounds = array<i64: 3, 288, 32>}, {pipeline_mode = #tpu.pipeline_mode<synchronous>, transform_indices = @transform_5, window_bounds = array<i64: 3, 32, 1>}, {pipeline_mode = #tpu.pipeline_mode<synchronous>, transform_indices = @transform_6, window_bounds = array<i64: 3, 288, 32>}, {pipeline_mode = #tpu.pipeline_mode<synchronous>, transform_indices = @transform_7, window_bounds = array<i64: 3, 32, 1>}, {pipeline_mode = #tpu.pipeline_mode<synchronous>, transform_indices = @transform_8, window_bounds = array<i64: 3, 32, 1>}, {pipeline_mode = #tpu.pipeline_mode<synchronous>, transform_indices = @transform_9, window_bounds = array<i64: 8, 32>}, {pipeline_mode = #tpu.pipeline_mode<synchronous>, transform_indices = @transform_10, window_bounds = array<i64: 8, 1>}, {transform_indices = @transform_11, window_bounds = array<i64: 1, 8, 256>}]} {
    %c0 = arith.constant 0 : index
    %c0_0 = arith.constant 0 : index
    %c0_1 = arith.constant 0 : index
    %0 = vector.load %arg1[%c0, %c0_0, %c0_1] : memref<1x8x256xf32, #tpu.memory_space<vmem>>, vector<1x8x256xf32>
    %1 = vector.shape_cast %0 : vector<1x8x256xf32> to vector<8x256xf32>
    %c0_2 = arith.constant 0 : index
    %c0_3 = arith.constant 0 : index
    %2 = vector.load %arg3[%c0_2, %c0_3] : memref<32x8xf32, #tpu.memory_space<vmem>>, vector<32x8xf32>
    %cst = arith.constant dense<0.000000e+00> : vector<32x256xf32>
    %3 = tpu.matmul %2, %1, %cst {dimension_numbers = #tpu.dot_dimension_numbers<[1], [0], [0], [1], [0, 0, 1, 1], [], []>} : vector<32x8xf32>, vector<8x256xf32>, vector<32x256xf32> -> vector<32x256xf32>
    %c0_4 = arith.constant 0 : index
    %c0_5 = arith.constant 0 : index
    %4 = vector.load %arg4[%c0_4, %c0_5] : memref<32x1xf32, #tpu.memory_space<vmem>>, vector<32x1xf32>
    %5 = vector.broadcast %4 : vector<32x1xf32> to vector<32x256xf32>
    %6 = arith.addf %3, %5 : vector<32x256xf32>
    %c0_6 = arith.constant 0 : index
    %c0_7 = arith.constant 0 : index
    %c0_8 = arith.constant 0 : index
    %7 = vector.load %arg5[%c0_6, %c0_7, %c0_8] : memref<3x288x32xf32, #tpu.memory_space<vmem>>, vector<1x288x32xf32>
    %8 = vector.shape_cast %7 : vector<1x288x32xf32> to vector<288x32xf32>
    %c0_9 = arith.constant 0 : index
    %c0_10 = arith.constant 0 : index
    %c0_11 = arith.constant 0 : index
    %9 = vector.load %arg6[%c0_9, %c0_10, %c0_11] : memref<3x32x1xf32, #tpu.memory_space<vmem>>, vector<1x32x1xf32>
    %10 = vector.shape_cast %9 : vector<1x32x1xf32> to vector<32x1xf32>
    %cst_12 = arith.constant dense<0.000000e+00> : vector<288x256xf32>
    %11 = tpu.matmul %8, %6, %cst_12 {dimension_numbers = #tpu.dot_dimension_numbers<[1], [0], [0], [1], [0, 0, 1, 1], [], []>} : vector<288x32xf32>, vector<32x256xf32>, vector<288x256xf32> -> vector<288x256xf32>
    %cst_13 = arith.constant 0.000000e+00 : f32
    %12 = vector.broadcast %cst_13 : f32 to vector<32x256xf32>
    %13 = vector.extract_strided_slice %11 {offsets = [0, 0], sizes = [32, 256], strides = [1, 1]} : vector<288x256xf32> to vector<32x256xf32>
    %c0_14 = arith.constant 0 : index
    %c0_15 = arith.constant 0 : index
    %c0_16 = arith.constant 0 : index
    %14 = vector.load %arg2[%c0_14, %c0_15, %c0_16] : memref<9x256x256xf32, #tpu.memory_space<vmem>>, vector<1x256x256xf32>
    %15 = vector.shape_cast %14 : vector<1x256x256xf32> to vector<256x256xf32>
    %cst_17 = arith.constant dense<0.000000e+00> : vector<32x256xf32>
    %16 = tpu.matmul %13, %15, %cst_17 {dimension_numbers = #tpu.dot_dimension_numbers<[1], [0], [0], [1], [0, 0, 1, 1], [], []>} : vector<32x256xf32>, vector<256x256xf32>, vector<32x256xf32> -> vector<32x256xf32>
    %17 = arith.addf %12, %16 : vector<32x256xf32>
    %18 = vector.extract_strided_slice %11 {offsets = [32, 0], sizes = [32, 256], strides = [1, 1]} : vector<288x256xf32> to vector<32x256xf32>
    %c1 = arith.constant 1 : index
    %c0_18 = arith.constant 0 : index
    %c0_19 = arith.constant 0 : index
    %19 = vector.load %arg2[%c1, %c0_18, %c0_19] : memref<9x256x256xf32, #tpu.memory_space<vmem>>, vector<1x256x256xf32>
    %20 = vector.shape_cast %19 : vector<1x256x256xf32> to vector<256x256xf32>
    %cst_20 = arith.constant dense<0.000000e+00> : vector<32x256xf32>
    %21 = tpu.matmul %18, %20, %cst_20 {dimension_numbers = #tpu.dot_dimension_numbers<[1], [0], [0], [1], [0, 0, 1, 1], [], []>} : vector<32x256xf32>, vector<256x256xf32>, vector<32x256xf32> -> vector<32x256xf32>
    %22 = arith.addf %17, %21 : vector<32x256xf32>
    %23 = vector.extract_strided_slice %11 {offsets = [64, 0], sizes = [32, 256], strides = [1, 1]} : vector<288x256xf32> to vector<32x256xf32>
    %c2 = arith.constant 2 : index
    %c0_21 = arith.constant 0 : index
    %c0_22 = arith.constant 0 : index
    %24 = vector.load %arg2[%c2, %c0_21, %c0_22] : memref<9x256x256xf32, #tpu.memory_space<vmem>>, vector<1x256x256xf32>
    %25 = vector.shape_cast %24 : vector<1x256x256xf32> to vector<256x256xf32>
    %cst_23 = arith.constant dense<0.000000e+00> : vector<32x256xf32>
    %26 = tpu.matmul %23, %25, %cst_23 {dimension_numbers = #tpu.dot_dimension_numbers<[1], [0], [0], [1], [0, 0, 1, 1], [], []>} : vector<32x256xf32>, vector<256x256xf32>, vector<32x256xf32> -> vector<32x256xf32>
    %27 = arith.addf %22, %26 : vector<32x256xf32>
    %28 = vector.extract_strided_slice %11 {offsets = [96, 0], sizes = [32, 256], strides = [1, 1]} : vector<288x256xf32> to vector<32x256xf32>
    %c3 = arith.constant 3 : index
    %c0_24 = arith.constant 0 : index
    %c0_25 = arith.constant 0 : index
    %29 = vector.load %arg2[%c3, %c0_24, %c0_25] : memref<9x256x256xf32, #tpu.memory_space<vmem>>, vector<1x256x256xf32>
    %30 = vector.shape_cast %29 : vector<1x256x256xf32> to vector<256x256xf32>
    %cst_26 = arith.constant dense<0.000000e+00> : vector<32x256xf32>
    %31 = tpu.matmul %28, %30, %cst_26 {dimension_numbers = #tpu.dot_dimension_numbers<[1], [0], [0], [1], [0, 0, 1, 1], [], []>} : vector<32x256xf32>, vector<256x256xf32>, vector<32x256xf32> -> vector<32x256xf32>
    %32 = arith.addf %27, %31 : vector<32x256xf32>
    %33 = vector.extract_strided_slice %11 {offsets = [128, 0], sizes = [32, 256], strides = [1, 1]} : vector<288x256xf32> to vector<32x256xf32>
    %c4 = arith.constant 4 : index
    %c0_27 = arith.constant 0 : index
    %c0_28 = arith.constant 0 : index
    %34 = vector.load %arg2[%c4, %c0_27, %c0_28] : memref<9x256x256xf32, #tpu.memory_space<vmem>>, vector<1x256x256xf32>
    %35 = vector.shape_cast %34 : vector<1x256x256xf32> to vector<256x256xf32>
    %cst_29 = arith.constant dense<0.000000e+00> : vector<32x256xf32>
    %36 = tpu.matmul %33, %35, %cst_29 {dimension_numbers = #tpu.dot_dimension_numbers<[1], [0], [0], [1], [0, 0, 1, 1], [], []>} : vector<32x256xf32>, vector<256x256xf32>, vector<32x256xf32> -> vector<32x256xf32>
    %37 = arith.addf %32, %36 : vector<32x256xf32>
    %38 = vector.extract_strided_slice %11 {offsets = [160, 0], sizes = [32, 256], strides = [1, 1]} : vector<288x256xf32> to vector<32x256xf32>
    %c5 = arith.constant 5 : index
    %c0_30 = arith.constant 0 : index
    %c0_31 = arith.constant 0 : index
    %39 = vector.load %arg2[%c5, %c0_30, %c0_31] : memref<9x256x256xf32, #tpu.memory_space<vmem>>, vector<1x256x256xf32>
    %40 = vector.shape_cast %39 : vector<1x256x256xf32> to vector<256x256xf32>
    %cst_32 = arith.constant dense<0.000000e+00> : vector<32x256xf32>
    %41 = tpu.matmul %38, %40, %cst_32 {dimension_numbers = #tpu.dot_dimension_numbers<[1], [0], [0], [1], [0, 0, 1, 1], [], []>} : vector<32x256xf32>, vector<256x256xf32>, vector<32x256xf32> -> vector<32x256xf32>
    %42 = arith.addf %37, %41 : vector<32x256xf32>
    %43 = vector.extract_strided_slice %11 {offsets = [192, 0], sizes = [32, 256], strides = [1, 1]} : vector<288x256xf32> to vector<32x256xf32>
    %c6 = arith.constant 6 : index
    %c0_33 = arith.constant 0 : index
    %c0_34 = arith.constant 0 : index
    %44 = vector.load %arg2[%c6, %c0_33, %c0_34] : memref<9x256x256xf32, #tpu.memory_space<vmem>>, vector<1x256x256xf32>
    %45 = vector.shape_cast %44 : vector<1x256x256xf32> to vector<256x256xf32>
    %cst_35 = arith.constant dense<0.000000e+00> : vector<32x256xf32>
    %46 = tpu.matmul %43, %45, %cst_35 {dimension_numbers = #tpu.dot_dimension_numbers<[1], [0], [0], [1], [0, 0, 1, 1], [], []>} : vector<32x256xf32>, vector<256x256xf32>, vector<32x256xf32> -> vector<32x256xf32>
    %47 = arith.addf %42, %46 : vector<32x256xf32>
    %48 = vector.extract_strided_slice %11 {offsets = [224, 0], sizes = [32, 256], strides = [1, 1]} : vector<288x256xf32> to vector<32x256xf32>
    %c7 = arith.constant 7 : index
    %c0_36 = arith.constant 0 : index
    %c0_37 = arith.constant 0 : index
    %49 = vector.load %arg2[%c7, %c0_36, %c0_37] : memref<9x256x256xf32, #tpu.memory_space<vmem>>, vector<1x256x256xf32>
    %50 = vector.shape_cast %49 : vector<1x256x256xf32> to vector<256x256xf32>
    %cst_38 = arith.constant dense<0.000000e+00> : vector<32x256xf32>
    %51 = tpu.matmul %48, %50, %cst_38 {dimension_numbers = #tpu.dot_dimension_numbers<[1], [0], [0], [1], [0, 0, 1, 1], [], []>} : vector<32x256xf32>, vector<256x256xf32>, vector<32x256xf32> -> vector<32x256xf32>
    %52 = arith.addf %47, %51 : vector<32x256xf32>
    %53 = vector.extract_strided_slice %11 {offsets = [256, 0], sizes = [32, 256], strides = [1, 1]} : vector<288x256xf32> to vector<32x256xf32>
    %c8 = arith.constant 8 : index
    %c0_39 = arith.constant 0 : index
    %c0_40 = arith.constant 0 : index
    %54 = vector.load %arg2[%c8, %c0_39, %c0_40] : memref<9x256x256xf32, #tpu.memory_space<vmem>>, vector<1x256x256xf32>
    %55 = vector.shape_cast %54 : vector<1x256x256xf32> to vector<256x256xf32>
    %cst_41 = arith.constant dense<0.000000e+00> : vector<32x256xf32>
    %56 = tpu.matmul %53, %55, %cst_41 {dimension_numbers = #tpu.dot_dimension_numbers<[1], [0], [0], [1], [0, 0, 1, 1], [], []>} : vector<32x256xf32>, vector<256x256xf32>, vector<32x256xf32> -> vector<32x256xf32>
    %57 = arith.addf %52, %56 : vector<32x256xf32>
    %58 = vector.broadcast %10 : vector<32x1xf32> to vector<32x256xf32>
    %59 = arith.addf %57, %58 : vector<32x256xf32>
    %cst_42 = arith.constant 0.000000e+00 : f32
    %60 = vector.broadcast %cst_42 : f32 to vector<32x256xf32>
    %61 = arith.maximumf %59, %60 : vector<32x256xf32>
    %c0_43 = arith.constant 0 : index
    %c0_44 = arith.constant 0 : index
    %c0_45 = arith.constant 0 : index
    %62 = vector.load %arg7[%c0_43, %c0_44, %c0_45] : memref<3x288x32xf32, #tpu.memory_space<vmem>>, vector<1x288x32xf32>
    %63 = vector.shape_cast %62 : vector<1x288x32xf32> to vector<288x32xf32>
    %c0_46 = arith.constant 0 : index
    %c0_47 = arith.constant 0 : index
    %c0_48 = arith.constant 0 : index
    %64 = vector.load %arg8[%c0_46, %c0_47, %c0_48] : memref<3x32x1xf32, #tpu.memory_space<vmem>>, vector<1x32x1xf32>
    %65 = vector.shape_cast %64 : vector<1x32x1xf32> to vector<32x1xf32>
    %cst_49 = arith.constant dense<0.000000e+00> : vector<288x256xf32>
    %66 = tpu.matmul %63, %61, %cst_49 {dimension_numbers = #tpu.dot_dimension_numbers<[1], [0], [0], [1], [0, 0, 1, 1], [], []>} : vector<288x32xf32>, vector<32x256xf32>, vector<288x256xf32> -> vector<288x256xf32>
    %cst_50 = arith.constant 0.000000e+00 : f32
    %67 = vector.broadcast %cst_50 : f32 to vector<32x256xf32>
    %68 = vector.extract_strided_slice %66 {offsets = [0, 0], sizes = [32, 256], strides = [1, 1]} : vector<288x256xf32> to vector<32x256xf32>
    %c0_51 = arith.constant 0 : index
    %c0_52 = arith.constant 0 : index
    %c0_53 = arith.constant 0 : index
    %69 = vector.load %arg2[%c0_51, %c0_52, %c0_53] : memref<9x256x256xf32, #tpu.memory_space<vmem>>, vector<1x256x256xf32>
    %70 = vector.shape_cast %69 : vector<1x256x256xf32> to vector<256x256xf32>
    %cst_54 = arith.constant dense<0.000000e+00> : vector<32x256xf32>
    %71 = tpu.matmul %68, %70, %cst_54 {dimension_numbers = #tpu.dot_dimension_numbers<[1], [0], [0], [1], [0, 0, 1, 1], [], []>} : vector<32x256xf32>, vector<256x256xf32>, vector<32x256xf32> -> vector<32x256xf32>
    %72 = arith.addf %67, %71 : vector<32x256xf32>
    %73 = vector.extract_strided_slice %66 {offsets = [32, 0], sizes = [32, 256], strides = [1, 1]} : vector<288x256xf32> to vector<32x256xf32>
    %c1_55 = arith.constant 1 : index
    %c0_56 = arith.constant 0 : index
    %c0_57 = arith.constant 0 : index
    %74 = vector.load %arg2[%c1_55, %c0_56, %c0_57] : memref<9x256x256xf32, #tpu.memory_space<vmem>>, vector<1x256x256xf32>
    %75 = vector.shape_cast %74 : vector<1x256x256xf32> to vector<256x256xf32>
    %cst_58 = arith.constant dense<0.000000e+00> : vector<32x256xf32>
    %76 = tpu.matmul %73, %75, %cst_58 {dimension_numbers = #tpu.dot_dimension_numbers<[1], [0], [0], [1], [0, 0, 1, 1], [], []>} : vector<32x256xf32>, vector<256x256xf32>, vector<32x256xf32> -> vector<32x256xf32>
    %77 = arith.addf %72, %76 : vector<32x256xf32>
    %78 = vector.extract_strided_slice %66 {offsets = [64, 0], sizes = [32, 256], strides = [1, 1]} : vector<288x256xf32> to vector<32x256xf32>
    %c2_59 = arith.constant 2 : index
    %c0_60 = arith.constant 0 : index
    %c0_61 = arith.constant 0 : index
    %79 = vector.load %arg2[%c2_59, %c0_60, %c0_61] : memref<9x256x256xf32, #tpu.memory_space<vmem>>, vector<1x256x256xf32>
    %80 = vector.shape_cast %79 : vector<1x256x256xf32> to vector<256x256xf32>
    %cst_62 = arith.constant dense<0.000000e+00> : vector<32x256xf32>
    %81 = tpu.matmul %78, %80, %cst_62 {dimension_numbers = #tpu.dot_dimension_numbers<[1], [0], [0], [1], [0, 0, 1, 1], [], []>} : vector<32x256xf32>, vector<256x256xf32>, vector<32x256xf32> -> vector<32x256xf32>
    %82 = arith.addf %77, %81 : vector<32x256xf32>
    %83 = vector.extract_strided_slice %66 {offsets = [96, 0], sizes = [32, 256], strides = [1, 1]} : vector<288x256xf32> to vector<32x256xf32>
    %c3_63 = arith.constant 3 : index
    %c0_64 = arith.constant 0 : index
    %c0_65 = arith.constant 0 : index
    %84 = vector.load %arg2[%c3_63, %c0_64, %c0_65] : memref<9x256x256xf32, #tpu.memory_space<vmem>>, vector<1x256x256xf32>
    %85 = vector.shape_cast %84 : vector<1x256x256xf32> to vector<256x256xf32>
    %cst_66 = arith.constant dense<0.000000e+00> : vector<32x256xf32>
    %86 = tpu.matmul %83, %85, %cst_66 {dimension_numbers = #tpu.dot_dimension_numbers<[1], [0], [0], [1], [0, 0, 1, 1], [], []>} : vector<32x256xf32>, vector<256x256xf32>, vector<32x256xf32> -> vector<32x256xf32>
    %87 = arith.addf %82, %86 : vector<32x256xf32>
    %88 = vector.extract_strided_slice %66 {offsets = [128, 0], sizes = [32, 256], strides = [1, 1]} : vector<288x256xf32> to vector<32x256xf32>
    %c4_67 = arith.constant 4 : index
    %c0_68 = arith.constant 0 : index
    %c0_69 = arith.constant 0 : index
    %89 = vector.load %arg2[%c4_67, %c0_68, %c0_69] : memref<9x256x256xf32, #tpu.memory_space<vmem>>, vector<1x256x256xf32>
    %90 = vector.shape_cast %89 : vector<1x256x256xf32> to vector<256x256xf32>
    %cst_70 = arith.constant dense<0.000000e+00> : vector<32x256xf32>
    %91 = tpu.matmul %88, %90, %cst_70 {dimension_numbers = #tpu.dot_dimension_numbers<[1], [0], [0], [1], [0, 0, 1, 1], [], []>} : vector<32x256xf32>, vector<256x256xf32>, vector<32x256xf32> -> vector<32x256xf32>
    %92 = arith.addf %87, %91 : vector<32x256xf32>
    %93 = vector.extract_strided_slice %66 {offsets = [160, 0], sizes = [32, 256], strides = [1, 1]} : vector<288x256xf32> to vector<32x256xf32>
    %c5_71 = arith.constant 5 : index
    %c0_72 = arith.constant 0 : index
    %c0_73 = arith.constant 0 : index
    %94 = vector.load %arg2[%c5_71, %c0_72, %c0_73] : memref<9x256x256xf32, #tpu.memory_space<vmem>>, vector<1x256x256xf32>
    %95 = vector.shape_cast %94 : vector<1x256x256xf32> to vector<256x256xf32>
    %cst_74 = arith.constant dense<0.000000e+00> : vector<32x256xf32>
    %96 = tpu.matmul %93, %95, %cst_74 {dimension_numbers = #tpu.dot_dimension_numbers<[1], [0], [0], [1], [0, 0, 1, 1], [], []>} : vector<32x256xf32>, vector<256x256xf32>, vector<32x256xf32> -> vector<32x256xf32>
    %97 = arith.addf %92, %96 : vector<32x256xf32>
    %98 = vector.extract_strided_slice %66 {offsets = [192, 0], sizes = [32, 256], strides = [1, 1]} : vector<288x256xf32> to vector<32x256xf32>
    %c6_75 = arith.constant 6 : index
    %c0_76 = arith.constant 0 : index
    %c0_77 = arith.constant 0 : index
    %99 = vector.load %arg2[%c6_75, %c0_76, %c0_77] : memref<9x256x256xf32, #tpu.memory_space<vmem>>, vector<1x256x256xf32>
    %100 = vector.shape_cast %99 : vector<1x256x256xf32> to vector<256x256xf32>
    %cst_78 = arith.constant dense<0.000000e+00> : vector<32x256xf32>
    %101 = tpu.matmul %98, %100, %cst_78 {dimension_numbers = #tpu.dot_dimension_numbers<[1], [0], [0], [1], [0, 0, 1, 1], [], []>} : vector<32x256xf32>, vector<256x256xf32>, vector<32x256xf32> -> vector<32x256xf32>
    %102 = arith.addf %97, %101 : vector<32x256xf32>
    %103 = vector.extract_strided_slice %66 {offsets = [224, 0], sizes = [32, 256], strides = [1, 1]} : vector<288x256xf32> to vector<32x256xf32>
    %c7_79 = arith.constant 7 : index
    %c0_80 = arith.constant 0 : index
    %c0_81 = arith.constant 0 : index
    %104 = vector.load %arg2[%c7_79, %c0_80, %c0_81] : memref<9x256x256xf32, #tpu.memory_space<vmem>>, vector<1x256x256xf32>
    %105 = vector.shape_cast %104 : vector<1x256x256xf32> to vector<256x256xf32>
    %cst_82 = arith.constant dense<0.000000e+00> : vector<32x256xf32>
    %106 = tpu.matmul %103, %105, %cst_82 {dimension_numbers = #tpu.dot_dimension_numbers<[1], [0], [0], [1], [0, 0, 1, 1], [], []>} : vector<32x256xf32>, vector<256x256xf32>, vector<32x256xf32> -> vector<32x256xf32>
    %107 = arith.addf %102, %106 : vector<32x256xf32>
    %108 = vector.extract_strided_slice %66 {offsets = [256, 0], sizes = [32, 256], strides = [1, 1]} : vector<288x256xf32> to vector<32x256xf32>
    %c8_83 = arith.constant 8 : index
    %c0_84 = arith.constant 0 : index
    %c0_85 = arith.constant 0 : index
    %109 = vector.load %arg2[%c8_83, %c0_84, %c0_85] : memref<9x256x256xf32, #tpu.memory_space<vmem>>, vector<1x256x256xf32>
    %110 = vector.shape_cast %109 : vector<1x256x256xf32> to vector<256x256xf32>
    %cst_86 = arith.constant dense<0.000000e+00> : vector<32x256xf32>
    %111 = tpu.matmul %108, %110, %cst_86 {dimension_numbers = #tpu.dot_dimension_numbers<[1], [0], [0], [1], [0, 0, 1, 1], [], []>} : vector<32x256xf32>, vector<256x256xf32>, vector<32x256xf32> -> vector<32x256xf32>
    %112 = arith.addf %107, %111 : vector<32x256xf32>
    %113 = vector.broadcast %65 : vector<32x1xf32> to vector<32x256xf32>
    %114 = arith.addf %112, %113 : vector<32x256xf32>
    %cst_87 = arith.constant 0.000000e+00 : f32
    %115 = vector.broadcast %cst_87 : f32 to vector<32x256xf32>
    %116 = arith.maximumf %114, %115 : vector<32x256xf32>
    %c0_88 = arith.constant 0 : index
    %c0_89 = arith.constant 0 : index
    %c0_90 = arith.constant 0 : index
    %117 = vector.load %arg9[%c0_88, %c0_89, %c0_90] : memref<3x32x1xf32, #tpu.memory_space<vmem>>, vector<1x32x1xf32>
    %118 = vector.shape_cast %117 : vector<1x32x1xf32> to vector<32x1xf32>
    %119 = vector.broadcast %118 : vector<32x1xf32> to vector<32x256xf32>
    %120 = arith.mulf %119, %116 : vector<32x256xf32>
    %121 = arith.addf %6, %120 : vector<32x256xf32>
    %c1_91 = arith.constant 1 : index
    %c0_92 = arith.constant 0 : index
    %c0_93 = arith.constant 0 : index
    %122 = vector.load %arg5[%c1_91, %c0_92, %c0_93] : memref<3x288x32xf32, #tpu.memory_space<vmem>>, vector<1x288x32xf32>
    %123 = vector.shape_cast %122 : vector<1x288x32xf32> to vector<288x32xf32>
    %c1_94 = arith.constant 1 : index
    %c0_95 = arith.constant 0 : index
    %c0_96 = arith.constant 0 : index
    %124 = vector.load %arg6[%c1_94, %c0_95, %c0_96] : memref<3x32x1xf32, #tpu.memory_space<vmem>>, vector<1x32x1xf32>
    %125 = vector.shape_cast %124 : vector<1x32x1xf32> to vector<32x1xf32>
    %cst_97 = arith.constant dense<0.000000e+00> : vector<288x256xf32>
    %126 = tpu.matmul %123, %121, %cst_97 {dimension_numbers = #tpu.dot_dimension_numbers<[1], [0], [0], [1], [0, 0, 1, 1], [], []>} : vector<288x32xf32>, vector<32x256xf32>, vector<288x256xf32> -> vector<288x256xf32>
    %cst_98 = arith.constant 0.000000e+00 : f32
    %127 = vector.broadcast %cst_98 : f32 to vector<32x256xf32>
    %128 = vector.extract_strided_slice %126 {offsets = [0, 0], sizes = [32, 256], strides = [1, 1]} : vector<288x256xf32> to vector<32x256xf32>
    %c0_99 = arith.constant 0 : index
    %c0_100 = arith.constant 0 : index
    %c0_101 = arith.constant 0 : index
    %129 = vector.load %arg2[%c0_99, %c0_100, %c0_101] : memref<9x256x256xf32, #tpu.memory_space<vmem>>, vector<1x256x256xf32>
    %130 = vector.shape_cast %129 : vector<1x256x256xf32> to vector<256x256xf32>
    %cst_102 = arith.constant dense<0.000000e+00> : vector<32x256xf32>
    %131 = tpu.matmul %128, %130, %cst_102 {dimension_numbers = #tpu.dot_dimension_numbers<[1], [0], [0], [1], [0, 0, 1, 1], [], []>} : vector<32x256xf32>, vector<256x256xf32>, vector<32x256xf32> -> vector<32x256xf32>
    %132 = arith.addf %127, %131 : vector<32x256xf32>
    %133 = vector.extract_strided_slice %126 {offsets = [32, 0], sizes = [32, 256], strides = [1, 1]} : vector<288x256xf32> to vector<32x256xf32>
    %c1_103 = arith.constant 1 : index
    %c0_104 = arith.constant 0 : index
    %c0_105 = arith.constant 0 : index
    %134 = vector.load %arg2[%c1_103, %c0_104, %c0_105] : memref<9x256x256xf32, #tpu.memory_space<vmem>>, vector<1x256x256xf32>
    %135 = vector.shape_cast %134 : vector<1x256x256xf32> to vector<256x256xf32>
    %cst_106 = arith.constant dense<0.000000e+00> : vector<32x256xf32>
    %136 = tpu.matmul %133, %135, %cst_106 {dimension_numbers = #tpu.dot_dimension_numbers<[1], [0], [0], [1], [0, 0, 1, 1], [], []>} : vector<32x256xf32>, vector<256x256xf32>, vector<32x256xf32> -> vector<32x256xf32>
    %137 = arith.addf %132, %136 : vector<32x256xf32>
    %138 = vector.extract_strided_slice %126 {offsets = [64, 0], sizes = [32, 256], strides = [1, 1]} : vector<288x256xf32> to vector<32x256xf32>
    %c2_107 = arith.constant 2 : index
    %c0_108 = arith.constant 0 : index
    %c0_109 = arith.constant 0 : index
    %139 = vector.load %arg2[%c2_107, %c0_108, %c0_109] : memref<9x256x256xf32, #tpu.memory_space<vmem>>, vector<1x256x256xf32>
    %140 = vector.shape_cast %139 : vector<1x256x256xf32> to vector<256x256xf32>
    %cst_110 = arith.constant dense<0.000000e+00> : vector<32x256xf32>
    %141 = tpu.matmul %138, %140, %cst_110 {dimension_numbers = #tpu.dot_dimension_numbers<[1], [0], [0], [1], [0, 0, 1, 1], [], []>} : vector<32x256xf32>, vector<256x256xf32>, vector<32x256xf32> -> vector<32x256xf32>
    %142 = arith.addf %137, %141 : vector<32x256xf32>
    %143 = vector.extract_strided_slice %126 {offsets = [96, 0], sizes = [32, 256], strides = [1, 1]} : vector<288x256xf32> to vector<32x256xf32>
    %c3_111 = arith.constant 3 : index
    %c0_112 = arith.constant 0 : index
    %c0_113 = arith.constant 0 : index
    %144 = vector.load %arg2[%c3_111, %c0_112, %c0_113] : memref<9x256x256xf32, #tpu.memory_space<vmem>>, vector<1x256x256xf32>
    %145 = vector.shape_cast %144 : vector<1x256x256xf32> to vector<256x256xf32>
    %cst_114 = arith.constant dense<0.000000e+00> : vector<32x256xf32>
    %146 = tpu.matmul %143, %145, %cst_114 {dimension_numbers = #tpu.dot_dimension_numbers<[1], [0], [0], [1], [0, 0, 1, 1], [], []>} : vector<32x256xf32>, vector<256x256xf32>, vector<32x256xf32> -> vector<32x256xf32>
    %147 = arith.addf %142, %146 : vector<32x256xf32>
    %148 = vector.extract_strided_slice %126 {offsets = [128, 0], sizes = [32, 256], strides = [1, 1]} : vector<288x256xf32> to vector<32x256xf32>
    %c4_115 = arith.constant 4 : index
    %c0_116 = arith.constant 0 : index
    %c0_117 = arith.constant 0 : index
    %149 = vector.load %arg2[%c4_115, %c0_116, %c0_117] : memref<9x256x256xf32, #tpu.memory_space<vmem>>, vector<1x256x256xf32>
    %150 = vector.shape_cast %149 : vector<1x256x256xf32> to vector<256x256xf32>
    %cst_118 = arith.constant dense<0.000000e+00> : vector<32x256xf32>
    %151 = tpu.matmul %148, %150, %cst_118 {dimension_numbers = #tpu.dot_dimension_numbers<[1], [0], [0], [1], [0, 0, 1, 1], [], []>} : vector<32x256xf32>, vector<256x256xf32>, vector<32x256xf32> -> vector<32x256xf32>
    %152 = arith.addf %147, %151 : vector<32x256xf32>
    %153 = vector.extract_strided_slice %126 {offsets = [160, 0], sizes = [32, 256], strides = [1, 1]} : vector<288x256xf32> to vector<32x256xf32>
    %c5_119 = arith.constant 5 : index
    %c0_120 = arith.constant 0 : index
    %c0_121 = arith.constant 0 : index
    %154 = vector.load %arg2[%c5_119, %c0_120, %c0_121] : memref<9x256x256xf32, #tpu.memory_space<vmem>>, vector<1x256x256xf32>
    %155 = vector.shape_cast %154 : vector<1x256x256xf32> to vector<256x256xf32>
    %cst_122 = arith.constant dense<0.000000e+00> : vector<32x256xf32>
    %156 = tpu.matmul %153, %155, %cst_122 {dimension_numbers = #tpu.dot_dimension_numbers<[1], [0], [0], [1], [0, 0, 1, 1], [], []>} : vector<32x256xf32>, vector<256x256xf32>, vector<32x256xf32> -> vector<32x256xf32>
    %157 = arith.addf %152, %156 : vector<32x256xf32>
    %158 = vector.extract_strided_slice %126 {offsets = [192, 0], sizes = [32, 256], strides = [1, 1]} : vector<288x256xf32> to vector<32x256xf32>
    %c6_123 = arith.constant 6 : index
    %c0_124 = arith.constant 0 : index
    %c0_125 = arith.constant 0 : index
    %159 = vector.load %arg2[%c6_123, %c0_124, %c0_125] : memref<9x256x256xf32, #tpu.memory_space<vmem>>, vector<1x256x256xf32>
    %160 = vector.shape_cast %159 : vector<1x256x256xf32> to vector<256x256xf32>
    %cst_126 = arith.constant dense<0.000000e+00> : vector<32x256xf32>
    %161 = tpu.matmul %158, %160, %cst_126 {dimension_numbers = #tpu.dot_dimension_numbers<[1], [0], [0], [1], [0, 0, 1, 1], [], []>} : vector<32x256xf32>, vector<256x256xf32>, vector<32x256xf32> -> vector<32x256xf32>
    %162 = arith.addf %157, %161 : vector<32x256xf32>
    %163 = vector.extract_strided_slice %126 {offsets = [224, 0], sizes = [32, 256], strides = [1, 1]} : vector<288x256xf32> to vector<32x256xf32>
    %c7_127 = arith.constant 7 : index
    %c0_128 = arith.constant 0 : index
    %c0_129 = arith.constant 0 : index
    %164 = vector.load %arg2[%c7_127, %c0_128, %c0_129] : memref<9x256x256xf32, #tpu.memory_space<vmem>>, vector<1x256x256xf32>
    %165 = vector.shape_cast %164 : vector<1x256x256xf32> to vector<256x256xf32>
    %cst_130 = arith.constant dense<0.000000e+00> : vector<32x256xf32>
    %166 = tpu.matmul %163, %165, %cst_130 {dimension_numbers = #tpu.dot_dimension_numbers<[1], [0], [0], [1], [0, 0, 1, 1], [], []>} : vector<32x256xf32>, vector<256x256xf32>, vector<32x256xf32> -> vector<32x256xf32>
    %167 = arith.addf %162, %166 : vector<32x256xf32>
    %168 = vector.extract_strided_slice %126 {offsets = [256, 0], sizes = [32, 256], strides = [1, 1]} : vector<288x256xf32> to vector<32x256xf32>
    %c8_131 = arith.constant 8 : index
    %c0_132 = arith.constant 0 : index
    %c0_133 = arith.constant 0 : index
    %169 = vector.load %arg2[%c8_131, %c0_132, %c0_133] : memref<9x256x256xf32, #tpu.memory_space<vmem>>, vector<1x256x256xf32>
    %170 = vector.shape_cast %169 : vector<1x256x256xf32> to vector<256x256xf32>
    %cst_134 = arith.constant dense<0.000000e+00> : vector<32x256xf32>
    %171 = tpu.matmul %168, %170, %cst_134 {dimension_numbers = #tpu.dot_dimension_numbers<[1], [0], [0], [1], [0, 0, 1, 1], [], []>} : vector<32x256xf32>, vector<256x256xf32>, vector<32x256xf32> -> vector<32x256xf32>
    %172 = arith.addf %167, %171 : vector<32x256xf32>
    %173 = vector.broadcast %125 : vector<32x1xf32> to vector<32x256xf32>
    %174 = arith.addf %172, %173 : vector<32x256xf32>
    %cst_135 = arith.constant 0.000000e+00 : f32
    %175 = vector.broadcast %cst_135 : f32 to vector<32x256xf32>
    %176 = arith.maximumf %174, %175 : vector<32x256xf32>
    %c1_136 = arith.constant 1 : index
    %c0_137 = arith.constant 0 : index
    %c0_138 = arith.constant 0 : index
    %177 = vector.load %arg7[%c1_136, %c0_137, %c0_138] : memref<3x288x32xf32, #tpu.memory_space<vmem>>, vector<1x288x32xf32>
    %178 = vector.shape_cast %177 : vector<1x288x32xf32> to vector<288x32xf32>
    %c1_139 = arith.constant 1 : index
    %c0_140 = arith.constant 0 : index
    %c0_141 = arith.constant 0 : index
    %179 = vector.load %arg8[%c1_139, %c0_140, %c0_141] : memref<3x32x1xf32, #tpu.memory_space<vmem>>, vector<1x32x1xf32>
    %180 = vector.shape_cast %179 : vector<1x32x1xf32> to vector<32x1xf32>
    %cst_142 = arith.constant dense<0.000000e+00> : vector<288x256xf32>
    %181 = tpu.matmul %178, %176, %cst_142 {dimension_numbers = #tpu.dot_dimension_numbers<[1], [0], [0], [1], [0, 0, 1, 1], [], []>} : vector<288x32xf32>, vector<32x256xf32>, vector<288x256xf32> -> vector<288x256xf32>
    %cst_143 = arith.constant 0.000000e+00 : f32
    %182 = vector.broadcast %cst_143 : f32 to vector<32x256xf32>
    %183 = vector.extract_strided_slice %181 {offsets = [0, 0], sizes = [32, 256], strides = [1, 1]} : vector<288x256xf32> to vector<32x256xf32>
    %c0_144 = arith.constant 0 : index
    %c0_145 = arith.constant 0 : index
    %c0_146 = arith.constant 0 : index
    %184 = vector.load %arg2[%c0_144, %c0_145, %c0_146] : memref<9x256x256xf32, #tpu.memory_space<vmem>>, vector<1x256x256xf32>
    %185 = vector.shape_cast %184 : vector<1x256x256xf32> to vector<256x256xf32>
    %cst_147 = arith.constant dense<0.000000e+00> : vector<32x256xf32>
    %186 = tpu.matmul %183, %185, %cst_147 {dimension_numbers = #tpu.dot_dimension_numbers<[1], [0], [0], [1], [0, 0, 1, 1], [], []>} : vector<32x256xf32>, vector<256x256xf32>, vector<32x256xf32> -> vector<32x256xf32>
    %187 = arith.addf %182, %186 : vector<32x256xf32>
    %188 = vector.extract_strided_slice %181 {offsets = [32, 0], sizes = [32, 256], strides = [1, 1]} : vector<288x256xf32> to vector<32x256xf32>
    %c1_148 = arith.constant 1 : index
    %c0_149 = arith.constant 0 : index
    %c0_150 = arith.constant 0 : index
    %189 = vector.load %arg2[%c1_148, %c0_149, %c0_150] : memref<9x256x256xf32, #tpu.memory_space<vmem>>, vector<1x256x256xf32>
    %190 = vector.shape_cast %189 : vector<1x256x256xf32> to vector<256x256xf32>
    %cst_151 = arith.constant dense<0.000000e+00> : vector<32x256xf32>
    %191 = tpu.matmul %188, %190, %cst_151 {dimension_numbers = #tpu.dot_dimension_numbers<[1], [0], [0], [1], [0, 0, 1, 1], [], []>} : vector<32x256xf32>, vector<256x256xf32>, vector<32x256xf32> -> vector<32x256xf32>
    %192 = arith.addf %187, %191 : vector<32x256xf32>
    %193 = vector.extract_strided_slice %181 {offsets = [64, 0], sizes = [32, 256], strides = [1, 1]} : vector<288x256xf32> to vector<32x256xf32>
    %c2_152 = arith.constant 2 : index
    %c0_153 = arith.constant 0 : index
    %c0_154 = arith.constant 0 : index
    %194 = vector.load %arg2[%c2_152, %c0_153, %c0_154] : memref<9x256x256xf32, #tpu.memory_space<vmem>>, vector<1x256x256xf32>
    %195 = vector.shape_cast %194 : vector<1x256x256xf32> to vector<256x256xf32>
    %cst_155 = arith.constant dense<0.000000e+00> : vector<32x256xf32>
    %196 = tpu.matmul %193, %195, %cst_155 {dimension_numbers = #tpu.dot_dimension_numbers<[1], [0], [0], [1], [0, 0, 1, 1], [], []>} : vector<32x256xf32>, vector<256x256xf32>, vector<32x256xf32> -> vector<32x256xf32>
    %197 = arith.addf %192, %196 : vector<32x256xf32>
    %198 = vector.extract_strided_slice %181 {offsets = [96, 0], sizes = [32, 256], strides = [1, 1]} : vector<288x256xf32> to vector<32x256xf32>
    %c3_156 = arith.constant 3 : index
    %c0_157 = arith.constant 0 : index
    %c0_158 = arith.constant 0 : index
    %199 = vector.load %arg2[%c3_156, %c0_157, %c0_158] : memref<9x256x256xf32, #tpu.memory_space<vmem>>, vector<1x256x256xf32>
    %200 = vector.shape_cast %199 : vector<1x256x256xf32> to vector<256x256xf32>
    %cst_159 = arith.constant dense<0.000000e+00> : vector<32x256xf32>
    %201 = tpu.matmul %198, %200, %cst_159 {dimension_numbers = #tpu.dot_dimension_numbers<[1], [0], [0], [1], [0, 0, 1, 1], [], []>} : vector<32x256xf32>, vector<256x256xf32>, vector<32x256xf32> -> vector<32x256xf32>
    %202 = arith.addf %197, %201 : vector<32x256xf32>
    %203 = vector.extract_strided_slice %181 {offsets = [128, 0], sizes = [32, 256], strides = [1, 1]} : vector<288x256xf32> to vector<32x256xf32>
    %c4_160 = arith.constant 4 : index
    %c0_161 = arith.constant 0 : index
    %c0_162 = arith.constant 0 : index
    %204 = vector.load %arg2[%c4_160, %c0_161, %c0_162] : memref<9x256x256xf32, #tpu.memory_space<vmem>>, vector<1x256x256xf32>
    %205 = vector.shape_cast %204 : vector<1x256x256xf32> to vector<256x256xf32>
    %cst_163 = arith.constant dense<0.000000e+00> : vector<32x256xf32>
    %206 = tpu.matmul %203, %205, %cst_163 {dimension_numbers = #tpu.dot_dimension_numbers<[1], [0], [0], [1], [0, 0, 1, 1], [], []>} : vector<32x256xf32>, vector<256x256xf32>, vector<32x256xf32> -> vector<32x256xf32>
    %207 = arith.addf %202, %206 : vector<32x256xf32>
    %208 = vector.extract_strided_slice %181 {offsets = [160, 0], sizes = [32, 256], strides = [1, 1]} : vector<288x256xf32> to vector<32x256xf32>
    %c5_164 = arith.constant 5 : index
    %c0_165 = arith.constant 0 : index
    %c0_166 = arith.constant 0 : index
    %209 = vector.load %arg2[%c5_164, %c0_165, %c0_166] : memref<9x256x256xf32, #tpu.memory_space<vmem>>, vector<1x256x256xf32>
    %210 = vector.shape_cast %209 : vector<1x256x256xf32> to vector<256x256xf32>
    %cst_167 = arith.constant dense<0.000000e+00> : vector<32x256xf32>
    %211 = tpu.matmul %208, %210, %cst_167 {dimension_numbers = #tpu.dot_dimension_numbers<[1], [0], [0], [1], [0, 0, 1, 1], [], []>} : vector<32x256xf32>, vector<256x256xf32>, vector<32x256xf32> -> vector<32x256xf32>
    %212 = arith.addf %207, %211 : vector<32x256xf32>
    %213 = vector.extract_strided_slice %181 {offsets = [192, 0], sizes = [32, 256], strides = [1, 1]} : vector<288x256xf32> to vector<32x256xf32>
    %c6_168 = arith.constant 6 : index
    %c0_169 = arith.constant 0 : index
    %c0_170 = arith.constant 0 : index
    %214 = vector.load %arg2[%c6_168, %c0_169, %c0_170] : memref<9x256x256xf32, #tpu.memory_space<vmem>>, vector<1x256x256xf32>
    %215 = vector.shape_cast %214 : vector<1x256x256xf32> to vector<256x256xf32>
    %cst_171 = arith.constant dense<0.000000e+00> : vector<32x256xf32>
    %216 = tpu.matmul %213, %215, %cst_171 {dimension_numbers = #tpu.dot_dimension_numbers<[1], [0], [0], [1], [0, 0, 1, 1], [], []>} : vector<32x256xf32>, vector<256x256xf32>, vector<32x256xf32> -> vector<32x256xf32>
    %217 = arith.addf %212, %216 : vector<32x256xf32>
    %218 = vector.extract_strided_slice %181 {offsets = [224, 0], sizes = [32, 256], strides = [1, 1]} : vector<288x256xf32> to vector<32x256xf32>
    %c7_172 = arith.constant 7 : index
    %c0_173 = arith.constant 0 : index
    %c0_174 = arith.constant 0 : index
    %219 = vector.load %arg2[%c7_172, %c0_173, %c0_174] : memref<9x256x256xf32, #tpu.memory_space<vmem>>, vector<1x256x256xf32>
    %220 = vector.shape_cast %219 : vector<1x256x256xf32> to vector<256x256xf32>
    %cst_175 = arith.constant dense<0.000000e+00> : vector<32x256xf32>
    %221 = tpu.matmul %218, %220, %cst_175 {dimension_numbers = #tpu.dot_dimension_numbers<[1], [0], [0], [1], [0, 0, 1, 1], [], []>} : vector<32x256xf32>, vector<256x256xf32>, vector<32x256xf32> -> vector<32x256xf32>
    %222 = arith.addf %217, %221 : vector<32x256xf32>
    %223 = vector.extract_strided_slice %181 {offsets = [256, 0], sizes = [32, 256], strides = [1, 1]} : vector<288x256xf32> to vector<32x256xf32>
    %c8_176 = arith.constant 8 : index
    %c0_177 = arith.constant 0 : index
    %c0_178 = arith.constant 0 : index
    %224 = vector.load %arg2[%c8_176, %c0_177, %c0_178] : memref<9x256x256xf32, #tpu.memory_space<vmem>>, vector<1x256x256xf32>
    %225 = vector.shape_cast %224 : vector<1x256x256xf32> to vector<256x256xf32>
    %cst_179 = arith.constant dense<0.000000e+00> : vector<32x256xf32>
    %226 = tpu.matmul %223, %225, %cst_179 {dimension_numbers = #tpu.dot_dimension_numbers<[1], [0], [0], [1], [0, 0, 1, 1], [], []>} : vector<32x256xf32>, vector<256x256xf32>, vector<32x256xf32> -> vector<32x256xf32>
    %227 = arith.addf %222, %226 : vector<32x256xf32>
    %228 = vector.broadcast %180 : vector<32x1xf32> to vector<32x256xf32>
    %229 = arith.addf %227, %228 : vector<32x256xf32>
    %cst_180 = arith.constant 0.000000e+00 : f32
    %230 = vector.broadcast %cst_180 : f32 to vector<32x256xf32>
    %231 = arith.maximumf %229, %230 : vector<32x256xf32>
    %c1_181 = arith.constant 1 : index
    %c0_182 = arith.constant 0 : index
    %c0_183 = arith.constant 0 : index
    %232 = vector.load %arg9[%c1_181, %c0_182, %c0_183] : memref<3x32x1xf32, #tpu.memory_space<vmem>>, vector<1x32x1xf32>
    %233 = vector.shape_cast %232 : vector<1x32x1xf32> to vector<32x1xf32>
    %234 = vector.broadcast %233 : vector<32x1xf32> to vector<32x256xf32>
    %235 = arith.mulf %234, %231 : vector<32x256xf32>
    %236 = arith.addf %121, %235 : vector<32x256xf32>
    %c2_184 = arith.constant 2 : index
    %c0_185 = arith.constant 0 : index
    %c0_186 = arith.constant 0 : index
    %237 = vector.load %arg5[%c2_184, %c0_185, %c0_186] : memref<3x288x32xf32, #tpu.memory_space<vmem>>, vector<1x288x32xf32>
    %238 = vector.shape_cast %237 : vector<1x288x32xf32> to vector<288x32xf32>
    %c2_187 = arith.constant 2 : index
    %c0_188 = arith.constant 0 : index
    %c0_189 = arith.constant 0 : index
    %239 = vector.load %arg6[%c2_187, %c0_188, %c0_189] : memref<3x32x1xf32, #tpu.memory_space<vmem>>, vector<1x32x1xf32>
    %240 = vector.shape_cast %239 : vector<1x32x1xf32> to vector<32x1xf32>
    %cst_190 = arith.constant dense<0.000000e+00> : vector<288x256xf32>
    %241 = tpu.matmul %238, %236, %cst_190 {dimension_numbers = #tpu.dot_dimension_numbers<[1], [0], [0], [1], [0, 0, 1, 1], [], []>} : vector<288x32xf32>, vector<32x256xf32>, vector<288x256xf32> -> vector<288x256xf32>
    %cst_191 = arith.constant 0.000000e+00 : f32
    %242 = vector.broadcast %cst_191 : f32 to vector<32x256xf32>
    %243 = vector.extract_strided_slice %241 {offsets = [0, 0], sizes = [32, 256], strides = [1, 1]} : vector<288x256xf32> to vector<32x256xf32>
    %c0_192 = arith.constant 0 : index
    %c0_193 = arith.constant 0 : index
    %c0_194 = arith.constant 0 : index
    %244 = vector.load %arg2[%c0_192, %c0_193, %c0_194] : memref<9x256x256xf32, #tpu.memory_space<vmem>>, vector<1x256x256xf32>
    %245 = vector.shape_cast %244 : vector<1x256x256xf32> to vector<256x256xf32>
    %cst_195 = arith.constant dense<0.000000e+00> : vector<32x256xf32>
    %246 = tpu.matmul %243, %245, %cst_195 {dimension_numbers = #tpu.dot_dimension_numbers<[1], [0], [0], [1], [0, 0, 1, 1], [], []>} : vector<32x256xf32>, vector<256x256xf32>, vector<32x256xf32> -> vector<32x256xf32>
    %247 = arith.addf %242, %246 : vector<32x256xf32>
    %248 = vector.extract_strided_slice %241 {offsets = [32, 0], sizes = [32, 256], strides = [1, 1]} : vector<288x256xf32> to vector<32x256xf32>
    %c1_196 = arith.constant 1 : index
    %c0_197 = arith.constant 0 : index
    %c0_198 = arith.constant 0 : index
    %249 = vector.load %arg2[%c1_196, %c0_197, %c0_198] : memref<9x256x256xf32, #tpu.memory_space<vmem>>, vector<1x256x256xf32>
    %250 = vector.shape_cast %249 : vector<1x256x256xf32> to vector<256x256xf32>
    %cst_199 = arith.constant dense<0.000000e+00> : vector<32x256xf32>
    %251 = tpu.matmul %248, %250, %cst_199 {dimension_numbers = #tpu.dot_dimension_numbers<[1], [0], [0], [1], [0, 0, 1, 1], [], []>} : vector<32x256xf32>, vector<256x256xf32>, vector<32x256xf32> -> vector<32x256xf32>
    %252 = arith.addf %247, %251 : vector<32x256xf32>
    %253 = vector.extract_strided_slice %241 {offsets = [64, 0], sizes = [32, 256], strides = [1, 1]} : vector<288x256xf32> to vector<32x256xf32>
    %c2_200 = arith.constant 2 : index
    %c0_201 = arith.constant 0 : index
    %c0_202 = arith.constant 0 : index
    %254 = vector.load %arg2[%c2_200, %c0_201, %c0_202] : memref<9x256x256xf32, #tpu.memory_space<vmem>>, vector<1x256x256xf32>
    %255 = vector.shape_cast %254 : vector<1x256x256xf32> to vector<256x256xf32>
    %cst_203 = arith.constant dense<0.000000e+00> : vector<32x256xf32>
    %256 = tpu.matmul %253, %255, %cst_203 {dimension_numbers = #tpu.dot_dimension_numbers<[1], [0], [0], [1], [0, 0, 1, 1], [], []>} : vector<32x256xf32>, vector<256x256xf32>, vector<32x256xf32> -> vector<32x256xf32>
    %257 = arith.addf %252, %256 : vector<32x256xf32>
    %258 = vector.extract_strided_slice %241 {offsets = [96, 0], sizes = [32, 256], strides = [1, 1]} : vector<288x256xf32> to vector<32x256xf32>
    %c3_204 = arith.constant 3 : index
    %c0_205 = arith.constant 0 : index
    %c0_206 = arith.constant 0 : index
    %259 = vector.load %arg2[%c3_204, %c0_205, %c0_206] : memref<9x256x256xf32, #tpu.memory_space<vmem>>, vector<1x256x256xf32>
    %260 = vector.shape_cast %259 : vector<1x256x256xf32> to vector<256x256xf32>
    %cst_207 = arith.constant dense<0.000000e+00> : vector<32x256xf32>
    %261 = tpu.matmul %258, %260, %cst_207 {dimension_numbers = #tpu.dot_dimension_numbers<[1], [0], [0], [1], [0, 0, 1, 1], [], []>} : vector<32x256xf32>, vector<256x256xf32>, vector<32x256xf32> -> vector<32x256xf32>
    %262 = arith.addf %257, %261 : vector<32x256xf32>
    %263 = vector.extract_strided_slice %241 {offsets = [128, 0], sizes = [32, 256], strides = [1, 1]} : vector<288x256xf32> to vector<32x256xf32>
    %c4_208 = arith.constant 4 : index
    %c0_209 = arith.constant 0 : index
    %c0_210 = arith.constant 0 : index
    %264 = vector.load %arg2[%c4_208, %c0_209, %c0_210] : memref<9x256x256xf32, #tpu.memory_space<vmem>>, vector<1x256x256xf32>
    %265 = vector.shape_cast %264 : vector<1x256x256xf32> to vector<256x256xf32>
    %cst_211 = arith.constant dense<0.000000e+00> : vector<32x256xf32>
    %266 = tpu.matmul %263, %265, %cst_211 {dimension_numbers = #tpu.dot_dimension_numbers<[1], [0], [0], [1], [0, 0, 1, 1], [], []>} : vector<32x256xf32>, vector<256x256xf32>, vector<32x256xf32> -> vector<32x256xf32>
    %267 = arith.addf %262, %266 : vector<32x256xf32>
    %268 = vector.extract_strided_slice %241 {offsets = [160, 0], sizes = [32, 256], strides = [1, 1]} : vector<288x256xf32> to vector<32x256xf32>
    %c5_212 = arith.constant 5 : index
    %c0_213 = arith.constant 0 : index
    %c0_214 = arith.constant 0 : index
    %269 = vector.load %arg2[%c5_212, %c0_213, %c0_214] : memref<9x256x256xf32, #tpu.memory_space<vmem>>, vector<1x256x256xf32>
    %270 = vector.shape_cast %269 : vector<1x256x256xf32> to vector<256x256xf32>
    %cst_215 = arith.constant dense<0.000000e+00> : vector<32x256xf32>
    %271 = tpu.matmul %268, %270, %cst_215 {dimension_numbers = #tpu.dot_dimension_numbers<[1], [0], [0], [1], [0, 0, 1, 1], [], []>} : vector<32x256xf32>, vector<256x256xf32>, vector<32x256xf32> -> vector<32x256xf32>
    %272 = arith.addf %267, %271 : vector<32x256xf32>
    %273 = vector.extract_strided_slice %241 {offsets = [192, 0], sizes = [32, 256], strides = [1, 1]} : vector<288x256xf32> to vector<32x256xf32>
    %c6_216 = arith.constant 6 : index
    %c0_217 = arith.constant 0 : index
    %c0_218 = arith.constant 0 : index
    %274 = vector.load %arg2[%c6_216, %c0_217, %c0_218] : memref<9x256x256xf32, #tpu.memory_space<vmem>>, vector<1x256x256xf32>
    %275 = vector.shape_cast %274 : vector<1x256x256xf32> to vector<256x256xf32>
    %cst_219 = arith.constant dense<0.000000e+00> : vector<32x256xf32>
    %276 = tpu.matmul %273, %275, %cst_219 {dimension_numbers = #tpu.dot_dimension_numbers<[1], [0], [0], [1], [0, 0, 1, 1], [], []>} : vector<32x256xf32>, vector<256x256xf32>, vector<32x256xf32> -> vector<32x256xf32>
    %277 = arith.addf %272, %276 : vector<32x256xf32>
    %278 = vector.extract_strided_slice %241 {offsets = [224, 0], sizes = [32, 256], strides = [1, 1]} : vector<288x256xf32> to vector<32x256xf32>
    %c7_220 = arith.constant 7 : index
    %c0_221 = arith.constant 0 : index
    %c0_222 = arith.constant 0 : index
    %279 = vector.load %arg2[%c7_220, %c0_221, %c0_222] : memref<9x256x256xf32, #tpu.memory_space<vmem>>, vector<1x256x256xf32>
    %280 = vector.shape_cast %279 : vector<1x256x256xf32> to vector<256x256xf32>
    %cst_223 = arith.constant dense<0.000000e+00> : vector<32x256xf32>
    %281 = tpu.matmul %278, %280, %cst_223 {dimension_numbers = #tpu.dot_dimension_numbers<[1], [0], [0], [1], [0, 0, 1, 1], [], []>} : vector<32x256xf32>, vector<256x256xf32>, vector<32x256xf32> -> vector<32x256xf32>
    %282 = arith.addf %277, %281 : vector<32x256xf32>
    %283 = vector.extract_strided_slice %241 {offsets = [256, 0], sizes = [32, 256], strides = [1, 1]} : vector<288x256xf32> to vector<32x256xf32>
    %c8_224 = arith.constant 8 : index
    %c0_225 = arith.constant 0 : index
    %c0_226 = arith.constant 0 : index
    %284 = vector.load %arg2[%c8_224, %c0_225, %c0_226] : memref<9x256x256xf32, #tpu.memory_space<vmem>>, vector<1x256x256xf32>
    %285 = vector.shape_cast %284 : vector<1x256x256xf32> to vector<256x256xf32>
    %cst_227 = arith.constant dense<0.000000e+00> : vector<32x256xf32>
    %286 = tpu.matmul %283, %285, %cst_227 {dimension_numbers = #tpu.dot_dimension_numbers<[1], [0], [0], [1], [0, 0, 1, 1], [], []>} : vector<32x256xf32>, vector<256x256xf32>, vector<32x256xf32> -> vector<32x256xf32>
    %287 = arith.addf %282, %286 : vector<32x256xf32>
    %288 = vector.broadcast %240 : vector<32x1xf32> to vector<32x256xf32>
    %289 = arith.addf %287, %288 : vector<32x256xf32>
    %cst_228 = arith.constant 0.000000e+00 : f32
    %290 = vector.broadcast %cst_228 : f32 to vector<32x256xf32>
    %291 = arith.maximumf %289, %290 : vector<32x256xf32>
    %c2_229 = arith.constant 2 : index
    %c0_230 = arith.constant 0 : index
    %c0_231 = arith.constant 0 : index
    %292 = vector.load %arg7[%c2_229, %c0_230, %c0_231] : memref<3x288x32xf32, #tpu.memory_space<vmem>>, vector<1x288x32xf32>
    %293 = vector.shape_cast %292 : vector<1x288x32xf32> to vector<288x32xf32>
    %c2_232 = arith.constant 2 : index
    %c0_233 = arith.constant 0 : index
    %c0_234 = arith.constant 0 : index
    %294 = vector.load %arg8[%c2_232, %c0_233, %c0_234] : memref<3x32x1xf32, #tpu.memory_space<vmem>>, vector<1x32x1xf32>
    %295 = vector.shape_cast %294 : vector<1x32x1xf32> to vector<32x1xf32>
    %cst_235 = arith.constant dense<0.000000e+00> : vector<288x256xf32>
    %296 = tpu.matmul %293, %291, %cst_235 {dimension_numbers = #tpu.dot_dimension_numbers<[1], [0], [0], [1], [0, 0, 1, 1], [], []>} : vector<288x32xf32>, vector<32x256xf32>, vector<288x256xf32> -> vector<288x256xf32>
    %cst_236 = arith.constant 0.000000e+00 : f32
    %297 = vector.broadcast %cst_236 : f32 to vector<32x256xf32>
    %298 = vector.extract_strided_slice %296 {offsets = [0, 0], sizes = [32, 256], strides = [1, 1]} : vector<288x256xf32> to vector<32x256xf32>
    %c0_237 = arith.constant 0 : index
    %c0_238 = arith.constant 0 : index
    %c0_239 = arith.constant 0 : index
    %299 = vector.load %arg2[%c0_237, %c0_238, %c0_239] : memref<9x256x256xf32, #tpu.memory_space<vmem>>, vector<1x256x256xf32>
    %300 = vector.shape_cast %299 : vector<1x256x256xf32> to vector<256x256xf32>
    %cst_240 = arith.constant dense<0.000000e+00> : vector<32x256xf32>
    %301 = tpu.matmul %298, %300, %cst_240 {dimension_numbers = #tpu.dot_dimension_numbers<[1], [0], [0], [1], [0, 0, 1, 1], [], []>} : vector<32x256xf32>, vector<256x256xf32>, vector<32x256xf32> -> vector<32x256xf32>
    %302 = arith.addf %297, %301 : vector<32x256xf32>
    %303 = vector.extract_strided_slice %296 {offsets = [32, 0], sizes = [32, 256], strides = [1, 1]} : vector<288x256xf32> to vector<32x256xf32>
    %c1_241 = arith.constant 1 : index
    %c0_242 = arith.constant 0 : index
    %c0_243 = arith.constant 0 : index
    %304 = vector.load %arg2[%c1_241, %c0_242, %c0_243] : memref<9x256x256xf32, #tpu.memory_space<vmem>>, vector<1x256x256xf32>
    %305 = vector.shape_cast %304 : vector<1x256x256xf32> to vector<256x256xf32>
    %cst_244 = arith.constant dense<0.000000e+00> : vector<32x256xf32>
    %306 = tpu.matmul %303, %305, %cst_244 {dimension_numbers = #tpu.dot_dimension_numbers<[1], [0], [0], [1], [0, 0, 1, 1], [], []>} : vector<32x256xf32>, vector<256x256xf32>, vector<32x256xf32> -> vector<32x256xf32>
    %307 = arith.addf %302, %306 : vector<32x256xf32>
    %308 = vector.extract_strided_slice %296 {offsets = [64, 0], sizes = [32, 256], strides = [1, 1]} : vector<288x256xf32> to vector<32x256xf32>
    %c2_245 = arith.constant 2 : index
    %c0_246 = arith.constant 0 : index
    %c0_247 = arith.constant 0 : index
    %309 = vector.load %arg2[%c2_245, %c0_246, %c0_247] : memref<9x256x256xf32, #tpu.memory_space<vmem>>, vector<1x256x256xf32>
    %310 = vector.shape_cast %309 : vector<1x256x256xf32> to vector<256x256xf32>
    %cst_248 = arith.constant dense<0.000000e+00> : vector<32x256xf32>
    %311 = tpu.matmul %308, %310, %cst_248 {dimension_numbers = #tpu.dot_dimension_numbers<[1], [0], [0], [1], [0, 0, 1, 1], [], []>} : vector<32x256xf32>, vector<256x256xf32>, vector<32x256xf32> -> vector<32x256xf32>
    %312 = arith.addf %307, %311 : vector<32x256xf32>
    %313 = vector.extract_strided_slice %296 {offsets = [96, 0], sizes = [32, 256], strides = [1, 1]} : vector<288x256xf32> to vector<32x256xf32>
    %c3_249 = arith.constant 3 : index
    %c0_250 = arith.constant 0 : index
    %c0_251 = arith.constant 0 : index
    %314 = vector.load %arg2[%c3_249, %c0_250, %c0_251] : memref<9x256x256xf32, #tpu.memory_space<vmem>>, vector<1x256x256xf32>
    %315 = vector.shape_cast %314 : vector<1x256x256xf32> to vector<256x256xf32>
    %cst_252 = arith.constant dense<0.000000e+00> : vector<32x256xf32>
    %316 = tpu.matmul %313, %315, %cst_252 {dimension_numbers = #tpu.dot_dimension_numbers<[1], [0], [0], [1], [0, 0, 1, 1], [], []>} : vector<32x256xf32>, vector<256x256xf32>, vector<32x256xf32> -> vector<32x256xf32>
    %317 = arith.addf %312, %316 : vector<32x256xf32>
    %318 = vector.extract_strided_slice %296 {offsets = [128, 0], sizes = [32, 256], strides = [1, 1]} : vector<288x256xf32> to vector<32x256xf32>
    %c4_253 = arith.constant 4 : index
    %c0_254 = arith.constant 0 : index
    %c0_255 = arith.constant 0 : index
    %319 = vector.load %arg2[%c4_253, %c0_254, %c0_255] : memref<9x256x256xf32, #tpu.memory_space<vmem>>, vector<1x256x256xf32>
    %320 = vector.shape_cast %319 : vector<1x256x256xf32> to vector<256x256xf32>
    %cst_256 = arith.constant dense<0.000000e+00> : vector<32x256xf32>
    %321 = tpu.matmul %318, %320, %cst_256 {dimension_numbers = #tpu.dot_dimension_numbers<[1], [0], [0], [1], [0, 0, 1, 1], [], []>} : vector<32x256xf32>, vector<256x256xf32>, vector<32x256xf32> -> vector<32x256xf32>
    %322 = arith.addf %317, %321 : vector<32x256xf32>
    %323 = vector.extract_strided_slice %296 {offsets = [160, 0], sizes = [32, 256], strides = [1, 1]} : vector<288x256xf32> to vector<32x256xf32>
    %c5_257 = arith.constant 5 : index
    %c0_258 = arith.constant 0 : index
    %c0_259 = arith.constant 0 : index
    %324 = vector.load %arg2[%c5_257, %c0_258, %c0_259] : memref<9x256x256xf32, #tpu.memory_space<vmem>>, vector<1x256x256xf32>
    %325 = vector.shape_cast %324 : vector<1x256x256xf32> to vector<256x256xf32>
    %cst_260 = arith.constant dense<0.000000e+00> : vector<32x256xf32>
    %326 = tpu.matmul %323, %325, %cst_260 {dimension_numbers = #tpu.dot_dimension_numbers<[1], [0], [0], [1], [0, 0, 1, 1], [], []>} : vector<32x256xf32>, vector<256x256xf32>, vector<32x256xf32> -> vector<32x256xf32>
    %327 = arith.addf %322, %326 : vector<32x256xf32>
    %328 = vector.extract_strided_slice %296 {offsets = [192, 0], sizes = [32, 256], strides = [1, 1]} : vector<288x256xf32> to vector<32x256xf32>
    %c6_261 = arith.constant 6 : index
    %c0_262 = arith.constant 0 : index
    %c0_263 = arith.constant 0 : index
    %329 = vector.load %arg2[%c6_261, %c0_262, %c0_263] : memref<9x256x256xf32, #tpu.memory_space<vmem>>, vector<1x256x256xf32>
    %330 = vector.shape_cast %329 : vector<1x256x256xf32> to vector<256x256xf32>
    %cst_264 = arith.constant dense<0.000000e+00> : vector<32x256xf32>
    %331 = tpu.matmul %328, %330, %cst_264 {dimension_numbers = #tpu.dot_dimension_numbers<[1], [0], [0], [1], [0, 0, 1, 1], [], []>} : vector<32x256xf32>, vector<256x256xf32>, vector<32x256xf32> -> vector<32x256xf32>
    %332 = arith.addf %327, %331 : vector<32x256xf32>
    %333 = vector.extract_strided_slice %296 {offsets = [224, 0], sizes = [32, 256], strides = [1, 1]} : vector<288x256xf32> to vector<32x256xf32>
    %c7_265 = arith.constant 7 : index
    %c0_266 = arith.constant 0 : index
    %c0_267 = arith.constant 0 : index
    %334 = vector.load %arg2[%c7_265, %c0_266, %c0_267] : memref<9x256x256xf32, #tpu.memory_space<vmem>>, vector<1x256x256xf32>
    %335 = vector.shape_cast %334 : vector<1x256x256xf32> to vector<256x256xf32>
    %cst_268 = arith.constant dense<0.000000e+00> : vector<32x256xf32>
    %336 = tpu.matmul %333, %335, %cst_268 {dimension_numbers = #tpu.dot_dimension_numbers<[1], [0], [0], [1], [0, 0, 1, 1], [], []>} : vector<32x256xf32>, vector<256x256xf32>, vector<32x256xf32> -> vector<32x256xf32>
    %337 = arith.addf %332, %336 : vector<32x256xf32>
    %338 = vector.extract_strided_slice %296 {offsets = [256, 0], sizes = [32, 256], strides = [1, 1]} : vector<288x256xf32> to vector<32x256xf32>
    %c8_269 = arith.constant 8 : index
    %c0_270 = arith.constant 0 : index
    %c0_271 = arith.constant 0 : index
    %339 = vector.load %arg2[%c8_269, %c0_270, %c0_271] : memref<9x256x256xf32, #tpu.memory_space<vmem>>, vector<1x256x256xf32>
    %340 = vector.shape_cast %339 : vector<1x256x256xf32> to vector<256x256xf32>
    %cst_272 = arith.constant dense<0.000000e+00> : vector<32x256xf32>
    %341 = tpu.matmul %338, %340, %cst_272 {dimension_numbers = #tpu.dot_dimension_numbers<[1], [0], [0], [1], [0, 0, 1, 1], [], []>} : vector<32x256xf32>, vector<256x256xf32>, vector<32x256xf32> -> vector<32x256xf32>
    %342 = arith.addf %337, %341 : vector<32x256xf32>
    %343 = vector.broadcast %295 : vector<32x1xf32> to vector<32x256xf32>
    %344 = arith.addf %342, %343 : vector<32x256xf32>
    %cst_273 = arith.constant 0.000000e+00 : f32
    %345 = vector.broadcast %cst_273 : f32 to vector<32x256xf32>
    %346 = arith.maximumf %344, %345 : vector<32x256xf32>
    %c2_274 = arith.constant 2 : index
    %c0_275 = arith.constant 0 : index
    %c0_276 = arith.constant 0 : index
    %347 = vector.load %arg9[%c2_274, %c0_275, %c0_276] : memref<3x32x1xf32, #tpu.memory_space<vmem>>, vector<1x32x1xf32>
    %348 = vector.shape_cast %347 : vector<1x32x1xf32> to vector<32x1xf32>
    %349 = vector.broadcast %348 : vector<32x1xf32> to vector<32x256xf32>
    %350 = arith.mulf %349, %346 : vector<32x256xf32>
    %351 = arith.addf %236, %350 : vector<32x256xf32>
    %c0_277 = arith.constant 0 : index
    %c0_278 = arith.constant 0 : index
    %352 = vector.load %arg10[%c0_277, %c0_278] : memref<8x32xf32, #tpu.memory_space<vmem>>, vector<8x32xf32>
    %cst_279 = arith.constant dense<0.000000e+00> : vector<8x256xf32>
    %353 = tpu.matmul %352, %351, %cst_279 {dimension_numbers = #tpu.dot_dimension_numbers<[1], [0], [0], [1], [0, 0, 1, 1], [], []>} : vector<8x32xf32>, vector<32x256xf32>, vector<8x256xf32> -> vector<8x256xf32>
    %c0_280 = arith.constant 0 : index
    %c0_281 = arith.constant 0 : index
    %354 = vector.load %arg11[%c0_280, %c0_281] : memref<8x1xf32, #tpu.memory_space<vmem>>, vector<8x1xf32>
    %355 = vector.broadcast %354 : vector<8x1xf32> to vector<8x256xf32>
    %356 = arith.addf %353, %355 : vector<8x256xf32>
    %c0_282 = arith.constant 0 : index
    %c0_283 = arith.constant 0 : index
    %c0_284 = arith.constant 0 : index
    %357 = vector.load %arg12[%c0_282, %c0_283, %c0_284] : memref<1x8x256xf32, #tpu.memory_space<vmem>>, vector<1x8x256xf32>
    %358 = vector.shape_cast %357 : vector<1x8x256xf32> to vector<8x256xf32>
    %359 = vector.shape_cast %356 : vector<8x256xf32> to vector<1x8x256xf32>
    tpu.vector_store %arg12[%c0_282, %c0_283, %c0_284], %359 {strides = array<i32>} : memref<1x8x256xf32, #tpu.memory_space<vmem>>, vector<1x8x256xf32>,
    return
  }
  func.func @transform_0(%arg0: i32) -> (i32, i32, i32) {
    %c0_i32 = arith.constant 0 : i32
    %c0_i32_0 = arith.constant 0 : i32
    %c0_i32_1 = arith.constant 0 : i32
    return %arg0, %c0_i32, %c0_i32_0 : i32, i32, i32
  }
  func.func @transform_1(%arg0: i32) -> (i32, i32, i32) {
    %c0_i32 = arith.constant 0 : i32
    %c0_i32_0 = arith.constant 0 : i32
    %c0_i32_1 = arith.constant 0 : i32
    %c0_i32_2 = arith.constant 0 : i32
    return %c0_i32, %c0_i32_0, %c0_i32_1 : i32, i32, i32
  }
  func.func @transform_2(%arg0: i32) -> (i32, i32) {
    %c0_i32 = arith.constant 0 : i32
    %c0_i32_0 = arith.constant 0 : i32
    %c0_i32_1 = arith.constant 0 : i32
    return %c0_i32, %c0_i32_0 : i32, i32
  }
  func.func @transform_3(%arg0: i32) -> (i32, i32) {
    %c0_i32 = arith.constant 0 : i32
    %c0_i32_0 = arith.constant 0 : i32
    %c0_i32_1 = arith.constant 0 : i32
    return %c0_i32, %c0_i32_0 : i32, i32
  }
  func.func @transform_4(%arg0: i32) -> (i32, i32, i32) {
    %c0_i32 = arith.constant 0 : i32
    %c0_i32_0 = arith.constant 0 : i32
    %c0_i32_1 = arith.constant 0 : i32
    %c0_i32_2 = arith.constant 0 : i32
    return %c0_i32, %c0_i32_0, %c0_i32_1 : i32, i32, i32
  }
  func.func @transform_5(%arg0: i32) -> (i32, i32, i32) {
    %c0_i32 = arith.constant 0 : i32
    %c0_i32_0 = arith.constant 0 : i32
    %c0_i32_1 = arith.constant 0 : i32
    %c0_i32_2 = arith.constant 0 : i32
    return %c0_i32, %c0_i32_0, %c0_i32_1 : i32, i32, i32
  }
  func.func @transform_6(%arg0: i32) -> (i32, i32, i32) {
    %c0_i32 = arith.constant 0 : i32
    %c0_i32_0 = arith.constant 0 : i32
    %c0_i32_1 = arith.constant 0 : i32
    %c0_i32_2 = arith.constant 0 : i32
    return %c0_i32, %c0_i32_0, %c0_i32_1 : i32, i32, i32
  }
  func.func @transform_7(%arg0: i32) -> (i32, i32, i32) {
    %c0_i32 = arith.constant 0 : i32
    %c0_i32_0 = arith.constant 0 : i32
    %c0_i32_1 = arith.constant 0 : i32
    %c0_i32_2 = arith.constant 0 : i32
    return %c0_i32, %c0_i32_0, %c0_i32_1 : i32, i32, i32
  }
  func.func @transform_8(%arg0: i32) -> (i32, i32, i32) {
    %c0_i32 = arith.constant 0 : i32
    %c0_i32_0 = arith.constant 0 : i32
    %c0_i32_1 = arith.constant 0 : i32
    %c0_i32_2 = arith.constant 0 : i32
    return %c0_i32, %c0_i32_0, %c0_i32_1 : i32, i32, i32
  }
  func.func @transform_9(%arg0: i32) -> (i32, i32) {
    %c0_i32 = arith.constant 0 : i32
    %c0_i32_0 = arith.constant 0 : i32
    %c0_i32_1 = arith.constant 0 : i32
    return %c0_i32, %c0_i32_0 : i32, i32
  }
  func.func @transform_10(%arg0: i32) -> (i32, i32) {
    %c0_i32 = arith.constant 0 : i32
    %c0_i32_0 = arith.constant 0 : i32
    %c0_i32_1 = arith.constant 0 : i32
    return %c0_i32, %c0_i32_0 : i32, i32
  }
  func.func @transform_11(%arg0: i32) -> (i32, i32, i32) {
    %c0_i32 = arith.constant 0 : i32
    %c0_i32_0 = arith.constant 0 : i32
    %c0_i32_1 = arith.constant 0 : i32
    return %arg0, %c0_i32, %c0_i32_0 : i32, i32, i32
  }
}

</mosaic_0001>

<llo_original>
// kernel: tpu_custom_call.1
$region0: #{tpu_custom_call.1}
  #allocation0 [shape = 'u32[]', space=smem, size = 0x4, offset = 0x4, fixed_abs, tag = 'smem constant byte address 0x4 - core index']
  #allocation1 [shape = 'u32[72,128]{1,0:T(1,128)}', space=vmem, size = 0x9000, scoped, tag = 'internal scratch']
  %s0 = inlined_call_operand.hbm [shape: f32[2,8,256], index: 0, kind: input, shape index: {}]
  %s1 = inlined_call_operand.hbm [shape: f32[9,256,256], index: 1, kind: input, shape index: {}]
  %s2 = inlined_call_operand.vmem [shape: f32[32,8], index: 2, kind: input, shape index: {}]
  %s3 = inlined_call_operand.vmem [shape: f32[32,1], index: 3, kind: input, shape index: {}]
  %s4 = inlined_call_operand.vmem [shape: f32[3,288,32], index: 4, kind: input, shape index: {}]
  %s5 = inlined_call_operand.vmem [shape: f32[3,32,1], index: 5, kind: input, shape index: {}]
  %s6 = inlined_call_operand.vmem [shape: f32[3,288,32], index: 6, kind: input, shape index: {}]
  %s7 = inlined_call_operand.vmem [shape: f32[3,32,1], index: 7, kind: input, shape index: {}]
  %s8 = inlined_call_operand.vmem [shape: f32[3,32,1], index: 8, kind: input, shape index: {}]
  %s9 = inlined_call_operand.hbm [shape: f32[8,32], index: 9, kind: input, shape index: {}]
  %s10 = inlined_call_operand.vmem [shape: f32[8,1], index: 10, kind: input, shape index: {}]
  %s11 = inlined_call_operand.hbm [shape: f32[2,8,256], index: 11, kind: output, shape index: {}]
  %s12 = sld [smem:[#allocation0]]
  $region89: #{tpu_custom_call.1} parent=0
    _
  %s14 = ssub.s32 1, %s12
  %s15 = scalar_select 0, %s14, %s12
  $region1: #{tpu_custom_call.1} parent=0
    #allocation2 [shape = 'u8[16384]{0}', space=vmem, size = 0x4000, scoped, tag = 'input window, operand 0']
    #allocation3 [shape = 's32[2]{0}', space=sflag, size = 0x8, scoped, tag = 'scoped memory for tpu_custom_call.1']
    #allocation4 [shape = 's32[2]{0}', space=sflag, size = 0x8, scoped, tag = 'scoped memory for tpu_custom_call.1']
    #allocation5 [shape = 'u8[2359296]{0}', space=vmem, size = 0x240000, scoped, tag = 'input window, operand 1, single buffered']
    #allocation6 [shape = 's32[1]{0}', space=sflag, size = 0x4, scoped, tag = 'scoped memory for tpu_custom_call.1']
    #allocation7 [shape = 'u8[4096]{0}', space=vmem, size = 0x1000, scoped, tag = 'input window, operand 9, single buffered']
    #allocation8 [shape = 'u8[16384]{0}', space=vmem, size = 0x4000, scoped, tag = 'output window, operand 0']
    %16 = vsyncpa [#allocation3], 0
    %s17 = scalar_lea.sflag [#allocation3], 1
    %18 = vsyncpa %s17, 0
    %19 = vsyncpa [#allocation6], 0
    %20 = vsyncpa [#allocation4], 0
    %s21 = scalar_lea.sflag [#allocation4], 1
    %22 = vsyncpa %s21, 0
    loop: start=0, step=1, limit=4
    $region2: #{tpu_custom_call.1} parent=1 // loop_pre_header
      _
    $region3: #{tpu_custom_call.1} parent=1 // loop_header
      %s24 = sphi 0, %s28
      %p25 = scmp.ge.s32.totalorder %s24, 4
      %s34 = sphi 0, %s36
      %s37 = sphi 0, %s34
      %s38 = sphi 0, %s37
      %s54 = sphi 0, %s38
      %s58 = sphi 0, %s58
      %s60 = sphi 0, %s58
      %s61 = sphi 0, %s60
      %s75 = sphi 0, %s61
      %s79 = sphi 0, %s79
      %s81 = sphi 0, %s79
      %s82 = sphi 0, %s81
      %s96 = sphi 0, %s82
      %s100 = sphi 0, %s100
      %s102 = sphi 0, %s100
      %s103 = sphi 0, %s102
      %s117 = sphi 0, %s103
      %s121 = sphi 0, %s121
      %s123 = sphi 0, %s121
      %s124 = sphi 0, %s123
      %s138 = sphi 0, %s124
      %s142 = sphi 0, %s142
      %s144 = sphi 0, %s142
      %s145 = sphi 0, %s144
      %s159 = sphi 0, %s145
      %s163 = sphi 0, %s163
      %s165 = sphi 0, %s163
      %s166 = sphi 0, %s165
      %s180 = sphi 0, %s166
      %s184 = sphi 0, %s184
      %s186 = sphi 0, %s184
      %s187 = sphi 0, %s186
      %s201 = sphi 0, %s187
      %s205 = sphi 0, %s205
      %s207 = sphi 0, %s205
      %s208 = sphi 0, %s207
      %s222 = sphi 0, %s208
      %s226 = sphi 0, %s226
      %s228 = sphi 0, %s226
      %s229 = sphi 0, %s228
      %s243 = sphi 0, %s229
      %s247 = sphi 0, %s247
      %s249 = sphi 0, %s247
      %s250 = sphi 0, %s249
      %s264 = sphi 0, %s250
      %s270 = sphi 0, %s272
      %s273 = sphi 0, %s270
      %s274 = sphi 0, %s273
      %s290 = sphi 0, %s274
    $region4: #{tpu_custom_call.1} parent=1 // loop_header_branch
      %27 = sbr.rel (%p25) target = $region8
    $region5: #{tpu_custom_call.1} parent=1 // loop_body
      %s29 = ssub.s32 %s24, 1
      %s30 = ssub.s32 %s24, 2
      %s31 = sadd.s32 %s24, 1
      %s32 = ssub.s32 %s24, %s31
      %p33 = scmp.eq.s32.totalorder %s32, 0
      %s35 = sadd.s32 %s34, 1
      %s36 = scalar_select %p33, %s34, %s35
      %p39 = pneg %p33
      %p40 = scmp.eq.s32.totalorder %s24, 1
      %p41 = por %p39, %p40
      %p42 = scmp.ne.s32.totalorder %s34, %s37
      %p43 = scmp.eq.s32.totalorder %s24, 0
      %p44 = por %p42, %p43
      %p45 = scmp.ne.s32.totalorder %s34, %s37
      %p46 = scmp.eq.s32.totalorder %s29, 1
      %p47 = por %p45, %p46
      %p48 = scmp.ne.s32.totalorder %s37, %s38
      %p49 = scmp.eq.s32.totalorder %s29, 0
      %p50 = por %p48, %p49
      %p51 = scmp.ne.s32.totalorder %s37, %s38
      %p52 = scmp.eq.s32.totalorder %s30, 1
      %p53 = por %p51, %p52
      %p55 = scmp.ne.s32.totalorder %s38, %s54
      %p56 = scmp.eq.s32.totalorder %s30, 0
      %p57 = por %p55, %p56
      %s59 = sadd.s32 %s58, 1
      %p62 = scmp.eq.s32.totalorder %s24, 1
      %p63 = scmp.ne.s32.totalorder %s58, %s60
      %p64 = scmp.eq.s32.totalorder %s24, 0
      %p65 = por %p63, %p64
      %p66 = scmp.ne.s32.totalorder %s58, %s60
      %p67 = scmp.eq.s32.totalorder %s29, 1
      %p68 = por %p66, %p67
      %p69 = scmp.ne.s32.totalorder %s60, %s61
      %p70 = scmp.eq.s32.totalorder %s29, 0
      %p71 = por %p69, %p70
      %p72 = scmp.ne.s32.totalorder %s60, %s61
      %p73 = scmp.eq.s32.totalorder %s30, 1
      %p74 = por %p72, %p73
      %p76 = scmp.ne.s32.totalorder %s61, %s75
      %p77 = scmp.eq.s32.totalorder %s30, 0
      %p78 = por %p76, %p77
      %s80 = sadd.s32 %s79, 1
      %p83 = scmp.eq.s32.totalorder %s24, 1
      %p84 = scmp.ne.s32.totalorder %s79, %s81
      %p85 = scmp.eq.s32.totalorder %s24, 0
      %p86 = por %p84, %p85
      %p87 = scmp.ne.s32.totalorder %s79, %s81
      %p88 = scmp.eq.s32.totalorder %s29, 1
      %p89 = por %p87, %p88
      %p90 = scmp.ne.s32.totalorder %s81, %s82
      %p91 = scmp.eq.s32.totalorder %s29, 0
      %p92 = por %p90, %p91
      %p93 = scmp.ne.s32.totalorder %s81, %s82
      %p94 = scmp.eq.s32.totalorder %s30, 1
      %p95 = por %p93, %p94
      %p97 = scmp.ne.s32.totalorder %s82, %s96
      %p98 = scmp.eq.s32.totalorder %s30, 0
      %p99 = por %p97, %p98
      %s101 = sadd.s32 %s100, 1
      %p104 = scmp.eq.s32.totalorder %s24, 1
      %p105 = scmp.ne.s32.totalorder %s100, %s102
      %p106 = scmp.eq.s32.totalorder %s24, 0
      %p107 = por %p105, %p106
      %p108 = scmp.ne.s32.totalorder %s100, %s102
      %p109 = scmp.eq.s32.totalorder %s29, 1
      %p110 = por %p108, %p109
      %p111 = scmp.ne.s32.totalorder %s102, %s103
      %p112 = scmp.eq.s32.totalorder %s29, 0
      %p113 = por %p111, %p112
      %p114 = scmp.ne.s32.totalorder %s102, %s103
      %p115 = scmp.eq.s32.totalorder %s30, 1
      %p116 = por %p114, %p115
      %p118 = scmp.ne.s32.totalorder %s103, %s117
      %p119 = scmp.eq.s32.totalorder %s30, 0
      %p120 = por %p118, %p119
      %s122 = sadd.s32 %s121, 1
      %p125 = scmp.eq.s32.totalorder %s24, 1
      %p126 = scmp.ne.s32.totalorder %s121, %s123
      %p127 = scmp.eq.s32.totalorder %s24, 0
      %p128 = por %p126, %p127
      %p129 = scmp.ne.s32.totalorder %s121, %s123
      %p130 = scmp.eq.s32.totalorder %s29, 1
      %p131 = por %p129, %p130
      %p132 = scmp.ne.s32.totalorder %s123, %s124
      %p133 = scmp.eq.s32.totalorder %s29, 0
      %p134 = por %p132, %p133
      %p135 = scmp.ne.s32.totalorder %s123, %s124
      %p136 = scmp.eq.s32.totalorder %s30, 1
      %p137 = por %p135, %p136
      %p139 = scmp.ne.s32.totalorder %s124, %s138
      %p140 = scmp.eq.s32.totalorder %s30, 0
      %p141 = por %p139, %p140
      %s143 = sadd.s32 %s142, 1
      %p146 = scmp.eq.s32.totalorder %s24, 1
      %p147 = scmp.ne.s32.totalorder %s142, %s144
      %p148 = scmp.eq.s32.totalorder %s24, 0
      %p149 = por %p147, %p148
      %p150 = scmp.ne.s32.totalorder %s142, %s144
      %p151 = scmp.eq.s32.totalorder %s29, 1
      %p152 = por %p150, %p151
      %p153 = scmp.ne.s32.totalorder %s144, %s145
      %p154 = scmp.eq.s32.totalorder %s29, 0
      %p155 = por %p153, %p154
      %p156 = scmp.ne.s32.totalorder %s144, %s145
      %p157 = scmp.eq.s32.totalorder %s30, 1
      %p158 = por %p156, %p157
      %p160 = scmp.ne.s32.totalorder %s145, %s159
      %p161 = scmp.eq.s32.totalorder %s30, 0
      %p162 = por %p160, %p161
      %s164 = sadd.s32 %s163, 1
      %p167 = scmp.eq.s32.totalorder %s24, 1
      %p168 = scmp.ne.s32.totalorder %s163, %s165
      %p169 = scmp.eq.s32.totalorder %s24, 0
      %p170 = por %p168, %p169
      %p171 = scmp.ne.s32.totalorder %s163, %s165
      %p172 = scmp.eq.s32.totalorder %s29, 1
      %p173 = por %p171, %p172
      %p174 = scmp.ne.s32.totalorder %s165, %s166
      %p175 = scmp.eq.s32.totalorder %s29, 0
      %p176 = por %p174, %p175
      %p177 = scmp.ne.s32.totalorder %s165, %s166
      %p178 = scmp.eq.s32.totalorder %s30, 1
      %p179 = por %p177, %p178
      %p181 = scmp.ne.s32.totalorder %s166, %s180
      %p182 = scmp.eq.s32.totalorder %s30, 0
      %p183 = por %p181, %p182
      %s185 = sadd.s32 %s184, 1
      %p188 = scmp.eq.s32.totalorder %s24, 1
      %p189 = scmp.ne.s32.totalorder %s184, %s186
      %p190 = scmp.eq.s32.totalorder %s24, 0
      %p191 = por %p189, %p190
      %p192 = scmp.ne.s32.totalorder %s184, %s186
      %p193 = scmp.eq.s32.totalorder %s29, 1
      %p194 = por %p192, %p193
      %p195 = scmp.ne.s32.totalorder %s186, %s187
      %p196 = scmp.eq.s32.totalorder %s29, 0
      %p197 = por %p195, %p196
      %p198 = scmp.ne.s32.totalorder %s186, %s187
      %p199 = scmp.eq.s32.totalorder %s30, 1
      %p200 = por %p198, %p199
      %p202 = scmp.ne.s32.totalorder %s187, %s201
      %p203 = scmp.eq.s32.totalorder %s30, 0
      %p204 = por %p202, %p203
      %s206 = sadd.s32 %s205, 1
      %p209 = scmp.eq.s32.totalorder %s24, 1
      %p210 = scmp.ne.s32.totalorder %s205, %s207
      %p211 = scmp.eq.s32.totalorder %s24, 0
      %p212 = por %p210, %p211
      %p213 = scmp.ne.s32.totalorder %s205, %s207
      %p214 = scmp.eq.s32.totalorder %s29, 1
      %p215 = por %p213, %p214
      %p216 = scmp.ne.s32.totalorder %s207, %s208
      %p217 = scmp.eq.s32.totalorder %s29, 0
      %p218 = por %p216, %p217
      %p219 = scmp.ne.s32.totalorder %s207, %s208
      %p220 = scmp.eq.s32.totalorder %s30, 1
      %p221 = por %p219, %p220
      %p223 = scmp.ne.s32.totalorder %s208, %s222
      %p224 = scmp.eq.s32.totalorder %s30, 0
      %p225 = por %p223, %p224
      %s227 = sadd.s32 %s226, 1
      %p230 = scmp.eq.s32.totalorder %s24, 1
      %p231 = scmp.ne.s32.totalorder %s226, %s228
      %p232 = scmp.eq.s32.totalorder %s24, 0
      %p233 = por %p231, %p232
      %p234 = scmp.ne.s32.totalorder %s226, %s228
      %p235 = scmp.eq.s32.totalorder %s29, 1
      %p236 = por %p234, %p235
      %p237 = scmp.ne.s32.totalorder %s228, %s229
      %p238 = scmp.eq.s32.totalorder %s29, 0
      %p239 = por %p237, %p238
      %p240 = scmp.ne.s32.totalorder %s228, %s229
      %p241 = scmp.eq.s32.totalorder %s30, 1
      %p242 = por %p240, %p241
      %p244 = scmp.ne.s32.totalorder %s229, %s243
      %p245 = scmp.eq.s32.totalorder %s30, 0
      %p246 = por %p244, %p245
      %s248 = sadd.s32 %s247, 1
      %p251 = scmp.eq.s32.totalorder %s24, 1
      %p252 = scmp.ne.s32.totalorder %s247, %s249
      %p253 = scmp.eq.s32.totalorder %s24, 0
      %p254 = por %p252, %p253
      %p255 = scmp.ne.s32.totalorder %s247, %s249
      %p256 = scmp.eq.s32.totalorder %s29, 1
      %p257 = por %p255, %p256
      %p258 = scmp.ne.s32.totalorder %s249, %s250
      %p259 = scmp.eq.s32.totalorder %s29, 0
      %p260 = por %p258, %p259
      %p261 = scmp.ne.s32.totalorder %s249, %s250
      %p262 = scmp.eq.s32.totalorder %s30, 1
      %p263 = por %p261, %p262
      %p265 = scmp.ne.s32.totalorder %s250, %s264
      %p266 = scmp.eq.s32.totalorder %s30, 0
      %p267 = por %p265, %p266
      %s268 = ssub.s32 %s24, %s31
      %p269 = scmp.eq.s32.totalorder %s268, 0
      %s271 = sadd.s32 %s270, 1
      %s272 = scalar_select %p269, %s270, %s271
      %p275 = pneg %p269
      %p276 = scmp.eq.s32.totalorder %s24, 1
      %p277 = por %p275, %p276
      %p278 = scmp.ne.s32.totalorder %s270, %s273
      %p279 = scmp.eq.s32.totalorder %s24, 0
      %p280 = por %p278, %p279
      %p281 = scmp.ne.s32.totalorder %s270, %s273
      %p282 = scmp.eq.s32.totalorder %s29, 1
      %p283 = por %p281, %p282
      %p284 = scmp.ne.s32.totalorder %s273, %s274
      %p285 = scmp.eq.s32.totalorder %s29, 0
      %p286 = por %p284, %p285
      %p287 = scmp.ne.s32.totalorder %s273, %s274
      %p288 = scmp.eq.s32.totalorder %s30, 1
      %p289 = por %p287, %p288
      %p291 = scmp.ne.s32.totalorder %s274, %s290
      %p292 = scmp.eq.s32.totalorder %s30, 0
      %p293 = por %p291, %p292
      %p294 = scmp.le.s32.totalorder 1, %s24
      %p295 = scmp.lt.s32.totalorder %s24, 3
      %p296 = pnand %p294, %p295
      %p297 = pneg %p296
      // Predicated region
      $region9: #{tpu_custom_call.1} parent=5 // pred_check
        _
      $region10: #{tpu_custom_call.1} parent=5 // pred_check_branch
        %299 = sbr.rel (%p296) target = $region12
      $region11: #{tpu_custom_call.1} parent=5 // pred_region
        %s300 = ssub.s32 %s24, 1
        // Predicated region
        $region13: #{tpu_custom_call.1} parent=11 // pred_check
          %p301 = pneg %p71
        $region14: #{tpu_custom_call.1} parent=11 // pred_check_branch
          %303 = sbr.rel (%p301) target = $region16
        $region15: #{tpu_custom_call.1} parent=11 // pred_region
          %305 = vsyncadd [#allocation6], 0
          %s306 = sshll.u32 %s1, 4
          %s307 = int_to_ptr.hbm [resolvable:$true] %s306
          %s308 = sshll.u32 [#allocation5], 4
          %s309 = int_to_ptr.vmem [resolvable:$true] %s308
          %314 = dma.hbm_to_vmem [thread:$0]  %s307, 73728, %s309, [#allocation6], 256, 256, 16
        $region16: #{tpu_custom_call.1} parent=11 // pred_fallthru
          _
        // Predicated region
        $region17: #{tpu_custom_call.1} parent=11 // pred_check
          %p315 = pneg %p92
        $region18: #{tpu_custom_call.1} parent=11 // pred_check_branch
          %317 = sbr.rel (%p315) target = $region20
        $region19: #{tpu_custom_call.1} parent=11 // pred_region
          _
        $region20: #{tpu_custom_call.1} parent=11 // pred_fallthru
          _
        // Predicated region
        $region21: #{tpu_custom_call.1} parent=11 // pred_check
          %p318 = pneg %p113
        $region22: #{tpu_custom_call.1} parent=11 // pred_check_branch
          %320 = sbr.rel (%p318) target = $region24
        $region23: #{tpu_custom_call.1} parent=11 // pred_region
          _
        $region24: #{tpu_custom_call.1} parent=11 // pred_fallthru
          _
        // Predicated region
        $region25: #{tpu_custom_call.1} parent=11 // pred_check
          %p321 = pneg %p134
        $region26: #{tpu_custom_call.1} parent=11 // pred_check_branch
          %323 = sbr.rel (%p321) target = $region28
        $region27: #{tpu_custom_call.1} parent=11 // pred_region
          _
        $region28: #{tpu_custom_call.1} parent=11 // pred_fallthru
          _
        // Predicated region
        $region29: #{tpu_custom_call.1} parent=11 // pred_check
          %p324 = pneg %p155
        $region30: #{tpu_custom_call.1} parent=11 // pred_check_branch
          %326 = sbr.rel (%p324) target = $region32
        $region31: #{tpu_custom_call.1} parent=11 // pred_region
          _
        $region32: #{tpu_custom_call.1} parent=11 // pred_fallthru
          _
        // Predicated region
        $region33: #{tpu_custom_call.1} parent=11 // pred_check
          %p327 = pneg %p176
        $region34: #{tpu_custom_call.1} parent=11 // pred_check_branch
          %329 = sbr.rel (%p327) target = $region36
        $region35: #{tpu_custom_call.1} parent=11 // pred_region
          _
        $region36: #{tpu_custom_call.1} parent=11 // pred_fallthru
          _
        // Predicated region
        $region37: #{tpu_custom_call.1} parent=11 // pred_check
          %p330 = pneg %p197
        $region38: #{tpu_custom_call.1} parent=11 // pred_check_branch
          %332 = sbr.rel (%p330) target = $region40
        $region39: #{tpu_custom_call.1} parent=11 // pred_region
          _
        $region40: #{tpu_custom_call.1} parent=11 // pred_fallthru
          _
        // Predicated region
        $region41: #{tpu_custom_call.1} parent=11 // pred_check
          %p333 = pneg %p218
        $region42: #{tpu_custom_call.1} parent=11 // pred_check_branch
          %335 = sbr.rel (%p333) target = $region44
        $region43: #{tpu_custom_call.1} parent=11 // pred_region
          _
        $region44: #{tpu_custom_call.1} parent=11 // pred_fallthru
          _
        // Predicated region
        $region45: #{tpu_custom_call.1} parent=11 // pred_check
          %p336 = pneg %p239
        $region46: #{tpu_custom_call.1} parent=11 // pred_check_branch
          %338 = sbr.rel (%p336) target = $region48
        $region47: #{tpu_custom_call.1} parent=11 // pred_region
          %340 = vsyncadd [#allocation6], 0
          %s342 = sshll.u32 %s9, 4
          %s343 = int_to_ptr.hbm [resolvable:$true] %s342
          %s344 = sshll.u32 [#allocation7], 4
          %s345 = int_to_ptr.vmem [resolvable:$true] %s344
          %347 = dma.hbm_to_vmem [thread:$0]  %s343, 128, %s345, [#allocation6]
        $region48: #{tpu_custom_call.1} parent=11 // pred_fallthru
          _
        // Predicated region
        $region49: #{tpu_custom_call.1} parent=11 // pred_check
          %p348 = pneg %p260
        $region50: #{tpu_custom_call.1} parent=11 // pred_check_branch
          %350 = sbr.rel (%p348) target = $region52
        $region51: #{tpu_custom_call.1} parent=11 // pred_region
          _
        $region52: #{tpu_custom_call.1} parent=11 // pred_fallthru
          _
      $region12: #{tpu_custom_call.1} parent=5 // pred_fallthru
        _
      %p351 = scmp.lt.s32.totalorder %s24, 2
      // Predicated region
      $region53: #{tpu_custom_call.1} parent=5 // pred_check
        %p352 = pneg %p351
      $region54: #{tpu_custom_call.1} parent=5 // pred_check_branch
        %354 = sbr.rel (%p352) target = $region56
      $region55: #{tpu_custom_call.1} parent=5 // pred_region
        // Predicated region
        $region57: #{tpu_custom_call.1} parent=55 // pred_check
          %p355 = pneg %p44
        $region58: #{tpu_custom_call.1} parent=55 // pred_check_branch
          %357 = sbr.rel (%p355) target = $region60
        $region59: #{tpu_custom_call.1} parent=55 // pred_region
          %s358 = sand.u32 %s34, 1
          %s359 = scalar_lea.sflag [#allocation3], %s358
          %s360 = sand.u32 %s34, 1
          %s361 = smul.addr %s360, 16
          %s362 = scalar_lea.vmem [#allocation2], %s361
          %364 = vsyncadd %s359, 0
          %s365 = smul.addr %s24, 2
          %s366 = smul.addr %s365, 8
          %s367 = scalar_lea.hbm %s0, %s366
          %s369 = sshll.u32 %s367, 4
          %s370 = int_to_ptr.hbm [resolvable:$true] %s369
          %s371 = sshll.u32 %s362, 4
          %s372 = int_to_ptr.vmem [resolvable:$true] %s371
          %374 = dma.hbm_to_vmem [thread:$0]  %s370, 256, %s372, %s359
        $region60: #{tpu_custom_call.1} parent=55 // pred_fallthru
          _
      $region56: #{tpu_custom_call.1} parent=5 // pred_fallthru
        _
      %p375 = scmp.le.s32.totalorder 1, %s24
      %p376 = scmp.lt.s32.totalorder %s24, 3
      %p377 = pnand %p375, %p376
      %p378 = pneg %p377
      // Predicated region
      $region61: #{tpu_custom_call.1} parent=5 // pred_check
        _
      $region62: #{tpu_custom_call.1} parent=5 // pred_check_branch
        %380 = sbr.rel (%p377) target = $region64
      $region63: #{tpu_custom_call.1} parent=5 // pred_region
        %s381 = ssub.s32 %s24, 1
        %s382 = sand.u32 %s37, 1
        %s383 = scalar_lea.sflag [#allocation3], %s382
        %s384 = sand.u32 %s37, 1
        %s385 = smul.addr %s384, 16
        %s386 = scalar_lea.vmem [#allocation2], %s385
        // Predicated region
        $region65: #{tpu_custom_call.1} parent=63 // pred_check
          %p387 = pneg %p50
        $region66: #{tpu_custom_call.1} parent=63 // pred_check_branch
          %389 = sbr.rel (%p387) target = $region68
        $region67: #{tpu_custom_call.1} parent=63 // pred_region
          %391 = dma.done %s383, 256
        $region68: #{tpu_custom_call.1} parent=63 // pred_fallthru
          _
        // Predicated region
        $region69: #{tpu_custom_call.1} parent=63 // pred_check
          %p392 = pneg %p71
        $region70: #{tpu_custom_call.1} parent=63 // pred_check_branch
          %394 = sbr.rel (%p392) target = $region72
        $region71: #{tpu_custom_call.1} parent=63 // pred_region
          %396 = dma.done [#allocation6], 73728
        $region72: #{tpu_custom_call.1} parent=63 // pred_fallthru
          _
        // Predicated region
        $region73: #{tpu_custom_call.1} parent=63 // pred_check
          %p397 = pneg %p239
        $region74: #{tpu_custom_call.1} parent=63 // pred_check_branch
          %399 = sbr.rel (%p397) target = $region76
        $region75: #{tpu_custom_call.1} parent=63 // pred_region
          %401 = dma.done [#allocation6], 128
        $region76: #{tpu_custom_call.1} parent=63 // pred_fallthru
          _
        %s402 = sand.u32 %s37, 1
        %s403 = scalar_lea.sflag [#allocation3], %s402
        %s404 = sand.u32 %s37, 1
        %s405 = smul.addr %s404, 16
        %s406 = scalar_lea.vmem [#allocation2], %s405
        %p407 = pneg %p50
        %p408 = pneg %p47
        %p409 = pneg %p71
        %p410 = pneg %p68
        %p411 = pneg %p92
        %p412 = pneg %p89
        %p413 = pneg %p113
        %p414 = pneg %p110
        %p415 = pneg %p134
        %p416 = pneg %p131
        %p417 = pneg %p155
        %p418 = pneg %p152
        %p419 = pneg %p176
        %p420 = pneg %p173
        %p421 = pneg %p197
        %p422 = pneg %p194
        %p423 = pneg %p218
        %p424 = pneg %p215
        %p425 = pneg %p239
        %p426 = pneg %p236
        %p427 = pneg %p260
        %p428 = pneg %p257
        %p429 = pneg %p286
        %p430 = pneg %p283
        %s431 = sand.u32 %s273, 1
        %s432 = scalar_lea.sflag [#allocation4], %s431
        %s433 = sand.u32 %s273, 1
        %s434 = smul.addr %s433, 16
        %s435 = scalar_lea.vmem [#allocation8], %s434
        %v436 = vld [vmem:[%s386] sm:$0xff]
        %v437 = vld [vmem:[%s386 + $0x8] sm:$0xff]
        %v438 = vld [vmem:[%s2] sm:$0xff]
        %v439 = vld [vmem:[%s2 + $0x8] sm:$0xff]
        %v440 = vld [vmem:[%s2 + $0x10] sm:$0xff]
        %v441 = vld [vmem:[%s2 + $0x18] sm:$0xff]
        %v442 = vld [vmem:[%s3] sm:$0xff]
        %v443 = vld [vmem:[%s3 + $0x8] sm:$0xff]
        %v444 = vld [vmem:[%s3 + $0x10] sm:$0xff]
        %v445 = vld [vmem:[%s3 + $0x18] sm:$0xff]
        %447 = vset.pattern.permute.xlu0 0
        %448 = vperm.xlu0 %447, %v442
        %v449 = vpop.permute.xlu0 %448
        %452 = vset.pattern.permute.xlu0 0
        %453 = vperm.xlu0 %452, %v443
        %v454 = vpop.permute.xlu0 %453
        %457 = vset.pattern.permute.xlu0 0
        %458 = vperm.xlu0 %457, %v444
        %v459 = vpop.permute.xlu0 %458
        %462 = vset.pattern.permute.xlu0 0
        %463 = vperm.xlu0 %462, %v445
        %v464 = vpop.permute.xlu0 %463
        %vm466 = vcmask 64512
        %v468 = vsel %vm466, %v438, 0
        %v471 = vsel %vm466, %v439, 0
        %v474 = vsel %vm466, %v440, 0
        %v477 = vsel %vm466, %v441, 0
        %479 = vmatpush.msra.mxu0 0.0
        %480 = vmatpush.msra.mxu0 0.0
        %481 = vmatpush.msra.mxu0 0.0
        %482 = vmatpush.msra.mxu0 0.0
        %483 = vmatpush.msra.mxu0 0.0
        %484 = vmatpush.msra.mxu0 0.0
        %485 = vmatpush.msra.mxu0 0.0
        %486 = vmatpush.msra.mxu0 0.0
        %487 = vmatpush.msra.mxu0 0.0
        %488 = vmatpush.msra.mxu0 0.0
        %489 = vmatpush.msra.mxu0 0.0
        %490 = vmatpush.msra.mxu0 0.0
        %491 = vmatpush.msra.mxu0 0.0
        %492 = vmatpush.msra.mxu0 0.0
        %493 = vmatpush.msra.mxu0 0.0
        %494 = vmatpush.msra.mxu0 %v436
        %495 = vmatmul.f32.gmra.mxu0 %v468
        %v496 = vpop.f32.mrf.mxu0
        %v497 = vadd.f32 %v449, %v496
        %498 = vmatmul.f32.gmra.mxu0 %v471
        %v499 = vpop.f32.mrf.mxu0
        %v500 = vadd.f32 %v454, %v499
        %501 = vmatmul.f32.gmra.mxu0 %v474
        %v502 = vpop.f32.mrf.mxu0
        %v503 = vadd.f32 %v459, %v502
        %504 = vmatmul.f32.gmra.mxu0 %v477
        %v505 = vpop.f32.mrf.mxu0
        %v506 = vadd.f32 %v464, %v505
        %507 = vdwg.mxu0
        %508 = vmatpush.msra.mxu0 0.0
        %509 = vmatpush.msra.mxu0 0.0
        %510 = vmatpush.msra.mxu0 0.0
        %511 = vmatpush.msra.mxu0 0.0
        %512 = vmatpush.msra.mxu0 0.0
        %513 = vmatpush.msra.mxu0 0.0
        %514 = vmatpush.msra.mxu0 0.0
        %515 = vmatpush.msra.mxu0 0.0
        %516 = vmatpush.msra.mxu0 0.0
        %517 = vmatpush.msra.mxu0 0.0
        %518 = vmatpush.msra.mxu0 0.0
        %519 = vmatpush.msra.mxu0 0.0
        %520 = vmatpush.msra.mxu0 0.0
        %521 = vmatpush.msra.mxu0 0.0
        %522 = vmatpush.msra.mxu0 0.0
        %523 = vmatpush.msra.mxu0 %v437
        %524 = vmatmul.f32.gmra.mxu0 %v468
        %v525 = vpop.f32.mrf.mxu0
        %v526 = vadd.f32 %v449, %v525
        %527 = vmatmul.f32.gmra.mxu0 %v471
        %v528 = vpop.f32.mrf.mxu0
        %v529 = vadd.f32 %v454, %v528
        %530 = vmatmul.f32.gmra.mxu0 %v474
        %v531 = vpop.f32.mrf.mxu0
        %v532 = vadd.f32 %v459, %v531
        %533 = vmatmul.f32.gmra.mxu0 %v477
        %v534 = vpop.f32.mrf.mxu0
        %v535 = vadd.f32 %v464, %v534
        %536 = vdwg.mxu0
        %v537 = vld [vmem:[%s4] sm:$0xff]
        %v538 = vld [vmem:[%s4 + $0x8] sm:$0xff]
        %v539 = vld [vmem:[%s4 + $0x10] sm:$0xff]
        %v540 = vld [vmem:[%s4 + $0x18] sm:$0xff]
        %v541 = vld [vmem:[%s4 + $0x20] sm:$0xff]
        %v542 = vld [vmem:[%s4 + $0x28] sm:$0xff]
        %v543 = vld [vmem:[%s4 + $0x30] sm:$0xff]
        %v544 = vld [vmem:[%s4 + $0x38] sm:$0xff]
        %v545 = vld [vmem:[%s4 + $0x40] sm:$0xff]
        %v546 = vld [vmem:[%s4 + $0x48] sm:$0xff]
        %v547 = vld [vmem:[%s4 + $0x50] sm:$0xff]
        %v548 = vld [vmem:[%s4 + $0x58] sm:$0xff]
        %v549 = vld [vmem:[%s4 + $0x60] sm:$0xff]
        %v550 = vld [vmem:[%s4 + $0x68] sm:$0xff]
        %v551 = vld [vmem:[%s4 + $0x70] sm:$0xff]
        %v552 = vld [vmem:[%s4 + $0x78] sm:$0xff]
        %v553 = vld [vmem:[%s4 + $0x80] sm:$0xff]
        %v554 = vld [vmem:[%s4 + $0x88] sm:$0xff]
        %v555 = vld [vmem:[%s4 + $0x90] sm:$0xff]
        %v556 = vld [vmem:[%s4 + $0x98] sm:$0xff]
        %v557 = vld [vmem:[%s4 + $0xa0] sm:$0xff]
        %v558 = vld [vmem:[%s4 + $0xa8] sm:$0xff]
        %v559 = vld [vmem:[%s4 + $0xb0] sm:$0xff]
        %v560 = vld [vmem:[%s4 + $0xb8] sm:$0xff]
        %v561 = vld [vmem:[%s4 + $0xc0] sm:$0xff]
        %v562 = vld [vmem:[%s4 + $0xc8] sm:$0xff]
        %v563 = vld [vmem:[%s4 + $0xd0] sm:$0xff]
        %v564 = vld [vmem:[%s4 + $0xd8] sm:$0xff]
        %v565 = vld [vmem:[%s4 + $0xe0] sm:$0xff]
        %v566 = vld [vmem:[%s4 + $0xe8] sm:$0xff]
        %v567 = vld [vmem:[%s4 + $0xf0] sm:$0xff]
        %v568 = vld [vmem:[%s4 + $0xf8] sm:$0xff]
        %v569 = vld [vmem:[%s4 + $0x100] sm:$0xff]
        %v570 = vld [vmem:[%s4 + $0x108] sm:$0xff]
        %v571 = vld [vmem:[%s4 + $0x110] sm:$0xff]
        %v572 = vld [vmem:[%s4 + $0x118] sm:$0xff]
        %v573 = vld [vmem:[%s5] sm:$0xff]
        %v574 = vld [vmem:[%s5 + $0x8] sm:$0xff]
        %v575 = vld [vmem:[%s5 + $0x10] sm:$0xff]
        %v576 = vld [vmem:[%s5 + $0x18] sm:$0xff]
        %vm577 = vcmask 261120
        %v579 = vsel %vm577, %v537, 0
        %v582 = vsel %vm577, %v538, 0
        %v585 = vsel %vm577, %v539, 0
        %v588 = vsel %vm577, %v540, 0
        %v591 = vsel %vm577, %v541, 0
        %v594 = vsel %vm577, %v542, 0
        %v597 = vsel %vm577, %v543, 0
        %v600 = vsel %vm577, %v544, 0
        %v603 = vsel %vm577, %v545, 0
        %v606 = vsel %vm577, %v546, 0
        %v609 = vsel %vm577, %v547, 0
        %v612 = vsel %vm577, %v548, 0
        %v615 = vsel %vm577, %v549, 0
        %v618 = vsel %vm577, %v550, 0
        %v621 = vsel %vm577, %v551, 0
        %v624 = vsel %vm577, %v552, 0
        %v627 = vsel %vm577, %v553, 0
        %v630 = vsel %vm577, %v554, 0
        %v633 = vsel %vm577, %v555, 0
        %v636 = vsel %vm577, %v556, 0
        %v639 = vsel %vm577, %v557, 0
        %v642 = vsel %vm577, %v558, 0
        %v645 = vsel %vm577, %v559, 0
        %v648 = vsel %vm577, %v560, 0
        %v651 = vsel %vm577, %v561, 0
        %v654 = vsel %vm577, %v562, 0
        %v657 = vsel %vm577, %v563, 0
        %v660 = vsel %vm577, %v564, 0
        %v663 = vsel %vm577, %v565, 0
        %v666 = vsel %vm577, %v566, 0
        %v669 = vsel %vm577, %v567, 0
        %v672 = vsel %vm577, %v568, 0
        %v675 = vsel %vm577, %v569, 0
        %v678 = vsel %vm577, %v570, 0
        %v681 = vsel %vm577, %v571, 0
        %v684 = vsel %vm577, %v572, 0
        %686 = vmatpush.msra.mxu0 0.0
        %687 = vmatpush.msra.mxu0 0.0
        %688 = vmatpush.msra.mxu0 0.0
        %689 = vmatpush.msra.mxu0 0.0
        %690 = vmatpush.msra.mxu0 0.0
        %691 = vmatpush.msra.mxu0 0.0
        %692 = vmatpush.msra.mxu0 0.0
        %693 = vmatpush.msra.mxu0 0.0
        %694 = vmatpush.msra.mxu0 0.0
        %695 = vmatpush.msra.mxu0 0.0
        %696 = vmatpush.msra.mxu0 0.0
        %697 = vmatpush.msra.mxu0 0.0
        %698 = vmatpush.msra.mxu0 %v506
        %699 = vmatpush.msra.mxu0 %v503
        %700 = vmatpush.msra.mxu0 %v500
        %701 = vmatpush.msra.mxu0 %v497
        %702 = vmatmul.f32.gmra.mxu0 %v579
        %v703 = vpop.f32.mrf.mxu0
        %v704 = vadd.f32 0.0, %v703
        %705 = vmatmul.f32.gmra.mxu0 %v582
        %v706 = vpop.f32.mrf.mxu0
        %v707 = vadd.f32 0.0, %v706
        %708 = vmatmul.f32.gmra.mxu0 %v585
        %v709 = vpop.f32.mrf.mxu0
        %v710 = vadd.f32 0.0, %v709
        %711 = vmatmul.f32.gmra.mxu0 %v588
        %v712 = vpop.f32.mrf.mxu0
        %v713 = vadd.f32 0.0, %v712
        %714 = vmatmul.f32.gmra.mxu0 %v591
        %v715 = vpop.f32.mrf.mxu0
        %v716 = vadd.f32 0.0, %v715
        %717 = vmatmul.f32.gmra.mxu0 %v594
        %v718 = vpop.f32.mrf.mxu0
        %v719 = vadd.f32 0.0, %v718
        %720 = vmatmul.f32.gmra.mxu0 %v597
        %v721 = vpop.f32.mrf.mxu0
        %v722 = vadd.f32 0.0, %v721
        %723 = vmatmul.f32.gmra.mxu0 %v600
        %v724 = vpop.f32.mrf.mxu0
        %v725 = vadd.f32 0.0, %v724
        %726 = vmatmul.f32.gmra.mxu0 %v603
        %v727 = vpop.f32.mrf.mxu0
        %v728 = vadd.f32 0.0, %v727
        %729 = vmatmul.f32.gmra.mxu0 %v606
        %v730 = vpop.f32.mrf.mxu0
        %v731 = vadd.f32 0.0, %v730
        %732 = vmatmul.f32.gmra.mxu0 %v609
        %v733 = vpop.f32.mrf.mxu0
        %v734 = vadd.f32 0.0, %v733
        %735 = vmatmul.f32.gmra.mxu0 %v612
        %v736 = vpop.f32.mrf.mxu0
        %v737 = vadd.f32 0.0, %v736
        %738 = vmatmul.f32.gmra.mxu0 %v615
        %v739 = vpop.f32.mrf.mxu0
        %v740 = vadd.f32 0.0, %v739
        %741 = vmatmul.f32.gmra.mxu0 %v618
        %v742 = vpop.f32.mrf.mxu0
        %v743 = vadd.f32 0.0, %v742
        %744 = vmatmul.f32.gmra.mxu0 %v621
        %v745 = vpop.f32.mrf.mxu0
        %v746 = vadd.f32 0.0, %v745
        %747 = vmatmul.f32.gmra.mxu0 %v624
        %v748 = vpop.f32.mrf.mxu0
        %v749 = vadd.f32 0.0, %v748
        %750 = vmatmul.f32.gmra.mxu0 %v627
        %v751 = vpop.f32.mrf.mxu0
        %v752 = vadd.f32 0.0, %v751
        %753 = vmatmul.f32.gmra.mxu0 %v630
        %v754 = vpop.f32.mrf.mxu0
        %v755 = vadd.f32 0.0, %v754
        %756 = vmatmul.f32.gmra.mxu0 %v633
        %v757 = vpop.f32.mrf.mxu0
        %v758 = vadd.f32 0.0, %v757
        %759 = vmatmul.f32.gmra.mxu0 %v636
        %v760 = vpop.f32.mrf.mxu0
        %v761 = vadd.f32 0.0, %v760
        %762 = vmatmul.f32.gmra.mxu0 %v639
        %v763 = vpop.f32.mrf.mxu0
        %v764 = vadd.f32 0.0, %v763
        %765 = vmatmul.f32.gmra.mxu0 %v642
        %v766 = vpop.f32.mrf.mxu0
        %v767 = vadd.f32 0.0, %v766
        %768 = vmatmul.f32.gmra.mxu0 %v645
        %v769 = vpop.f32.mrf.mxu0
        %v770 = vadd.f32 0.0, %v769
        %771 = vmatmul.f32.gmra.mxu0 %v648
        %v772 = vpop.f32.mrf.mxu0
        %v773 = vadd.f32 0.0, %v772
        %774 = vmatmul.f32.gmra.mxu0 %v651
        %v775 = vpop.f32.mrf.mxu0
        %v776 = vadd.f32 0.0, %v775
        %777 = vmatmul.f32.gmra.mxu0 %v654
        %v778 = vpop.f32.mrf.mxu0
        %v779 = vadd.f32 0.0, %v778
        %780 = vmatmul.f32.gmra.mxu0 %v657
        %v781 = vpop.f32.mrf.mxu0
        %v782 = vadd.f32 0.0, %v781
        %783 = vmatmul.f32.gmra.mxu0 %v660
        %v784 = vpop.f32.mrf.mxu0
        %v785 = vadd.f32 0.0, %v784
        %786 = vmatmul.f32.gmra.mxu0 %v663
        %v787 = vpop.f32.mrf.mxu0
        %v788 = vadd.f32 0.0, %v787
        %789 = vmatmul.f32.gmra.mxu0 %v666
        %v790 = vpop.f32.mrf.mxu0
        %v791 = vadd.f32 0.0, %v790
        %792 = vmatmul.f32.gmra.mxu0 %v669
        %v793 = vpop.f32.mrf.mxu0
        %v794 = vadd.f32 0.0, %v793
        %795 = vmatmul.f32.gmra.mxu0 %v672
        %v796 = vpop.f32.mrf.mxu0
        %v797 = vadd.f32 0.0, %v796
        %798 = vmatmul.f32.gmra.mxu0 %v675
        %v799 = vpop.f32.mrf.mxu0
        %v800 = vadd.f32 0.0, %v799
        %801 = vmatmul.f32.gmra.mxu0 %v678
        %v802 = vpop.f32.mrf.mxu0
        %v803 = vadd.f32 0.0, %v802
        %804 = vmatmul.f32.gmra.mxu0 %v681
        %v805 = vpop.f32.mrf.mxu0
        %v806 = vadd.f32 0.0, %v805
        %807 = vmatmul.f32.gmra.mxu0 %v684
        %v808 = vpop.f32.mrf.mxu0
        %v809 = vadd.f32 0.0, %v808
        %810 = vdwg.mxu0
        %811 = vmatpush.msra.mxu0 0.0
        %812 = vmatpush.msra.mxu0 0.0
        %813 = vmatpush.msra.mxu0 0.0
        %814 = vmatpush.msra.mxu0 0.0
        %815 = vmatpush.msra.mxu0 0.0
        %816 = vmatpush.msra.mxu0 0.0
        %817 = vmatpush.msra.mxu0 0.0
        %818 = vmatpush.msra.mxu0 0.0
        %819 = vmatpush.msra.mxu0 0.0
        %820 = vmatpush.msra.mxu0 0.0
        %821 = vmatpush.msra.mxu0 0.0
        %822 = vmatpush.msra.mxu0 0.0
        %823 = vmatpush.msra.mxu0 %v535
        %824 = vmatpush.msra.mxu0 %v532
        %825 = vmatpush.msra.mxu0 %v529
        %826 = vmatpush.msra.mxu0 %v526
        %827 = vmatmul.f32.gmra.mxu0 %v579
        %v828 = vpop.f32.mrf.mxu0
        %v829 = vadd.f32 0.0, %v828
        %830 = vmatmul.f32.gmra.mxu0 %v582
        %v831 = vpop.f32.mrf.mxu0
        %v832 = vadd.f32 0.0, %v831
        %833 = vmatmul.f32.gmra.mxu0 %v585
        %v834 = vpop.f32.mrf.mxu0
        %v835 = vadd.f32 0.0, %v834
        %836 = vmatmul.f32.gmra.mxu0 %v588
        %v837 = vpop.f32.mrf.mxu0
        %v838 = vadd.f32 0.0, %v837
        %839 = vmatmul.f32.gmra.mxu0 %v591
        %v840 = vpop.f32.mrf.mxu0
        %v841 = vadd.f32 0.0, %v840
        %842 = vmatmul.f32.gmra.mxu0 %v594
        %v843 = vpop.f32.mrf.mxu0
        %v844 = vadd.f32 0.0, %v843
        %845 = vmatmul.f32.gmra.mxu0 %v597
        %v846 = vpop.f32.mrf.mxu0
        %v847 = vadd.f32 0.0, %v846
        %848 = vmatmul.f32.gmra.mxu0 %v600
        %v849 = vpop.f32.mrf.mxu0
        %v850 = vadd.f32 0.0, %v849
        %851 = vmatmul.f32.gmra.mxu0 %v603
        %v852 = vpop.f32.mrf.mxu0
        %v853 = vadd.f32 0.0, %v852
        %854 = vmatmul.f32.gmra.mxu0 %v606
        %v855 = vpop.f32.mrf.mxu0
        %v856 = vadd.f32 0.0, %v855
        %857 = vmatmul.f32.gmra.mxu0 %v609
        %v858 = vpop.f32.mrf.mxu0
        %v859 = vadd.f32 0.0, %v858
        %860 = vmatmul.f32.gmra.mxu0 %v612
        %v861 = vpop.f32.mrf.mxu0
        %v862 = vadd.f32 0.0, %v861
        %863 = vmatmul.f32.gmra.mxu0 %v615
        %v864 = vpop.f32.mrf.mxu0
        %v865 = vadd.f32 0.0, %v864
        %866 = vmatmul.f32.gmra.mxu0 %v618
        %v867 = vpop.f32.mrf.mxu0
        %v868 = vadd.f32 0.0, %v867
        %869 = vmatmul.f32.gmra.mxu0 %v621
        %v870 = vpop.f32.mrf.mxu0
        %v871 = vadd.f32 0.0, %v870
        %872 = vmatmul.f32.gmra.mxu0 %v624
        %v873 = vpop.f32.mrf.mxu0
        %v874 = vadd.f32 0.0, %v873
        %875 = vmatmul.f32.gmra.mxu0 %v627
        %v876 = vpop.f32.mrf.mxu0
        %v877 = vadd.f32 0.0, %v876
        %878 = vmatmul.f32.gmra.mxu0 %v630
        %v879 = vpop.f32.mrf.mxu0
        %v880 = vadd.f32 0.0, %v879
        %881 = vmatmul.f32.gmra.mxu0 %v633
        %v882 = vpop.f32.mrf.mxu0
        %v883 = vadd.f32 0.0, %v882
        %884 = vmatmul.f32.gmra.mxu0 %v636
        %v885 = vpop.f32.mrf.mxu0
        %v886 = vadd.f32 0.0, %v885
        %887 = vmatmul.f32.gmra.mxu0 %v639
        %v888 = vpop.f32.mrf.mxu0
        %v889 = vadd.f32 0.0, %v888
        %890 = vmatmul.f32.gmra.mxu0 %v642
        %v891 = vpop.f32.mrf.mxu0
        %v892 = vadd.f32 0.0, %v891
        %893 = vmatmul.f32.gmra.mxu0 %v645
        %v894 = vpop.f32.mrf.mxu0
        %v895 = vadd.f32 0.0, %v894
        %896 = vmatmul.f32.gmra.mxu0 %v648
        %v897 = vpop.f32.mrf.mxu0
        %v898 = vadd.f32 0.0, %v897
        %899 = vmatmul.f32.gmra.mxu0 %v651
        %v900 = vpop.f32.mrf.mxu0
        %v901 = vadd.f32 0.0, %v900
        %902 = vmatmul.f32.gmra.mxu0 %v654
        %v903 = vpop.f32.mrf.mxu0
        %v904 = vadd.f32 0.0, %v903
        %905 = vmatmul.f32.gmra.mxu0 %v657
        %v906 = vpop.f32.mrf.mxu0
        %v907 = vadd.f32 0.0, %v906
        %908 = vmatmul.f32.gmra.mxu0 %v660
        %v909 = vpop.f32.mrf.mxu0
        %v910 = vadd.f32 0.0, %v909
        %911 = vmatmul.f32.gmra.mxu0 %v663
        %v912 = vpop.f32.mrf.mxu0
        %v913 = vadd.f32 0.0, %v912
        %914 = vmatmul.f32.gmra.mxu0 %v666
        %v915 = vpop.f32.mrf.mxu0
        %v916 = vadd.f32 0.0, %v915
        %917 = vmatmul.f32.gmra.mxu0 %v669
        %v918 = vpop.f32.mrf.mxu0
        %v919 = vadd.f32 0.0, %v918
        %920 = vmatmul.f32.gmra.mxu0 %v672
        %v921 = vpop.f32.mrf.mxu0
        %v922 = vadd.f32 0.0, %v921
        %923 = vmatmul.f32.gmra.mxu0 %v675
        %v924 = vpop.f32.mrf.mxu0
        %v925 = vadd.f32 0.0, %v924
        %926 = vmatmul.f32.gmra.mxu0 %v678
        %v927 = vpop.f32.mrf.mxu0
        %v928 = vadd.f32 0.0, %v927
        %929 = vmatmul.f32.gmra.mxu0 %v681
        %v930 = vpop.f32.mrf.mxu0
        %v931 = vadd.f32 0.0, %v930
        %932 = vmatmul.f32.gmra.mxu0 %v684
        %v933 = vpop.f32.mrf.mxu0
        %v934 = vadd.f32 0.0, %v933
        %935 = vdwg.mxu0
        %v936 = vld [vmem:[#allocation5] sm:$0xff]
        %v937 = vld [vmem:[#allocation5 + $0x8] sm:$0xff]
        %v938 = vld [vmem:[#allocation5 + $0x10] sm:$0xff]
        %v939 = vld [vmem:[#allocation5 + $0x18] sm:$0xff]
        %v940 = vld [vmem:[#allocation5 + $0x20] sm:$0xff]
        %v941 = vld [vmem:[#allocation5 + $0x28] sm:$0xff]
        %v942 = vld [vmem:[#allocation5 + $0x30] sm:$0xff]
        %v943 = vld [vmem:[#allocation5 + $0x38] sm:$0xff]
        %v944 = vld [vmem:[#allocation5 + $0x40] sm:$0xff]
        %v945 = vld [vmem:[#allocation5 + $0x48] sm:$0xff]
        %v946 = vld [vmem:[#allocation5 + $0x50] sm:$0xff]
        %v947 = vld [vmem:[#allocation5 + $0x58] sm:$0xff]
        %v948 = vld [vmem:[#allocation5 + $0x60] sm:$0xff]
        %v949 = vld [vmem:[#allocation5 + $0x68] sm:$0xff]
        %v950 = vld [vmem:[#allocation5 + $0x70] sm:$0xff]
        %v951 = vld [vmem:[#allocation5 + $0x78] sm:$0xff]
        %v952 = vld [vmem:[#allocation5 + $0x80] sm:$0xff]
        %v953 = vld [vmem:[#allocation5 + $0x88] sm:$0xff]
        %v954 = vld [vmem:[#allocation5 + $0x90] sm:$0xff]
        %v955 = vld [vmem:[#allocation5 + $0x98] sm:$0xff]
        %v956 = vld [vmem:[#allocation5 + $0xa0] sm:$0xff]
        %v957 = vld [vmem:[#allocation5 + $0xa8] sm:$0xff]
        %v958 = vld [vmem:[#allocation5 + $0xb0] sm:$0xff]
        %v959 = vld [vmem:[#allocation5 + $0xb8] sm:$0xff]
        %v960 = vld [vmem:[#allocation5 + $0xc0] sm:$0xff]
        %v961 = vld [vmem:[#allocation5 + $0xc8] sm:$0xff]
        %v962 = vld [vmem:[#allocation5 + $0xd0] sm:$0xff]
        %v963 = vld [vmem:[#allocation5 + $0xd8] sm:$0xff]
        %v964 = vld [vmem:[#allocation5 + $0xe0] sm:$0xff]
        %v965 = vld [vmem:[#allocation5 + $0xe8] sm:$0xff]
        %v966 = vld [vmem:[#allocation5 + $0xf0] sm:$0xff]
        %v967 = vld [vmem:[#allocation5 + $0xf8] sm:$0xff]
        %v968 = vld [vmem:[#allocation5 + $0x100] sm:$0xff]
        %v969 = vld [vmem:[#allocation5 + $0x108] sm:$0xff]
        %v970 = vld [vmem:[#allocation5 + $0x110] sm:$0xff]
        %v971 = vld [vmem:[#allocation5 + $0x118] sm:$0xff]
        %v972 = vld [vmem:[#allocation5 + $0x120] sm:$0xff]
        %v973 = vld [vmem:[#allocation5 + $0x128] sm:$0xff]
        %v974 = vld [vmem:[#allocation5 + $0x130] sm:$0xff]
        %v975 = vld [vmem:[#allocation5 + $0x138] sm:$0xff]
        %v976 = vld [vmem:[#allocation5 + $0x140] sm:$0xff]
        %v977 = vld [vmem:[#allocation5 + $0x148] sm:$0xff]
        %v978 = vld [vmem:[#allocation5 + $0x150] sm:$0xff]
        %v979 = vld [vmem:[#allocation5 + $0x158] sm:$0xff]
        %v980 = vld [vmem:[#allocation5 + $0x160] sm:$0xff]
        %v981 = vld [vmem:[#allocation5 + $0x168] sm:$0xff]
        %v982 = vld [vmem:[#allocation5 + $0x170] sm:$0xff]
        %v983 = vld [vmem:[#allocation5 + $0x178] sm:$0xff]
        %v984 = vld [vmem:[#allocation5 + $0x180] sm:$0xff]
        %v985 = vld [vmem:[#allocation5 + $0x188] sm:$0xff]
        %v986 = vld [vmem:[#allocation5 + $0x190] sm:$0xff]
        %v987 = vld [vmem:[#allocation5 + $0x198] sm:$0xff]
        %v988 = vld [vmem:[#allocation5 + $0x1a0] sm:$0xff]
        %v989 = vld [vmem:[#allocation5 + $0x1a8] sm:$0xff]
        %v990 = vld [vmem:[#allocation5 + $0x1b0] sm:$0xff]
        %v991 = vld [vmem:[#allocation5 + $0x1b8] sm:$0xff]
        %v992 = vld [vmem:[#allocation5 + $0x1c0] sm:$0xff]
        %v993 = vld [vmem:[#allocation5 + $0x1c8] sm:$0xff]
        %v994 = vld [vmem:[#allocation5 + $0x1d0] sm:$0xff]
        %v995 = vld [vmem:[#allocation5 + $0x1d8] sm:$0xff]
        %v996 = vld [vmem:[#allocation5 + $0x1e0] sm:$0xff]
        %v997 = vld [vmem:[#allocation5 + $0x1e8] sm:$0xff]
        %v998 = vld [vmem:[#allocation5 + $0x1f0] sm:$0xff]
        %v999 = vld [vmem:[#allocation5 + $0x1f8] sm:$0xff]
        %s1000 = scalar_lea.vmem [#allocation5], 512
        %v1001 = vld [vmem:[%s1000] sm:$0xff]
        %v1002 = vld [vmem:[%s1000 + $0x8] sm:$0xff]
        %v1003 = vld [vmem:[%s1000 + $0x10] sm:$0xff]
        %v1004 = vld [vmem:[%s1000 + $0x18] sm:$0xff]
        %v1005 = vld [vmem:[%s1000 + $0x20] sm:$0xff]
        %v1006 = vld [vmem:[%s1000 + $0x28] sm:$0xff]
        %v1007 = vld [vmem:[%s1000 + $0x30] sm:$0xff]
        %v1008 = vld [vmem:[%s1000 + $0x38] sm:$0xff]
        %v1009 = vld [vmem:[%s1000 + $0x40] sm:$0xff]
        %v1010 = vld [vmem:[%s1000 + $0x48] sm:$0xff]
        %v1011 = vld [vmem:[%s1000 + $0x50] sm:$0xff]
        %v1012 = vld [vmem:[%s1000 + $0x58] sm:$0xff]
        %v1013 = vld [vmem:[%s1000 + $0x60] sm:$0xff]
        %v1014 = vld [vmem:[%s1000 + $0x68] sm:$0xff]
        %v1015 = vld [vmem:[%s1000 + $0x70] sm:$0xff]
        %v1016 = vld [vmem:[%s1000 + $0x78] sm:$0xff]
        %v1017 = vld [vmem:[%s1000 + $0x80] sm:$0xff]
        %v1018 = vld [vmem:[%s1000 + $0x88] sm:$0xff]
        %v1019 = vld [vmem:[%s1000 + $0x90] sm:$0xff]
        %v1020 = vld [vmem:[%s1000 + $0x98] sm:$0xff]
        %v1021 = vld [vmem:[%s1000 + $0xa0] sm:$0xff]
        %v1022 = vld [vmem:[%s1000 + $0xa8] sm:$0xff]
        %v1023 = vld [vmem:[%s1000 + $0xb0] sm:$0xff]
        %v1024 = vld [vmem:[%s1000 + $0xb8] sm:$0xff]
        %v1025 = vld [vmem:[%s1000 + $0xc0] sm:$0xff]
        %v1026 = vld [vmem:[%s1000 + $0xc8] sm:$0xff]
        %v1027 = vld [vmem:[%s1000 + $0xd0] sm:$0xff]
        %v1028 = vld [vmem:[%s1000 + $0xd8] sm:$0xff]
        %v1029 = vld [vmem:[%s1000 + $0xe0] sm:$0xff]
        %v1030 = vld [vmem:[%s1000 + $0xe8] sm:$0xff]
        %v1031 = vld [vmem:[%s1000 + $0xf0] sm:$0xff]
        %v1032 = vld [vmem:[%s1000 + $0xf8] sm:$0xff]
        %v1033 = vld [vmem:[%s1000 + $0x100] sm:$0xff]
        %v1034 = vld [vmem:[%s1000 + $0x108] sm:$0xff]
        %v1035 = vld [vmem:[%s1000 + $0x110] sm:$0xff]
        %v1036 = vld [vmem:[%s1000 + $0x118] sm:$0xff]
        %v1037 = vld [vmem:[%s1000 + $0x120] sm:$0xff]
        %v1038 = vld [vmem:[%s1000 + $0x128] sm:$0xff]
        %v1039 = vld [vmem:[%s1000 + $0x130] sm:$0xff]
        %v1040 = vld [vmem:[%s1000 + $0x138] sm:$0xff]
        %v1041 = vld [vmem:[%s1000 + $0x140] sm:$0xff]
        %v1042 = vld [vmem:[%s1000 + $0x148] sm:$0xff]
        %v1043 = vld [vmem:[%s1000 + $0x150] sm:$0xff]
        %v1044 = vld [vmem:[%s1000 + $0x158] sm:$0xff]
        %v1045 = vld [vmem:[%s1000 + $0x160] sm:$0xff]
        %v1046 = vld [vmem:[%s1000 + $0x168] sm:$0xff]
        %v1047 = vld [vmem:[%s1000 + $0x170] sm:$0xff]
        %v1048 = vld [vmem:[%s1000 + $0x178] sm:$0xff]
        %v1049 = vld [vmem:[%s1000 + $0x180] sm:$0xff]
        %v1050 = vld [vmem:[%s1000 + $0x188] sm:$0xff]
        %v1051 = vld [vmem:[%s1000 + $0x190] sm:$0xff]
        %v1052 = vld [vmem:[%s1000 + $0x198] sm:$0xff]
        %v1053 = vld [vmem:[%s1000 + $0x1a0] sm:$0xff]
        %v1054 = vld [vmem:[%s1000 + $0x1a8] sm:$0xff]
        %v1055 = vld [vmem:[%s1000 + $0x1b0] sm:$0xff]
        %v1056 = vld [vmem:[%s1000 + $0x1b8] sm:$0xff]
        %v1057 = vld [vmem:[%s1000 + $0x1c0] sm:$0xff]
        %v1058 = vld [vmem:[%s1000 + $0x1c8] sm:$0xff]
        %v1059 = vld [vmem:[%s1000 + $0x1d0] sm:$0xff]
        %v1060 = vld [vmem:[%s1000 + $0x1d8] sm:$0xff]
        %v1061 = vld [vmem:[%s1000 + $0x1e0] sm:$0xff]
        %v1062 = vld [vmem:[%s1000 + $0x1e8] sm:$0xff]
        %v1063 = vld [vmem:[%s1000 + $0x1f0] sm:$0xff]
        %v1064 = vld [vmem:[%s1000 + $0x1f8] sm:$0xff]
        %1065 = vmatpush.msra.mxu0 %v1031
        %1066 = vmatpush.msra.mxu0 %v1029
        %1067 = vmatpush.msra.mxu0 %v1027
        %1068 = vmatpush.msra.mxu0 %v1025
        %1069 = vmatpush.msra.mxu0 %v1023
        %1070 = vmatpush.msra.mxu0 %v1021
        %1071 = vmatpush.msra.mxu0 %v1019
        %1072 = vmatpush.msra.mxu0 %v1017
        %1073 = vmatpush.msra.mxu0 %v1015
        %1074 = vmatpush.msra.mxu0 %v1013
        %1075 = vmatpush.msra.mxu0 %v1011
        %1076 = vmatpush.msra.mxu0 %v1009
        %1077 = vmatpush.msra.mxu0 %v1007
        %1078 = vmatpush.msra.mxu0 %v1005
        %1079 = vmatpush.msra.mxu0 %v1003
        %1080 = vmatpush.msra.mxu0 %v1001
        %1081 = vmatmul.f32.gmra.mxu0 %v716
        %v1082 = vpop.f32.mrf.mxu0
        %v1083 = vadd.f32 0.0, %v1082
        %1084 = vmatmul.f32.gmra.mxu0 %v719
        %v1085 = vpop.f32.mrf.mxu0
        %v1086 = vadd.f32 0.0, %v1085
        %1087 = vmatmul.f32.gmra.mxu0 %v722
        %v1088 = vpop.f32.mrf.mxu0
        %v1089 = vadd.f32 0.0, %v1088
        %1090 = vmatmul.f32.gmra.mxu0 %v725
        %v1091 = vpop.f32.mrf.mxu0
        %v1092 = vadd.f32 0.0, %v1091
        %1093 = vdwg.mxu0
        %1094 = vmatpush.msra.mxu0 %v1063
        %1095 = vmatpush.msra.mxu0 %v1061
        %1096 = vmatpush.msra.mxu0 %v1059
        %1097 = vmatpush.msra.mxu0 %v1057
        %1098 = vmatpush.msra.mxu0 %v1055
        %1099 = vmatpush.msra.mxu0 %v1053
        %1100 = vmatpush.msra.mxu0 %v1051
        %1101 = vmatpush.msra.mxu0 %v1049
        %1102 = vmatpush.msra.mxu0 %v1047
        %1103 = vmatpush.msra.mxu0 %v1045
        %1104 = vmatpush.msra.mxu0 %v1043
        %1105 = vmatpush.msra.mxu0 %v1041
        %1106 = vmatpush.msra.mxu0 %v1039
        %1107 = vmatpush.msra.mxu0 %v1037
        %1108 = vmatpush.msra.mxu0 %v1035
        %1109 = vmatpush.msra.mxu0 %v1033
        %1110 = vmatmul.f32.gmra.mxu0 %v841
        %v1111 = vpop.f32.mrf.mxu0
        %v1112 = vadd.f32 %v1083, %v1111
        %1113 = vmatmul.f32.gmra.mxu0 %v844
        %v1114 = vpop.f32.mrf.mxu0
        %v1115 = vadd.f32 %v1086, %v1114
        %1116 = vmatmul.f32.gmra.mxu0 %v847
        %v1117 = vpop.f32.mrf.mxu0
        %v1118 = vadd.f32 %v1089, %v1117
        %1119 = vmatmul.f32.gmra.mxu0 %v850
        %v1120 = vpop.f32.mrf.mxu0
        %v1121 = vadd.f32 %v1092, %v1120
        %1122 = vdwg.mxu0
        %1123 = vmatpush.msra.mxu0 %v1032
        %1124 = vmatpush.msra.mxu0 %v1030
        %1125 = vmatpush.msra.mxu0 %v1028
        %1126 = vmatpush.msra.mxu0 %v1026
        %1127 = vmatpush.msra.mxu0 %v1024
        %1128 = vmatpush.msra.mxu0 %v1022
        %1129 = vmatpush.msra.mxu0 %v1020
        %1130 = vmatpush.msra.mxu0 %v1018
        %1131 = vmatpush.msra.mxu0 %v1016
        %1132 = vmatpush.msra.mxu0 %v1014
        %1133 = vmatpush.msra.mxu0 %v1012
        %1134 = vmatpush.msra.mxu0 %v1010
        %1135 = vmatpush.msra.mxu0 %v1008
        %1136 = vmatpush.msra.mxu0 %v1006
        %1137 = vmatpush.msra.mxu0 %v1004
        %1138 = vmatpush.msra.mxu0 %v1002
        %1139 = vmatmul.f32.gmra.mxu0 %v716
        %v1140 = vpop.f32.mrf.mxu0
        %v1141 = vadd.f32 0.0, %v1140
        %1142 = vmatmul.f32.gmra.mxu0 %v719
        %v1143 = vpop.f32.mrf.mxu0
        %v1144 = vadd.f32 0.0, %v1143
        %1145 = vmatmul.f32.gmra.mxu0 %v722
        %v1146 = vpop.f32.mrf.mxu0
        %v1147 = vadd.f32 0.0, %v1146
        %1148 = vmatmul.f32.gmra.mxu0 %v725
        %v1149 = vpop.f32.mrf.mxu0
        %v1150 = vadd.f32 0.0, %v1149
        %1151 = vdwg.mxu0
        %1152 = vmatpush.msra.mxu0 %v1064
        %1153 = vmatpush.msra.mxu0 %v1062
        %1154 = vmatpush.msra.mxu0 %v1060
        %1155 = vmatpush.msra.mxu0 %v1058
        %1156 = vmatpush.msra.mxu0 %v1056
        %1157 = vmatpush.msra.mxu0 %v1054
        %1158 = vmatpush.msra.mxu0 %v1052
        %1159 = vmatpush.msra.mxu0 %v1050
        %1160 = vmatpush.msra.mxu0 %v1048
        %1161 = vmatpush.msra.mxu0 %v1046
        %1162 = vmatpush.msra.mxu0 %v1044
        %1163 = vmatpush.msra.mxu0 %v1042
        %1164 = vmatpush.msra.mxu0 %v1040
        %1165 = vmatpush.msra.mxu0 %v1038
        %1166 = vmatpush.msra.mxu0 %v1036
        %1167 = vmatpush.msra.mxu0 %v1034
        %1168 = vmatmul.f32.gmra.mxu0 %v841
        %v1169 = vpop.f32.mrf.mxu0
        %v1170 = vadd.f32 %v1141, %v1169
        %1171 = vmatmul.f32.gmra.mxu0 %v844
        %v1172 = vpop.f32.mrf.mxu0
        %v1173 = vadd.f32 %v1144, %v1172
        %1174 = vmatmul.f32.gmra.mxu0 %v847
        %v1175 = vpop.f32.mrf.mxu0
        %v1176 = vadd.f32 %v1147, %v1175
        %1177 = vmatmul.f32.gmra.mxu0 %v850
        %v1178 = vpop.f32.mrf.mxu0
        %v1179 = vadd.f32 %v1150, %v1178
        %1180 = vdwg.mxu0
        %1181 = vmatpush.msra.mxu0 %v966
        %1182 = vmatpush.msra.mxu0 %v964
        %1183 = vmatpush.msra.mxu0 %v962
        %1184 = vmatpush.msra.mxu0 %v960
        %1185 = vmatpush.msra.mxu0 %v958
        %1186 = vmatpush.msra.mxu0 %v956
        %1187 = vmatpush.msra.mxu0 %v954
        %1188 = vmatpush.msra.mxu0 %v952
        %1189 = vmatpush.msra.mxu0 %v950
        %1190 = vmatpush.msra.mxu0 %v948
        %1191 = vmatpush.msra.mxu0 %v946
        %1192 = vmatpush.msra.mxu0 %v944
        %1193 = vmatpush.msra.mxu0 %v942
        %1194 = vmatpush.msra.mxu0 %v940
        %1195 = vmatpush.msra.mxu0 %v938
        %1196 = vmatpush.msra.mxu0 %v936
        %1197 = vmatmul.f32.gmra.mxu0 %v704
        %v1198 = vpop.f32.mrf.mxu0
        %v1199 = vadd.f32 %v1112, %v1198
        %1200 = vmatmul.f32.gmra.mxu0 %v707
        %v1201 = vpop.f32.mrf.mxu0
        %v1202 = vadd.f32 %v1115, %v1201
        %1203 = vmatmul.f32.gmra.mxu0 %v710
        %v1204 = vpop.f32.mrf.mxu0
        %v1205 = vadd.f32 %v1118, %v1204
        %1206 = vmatmul.f32.gmra.mxu0 %v713
        %v1207 = vpop.f32.mrf.mxu0
        %v1208 = vadd.f32 %v1121, %v1207
        %1209 = vdwg.mxu0
        %1210 = vmatpush.msra.mxu0 %v998
        %1211 = vmatpush.msra.mxu0 %v996
        %1212 = vmatpush.msra.mxu0 %v994
        %1213 = vmatpush.msra.mxu0 %v992
        %1214 = vmatpush.msra.mxu0 %v990
        %1215 = vmatpush.msra.mxu0 %v988
        %1216 = vmatpush.msra.mxu0 %v986
        %1217 = vmatpush.msra.mxu0 %v984
        %1218 = vmatpush.msra.mxu0 %v982
        %1219 = vmatpush.msra.mxu0 %v980
        %1220 = vmatpush.msra.mxu0 %v978
        %1221 = vmatpush.msra.mxu0 %v976
        %1222 = vmatpush.msra.mxu0 %v974
        %1223 = vmatpush.msra.mxu0 %v972
        %1224 = vmatpush.msra.mxu0 %v970
        %1225 = vmatpush.msra.mxu0 %v968
        %1226 = vmatmul.f32.gmra.mxu0 %v829
        %v1227 = vpop.f32.mrf.mxu0
        %v1228 = vadd.f32 %v1199, %v1227
        %1229 = vmatmul.f32.gmra.mxu0 %v832
        %v1230 = vpop.f32.mrf.mxu0
        %v1231 = vadd.f32 %v1202, %v1230
        %1232 = vmatmul.f32.gmra.mxu0 %v835
        %v1233 = vpop.f32.mrf.mxu0
        %v1234 = vadd.f32 %v1205, %v1233
        %1235 = vmatmul.f32.gmra.mxu0 %v838
        %v1236 = vpop.f32.mrf.mxu0
        %v1237 = vadd.f32 %v1208, %v1236
        %1238 = vdwg.mxu0
        %1239 = vmatpush.msra.mxu0 %v967
        %1240 = vmatpush.msra.mxu0 %v965
        %1241 = vmatpush.msra.mxu0 %v963
        %1242 = vmatpush.msra.mxu0 %v961
        %1243 = vmatpush.msra.mxu0 %v959
        %1244 = vmatpush.msra.mxu0 %v957
        %1245 = vmatpush.msra.mxu0 %v955
        %1246 = vmatpush.msra.mxu0 %v953
        %1247 = vmatpush.msra.mxu0 %v951
        %1248 = vmatpush.msra.mxu0 %v949
        %1249 = vmatpush.msra.mxu0 %v947
        %1250 = vmatpush.msra.mxu0 %v945
        %1251 = vmatpush.msra.mxu0 %v943
        %1252 = vmatpush.msra.mxu0 %v941
        %1253 = vmatpush.msra.mxu0 %v939
        %1254 = vmatpush.msra.mxu0 %v937
        %1255 = vmatmul.f32.gmra.mxu0 %v704
        %v1256 = vpop.f32.mrf.mxu0
        %v1257 = vadd.f32 %v1170, %v1256
        %1258 = vmatmul.f32.gmra.mxu0 %v707
        %v1259 = vpop.f32.mrf.mxu0
        %v1260 = vadd.f32 %v1173, %v1259
        %1261 = vmatmul.f32.gmra.mxu0 %v710
        %v1262 = vpop.f32.mrf.mxu0
        %v1263 = vadd.f32 %v1176, %v1262
        %1264 = vmatmul.f32.gmra.mxu0 %v713
        %v1265 = vpop.f32.mrf.mxu0
        %v1266 = vadd.f32 %v1179, %v1265
        %1267 = vdwg.mxu0
        %1268 = vmatpush.msra.mxu0 %v999
        %1269 = vmatpush.msra.mxu0 %v997
        %1270 = vmatpush.msra.mxu0 %v995
        %1271 = vmatpush.msra.mxu0 %v993
        %1272 = vmatpush.msra.mxu0 %v991
        %1273 = vmatpush.msra.mxu0 %v989
        %1274 = vmatpush.msra.mxu0 %v987
        %1275 = vmatpush.msra.mxu0 %v985
        %1276 = vmatpush.msra.mxu0 %v983
        %1277 = vmatpush.msra.mxu0 %v981
        %1278 = vmatpush.msra.mxu0 %v979
        %1279 = vmatpush.msra.mxu0 %v977
        %1280 = vmatpush.msra.mxu0 %v975
        %1281 = vmatpush.msra.mxu0 %v973
        %1282 = vmatpush.msra.mxu0 %v971
        %1283 = vmatpush.msra.mxu0 %v969
        %1284 = vmatmul.f32.gmra.mxu0 %v829
        %v1285 = vpop.f32.mrf.mxu0
        %v1286 = vadd.f32 %v1257, %v1285
        %1287 = vmatmul.f32.gmra.mxu0 %v832
        %v1288 = vpop.f32.mrf.mxu0
        %v1289 = vadd.f32 %v1260, %v1288
        %1290 = vmatmul.f32.gmra.mxu0 %v835
        %v1291 = vpop.f32.mrf.mxu0
        %v1292 = vadd.f32 %v1263, %v1291
        %1293 = vmatmul.f32.gmra.mxu0 %v838
        %v1294 = vpop.f32.mrf.mxu0
        %v1295 = vadd.f32 %v1266, %v1294
        %1296 = vdwg.mxu0
        %s1297 = scalar_lea.vmem [#allocation5], 1024
        %v1298 = vld [vmem:[%s1297] sm:$0xff]
        %v1299 = vld [vmem:[%s1297 + $0x8] sm:$0xff]
        %v1300 = vld [vmem:[%s1297 + $0x10] sm:$0xff]
        %v1301 = vld [vmem:[%s1297 + $0x18] sm:$0xff]
        %v1302 = vld [vmem:[%s1297 + $0x20] sm:$0xff]
        %v1303 = vld [vmem:[%s1297 + $0x28] sm:$0xff]
        %v1304 = vld [vmem:[%s1297 + $0x30] sm:$0xff]
        %v1305 = vld [vmem:[%s1297 + $0x38] sm:$0xff]
        %v1306 = vld [vmem:[%s1297 + $0x40] sm:$0xff]
        %v1307 = vld [vmem:[%s1297 + $0x48] sm:$0xff]
        %v1308 = vld [vmem:[%s1297 + $0x50] sm:$0xff]
        %v1309 = vld [vmem:[%s1297 + $0x58] sm:$0xff]
        %v1310 = vld [vmem:[%s1297 + $0x60] sm:$0xff]
        %v1311 = vld [vmem:[%s1297 + $0x68] sm:$0xff]
        %v1312 = vld [vmem:[%s1297 + $0x70] sm:$0xff]
        %v1313 = vld [vmem:[%s1297 + $0x78] sm:$0xff]
        %v1314 = vld [vmem:[%s1297 + $0x80] sm:$0xff]
        %v1315 = vld [vmem:[%s1297 + $0x88] sm:$0xff]
        %v1316 = vld [vmem:[%s1297 + $0x90] sm:$0xff]
        %v1317 = vld [vmem:[%s1297 + $0x98] sm:$0xff]
        %v1318 = vld [vmem:[%s1297 + $0xa0] sm:$0xff]
        %v1319 = vld [vmem:[%s1297 + $0xa8] sm:$0xff]
        %v1320 = vld [vmem:[%s1297 + $0xb0] sm:$0xff]
        %v1321 = vld [vmem:[%s1297 + $0xb8] sm:$0xff]
        %v1322 = vld [vmem:[%s1297 + $0xc0] sm:$0xff]
        %v1323 = vld [vmem:[%s1297 + $0xc8] sm:$0xff]
        %v1324 = vld [vmem:[%s1297 + $0xd0] sm:$0xff]
        %v1325 = vld [vmem:[%s1297 + $0xd8] sm:$0xff]
        %v1326 = vld [vmem:[%s1297 + $0xe0] sm:$0xff]
        %v1327 = vld [vmem:[%s1297 + $0xe8] sm:$0xff]
        %v1328 = vld [vmem:[%s1297 + $0xf0] sm:$0xff]
        %v1329 = vld [vmem:[%s1297 + $0xf8] sm:$0xff]
        %v1330 = vld [vmem:[%s1297 + $0x100] sm:$0xff]
        %v1331 = vld [vmem:[%s1297 + $0x108] sm:$0xff]
        %v1332 = vld [vmem:[%s1297 + $0x110] sm:$0xff]
        %v1333 = vld [vmem:[%s1297 + $0x118] sm:$0xff]
        %v1334 = vld [vmem:[%s1297 + $0x120] sm:$0xff]
        %v1335 = vld [vmem:[%s1297 + $0x128] sm:$0xff]
        %v1336 = vld [vmem:[%s1297 + $0x130] sm:$0xff]
        %v1337 = vld [vmem:[%s1297 + $0x138] sm:$0xff]
        %v1338 = vld [vmem:[%s1297 + $0x140] sm:$0xff]
        %v1339 = vld [vmem:[%s1297 + $0x148] sm:$0xff]
        %v1340 = vld [vmem:[%s1297 + $0x150] sm:$0xff]
        %v1341 = vld [vmem:[%s1297 + $0x158] sm:$0xff]
        %v1342 = vld [vmem:[%s1297 + $0x160] sm:$0xff]
        %v1343 = vld [vmem:[%s1297 + $0x168] sm:$0xff]
        %v1344 = vld [vmem:[%s1297 + $0x170] sm:$0xff]
        %v1345 = vld [vmem:[%s1297 + $0x178] sm:$0xff]
        %v1346 = vld [vmem:[%s1297 + $0x180] sm:$0xff]
        %v1347 = vld [vmem:[%s1297 + $0x188] sm:$0xff]
        %v1348 = vld [vmem:[%s1297 + $0x190] sm:$0xff]
        %v1349 = vld [vmem:[%s1297 + $0x198] sm:$0xff]
        %v1350 = vld [vmem:[%s1297 + $0x1a0] sm:$0xff]
        %v1351 = vld [vmem:[%s1297 + $0x1a8] sm:$0xff]
        %v1352 = vld [vmem:[%s1297 + $0x1b0] sm:$0xff]
        %v1353 = vld [vmem:[%s1297 + $0x1b8] sm:$0xff]
        %v1354 = vld [vmem:[%s1297 + $0x1c0] sm:$0xff]
        %v1355 = vld [vmem:[%s1297 + $0x1c8] sm:$0xff]
        %v1356 = vld [vmem:[%s1297 + $0x1d0] sm:$0xff]
        %v1357 = vld [vmem:[%s1297 + $0x1d8] sm:$0xff]
        %v1358 = vld [vmem:[%s1297 + $0x1e0] sm:$0xff]
        %v1359 = vld [vmem:[%s1297 + $0x1e8] sm:$0xff]
        %v1360 = vld [vmem:[%s1297 + $0x1f0] sm:$0xff]
        %v1361 = vld [vmem:[%s1297 + $0x1f8] sm:$0xff]
        %1362 = vmatpush.msra.mxu0 %v1328
        %1363 = vmatpush.msra.mxu0 %v1326
        %1364 = vmatpush.msra.mxu0 %v1324
        %1365 = vmatpush.msra.mxu0 %v1322
        %1366 = vmatpush.msra.mxu0 %v1320
        %1367 = vmatpush.msra.mxu0 %v1318
        %1368 = vmatpush.msra.mxu0 %v1316
        %1369 = vmatpush.msra.mxu0 %v1314
        %1370 = vmatpush.msra.mxu0 %v1312
        %1371 = vmatpush.msra.mxu0 %v1310
        %1372 = vmatpush.msra.mxu0 %v1308
        %1373 = vmatpush.msra.mxu0 %v1306
        %1374 = vmatpush.msra.mxu0 %v1304
        %1375 = vmatpush.msra.mxu0 %v1302
        %1376 = vmatpush.msra.mxu0 %v1300
        %1377 = vmatpush.msra.mxu0 %v1298
        %1378 = vmatmul.f32.gmra.mxu0 %v728
        %v1379 = vpop.f32.mrf.mxu0
        %v1380 = vadd.f32 0.0, %v1379
        %1381 = vmatmul.f32.gmra.mxu0 %v731
        %v1382 = vpop.f32.mrf.mxu0
        %v1383 = vadd.f32 0.0, %v1382
        %1384 = vmatmul.f32.gmra.mxu0 %v734
        %v1385 = vpop.f32.mrf.mxu0
        %v1386 = vadd.f32 0.0, %v1385
        %1387 = vmatmul.f32.gmra.mxu0 %v737
        %v1388 = vpop.f32.mrf.mxu0
        %v1389 = vadd.f32 0.0, %v1388
        %1390 = vdwg.mxu0
        %1391 = vmatpush.msra.mxu0 %v1360
        %1392 = vmatpush.msra.mxu0 %v1358
        %1393 = vmatpush.msra.mxu0 %v1356
        %1394 = vmatpush.msra.mxu0 %v1354
        %1395 = vmatpush.msra.mxu0 %v1352
        %1396 = vmatpush.msra.mxu0 %v1350
        %1397 = vmatpush.msra.mxu0 %v1348
        %1398 = vmatpush.msra.mxu0 %v1346
        %1399 = vmatpush.msra.mxu0 %v1344
        %1400 = vmatpush.msra.mxu0 %v1342
        %1401 = vmatpush.msra.mxu0 %v1340
        %1402 = vmatpush.msra.mxu0 %v1338
        %1403 = vmatpush.msra.mxu0 %v1336
        %1404 = vmatpush.msra.mxu0 %v1334
        %1405 = vmatpush.msra.mxu0 %v1332
        %1406 = vmatpush.msra.mxu0 %v1330
        %1407 = vmatmul.f32.gmra.mxu0 %v853
        %v1408 = vpop.f32.mrf.mxu0
        %v1409 = vadd.f32 %v1380, %v1408
        %1410 = vmatmul.f32.gmra.mxu0 %v856
        %v1411 = vpop.f32.mrf.mxu0
        %v1412 = vadd.f32 %v1383, %v1411
        %1413 = vmatmul.f32.gmra.mxu0 %v859
        %v1414 = vpop.f32.mrf.mxu0
        %v1415 = vadd.f32 %v1386, %v1414
        %1416 = vmatmul.f32.gmra.mxu0 %v862
        %v1417 = vpop.f32.mrf.mxu0
        %v1418 = vadd.f32 %v1389, %v1417
        %1419 = vdwg.mxu0
        %1420 = vmatpush.msra.mxu0 %v1329
        %1421 = vmatpush.msra.mxu0 %v1327
        %1422 = vmatpush.msra.mxu0 %v1325
        %1423 = vmatpush.msra.mxu0 %v1323
        %1424 = vmatpush.msra.mxu0 %v1321
        %1425 = vmatpush.msra.mxu0 %v1319
        %1426 = vmatpush.msra.mxu0 %v1317
        %1427 = vmatpush.msra.mxu0 %v1315
        %1428 = vmatpush.msra.mxu0 %v1313
        %1429 = vmatpush.msra.mxu0 %v1311
        %1430 = vmatpush.msra.mxu0 %v1309
        %1431 = vmatpush.msra.mxu0 %v1307
        %1432 = vmatpush.msra.mxu0 %v1305
        %1433 = vmatpush.msra.mxu0 %v1303
        %1434 = vmatpush.msra.mxu0 %v1301
        %1435 = vmatpush.msra.mxu0 %v1299
        %1436 = vmatmul.f32.gmra.mxu0 %v728
        %v1437 = vpop.f32.mrf.mxu0
        %v1438 = vadd.f32 0.0, %v1437
        %1439 = vmatmul.f32.gmra.mxu0 %v731
        %v1440 = vpop.f32.mrf.mxu0
        %v1441 = vadd.f32 0.0, %v1440
        %1442 = vmatmul.f32.gmra.mxu0 %v734
        %v1443 = vpop.f32.mrf.mxu0
        %v1444 = vadd.f32 0.0, %v1443
        %1445 = vmatmul.f32.gmra.mxu0 %v737
        %v1446 = vpop.f32.mrf.mxu0
        %v1447 = vadd.f32 0.0, %v1446
        %1448 = vdwg.mxu0
        %1449 = vmatpush.msra.mxu0 %v1361
        %1450 = vmatpush.msra.mxu0 %v1359
        %1451 = vmatpush.msra.mxu0 %v1357
        %1452 = vmatpush.msra.mxu0 %v1355
        %1453 = vmatpush.msra.mxu0 %v1353
        %1454 = vmatpush.msra.mxu0 %v1351
        %1455 = vmatpush.msra.mxu0 %v1349
        %1456 = vmatpush.msra.mxu0 %v1347
        %1457 = vmatpush.msra.mxu0 %v1345
        %1458 = vmatpush.msra.mxu0 %v1343
        %1459 = vmatpush.msra.mxu0 %v1341
        %1460 = vmatpush.msra.mxu0 %v1339
        %1461 = vmatpush.msra.mxu0 %v1337
        %1462 = vmatpush.msra.mxu0 %v1335
        %1463 = vmatpush.msra.mxu0 %v1333
        %1464 = vmatpush.msra.mxu0 %v1331
        %1465 = vmatmul.f32.gmra.mxu0 %v853
        %v1466 = vpop.f32.mrf.mxu0
        %v1467 = vadd.f32 %v1438, %v1466
        %1468 = vmatmul.f32.gmra.mxu0 %v856
        %v1469 = vpop.f32.mrf.mxu0
        %v1470 = vadd.f32 %v1441, %v1469
        %1471 = vmatmul.f32.gmra.mxu0 %v859
        %v1472 = vpop.f32.mrf.mxu0
        %v1473 = vadd.f32 %v1444, %v1472
        %1474 = vmatmul.f32.gmra.mxu0 %v862
        %v1475 = vpop.f32.mrf.mxu0
        %v1476 = vadd.f32 %v1447, %v1475
        %1477 = vdwg.mxu0
        %v1478 = vadd.f32 %v1228, %v1409
        %v1479 = vadd.f32 %v1286, %v1467
        %v1480 = vadd.f32 %v1231, %v1412
        %v1481 = vadd.f32 %v1289, %v1470
        %v1482 = vadd.f32 %v1234, %v1415
        %v1483 = vadd.f32 %v1292, %v1473
        %v1484 = vadd.f32 %v1237, %v1418
        %v1485 = vadd.f32 %v1295, %v1476
        %s1486 = scalar_lea.vmem [#allocation5], 1536
        %v1487 = vld [vmem:[%s1486] sm:$0xff]
        %v1488 = vld [vmem:[%s1486 + $0x8] sm:$0xff]
        %v1489 = vld [vmem:[%s1486 + $0x10] sm:$0xff]
        %v1490 = vld [vmem:[%s1486 + $0x18] sm:$0xff]
        %v1491 = vld [vmem:[%s1486 + $0x20] sm:$0xff]
        %v1492 = vld [vmem:[%s1486 + $0x28] sm:$0xff]
        %v1493 = vld [vmem:[%s1486 + $0x30] sm:$0xff]
        %v1494 = vld [vmem:[%s1486 + $0x38] sm:$0xff]
        %v1495 = vld [vmem:[%s1486 + $0x40] sm:$0xff]
        %v1496 = vld [vmem:[%s1486 + $0x48] sm:$0xff]
        %v1497 = vld [vmem:[%s1486 + $0x50] sm:$0xff]
        %v1498 = vld [vmem:[%s1486 + $0x58] sm:$0xff]
        %v1499 = vld [vmem:[%s1486 + $0x60] sm:$0xff]
        %v1500 = vld [vmem:[%s1486 + $0x68] sm:$0xff]
        %v1501 = vld [vmem:[%s1486 + $0x70] sm:$0xff]
        %v1502 = vld [vmem:[%s1486 + $0x78] sm:$0xff]
        %v1503 = vld [vmem:[%s1486 + $0x80] sm:$0xff]
        %v1504 = vld [vmem:[%s1486 + $0x88] sm:$0xff]
        %v1505 = vld [vmem:[%s1486 + $0x90] sm:$0xff]
        %v1506 = vld [vmem:[%s1486 + $0x98] sm:$0xff]
        %v1507 = vld [vmem:[%s1486 + $0xa0] sm:$0xff]
        %v1508 = vld [vmem:[%s1486 + $0xa8] sm:$0xff]
        %v1509 = vld [vmem:[%s1486 + $0xb0] sm:$0xff]
        %v1510 = vld [vmem:[%s1486 + $0xb8] sm:$0xff]
        %v1511 = vld [vmem:[%s1486 + $0xc0] sm:$0xff]
        %v1512 = vld [vmem:[%s1486 + $0xc8] sm:$0xff]
        %v1513 = vld [vmem:[%s1486 + $0xd0] sm:$0xff]
        %v1514 = vld [vmem:[%s1486 + $0xd8] sm:$0xff]
        %v1515 = vld [vmem:[%s1486 + $0xe0] sm:$0xff]
        %v1516 = vld [vmem:[%s1486 + $0xe8] sm:$0xff]
        %v1517 = vld [vmem:[%s1486 + $0xf0] sm:$0xff]
        %v1518 = vld [vmem:[%s1486 + $0xf8] sm:$0xff]
        %v1519 = vld [vmem:[%s1486 + $0x100] sm:$0xff]
        %v1520 = vld [vmem:[%s1486 + $0x108] sm:$0xff]
        %v1521 = vld [vmem:[%s1486 + $0x110] sm:$0xff]
        %v1522 = vld [vmem:[%s1486 + $0x118] sm:$0xff]
        %v1523 = vld [vmem:[%s1486 + $0x120] sm:$0xff]
        %v1524 = vld [vmem:[%s1486 + $0x128] sm:$0xff]
        %v1525 = vld [vmem:[%s1486 + $0x130] sm:$0xff]
        %v1526 = vld [vmem:[%s1486 + $0x138] sm:$0xff]
        %v1527 = vld [vmem:[%s1486 + $0x140] sm:$0xff]
        %v1528 = vld [vmem:[%s1486 + $0x148] sm:$0xff]
        %v1529 = vld [vmem:[%s1486 + $0x150] sm:$0xff]
        %v1530 = vld [vmem:[%s1486 + $0x158] sm:$0xff]
        %v1531 = vld [vmem:[%s1486 + $0x160] sm:$0xff]
        %v1532 = vld [vmem:[%s1486 + $0x168] sm:$0xff]
        %v1533 = vld [vmem:[%s1486 + $0x170] sm:$0xff]
        %v1534 = vld [vmem:[%s1486 + $0x178] sm:$0xff]
        %v1535 = vld [vmem:[%s1486 + $0x180] sm:$0xff]
        %v1536 = vld [vmem:[%s1486 + $0x188] sm:$0xff]
        %v1537 = vld [vmem:[%s1486 + $0x190] sm:$0xff]
        %v1538 = vld [vmem:[%s1486 + $0x198] sm:$0xff]
        %v1539 = vld [vmem:[%s1486 + $0x1a0] sm:$0xff]
        %v1540 = vld [vmem:[%s1486 + $0x1a8] sm:$0xff]
        %v1541 = vld [vmem:[%s1486 + $0x1b0] sm:$0xff]
        %v1542 = vld [vmem:[%s1486 + $0x1b8] sm:$0xff]
        %v1543 = vld [vmem:[%s1486 + $0x1c0] sm:$0xff]
        %v1544 = vld [vmem:[%s1486 + $0x1c8] sm:$0xff]
        %v1545 = vld [vmem:[%s1486 + $0x1d0] sm:$0xff]
        %v1546 = vld [vmem:[%s1486 + $0x1d8] sm:$0xff]
        %v1547 = vld [vmem:[%s1486 + $0x1e0] sm:$0xff]
        %v1548 = vld [vmem:[%s1486 + $0x1e8] sm:$0xff]
        %v1549 = vld [vmem:[%s1486 + $0x1f0] sm:$0xff]
        %v1550 = vld [vmem:[%s1486 + $0x1f8] sm:$0xff]
        %1551 = vmatpush.msra.mxu0 %v1517
        %1552 = vmatpush.msra.mxu0 %v1515
        %1553 = vmatpush.msra.mxu0 %v1513
        %1554 = vmatpush.msra.mxu0 %v1511
        %1555 = vmatpush.msra.mxu0 %v1509
        %1556 = vmatpush.msra.mxu0 %v1507
        %1557 = vmatpush.msra.mxu0 %v1505
        %1558 = vmatpush.msra.mxu0 %v1503
        %1559 = vmatpush.msra.mxu0 %v1501
        %1560 = vmatpush.msra.mxu0 %v1499
        %1561 = vmatpush.msra.mxu0 %v1497
        %1562 = vmatpush.msra.mxu0 %v1495
        %1563 = vmatpush.msra.mxu0 %v1493
        %1564 = vmatpush.msra.mxu0 %v1491
        %1565 = vmatpush.msra.mxu0 %v1489
        %1566 = vmatpush.msra.mxu0 %v1487
        %1567 = vmatmul.f32.gmra.mxu0 %v740
        %v1568 = vpop.f32.mrf.mxu0
        %v1569 = vadd.f32 0.0, %v1568
        %1570 = vmatmul.f32.gmra.mxu0 %v743
        %v1571 = vpop.f32.mrf.mxu0
        %v1572 = vadd.f32 0.0, %v1571
        %1573 = vmatmul.f32.gmra.mxu0 %v746
        %v1574 = vpop.f32.mrf.mxu0
        %v1575 = vadd.f32 0.0, %v1574
        %1576 = vmatmul.f32.gmra.mxu0 %v749
        %v1577 = vpop.f32.mrf.mxu0
        %v1578 = vadd.f32 0.0, %v1577
        %1579 = vdwg.mxu0
        %1580 = vmatpush.msra.mxu0 %v1549
        %1581 = vmatpush.msra.mxu0 %v1547
        %1582 = vmatpush.msra.mxu0 %v1545
        %1583 = vmatpush.msra.mxu0 %v1543
        %1584 = vmatpush.msra.mxu0 %v1541
        %1585 = vmatpush.msra.mxu0 %v1539
        %1586 = vmatpush.msra.mxu0 %v1537
        %1587 = vmatpush.msra.mxu0 %v1535
        %1588 = vmatpush.msra.mxu0 %v1533
        %1589 = vmatpush.msra.mxu0 %v1531
        %1590 = vmatpush.msra.mxu0 %v1529
        %1591 = vmatpush.msra.mxu0 %v1527
        %1592 = vmatpush.msra.mxu0 %v1525
        %1593 = vmatpush.msra.mxu0 %v1523
        %1594 = vmatpush.msra.mxu0 %v1521
        %1595 = vmatpush.msra.mxu0 %v1519
        %1596 = vmatmul.f32.gmra.mxu0 %v865
        %v1597 = vpop.f32.mrf.mxu0
        %v1598 = vadd.f32 %v1569, %v1597
        %1599 = vmatmul.f32.gmra.mxu0 %v868
        %v1600 = vpop.f32.mrf.mxu0
        %v1601 = vadd.f32 %v1572, %v1600
        %1602 = vmatmul.f32.gmra.mxu0 %v871
        %v1603 = vpop.f32.mrf.mxu0
        %v1604 = vadd.f32 %v1575, %v1603
        %1605 = vmatmul.f32.gmra.mxu0 %v874
        %v1606 = vpop.f32.mrf.mxu0
        %v1607 = vadd.f32 %v1578, %v1606
        %1608 = vdwg.mxu0
        %1609 = vmatpush.msra.mxu0 %v1518
        %1610 = vmatpush.msra.mxu0 %v1516
        %1611 = vmatpush.msra.mxu0 %v1514
        %1612 = vmatpush.msra.mxu0 %v1512
        %1613 = vmatpush.msra.mxu0 %v1510
        %1614 = vmatpush.msra.mxu0 %v1508
        %1615 = vmatpush.msra.mxu0 %v1506
        %1616 = vmatpush.msra.mxu0 %v1504
        %1617 = vmatpush.msra.mxu0 %v1502
        %1618 = vmatpush.msra.mxu0 %v1500
        %1619 = vmatpush.msra.mxu0 %v1498
        %1620 = vmatpush.msra.mxu0 %v1496
        %1621 = vmatpush.msra.mxu0 %v1494
        %1622 = vmatpush.msra.mxu0 %v1492
        %1623 = vmatpush.msra.mxu0 %v1490
        %1624 = vmatpush.msra.mxu0 %v1488
        %1625 = vmatmul.f32.gmra.mxu0 %v740
        %v1626 = vpop.f32.mrf.mxu0
        %v1627 = vadd.f32 0.0, %v1626
        %1628 = vmatmul.f32.gmra.mxu0 %v743
        %v1629 = vpop.f32.mrf.mxu0
        %v1630 = vadd.f32 0.0, %v1629
        %1631 = vmatmul.f32.gmra.mxu0 %v746
        %v1632 = vpop.f32.mrf.mxu0
        %v1633 = vadd.f32 0.0, %v1632
        %1634 = vmatmul.f32.gmra.mxu0 %v749
        %v1635 = vpop.f32.mrf.mxu0
        %v1636 = vadd.f32 0.0, %v1635
        %1637 = vdwg.mxu0
        %1638 = vmatpush.msra.mxu0 %v1550
        %1639 = vmatpush.msra.mxu0 %v1548
        %1640 = vmatpush.msra.mxu0 %v1546
        %1641 = vmatpush.msra.mxu0 %v1544
        %1642 = vmatpush.msra.mxu0 %v1542
        %1643 = vmatpush.msra.mxu0 %v1540
        %1644 = vmatpush.msra.mxu0 %v1538
        %1645 = vmatpush.msra.mxu0 %v1536
        %1646 = vmatpush.msra.mxu0 %v1534
        %1647 = vmatpush.msra.mxu0 %v1532
        %1648 = vmatpush.msra.mxu0 %v1530
        %1649 = vmatpush.msra.mxu0 %v1528
        %1650 = vmatpush.msra.mxu0 %v1526
        %1651 = vmatpush.msra.mxu0 %v1524
        %1652 = vmatpush.msra.mxu0 %v1522
        %1653 = vmatpush.msra.mxu0 %v1520
        %1654 = vmatmul.f32.gmra.mxu0 %v865
        %v1655 = vpop.f32.mrf.mxu0
        %v1656 = vadd.f32 %v1627, %v1655
        %1657 = vmatmul.f32.gmra.mxu0 %v868
        %v1658 = vpop.f32.mrf.mxu0
        %v1659 = vadd.f32 %v1630, %v1658
        %1660 = vmatmul.f32.gmra.mxu0 %v871
        %v1661 = vpop.f32.mrf.mxu0
        %v1662 = vadd.f32 %v1633, %v1661
        %1663 = vmatmul.f32.gmra.mxu0 %v874
        %v1664 = vpop.f32.mrf.mxu0
        %v1665 = vadd.f32 %v1636, %v1664
        %1666 = vdwg.mxu0
        %v1667 = vadd.f32 %v1478, %v1598
        %v1668 = vadd.f32 %v1479, %v1656
        %v1669 = vadd.f32 %v1480, %v1601
        %v1670 = vadd.f32 %v1481, %v1659
        %v1671 = vadd.f32 %v1482, %v1604
        %v1672 = vadd.f32 %v1483, %v1662
        %v1673 = vadd.f32 %v1484, %v1607
        %v1674 = vadd.f32 %v1485, %v1665
        %s1675 = scalar_lea.vmem [#allocation5], 2048
        %v1676 = vld [vmem:[%s1675] sm:$0xff]
        %v1677 = vld [vmem:[%s1675 + $0x8] sm:$0xff]
        %v1678 = vld [vmem:[%s1675 + $0x10] sm:$0xff]
        %v1679 = vld [vmem:[%s1675 + $0x18] sm:$0xff]
        %v1680 = vld [vmem:[%s1675 + $0x20] sm:$0xff]
        %v1681 = vld [vmem:[%s1675 + $0x28] sm:$0xff]
        %v1682 = vld [vmem:[%s1675 + $0x30] sm:$0xff]
        %v1683 = vld [vmem:[%s1675 + $0x38] sm:$0xff]
        %v1684 = vld [vmem:[%s1675 + $0x40] sm:$0xff]
        %v1685 = vld [vmem:[%s1675 + $0x48] sm:$0xff]
        %v1686 = vld [vmem:[%s1675 + $0x50] sm:$0xff]
        %v1687 = vld [vmem:[%s1675 + $0x58] sm:$0xff]
        %v1688 = vld [vmem:[%s1675 + $0x60] sm:$0xff]
        %v1689 = vld [vmem:[%s1675 + $0x68] sm:$0xff]
        %v1690 = vld [vmem:[%s1675 + $0x70] sm:$0xff]
        %v1691 = vld [vmem:[%s1675 + $0x78] sm:$0xff]
        %v1692 = vld [vmem:[%s1675 + $0x80] sm:$0xff]
        %v1693 = vld [vmem:[%s1675 + $0x88] sm:$0xff]
        %v1694 = vld [vmem:[%s1675 + $0x90] sm:$0xff]
        %v1695 = vld [vmem:[%s1675 + $0x98] sm:$0xff]
        %v1696 = vld [vmem:[%s1675 + $0xa0] sm:$0xff]
        %v1697 = vld [vmem:[%s1675 + $0xa8] sm:$0xff]
        %v1698 = vld [vmem:[%s1675 + $0xb0] sm:$0xff]
        %v1699 = vld [vmem:[%s1675 + $0xb8] sm:$0xff]
        %v1700 = vld [vmem:[%s1675 + $0xc0] sm:$0xff]
        %v1701 = vld [vmem:[%s1675 + $0xc8] sm:$0xff]
        %v1702 = vld [vmem:[%s1675 + $0xd0] sm:$0xff]
        %v1703 = vld [vmem:[%s1675 + $0xd8] sm:$0xff]
        %v1704 = vld [vmem:[%s1675 + $0xe0] sm:$0xff]
        %v1705 = vld [vmem:[%s1675 + $0xe8] sm:$0xff]
        %v1706 = vld [vmem:[%s1675 + $0xf0] sm:$0xff]
        %v1707 = vld [vmem:[%s1675 + $0xf8] sm:$0xff]
        %v1708 = vld [vmem:[%s1675 + $0x100] sm:$0xff]
        %v1709 = vld [vmem:[%s1675 + $0x108] sm:$0xff]
        %v1710 = vld [vmem:[%s1675 + $0x110] sm:$0xff]
        %v1711 = vld [vmem:[%s1675 + $0x118] sm:$0xff]
        %v1712 = vld [vmem:[%s1675 + $0x120] sm:$0xff]
        %v1713 = vld [vmem:[%s1675 + $0x128] sm:$0xff]
        %v1714 = vld [vmem:[%s1675 + $0x130] sm:$0xff]
        %v1715 = vld [vmem:[%s1675 + $0x138] sm:$0xff]
        %v1716 = vld [vmem:[%s1675 + $0x140] sm:$0xff]
        %v1717 = vld [vmem:[%s1675 + $0x148] sm:$0xff]
        %v1718 = vld [vmem:[%s1675 + $0x150] sm:$0xff]
        %v1719 = vld [vmem:[%s1675 + $0x158] sm:$0xff]
        %v1720 = vld [vmem:[%s1675 + $0x160] sm:$0xff]
        %v1721 = vld [vmem:[%s1675 + $0x168] sm:$0xff]
        %v1722 = vld [vmem:[%s1675 + $0x170] sm:$0xff]
        %v1723 = vld [vmem:[%s1675 + $0x178] sm:$0xff]
        %v1724 = vld [vmem:[%s1675 + $0x180] sm:$0xff]
        %v1725 = vld [vmem:[%s1675 + $0x188] sm:$0xff]
        %v1726 = vld [vmem:[%s1675 + $0x190] sm:$0xff]
        %v1727 = vld [vmem:[%s1675 + $0x198] sm:$0xff]
        %v1728 = vld [vmem:[%s1675 + $0x1a0] sm:$0xff]
        %v1729 = vld [vmem:[%s1675 + $0x1a8] sm:$0xff]
        %v1730 = vld [vmem:[%s1675 + $0x1b0] sm:$0xff]
        %v1731 = vld [vmem:[%s1675 + $0x1b8] sm:$0xff]
        %v1732 = vld [vmem:[%s1675 + $0x1c0] sm:$0xff]
        %v1733 = vld [vmem:[%s1675 + $0x1c8] sm:$0xff]
        %v1734 = vld [vmem:[%s1675 + $0x1d0] sm:$0xff]
        %v1735 = vld [vmem:[%s1675 + $0x1d8] sm:$0xff]
        %v1736 = vld [vmem:[%s1675 + $0x1e0] sm:$0xff]
        %v1737 = vld [vmem:[%s1675 + $0x1e8] sm:$0xff]
        %v1738 = vld [vmem:[%s1675 + $0x1f0] sm:$0xff]
        %v1739 = vld [vmem:[%s1675 + $0x1f8] sm:$0xff]
        %1740 = vmatpush.msra.mxu0 %v1706
        %1741 = vmatpush.msra.mxu0 %v1704
        %1742 = vmatpush.msra.mxu0 %v1702
        %1743 = vmatpush.msra.mxu0 %v1700
        %1744 = vmatpush.msra.mxu0 %v1698
        %1745 = vmatpush.msra.mxu0 %v1696
        %1746 = vmatpush.msra.mxu0 %v1694
        %1747 = vmatpush.msra.mxu0 %v1692
        %1748 = vmatpush.msra.mxu0 %v1690
        %1749 = vmatpush.msra.mxu0 %v1688
        %1750 = vmatpush.msra.mxu0 %v1686
        %1751 = vmatpush.msra.mxu0 %v1684
        %1752 = vmatpush.msra.mxu0 %v1682
        %1753 = vmatpush.msra.mxu0 %v1680
        %1754 = vmatpush.msra.mxu0 %v1678
        %1755 = vmatpush.msra.mxu0 %v1676
        %1756 = vmatmul.f32.gmra.mxu0 %v752
        %v1757 = vpop.f32.mrf.mxu0
        %v1758 = vadd.f32 0.0, %v1757
        %1759 = vmatmul.f32.gmra.mxu0 %v755
        %v1760 = vpop.f32.mrf.mxu0
        %v1761 = vadd.f32 0.0, %v1760
        %1762 = vmatmul.f32.gmra.mxu0 %v758
        %v1763 = vpop.f32.mrf.mxu0
        %v1764 = vadd.f32 0.0, %v1763
        %1765 = vmatmul.f32.gmra.mxu0 %v761
        %v1766 = vpop.f32.mrf.mxu0
        %v1767 = vadd.f32 0.0, %v1766
        %1768 = vdwg.mxu0
        %1769 = vmatpush.msra.mxu0 %v1738
        %1770 = vmatpush.msra.mxu0 %v1736
        %1771 = vmatpush.msra.mxu0 %v1734
        %1772 = vmatpush.msra.mxu0 %v1732
        %1773 = vmatpush.msra.mxu0 %v1730
        %1774 = vmatpush.msra.mxu0 %v1728
        %1775 = vmatpush.msra.mxu0 %v1726
        %1776 = vmatpush.msra.mxu0 %v1724
        %1777 = vmatpush.msra.mxu0 %v1722
        %1778 = vmatpush.msra.mxu0 %v1720
        %1779 = vmatpush.msra.mxu0 %v1718
        %1780 = vmatpush.msra.mxu0 %v1716
        %1781 = vmatpush.msra.mxu0 %v1714
        %1782 = vmatpush.msra.mxu0 %v1712
        %1783 = vmatpush.msra.mxu0 %v1710
        %1784 = vmatpush.msra.mxu0 %v1708
        %1785 = vmatmul.f32.gmra.mxu0 %v877
        %v1786 = vpop.f32.mrf.mxu0
        %v1787 = vadd.f32 %v1758, %v1786
        %1788 = vmatmul.f32.gmra.mxu0 %v880
        %v1789 = vpop.f32.mrf.mxu0
        %v1790 = vadd.f32 %v1761, %v1789
        %1791 = vmatmul.f32.gmra.mxu0 %v883
        %v1792 = vpop.f32.mrf.mxu0
        %v1793 = vadd.f32 %v1764, %v1792
        %1794 = vmatmul.f32.gmra.mxu0 %v886
        %v1795 = vpop.f32.mrf.mxu0
        %v1796 = vadd.f32 %v1767, %v1795
        %1797 = vdwg.mxu0
        %1798 = vmatpush.msra.mxu0 %v1707
        %1799 = vmatpush.msra.mxu0 %v1705
        %1800 = vmatpush.msra.mxu0 %v1703
        %1801 = vmatpush.msra.mxu0 %v1701
        %1802 = vmatpush.msra.mxu0 %v1699
        %1803 = vmatpush.msra.mxu0 %v1697
        %1804 = vmatpush.msra.mxu0 %v1695
        %1805 = vmatpush.msra.mxu0 %v1693
        %1806 = vmatpush.msra.mxu0 %v1691
        %1807 = vmatpush.msra.mxu0 %v1689
        %1808 = vmatpush.msra.mxu0 %v1687
        %1809 = vmatpush.msra.mxu0 %v1685
        %1810 = vmatpush.msra.mxu0 %v1683
        %1811 = vmatpush.msra.mxu0 %v1681
        %1812 = vmatpush.msra.mxu0 %v1679
        %1813 = vmatpush.msra.mxu0 %v1677
        %1814 = vmatmul.f32.gmra.mxu0 %v752
        %v1815 = vpop.f32.mrf.mxu0
        %v1816 = vadd.f32 0.0, %v1815
        %1817 = vmatmul.f32.gmra.mxu0 %v755
        %v1818 = vpop.f32.mrf.mxu0
        %v1819 = vadd.f32 0.0, %v1818
        %1820 = vmatmul.f32.gmra.mxu0 %v758
        %v1821 = vpop.f32.mrf.mxu0
        %v1822 = vadd.f32 0.0, %v1821
        %1823 = vmatmul.f32.gmra.mxu0 %v761
        %v1824 = vpop.f32.mrf.mxu0
        %v1825 = vadd.f32 0.0, %v1824
        %1826 = vdwg.mxu0
        %1827 = vmatpush.msra.mxu0 %v1739
        %1828 = vmatpush.msra.mxu0 %v1737
        %1829 = vmatpush.msra.mxu0 %v1735
        %1830 = vmatpush.msra.mxu0 %v1733
        %1831 = vmatpush.msra.mxu0 %v1731
        %1832 = vmatpush.msra.mxu0 %v1729
        %1833 = vmatpush.msra.mxu0 %v1727
        %1834 = vmatpush.msra.mxu0 %v1725
        %1835 = vmatpush.msra.mxu0 %v1723
        %1836 = vmatpush.msra.mxu0 %v1721
        %1837 = vmatpush.msra.mxu0 %v1719
        %1838 = vmatpush.msra.mxu0 %v1717
        %1839 = vmatpush.msra.mxu0 %v1715
        %1840 = vmatpush.msra.mxu0 %v1713
        %1841 = vmatpush.msra.mxu0 %v1711
        %1842 = vmatpush.msra.mxu0 %v1709
        %1843 = vmatmul.f32.gmra.mxu0 %v877
        %v1844 = vpop.f32.mrf.mxu0
        %v1845 = vadd.f32 %v1816, %v1844
        %1846 = vmatmul.f32.gmra.mxu0 %v880
        %v1847 = vpop.f32.mrf.mxu0
        %v1848 = vadd.f32 %v1819, %v1847
        %1849 = vmatmul.f32.gmra.mxu0 %v883
        %v1850 = vpop.f32.mrf.mxu0
        %v1851 = vadd.f32 %v1822, %v1850
        %1852 = vmatmul.f32.gmra.mxu0 %v886
        %v1853 = vpop.f32.mrf.mxu0
        %v1854 = vadd.f32 %v1825, %v1853
        %1855 = vdwg.mxu0
        %v1856 = vadd.f32 %v1667, %v1787
        %v1857 = vadd.f32 %v1668, %v1845
        %v1858 = vadd.f32 %v1669, %v1790
        %v1859 = vadd.f32 %v1670, %v1848
        %v1860 = vadd.f32 %v1671, %v1793
        %v1861 = vadd.f32 %v1672, %v1851
        %v1862 = vadd.f32 %v1673, %v1796
        %v1863 = vadd.f32 %v1674, %v1854
        %s1864 = scalar_lea.vmem [#allocation5], 2560
        %v1865 = vld [vmem:[%s1864] sm:$0xff]
        %v1866 = vld [vmem:[%s1864 + $0x8] sm:$0xff]
        %v1867 = vld [vmem:[%s1864 + $0x10] sm:$0xff]
        %v1868 = vld [vmem:[%s1864 + $0x18] sm:$0xff]
        %v1869 = vld [vmem:[%s1864 + $0x20] sm:$0xff]
        %v1870 = vld [vmem:[%s1864 + $0x28] sm:$0xff]
        %v1871 = vld [vmem:[%s1864 + $0x30] sm:$0xff]
        %v1872 = vld [vmem:[%s1864 + $0x38] sm:$0xff]
        %v1873 = vld [vmem:[%s1864 + $0x40] sm:$0xff]
        %v1874 = vld [vmem:[%s1864 + $0x48] sm:$0xff]
        %v1875 = vld [vmem:[%s1864 + $0x50] sm:$0xff]
        %v1876 = vld [vmem:[%s1864 + $0x58] sm:$0xff]
        %v1877 = vld [vmem:[%s1864 + $0x60] sm:$0xff]
        %v1878 = vld [vmem:[%s1864 + $0x68] sm:$0xff]
        %v1879 = vld [vmem:[%s1864 + $0x70] sm:$0xff]
        %v1880 = vld [vmem:[%s1864 + $0x78] sm:$0xff]
        %v1881 = vld [vmem:[%s1864 + $0x80] sm:$0xff]
        %v1882 = vld [vmem:[%s1864 + $0x88] sm:$0xff]
        %v1883 = vld [vmem:[%s1864 + $0x90] sm:$0xff]
        %v1884 = vld [vmem:[%s1864 + $0x98] sm:$0xff]
        %v1885 = vld [vmem:[%s1864 + $0xa0] sm:$0xff]
        %v1886 = vld [vmem:[%s1864 + $0xa8] sm:$0xff]
        %v1887 = vld [vmem:[%s1864 + $0xb0] sm:$0xff]
        %v1888 = vld [vmem:[%s1864 + $0xb8] sm:$0xff]
        %v1889 = vld [vmem:[%s1864 + $0xc0] sm:$0xff]
        %v1890 = vld [vmem:[%s1864 + $0xc8] sm:$0xff]
        %v1891 = vld [vmem:[%s1864 + $0xd0] sm:$0xff]
        %v1892 = vld [vmem:[%s1864 + $0xd8] sm:$0xff]
        %v1893 = vld [vmem:[%s1864 + $0xe0] sm:$0xff]
        %v1894 = vld [vmem:[%s1864 + $0xe8] sm:$0xff]
        %v1895 = vld [vmem:[%s1864 + $0xf0] sm:$0xff]
        %v1896 = vld [vmem:[%s1864 + $0xf8] sm:$0xff]
        %v1897 = vld [vmem:[%s1864 + $0x100] sm:$0xff]
        %v1898 = vld [vmem:[%s1864 + $0x108] sm:$0xff]
        %v1899 = vld [vmem:[%s1864 + $0x110] sm:$0xff]
        %v1900 = vld [vmem:[%s1864 + $0x118] sm:$0xff]
        %v1901 = vld [vmem:[%s1864 + $0x120] sm:$0xff]
        %v1902 = vld [vmem:[%s1864 + $0x128] sm:$0xff]
        %v1903 = vld [vmem:[%s1864 + $0x130] sm:$0xff]
        %v1904 = vld [vmem:[%s1864 + $0x138] sm:$0xff]
        %v1905 = vld [vmem:[%s1864 + $0x140] sm:$0xff]
        %v1906 = vld [vmem:[%s1864 + $0x148] sm:$0xff]
        %v1907 = vld [vmem:[%s1864 + $0x150] sm:$0xff]
        %v1908 = vld [vmem:[%s1864 + $0x158] sm:$0xff]
        %v1909 = vld [vmem:[%s1864 + $0x160] sm:$0xff]
        %v1910 = vld [vmem:[%s1864 + $0x168] sm:$0xff]
        %v1911 = vld [vmem:[%s1864 + $0x170] sm:$0xff]
        %v1912 = vld [vmem:[%s1864 + $0x178] sm:$0xff]
        %v1913 = vld [vmem:[%s1864 + $0x180] sm:$0xff]
        %v1914 = vld [vmem:[%s1864 + $0x188] sm:$0xff]
        %v1915 = vld [vmem:[%s1864 + $0x190] sm:$0xff]
        %v1916 = vld [vmem:[%s1864 + $0x198] sm:$0xff]
        %v1917 = vld [vmem:[%s1864 + $0x1a0] sm:$0xff]
        %v1918 = vld [vmem:[%s1864 + $0x1a8] sm:$0xff]
        %v1919 = vld [vmem:[%s1864 + $0x1b0] sm:$0xff]
        %v1920 = vld [vmem:[%s1864 + $0x1b8] sm:$0xff]
        %v1921 = vld [vmem:[%s1864 + $0x1c0] sm:$0xff]
        %v1922 = vld [vmem:[%s1864 + $0x1c8] sm:$0xff]
        %v1923 = vld [vmem:[%s1864 + $0x1d0] sm:$0xff]
        %v1924 = vld [vmem:[%s1864 + $0x1d8] sm:$0xff]
        %v1925 = vld [vmem:[%s1864 + $0x1e0] sm:$0xff]
        %v1926 = vld [vmem:[%s1864 + $0x1e8] sm:$0xff]
        %v1927 = vld [vmem:[%s1864 + $0x1f0] sm:$0xff]
        %v1928 = vld [vmem:[%s1864 + $0x1f8] sm:$0xff]
        %1929 = vmatpush.msra.mxu0 %v1895
        %1930 = vmatpush.msra.mxu0 %v1893
        %1931 = vmatpush.msra.mxu0 %v1891
        %1932 = vmatpush.msra.mxu0 %v1889
        %1933 = vmatpush.msra.mxu0 %v1887
        %1934 = vmatpush.msra.mxu0 %v1885
        %1935 = vmatpush.msra.mxu0 %v1883
        %1936 = vmatpush.msra.mxu0 %v1881
        %1937 = vmatpush.msra.mxu0 %v1879
        %1938 = vmatpush.msra.mxu0 %v1877
        %1939 = vmatpush.msra.mxu0 %v1875
        %1940 = vmatpush.msra.mxu0 %v1873
        %1941 = vmatpush.msra.mxu0 %v1871
        %1942 = vmatpush.msra.mxu0 %v1869
        %1943 = vmatpush.msra.mxu0 %v1867
        %1944 = vmatpush.msra.mxu0 %v1865
        %1945 = vmatmul.f32.gmra.mxu0 %v764
        %v1946 = vpop.f32.mrf.mxu0
        %v1947 = vadd.f32 0.0, %v1946
        %1948 = vmatmul.f32.gmra.mxu0 %v767
        %v1949 = vpop.f32.mrf.mxu0
        %v1950 = vadd.f32 0.0, %v1949
        %1951 = vmatmul.f32.gmra.mxu0 %v770
        %v1952 = vpop.f32.mrf.mxu0
        %v1953 = vadd.f32 0.0, %v1952
        %1954 = vmatmul.f32.gmra.mxu0 %v773
        %v1955 = vpop.f32.mrf.mxu0
        %v1956 = vadd.f32 0.0, %v1955
        %1957 = vdwg.mxu0
        %1958 = vmatpush.msra.mxu0 %v1927
        %1959 = vmatpush.msra.mxu0 %v1925
        %1960 = vmatpush.msra.mxu0 %v1923
        %1961 = vmatpush.msra.mxu0 %v1921
        %1962 = vmatpush.msra.mxu0 %v1919
        %1963 = vmatpush.msra.mxu0 %v1917
        %1964 = vmatpush.msra.mxu0 %v1915
        %1965 = vmatpush.msra.mxu0 %v1913
        %1966 = vmatpush.msra.mxu0 %v1911
        %1967 = vmatpush.msra.mxu0 %v1909
        %1968 = vmatpush.msra.mxu0 %v1907
        %1969 = vmatpush.msra.mxu0 %v1905
        %1970 = vmatpush.msra.mxu0 %v1903
        %1971 = vmatpush.msra.mxu0 %v1901
        %1972 = vmatpush.msra.mxu0 %v1899
        %1973 = vmatpush.msra.mxu0 %v1897
        %1974 = vmatmul.f32.gmra.mxu0 %v889
        %v1975 = vpop.f32.mrf.mxu0
        %v1976 = vadd.f32 %v1947, %v1975
        %1977 = vmatmul.f32.gmra.mxu0 %v892
        %v1978 = vpop.f32.mrf.mxu0
        %v1979 = vadd.f32 %v1950, %v1978
        %1980 = vmatmul.f32.gmra.mxu0 %v895
        %v1981 = vpop.f32.mrf.mxu0
        %v1982 = vadd.f32 %v1953, %v1981
        %1983 = vmatmul.f32.gmra.mxu0 %v898
        %v1984 = vpop.f32.mrf.mxu0
        %v1985 = vadd.f32 %v1956, %v1984
        %1986 = vdwg.mxu0
        %1987 = vmatpush.msra.mxu0 %v1896
        %1988 = vmatpush.msra.mxu0 %v1894
        %1989 = vmatpush.msra.mxu0 %v1892
        %1990 = vmatpush.msra.mxu0 %v1890
        %1991 = vmatpush.msra.mxu0 %v1888
        %1992 = vmatpush.msra.mxu0 %v1886
        %1993 = vmatpush.msra.mxu0 %v1884
        %1994 = vmatpush.msra.mxu0 %v1882
        %1995 = vmatpush.msra.mxu0 %v1880
        %1996 = vmatpush.msra.mxu0 %v1878
        %1997 = vmatpush.msra.mxu0 %v1876
        %1998 = vmatpush.msra.mxu0 %v1874
        %1999 = vmatpush.msra.mxu0 %v1872
        %2000 = vmatpush.msra.mxu0 %v1870
        %2001 = vmatpush.msra.mxu0 %v1868
        %2002 = vmatpush.msra.mxu0 %v1866
        %2003 = vmatmul.f32.gmra.mxu0 %v764
        %v2004 = vpop.f32.mrf.mxu0
        %v2005 = vadd.f32 0.0, %v2004
        %2006 = vmatmul.f32.gmra.mxu0 %v767
        %v2007 = vpop.f32.mrf.mxu0
        %v2008 = vadd.f32 0.0, %v2007
        %2009 = vmatmul.f32.gmra.mxu0 %v770
        %v2010 = vpop.f32.mrf.mxu0
        %v2011 = vadd.f32 0.0, %v2010
        %2012 = vmatmul.f32.gmra.mxu0 %v773
        %v2013 = vpop.f32.mrf.mxu0
        %v2014 = vadd.f32 0.0, %v2013
        %2015 = vdwg.mxu0
        %2016 = vmatpush.msra.mxu0 %v1928
        %2017 = vmatpush.msra.mxu0 %v1926
        %2018 = vmatpush.msra.mxu0 %v1924
        %2019 = vmatpush.msra.mxu0 %v1922
        %2020 = vmatpush.msra.mxu0 %v1920
        %2021 = vmatpush.msra.mxu0 %v1918
        %2022 = vmatpush.msra.mxu0 %v1916
        %2023 = vmatpush.msra.mxu0 %v1914
        %2024 = vmatpush.msra.mxu0 %v1912
        %2025 = vmatpush.msra.mxu0 %v1910
        %2026 = vmatpush.msra.mxu0 %v1908
        %2027 = vmatpush.msra.mxu0 %v1906
        %2028 = vmatpush.msra.mxu0 %v1904
        %2029 = vmatpush.msra.mxu0 %v1902
        %2030 = vmatpush.msra.mxu0 %v1900
        %2031 = vmatpush.msra.mxu0 %v1898
        %2032 = vmatmul.f32.gmra.mxu0 %v889
        %v2033 = vpop.f32.mrf.mxu0
        %v2034 = vadd.f32 %v2005, %v2033
        %2035 = vmatmul.f32.gmra.mxu0 %v892
        %v2036 = vpop.f32.mrf.mxu0
        %v2037 = vadd.f32 %v2008, %v2036
        %2038 = vmatmul.f32.gmra.mxu0 %v895
        %v2039 = vpop.f32.mrf.mxu0
        %v2040 = vadd.f32 %v2011, %v2039
        %2041 = vmatmul.f32.gmra.mxu0 %v898
        %v2042 = vpop.f32.mrf.mxu0
        %v2043 = vadd.f32 %v2014, %v2042
        %2044 = vdwg.mxu0
        %v2045 = vadd.f32 %v1856, %v1976
        %v2046 = vadd.f32 %v1857, %v2034
        %v2047 = vadd.f32 %v1858, %v1979
        %v2048 = vadd.f32 %v1859, %v2037
        %v2049 = vadd.f32 %v1860, %v1982
        %v2050 = vadd.f32 %v1861, %v2040
        %v2051 = vadd.f32 %v1862, %v1985
        %v2052 = vadd.f32 %v1863, %v2043
        %s2053 = scalar_lea.vmem [#allocation5], 3072
        %v2054 = vld [vmem:[%s2053] sm:$0xff]
        %v2055 = vld [vmem:[%s2053 + $0x8] sm:$0xff]
        %v2056 = vld [vmem:[%s2053 + $0x10] sm:$0xff]
        %v2057 = vld [vmem:[%s2053 + $0x18] sm:$0xff]
        %v2058 = vld [vmem:[%s2053 + $0x20] sm:$0xff]
        %v2059 = vld [vmem:[%s2053 + $0x28] sm:$0xff]
        %v2060 = vld [vmem:[%s2053 + $0x30] sm:$0xff]
        %v2061 = vld [vmem:[%s2053 + $0x38] sm:$0xff]
        %v2062 = vld [vmem:[%s2053 + $0x40] sm:$0xff]
        %v2063 = vld [vmem:[%s2053 + $0x48] sm:$0xff]
        %v2064 = vld [vmem:[%s2053 + $0x50] sm:$0xff]
        %v2065 = vld [vmem:[%s2053 + $0x58] sm:$0xff]
        %v2066 = vld [vmem:[%s2053 + $0x60] sm:$0xff]
        %v2067 = vld [vmem:[%s2053 + $0x68] sm:$0xff]
        %v2068 = vld [vmem:[%s2053 + $0x70] sm:$0xff]
        %v2069 = vld [vmem:[%s2053 + $0x78] sm:$0xff]
        %v2070 = vld [vmem:[%s2053 + $0x80] sm:$0xff]
        %v2071 = vld [vmem:[%s2053 + $0x88] sm:$0xff]
        %v2072 = vld [vmem:[%s2053 + $0x90] sm:$0xff]
        %v2073 = vld [vmem:[%s2053 + $0x98] sm:$0xff]
        %v2074 = vld [vmem:[%s2053 + $0xa0] sm:$0xff]
        %v2075 = vld [vmem:[%s2053 + $0xa8] sm:$0xff]
        %v2076 = vld [vmem:[%s2053 + $0xb0] sm:$0xff]
        %v2077 = vld [vmem:[%s2053 + $0xb8] sm:$0xff]
        %v2078 = vld [vmem:[%s2053 + $0xc0] sm:$0xff]
        %v2079 = vld [vmem:[%s2053 + $0xc8] sm:$0xff]
        %v2080 = vld [vmem:[%s2053 + $0xd0] sm:$0xff]
        %v2081 = vld [vmem:[%s2053 + $0xd8] sm:$0xff]
        %v2082 = vld [vmem:[%s2053 + $0xe0] sm:$0xff]
        %v2083 = vld [vmem:[%s2053 + $0xe8] sm:$0xff]
        %v2084 = vld [vmem:[%s2053 + $0xf0] sm:$0xff]
        %v2085 = vld [vmem:[%s2053 + $0xf8] sm:$0xff]
        %v2086 = vld [vmem:[%s2053 + $0x100] sm:$0xff]
        %v2087 = vld [vmem:[%s2053 + $0x108] sm:$0xff]
        %v2088 = vld [vmem:[%s2053 + $0x110] sm:$0xff]
        %v2089 = vld [vmem:[%s2053 + $0x118] sm:$0xff]
        %v2090 = vld [vmem:[%s2053 + $0x120] sm:$0xff]
        %v2091 = vld [vmem:[%s2053 + $0x128] sm:$0xff]
        %v2092 = vld [vmem:[%s2053 + $0x130] sm:$0xff]
        %v2093 = vld [vmem:[%s2053 + $0x138] sm:$0xff]
        %v2094 = vld [vmem:[%s2053 + $0x140] sm:$0xff]
        %v2095 = vld [vmem:[%s2053 + $0x148] sm:$0xff]
        %v2096 = vld [vmem:[%s2053 + $0x150] sm:$0xff]
        %v2097 = vld [vmem:[%s2053 + $0x158] sm:$0xff]
        %v2098 = vld [vmem:[%s2053 + $0x160] sm:$0xff]
        %v2099 = vld [vmem:[%s2053 + $0x168] sm:$0xff]
        %v2100 = vld [vmem:[%s2053 + $0x170] sm:$0xff]
        %v2101 = vld [vmem:[%s2053 + $0x178] sm:$0xff]
        %v2102 = vld [vmem:[%s2053 + $0x180] sm:$0xff]
        %v2103 = vld [vmem:[%s2053 + $0x188] sm:$0xff]
        %v2104 = vld [vmem:[%s2053 + $0x190] sm:$0xff]
        %v2105 = vld [vmem:[%s2053 + $0x198] sm:$0xff]
        %v2106 = vld [vmem:[%s2053 + $0x1a0] sm:$0xff]
        %v2107 = vld [vmem:[%s2053 + $0x1a8] sm:$0xff]
        %v2108 = vld [vmem:[%s2053 + $0x1b0] sm:$0xff]
        %v2109 = vld [vmem:[%s2053 + $0x1b8] sm:$0xff]
        %v2110 = vld [vmem:[%s2053 + $0x1c0] sm:$0xff]
        %v2111 = vld [vmem:[%s2053 + $0x1c8] sm:$0xff]
        %v2112 = vld [vmem:[%s2053 + $0x1d0] sm:$0xff]
        %v2113 = vld [vmem:[%s2053 + $0x1d8] sm:$0xff]
        %v2114 = vld [vmem:[%s2053 + $0x1e0] sm:$0xff]
        %v2115 = vld [vmem:[%s2053 + $0x1e8] sm:$0xff]
        %v2116 = vld [vmem:[%s2053 + $0x1f0] sm:$0xff]
        %v2117 = vld [vmem:[%s2053 + $0x1f8] sm:$0xff]
        %2118 = vmatpush.msra.mxu0 %v2084
        %2119 = vmatpush.msra.mxu0 %v2082
        %2120 = vmatpush.msra.mxu0 %v2080
        %2121 = vmatpush.msra.mxu0 %v2078
        %2122 = vmatpush.msra.mxu0 %v2076
        %2123 = vmatpush.msra.mxu0 %v2074
        %2124 = vmatpush.msra.mxu0 %v2072
        %2125 = vmatpush.msra.mxu0 %v2070
        %2126 = vmatpush.msra.mxu0 %v2068
        %2127 = vmatpush.msra.mxu0 %v2066
        %2128 = vmatpush.msra.mxu0 %v2064
        %2129 = vmatpush.msra.mxu0 %v2062
        %2130 = vmatpush.msra.mxu0 %v2060
        %2131 = vmatpush.msra.mxu0 %v2058
        %2132 = vmatpush.msra.mxu0 %v2056
        %2133 = vmatpush.msra.mxu0 %v2054
        %2134 = vmatmul.f32.gmra.mxu0 %v776
        %v2135 = vpop.f32.mrf.mxu0
        %v2136 = vadd.f32 0.0, %v2135
        %2137 = vmatmul.f32.gmra.mxu0 %v779
        %v2138 = vpop.f32.mrf.mxu0
        %v2139 = vadd.f32 0.0, %v2138
        %2140 = vmatmul.f32.gmra.mxu0 %v782
        %v2141 = vpop.f32.mrf.mxu0
        %v2142 = vadd.f32 0.0, %v2141
        %2143 = vmatmul.f32.gmra.mxu0 %v785
        %v2144 = vpop.f32.mrf.mxu0
        %v2145 = vadd.f32 0.0, %v2144
        %2146 = vdwg.mxu0
        %2147 = vmatpush.msra.mxu0 %v2116
        %2148 = vmatpush.msra.mxu0 %v2114
        %2149 = vmatpush.msra.mxu0 %v2112
        %2150 = vmatpush.msra.mxu0 %v2110
        %2151 = vmatpush.msra.mxu0 %v2108
        %2152 = vmatpush.msra.mxu0 %v2106
        %2153 = vmatpush.msra.mxu0 %v2104
        %2154 = vmatpush.msra.mxu0 %v2102
        %2155 = vmatpush.msra.mxu0 %v2100
        %2156 = vmatpush.msra.mxu0 %v2098
        %2157 = vmatpush.msra.mxu0 %v2096
        %2158 = vmatpush.msra.mxu0 %v2094
        %2159 = vmatpush.msra.mxu0 %v2092
        %2160 = vmatpush.msra.mxu0 %v2090
        %2161 = vmatpush.msra.mxu0 %v2088
        %2162 = vmatpush.msra.mxu0 %v2086
        %2163 = vmatmul.f32.gmra.mxu0 %v901
        %v2164 = vpop.f32.mrf.mxu0
        %v2165 = vadd.f32 %v2136, %v2164
        %2166 = vmatmul.f32.gmra.mxu0 %v904
        %v2167 = vpop.f32.mrf.mxu0
        %v2168 = vadd.f32 %v2139, %v2167
        %2169 = vmatmul.f32.gmra.mxu0 %v907
        %v2170 = vpop.f32.mrf.mxu0
        %v2171 = vadd.f32 %v2142, %v2170
        %2172 = vmatmul.f32.gmra.mxu0 %v910
        %v2173 = vpop.f32.mrf.mxu0
        %v2174 = vadd.f32 %v2145, %v2173
        %2175 = vdwg.mxu0
        %2176 = vmatpush.msra.mxu0 %v2085
        %2177 = vmatpush.msra.mxu0 %v2083
        %2178 = vmatpush.msra.mxu0 %v2081
        %2179 = vmatpush.msra.mxu0 %v2079
        %2180 = vmatpush.msra.mxu0 %v2077
        %2181 = vmatpush.msra.mxu0 %v2075
        %2182 = vmatpush.msra.mxu0 %v2073
        %2183 = vmatpush.msra.mxu0 %v2071
        %2184 = vmatpush.msra.mxu0 %v2069
        %2185 = vmatpush.msra.mxu0 %v2067
        %2186 = vmatpush.msra.mxu0 %v2065
        %2187 = vmatpush.msra.mxu0 %v2063
        %2188 = vmatpush.msra.mxu0 %v2061
        %2189 = vmatpush.msra.mxu0 %v2059
        %2190 = vmatpush.msra.mxu0 %v2057
        %2191 = vmatpush.msra.mxu0 %v2055
        %2192 = vmatmul.f32.gmra.mxu0 %v776
        %v2193 = vpop.f32.mrf.mxu0
        %v2194 = vadd.f32 0.0, %v2193
        %2195 = vmatmul.f32.gmra.mxu0 %v779
        %v2196 = vpop.f32.mrf.mxu0
        %v2197 = vadd.f32 0.0, %v2196
        %2198 = vmatmul.f32.gmra.mxu0 %v782
        %v2199 = vpop.f32.mrf.mxu0
        %v2200 = vadd.f32 0.0, %v2199
        %2201 = vmatmul.f32.gmra.mxu0 %v785
        %v2202 = vpop.f32.mrf.mxu0
        %v2203 = vadd.f32 0.0, %v2202
        %2204 = vdwg.mxu0
        %2205 = vmatpush.msra.mxu0 %v2117
        %2206 = vmatpush.msra.mxu0 %v2115
        %2207 = vmatpush.msra.mxu0 %v2113
        %2208 = vmatpush.msra.mxu0 %v2111
        %2209 = vmatpush.msra.mxu0 %v2109
        %2210 = vmatpush.msra.mxu0 %v2107
        %2211 = vmatpush.msra.mxu0 %v2105
        %2212 = vmatpush.msra.mxu0 %v2103
        %2213 = vmatpush.msra.mxu0 %v2101
        %2214 = vmatpush.msra.mxu0 %v2099
        %2215 = vmatpush.msra.mxu0 %v2097
        %2216 = vmatpush.msra.mxu0 %v2095
        %2217 = vmatpush.msra.mxu0 %v2093
        %2218 = vmatpush.msra.mxu0 %v2091
        %2219 = vmatpush.msra.mxu0 %v2089
        %2220 = vmatpush.msra.mxu0 %v2087
        %2221 = vmatmul.f32.gmra.mxu0 %v901
        %v2222 = vpop.f32.mrf.mxu0
        %v2223 = vadd.f32 %v2194, %v2222
        %2224 = vmatmul.f32.gmra.mxu0 %v904
        %v2225 = vpop.f32.mrf.mxu0
        %v2226 = vadd.f32 %v2197, %v2225
        %2227 = vmatmul.f32.gmra.mxu0 %v907
        %v2228 = vpop.f32.mrf.mxu0
        %v2229 = vadd.f32 %v2200, %v2228
        %2230 = vmatmul.f32.gmra.mxu0 %v910
        %v2231 = vpop.f32.mrf.mxu0
        %v2232 = vadd.f32 %v2203, %v2231
        %2233 = vdwg.mxu0
        %v2234 = vadd.f32 %v2045, %v2165
        %v2235 = vadd.f32 %v2046, %v2223
        %v2236 = vadd.f32 %v2047, %v2168
        %v2237 = vadd.f32 %v2048, %v2226
        %v2238 = vadd.f32 %v2049, %v2171
        %v2239 = vadd.f32 %v2050, %v2229
        %v2240 = vadd.f32 %v2051, %v2174
        %v2241 = vadd.f32 %v2052, %v2232
        %s2242 = scalar_lea.vmem [#allocation5], 3584
        %v2243 = vld [vmem:[%s2242] sm:$0xff]
        %v2244 = vld [vmem:[%s2242 + $0x8] sm:$0xff]
        %v2245 = vld [vmem:[%s2242 + $0x10] sm:$0xff]
        %v2246 = vld [vmem:[%s2242 + $0x18] sm:$0xff]
        %v2247 = vld [vmem:[%s2242 + $0x20] sm:$0xff]
        %v2248 = vld [vmem:[%s2242 + $0x28] sm:$0xff]
        %v2249 = vld [vmem:[%s2242 + $0x30] sm:$0xff]
        %v2250 = vld [vmem:[%s2242 + $0x38] sm:$0xff]
        %v2251 = vld [vmem:[%s2242 + $0x40] sm:$0xff]
        %v2252 = vld [vmem:[%s2242 + $0x48] sm:$0xff]
        %v2253 = vld [vmem:[%s2242 + $0x50] sm:$0xff]
        %v2254 = vld [vmem:[%s2242 + $0x58] sm:$0xff]
        %v2255 = vld [vmem:[%s2242 + $0x60] sm:$0xff]
        %v2256 = vld [vmem:[%s2242 + $0x68] sm:$0xff]
        %v2257 = vld [vmem:[%s2242 + $0x70] sm:$0xff]
        %v2258 = vld [vmem:[%s2242 + $0x78] sm:$0xff]
        %v2259 = vld [vmem:[%s2242 + $0x80] sm:$0xff]
        %v2260 = vld [vmem:[%s2242 + $0x88] sm:$0xff]
        %v2261 = vld [vmem:[%s2242 + $0x90] sm:$0xff]
        %v2262 = vld [vmem:[%s2242 + $0x98] sm:$0xff]
        %v2263 = vld [vmem:[%s2242 + $0xa0] sm:$0xff]
        %v2264 = vld [vmem:[%s2242 + $0xa8] sm:$0xff]
        %v2265 = vld [vmem:[%s2242 + $0xb0] sm:$0xff]
        %v2266 = vld [vmem:[%s2242 + $0xb8] sm:$0xff]
        %v2267 = vld [vmem:[%s2242 + $0xc0] sm:$0xff]
        %v2268 = vld [vmem:[%s2242 + $0xc8] sm:$0xff]
        %v2269 = vld [vmem:[%s2242 + $0xd0] sm:$0xff]
        %v2270 = vld [vmem:[%s2242 + $0xd8] sm:$0xff]
        %v2271 = vld [vmem:[%s2242 + $0xe0] sm:$0xff]
        %v2272 = vld [vmem:[%s2242 + $0xe8] sm:$0xff]
        %v2273 = vld [vmem:[%s2242 + $0xf0] sm:$0xff]
        %v2274 = vld [vmem:[%s2242 + $0xf8] sm:$0xff]
        %v2275 = vld [vmem:[%s2242 + $0x100] sm:$0xff]
        %v2276 = vld [vmem:[%s2242 + $0x108] sm:$0xff]
        %v2277 = vld [vmem:[%s2242 + $0x110] sm:$0xff]
        %v2278 = vld [vmem:[%s2242 + $0x118] sm:$0xff]
        %v2279 = vld [vmem:[%s2242 + $0x120] sm:$0xff]
        %v2280 = vld [vmem:[%s2242 + $0x128] sm:$0xff]
        %v2281 = vld [vmem:[%s2242 + $0x130] sm:$0xff]
        %v2282 = vld [vmem:[%s2242 + $0x138] sm:$0xff]
        %v2283 = vld [vmem:[%s2242 + $0x140] sm:$0xff]
        %v2284 = vld [vmem:[%s2242 + $0x148] sm:$0xff]
        %v2285 = vld [vmem:[%s2242 + $0x150] sm:$0xff]
        %v2286 = vld [vmem:[%s2242 + $0x158] sm:$0xff]
        %v2287 = vld [vmem:[%s2242 + $0x160] sm:$0xff]
        %v2288 = vld [vmem:[%s2242 + $0x168] sm:$0xff]
        %v2289 = vld [vmem:[%s2242 + $0x170] sm:$0xff]
        %v2290 = vld [vmem:[%s2242 + $0x178] sm:$0xff]
        %v2291 = vld [vmem:[%s2242 + $0x180] sm:$0xff]
        %v2292 = vld [vmem:[%s2242 + $0x188] sm:$0xff]
        %v2293 = vld [vmem:[%s2242 + $0x190] sm:$0xff]
        %v2294 = vld [vmem:[%s2242 + $0x198] sm:$0xff]
        %v2295 = vld [vmem:[%s2242 + $0x1a0] sm:$0xff]
        %v2296 = vld [vmem:[%s2242 + $0x1a8] sm:$0xff]
        %v2297 = vld [vmem:[%s2242 + $0x1b0] sm:$0xff]
        %v2298 = vld [vmem:[%s2242 + $0x1b8] sm:$0xff]
        %v2299 = vld [vmem:[%s2242 + $0x1c0] sm:$0xff]
        %v2300 = vld [vmem:[%s2242 + $0x1c8] sm:$0xff]
        %v2301 = vld [vmem:[%s2242 + $0x1d0] sm:$0xff]
        %v2302 = vld [vmem:[%s2242 + $0x1d8] sm:$0xff]
        %v2303 = vld [vmem:[%s2242 + $0x1e0] sm:$0xff]
        %v2304 = vld [vmem:[%s2242 + $0x1e8] sm:$0xff]
        %v2305 = vld [vmem:[%s2242 + $0x1f0] sm:$0xff]
        %v2306 = vld [vmem:[%s2242 + $0x1f8] sm:$0xff]
        %2307 = vmatpush.msra.mxu0 %v2273
        %2308 = vmatpush.msra.mxu0 %v2271
        %2309 = vmatpush.msra.mxu0 %v2269
        %2310 = vmatpush.msra.mxu0 %v2267
        %2311 = vmatpush.msra.mxu0 %v2265
        %2312 = vmatpush.msra.mxu0 %v2263
        %2313 = vmatpush.msra.mxu0 %v2261
        %2314 = vmatpush.msra.mxu0 %v2259
        %2315 = vmatpush.msra.mxu0 %v2257
        %2316 = vmatpush.msra.mxu0 %v2255
        %2317 = vmatpush.msra.mxu0 %v2253
        %2318 = vmatpush.msra.mxu0 %v2251
        %2319 = vmatpush.msra.mxu0 %v2249
        %2320 = vmatpush.msra.mxu0 %v2247
        %2321 = vmatpush.msra.mxu0 %v2245
        %2322 = vmatpush.msra.mxu0 %v2243
        %2323 = vmatmul.f32.gmra.mxu0 %v788
        %v2324 = vpop.f32.mrf.mxu0
        %v2325 = vadd.f32 0.0, %v2324
        %2326 = vmatmul.f32.gmra.mxu0 %v791
        %v2327 = vpop.f32.mrf.mxu0
        %v2328 = vadd.f32 0.0, %v2327
        %2329 = vmatmul.f32.gmra.mxu0 %v794
        %v2330 = vpop.f32.mrf.mxu0
        %v2331 = vadd.f32 0.0, %v2330
        %2332 = vmatmul.f32.gmra.mxu0 %v797
        %v2333 = vpop.f32.mrf.mxu0
        %v2334 = vadd.f32 0.0, %v2333
        %2335 = vdwg.mxu0
        %2336 = vmatpush.msra.mxu0 %v2305
        %2337 = vmatpush.msra.mxu0 %v2303
        %2338 = vmatpush.msra.mxu0 %v2301
        %2339 = vmatpush.msra.mxu0 %v2299
        %2340 = vmatpush.msra.mxu0 %v2297
        %2341 = vmatpush.msra.mxu0 %v2295
        %2342 = vmatpush.msra.mxu0 %v2293
        %2343 = vmatpush.msra.mxu0 %v2291
        %2344 = vmatpush.msra.mxu0 %v2289
        %2345 = vmatpush.msra.mxu0 %v2287
        %2346 = vmatpush.msra.mxu0 %v2285
        %2347 = vmatpush.msra.mxu0 %v2283
        %2348 = vmatpush.msra.mxu0 %v2281
        %2349 = vmatpush.msra.mxu0 %v2279
        %2350 = vmatpush.msra.mxu0 %v2277
        %2351 = vmatpush.msra.mxu0 %v2275
        %2352 = vmatmul.f32.gmra.mxu0 %v913
        %v2353 = vpop.f32.mrf.mxu0
        %v2354 = vadd.f32 %v2325, %v2353
        %2355 = vmatmul.f32.gmra.mxu0 %v916
        %v2356 = vpop.f32.mrf.mxu0
        %v2357 = vadd.f32 %v2328, %v2356
        %2358 = vmatmul.f32.gmra.mxu0 %v919
        %v2359 = vpop.f32.mrf.mxu0
        %v2360 = vadd.f32 %v2331, %v2359
        %2361 = vmatmul.f32.gmra.mxu0 %v922
        %v2362 = vpop.f32.mrf.mxu0
        %v2363 = vadd.f32 %v2334, %v2362
        %2364 = vdwg.mxu0
        %2365 = vmatpush.msra.mxu0 %v2274
        %2366 = vmatpush.msra.mxu0 %v2272
        %2367 = vmatpush.msra.mxu0 %v2270
        %2368 = vmatpush.msra.mxu0 %v2268
        %2369 = vmatpush.msra.mxu0 %v2266
        %2370 = vmatpush.msra.mxu0 %v2264
        %2371 = vmatpush.msra.mxu0 %v2262
        %2372 = vmatpush.msra.mxu0 %v2260
        %2373 = vmatpush.msra.mxu0 %v2258
        %2374 = vmatpush.msra.mxu0 %v2256
        %2375 = vmatpush.msra.mxu0 %v2254
        %2376 = vmatpush.msra.mxu0 %v2252
        %2377 = vmatpush.msra.mxu0 %v2250
        %2378 = vmatpush.msra.mxu0 %v2248
        %2379 = vmatpush.msra.mxu0 %v2246
        %2380 = vmatpush.msra.mxu0 %v2244
        %2381 = vmatmul.f32.gmra.mxu0 %v788
        %v2382 = vpop.f32.mrf.mxu0
        %v2383 = vadd.f32 0.0, %v2382
        %2384 = vmatmul.f32.gmra.mxu0 %v791
        %v2385 = vpop.f32.mrf.mxu0
        %v2386 = vadd.f32 0.0, %v2385
        %2387 = vmatmul.f32.gmra.mxu0 %v794
        %v2388 = vpop.f32.mrf.mxu0
        %v2389 = vadd.f32 0.0, %v2388
        %2390 = vmatmul.f32.gmra.mxu0 %v797
        %v2391 = vpop.f32.mrf.mxu0
        %v2392 = vadd.f32 0.0, %v2391
        %2393 = vdwg.mxu0
        %2394 = vmatpush.msra.mxu0 %v2306
        %2395 = vmatpush.msra.mxu0 %v2304
        %2396 = vmatpush.msra.mxu0 %v2302
        %2397 = vmatpush.msra.mxu0 %v2300
        %2398 = vmatpush.msra.mxu0 %v2298
        %2399 = vmatpush.msra.mxu0 %v2296
        %2400 = vmatpush.msra.mxu0 %v2294
        %2401 = vmatpush.msra.mxu0 %v2292
        %2402 = vmatpush.msra.mxu0 %v2290
        %2403 = vmatpush.msra.mxu0 %v2288
        %2404 = vmatpush.msra.mxu0 %v2286
        %2405 = vmatpush.msra.mxu0 %v2284
        %2406 = vmatpush.msra.mxu0 %v2282
        %2407 = vmatpush.msra.mxu0 %v2280
        %2408 = vmatpush.msra.mxu0 %v2278
        %2409 = vmatpush.msra.mxu0 %v2276
        %2410 = vmatmul.f32.gmra.mxu0 %v913
        %v2411 = vpop.f32.mrf.mxu0
        %v2412 = vadd.f32 %v2383, %v2411
        %2413 = vmatmul.f32.gmra.mxu0 %v916
        %v2414 = vpop.f32.mrf.mxu0
        %v2415 = vadd.f32 %v2386, %v2414
        %2416 = vmatmul.f32.gmra.mxu0 %v919
        %v2417 = vpop.f32.mrf.mxu0
        %v2418 = vadd.f32 %v2389, %v2417
        %2419 = vmatmul.f32.gmra.mxu0 %v922
        %v2420 = vpop.f32.mrf.mxu0
        %v2421 = vadd.f32 %v2392, %v2420
        %2422 = vdwg.mxu0
        %v2423 = vadd.f32 %v2234, %v2354
        %v2424 = vadd.f32 %v2235, %v2412
        %v2425 = vadd.f32 %v2236, %v2357
        %v2426 = vadd.f32 %v2237, %v2415
        %v2427 = vadd.f32 %v2238, %v2360
        %v2428 = vadd.f32 %v2239, %v2418
        %v2429 = vadd.f32 %v2240, %v2363
        %v2430 = vadd.f32 %v2241, %v2421
        %s2431 = scalar_lea.vmem [#allocation5], 4096
        %v2432 = vld [vmem:[%s2431] sm:$0xff]
        %v2433 = vld [vmem:[%s2431 + $0x8] sm:$0xff]
        %v2434 = vld [vmem:[%s2431 + $0x10] sm:$0xff]
        %v2435 = vld [vmem:[%s2431 + $0x18] sm:$0xff]
        %v2436 = vld [vmem:[%s2431 + $0x20] sm:$0xff]
        %v2437 = vld [vmem:[%s2431 + $0x28] sm:$0xff]
        %v2438 = vld [vmem:[%s2431 + $0x30] sm:$0xff]
        %v2439 = vld [vmem:[%s2431 + $0x38] sm:$0xff]
        %v2440 = vld [vmem:[%s2431 + $0x40] sm:$0xff]
        %v2441 = vld [vmem:[%s2431 + $0x48] sm:$0xff]
        %v2442 = vld [vmem:[%s2431 + $0x50] sm:$0xff]
        %v2443 = vld [vmem:[%s2431 + $0x58] sm:$0xff]
        %v2444 = vld [vmem:[%s2431 + $0x60] sm:$0xff]
        %v2445 = vld [vmem:[%s2431 + $0x68] sm:$0xff]
        %v2446 = vld [vmem:[%s2431 + $0x70] sm:$0xff]
        %v2447 = vld [vmem:[%s2431 + $0x78] sm:$0xff]
        %v2448 = vld [vmem:[%s2431 + $0x80] sm:$0xff]
        %v2449 = vld [vmem:[%s2431 + $0x88] sm:$0xff]
        %v2450 = vld [vmem:[%s2431 + $0x90] sm:$0xff]
        %v2451 = vld [vmem:[%s2431 + $0x98] sm:$0xff]
        %v2452 = vld [vmem:[%s2431 + $0xa0] sm:$0xff]
        %v2453 = vld [vmem:[%s2431 + $0xa8] sm:$0xff]
        %v2454 = vld [vmem:[%s2431 + $0xb0] sm:$0xff]
        %v2455 = vld [vmem:[%s2431 + $0xb8] sm:$0xff]
        %v2456 = vld [vmem:[%s2431 + $0xc0] sm:$0xff]
        %v2457 = vld [vmem:[%s2431 + $0xc8] sm:$0xff]
        %v2458 = vld [vmem:[%s2431 + $0xd0] sm:$0xff]
        %v2459 = vld [vmem:[%s2431 + $0xd8] sm:$0xff]
        %v2460 = vld [vmem:[%s2431 + $0xe0] sm:$0xff]
        %v2461 = vld [vmem:[%s2431 + $0xe8] sm:$0xff]
        %v2462 = vld [vmem:[%s2431 + $0xf0] sm:$0xff]
        %v2463 = vld [vmem:[%s2431 + $0xf8] sm:$0xff]
        %v2464 = vld [vmem:[%s2431 + $0x100] sm:$0xff]
        %v2465 = vld [vmem:[%s2431 + $0x108] sm:$0xff]
        %v2466 = vld [vmem:[%s2431 + $0x110] sm:$0xff]
        %v2467 = vld [vmem:[%s2431 + $0x118] sm:$0xff]
        %v2468 = vld [vmem:[%s2431 + $0x120] sm:$0xff]
        %v2469 = vld [vmem:[%s2431 + $0x128] sm:$0xff]
        %v2470 = vld [vmem:[%s2431 + $0x130] sm:$0xff]
        %v2471 = vld [vmem:[%s2431 + $0x138] sm:$0xff]
        %v2472 = vld [vmem:[%s2431 + $0x140] sm:$0xff]
        %v2473 = vld [vmem:[%s2431 + $0x148] sm:$0xff]
        %v2474 = vld [vmem:[%s2431 + $0x150] sm:$0xff]
        %v2475 = vld [vmem:[%s2431 + $0x158] sm:$0xff]
        %v2476 = vld [vmem:[%s2431 + $0x160] sm:$0xff]
        %v2477 = vld [vmem:[%s2431 + $0x168] sm:$0xff]
        %v2478 = vld [vmem:[%s2431 + $0x170] sm:$0xff]
        %v2479 = vld [vmem:[%s2431 + $0x178] sm:$0xff]
        %v2480 = vld [vmem:[%s2431 + $0x180] sm:$0xff]
        %v2481 = vld [vmem:[%s2431 + $0x188] sm:$0xff]
        %v2482 = vld [vmem:[%s2431 + $0x190] sm:$0xff]
        %v2483 = vld [vmem:[%s2431 + $0x198] sm:$0xff]
        %v2484 = vld [vmem:[%s2431 + $0x1a0] sm:$0xff]
        %v2485 = vld [vmem:[%s2431 + $0x1a8] sm:$0xff]
        %v2486 = vld [vmem:[%s2431 + $0x1b0] sm:$0xff]
        %v2487 = vld [vmem:[%s2431 + $0x1b8] sm:$0xff]
        %v2488 = vld [vmem:[%s2431 + $0x1c0] sm:$0xff]
        %v2489 = vld [vmem:[%s2431 + $0x1c8] sm:$0xff]
        %v2490 = vld [vmem:[%s2431 + $0x1d0] sm:$0xff]
        %v2491 = vld [vmem:[%s2431 + $0x1d8] sm:$0xff]
        %v2492 = vld [vmem:[%s2431 + $0x1e0] sm:$0xff]
        %v2493 = vld [vmem:[%s2431 + $0x1e8] sm:$0xff]
        %v2494 = vld [vmem:[%s2431 + $0x1f0] sm:$0xff]
        %v2495 = vld [vmem:[%s2431 + $0x1f8] sm:$0xff]
        %2496 = vmatpush.msra.mxu0 %v2462
        %2497 = vmatpush.msra.mxu0 %v2460
        %2498 = vmatpush.msra.mxu0 %v2458
        %2499 = vmatpush.msra.mxu0 %v2456
        %2500 = vmatpush.msra.mxu0 %v2454
        %2501 = vmatpush.msra.mxu0 %v2452
        %2502 = vmatpush.msra.mxu0 %v2450
        %2503 = vmatpush.msra.mxu0 %v2448
        %2504 = vmatpush.msra.mxu0 %v2446
        %2505 = vmatpush.msra.mxu0 %v2444
        %2506 = vmatpush.msra.mxu0 %v2442
        %2507 = vmatpush.msra.mxu0 %v2440
        %2508 = vmatpush.msra.mxu0 %v2438
        %2509 = vmatpush.msra.mxu0 %v2436
        %2510 = vmatpush.msra.mxu0 %v2434
        %2511 = vmatpush.msra.mxu0 %v2432
        %2512 = vmatmul.f32.gmra.mxu0 %v800
        %v2513 = vpop.f32.mrf.mxu0
        %v2514 = vadd.f32 0.0, %v2513
        %2515 = vmatmul.f32.gmra.mxu0 %v803
        %v2516 = vpop.f32.mrf.mxu0
        %v2517 = vadd.f32 0.0, %v2516
        %2518 = vmatmul.f32.gmra.mxu0 %v806
        %v2519 = vpop.f32.mrf.mxu0
        %v2520 = vadd.f32 0.0, %v2519
        %2521 = vmatmul.f32.gmra.mxu0 %v809
        %v2522 = vpop.f32.mrf.mxu0
        %v2523 = vadd.f32 0.0, %v2522
        %2524 = vdwg.mxu0
        %2525 = vmatpush.msra.mxu0 %v2494
        %2526 = vmatpush.msra.mxu0 %v2492
        %2527 = vmatpush.msra.mxu0 %v2490
        %2528 = vmatpush.msra.mxu0 %v2488
        %2529 = vmatpush.msra.mxu0 %v2486
        %2530 = vmatpush.msra.mxu0 %v2484
        %2531 = vmatpush.msra.mxu0 %v2482
        %2532 = vmatpush.msra.mxu0 %v2480
        %2533 = vmatpush.msra.mxu0 %v2478
        %2534 = vmatpush.msra.mxu0 %v2476
        %2535 = vmatpush.msra.mxu0 %v2474
        %2536 = vmatpush.msra.mxu0 %v2472
        %2537 = vmatpush.msra.mxu0 %v2470
        %2538 = vmatpush.msra.mxu0 %v2468
        %2539 = vmatpush.msra.mxu0 %v2466
        %2540 = vmatpush.msra.mxu0 %v2464
        %2541 = vmatmul.f32.gmra.mxu0 %v925
        %v2542 = vpop.f32.mrf.mxu0
        %v2543 = vadd.f32 %v2514, %v2542
        %2544 = vmatmul.f32.gmra.mxu0 %v928
        %v2545 = vpop.f32.mrf.mxu0
        %v2546 = vadd.f32 %v2517, %v2545
        %2547 = vmatmul.f32.gmra.mxu0 %v931
        %v2548 = vpop.f32.mrf.mxu0
        %v2549 = vadd.f32 %v2520, %v2548
        %2550 = vmatmul.f32.gmra.mxu0 %v934
        %v2551 = vpop.f32.mrf.mxu0
        %v2552 = vadd.f32 %v2523, %v2551
        %2553 = vdwg.mxu0
        %2554 = vmatpush.msra.mxu0 %v2463
        %2555 = vmatpush.msra.mxu0 %v2461
        %2556 = vmatpush.msra.mxu0 %v2459
        %2557 = vmatpush.msra.mxu0 %v2457
        %2558 = vmatpush.msra.mxu0 %v2455
        %2559 = vmatpush.msra.mxu0 %v2453
        %2560 = vmatpush.msra.mxu0 %v2451
        %2561 = vmatpush.msra.mxu0 %v2449
        %2562 = vmatpush.msra.mxu0 %v2447
        %2563 = vmatpush.msra.mxu0 %v2445
        %2564 = vmatpush.msra.mxu0 %v2443
        %2565 = vmatpush.msra.mxu0 %v2441
        %2566 = vmatpush.msra.mxu0 %v2439
        %2567 = vmatpush.msra.mxu0 %v2437
        %2568 = vmatpush.msra.mxu0 %v2435
        %2569 = vmatpush.msra.mxu0 %v2433
        %2570 = vmatmul.f32.gmra.mxu0 %v800
        %v2571 = vpop.f32.mrf.mxu0
        %v2572 = vadd.f32 0.0, %v2571
        %2573 = vmatmul.f32.gmra.mxu0 %v803
        %v2574 = vpop.f32.mrf.mxu0
        %v2575 = vadd.f32 0.0, %v2574
        %2576 = vmatmul.f32.gmra.mxu0 %v806
        %v2577 = vpop.f32.mrf.mxu0
        %v2578 = vadd.f32 0.0, %v2577
        %2579 = vmatmul.f32.gmra.mxu0 %v809
        %v2580 = vpop.f32.mrf.mxu0
        %v2581 = vadd.f32 0.0, %v2580
        %2582 = vdwg.mxu0
        %2583 = vmatpush.msra.mxu0 %v2495
        %2584 = vmatpush.msra.mxu0 %v2493
        %2585 = vmatpush.msra.mxu0 %v2491
        %2586 = vmatpush.msra.mxu0 %v2489
        %2587 = vmatpush.msra.mxu0 %v2487
        %2588 = vmatpush.msra.mxu0 %v2485
        %2589 = vmatpush.msra.mxu0 %v2483
        %2590 = vmatpush.msra.mxu0 %v2481
        %2591 = vmatpush.msra.mxu0 %v2479
        %2592 = vmatpush.msra.mxu0 %v2477
        %2593 = vmatpush.msra.mxu0 %v2475
        %2594 = vmatpush.msra.mxu0 %v2473
        %2595 = vmatpush.msra.mxu0 %v2471
        %2596 = vmatpush.msra.mxu0 %v2469
        %2597 = vmatpush.msra.mxu0 %v2467
        %2598 = vmatpush.msra.mxu0 %v2465
        %2599 = vmatmul.f32.gmra.mxu0 %v925
        %v2600 = vpop.f32.mrf.mxu0
        %v2601 = vadd.f32 %v2572, %v2600
        %2602 = vmatmul.f32.gmra.mxu0 %v928
        %v2603 = vpop.f32.mrf.mxu0
        %v2604 = vadd.f32 %v2575, %v2603
        %2605 = vmatmul.f32.gmra.mxu0 %v931
        %v2606 = vpop.f32.mrf.mxu0
        %v2607 = vadd.f32 %v2578, %v2606
        %2608 = vmatmul.f32.gmra.mxu0 %v934
        %v2609 = vpop.f32.mrf.mxu0
        %v2610 = vadd.f32 %v2581, %v2609
        %2611 = vdwg.mxu0
        %v2612 = vadd.f32 %v2423, %v2543
        %v2613 = vadd.f32 %v2424, %v2601
        %v2614 = vadd.f32 %v2425, %v2546
        %v2615 = vadd.f32 %v2426, %v2604
        %v2616 = vadd.f32 %v2427, %v2549
        %v2617 = vadd.f32 %v2428, %v2607
        %v2618 = vadd.f32 %v2429, %v2552
        %v2619 = vadd.f32 %v2430, %v2610
        %2621 = vset.pattern.permute.xlu0 0
        %2622 = vperm.xlu0 %2621, %v573
        %v2623 = vpop.permute.xlu0 %2622
        %2626 = vset.pattern.permute.xlu0 0
        %2627 = vperm.xlu0 %2626, %v574
        %v2628 = vpop.permute.xlu0 %2627
        %2631 = vset.pattern.permute.xlu0 0
        %2632 = vperm.xlu0 %2631, %v575
        %v2633 = vpop.permute.xlu0 %2632
        %2636 = vset.pattern.permute.xlu0 0
        %2637 = vperm.xlu0 %2636, %v576
        %v2638 = vpop.permute.xlu0 %2637
        %v2640 = vadd.f32 %v2612, %v2623
        %v2641 = vadd.f32 %v2613, %v2623
        %v2642 = vadd.f32 %v2614, %v2628
        %v2643 = vadd.f32 %v2615, %v2628
        %v2644 = vadd.f32 %v2616, %v2633
        %v2645 = vadd.f32 %v2617, %v2633
        %v2646 = vadd.f32 %v2618, %v2638
        %v2647 = vadd.f32 %v2619, %v2638
        %v2648 = vmax.f32 %v2640, 0.0
        %v2649 = vmax.f32 %v2641, 0.0
        %v2650 = vmax.f32 %v2642, 0.0
        %v2651 = vmax.f32 %v2643, 0.0
        %v2652 = vmax.f32 %v2644, 0.0
        %v2653 = vmax.f32 %v2645, 0.0
        %v2654 = vmax.f32 %v2646, 0.0
        %v2655 = vmax.f32 %v2647, 0.0
        %v2656 = vld [vmem:[%s6] sm:$0xff]
        %v2657 = vld [vmem:[%s6 + $0x8] sm:$0xff]
        %v2658 = vld [vmem:[%s6 + $0x10] sm:$0xff]
        %v2659 = vld [vmem:[%s6 + $0x18] sm:$0xff]
        %v2660 = vld [vmem:[%s6 + $0x20] sm:$0xff]
        %v2661 = vld [vmem:[%s6 + $0x28] sm:$0xff]
        %v2662 = vld [vmem:[%s6 + $0x30] sm:$0xff]
        %v2663 = vld [vmem:[%s6 + $0x38] sm:$0xff]
        %v2664 = vld [vmem:[%s6 + $0x40] sm:$0xff]
        %v2665 = vld [vmem:[%s6 + $0x48] sm:$0xff]
        %v2666 = vld [vmem:[%s6 + $0x50] sm:$0xff]
        %v2667 = vld [vmem:[%s6 + $0x58] sm:$0xff]
        %v2668 = vld [vmem:[%s6 + $0x60] sm:$0xff]
        %v2669 = vld [vmem:[%s6 + $0x68] sm:$0xff]
        %v2670 = vld [vmem:[%s6 + $0x70] sm:$0xff]
        %v2671 = vld [vmem:[%s6 + $0x78] sm:$0xff]
        %v2672 = vld [vmem:[%s6 + $0x80] sm:$0xff]
        %v2673 = vld [vmem:[%s6 + $0x88] sm:$0xff]
        %v2674 = vld [vmem:[%s6 + $0x90] sm:$0xff]
        %v2675 = vld [vmem:[%s6 + $0x98] sm:$0xff]
        %v2676 = vld [vmem:[%s6 + $0xa0] sm:$0xff]
        %v2677 = vld [vmem:[%s6 + $0xa8] sm:$0xff]
        %v2678 = vld [vmem:[%s6 + $0xb0] sm:$0xff]
        %v2679 = vld [vmem:[%s6 + $0xb8] sm:$0xff]
        %v2680 = vld [vmem:[%s6 + $0xc0] sm:$0xff]
        %v2681 = vld [vmem:[%s6 + $0xc8] sm:$0xff]
        %v2682 = vld [vmem:[%s6 + $0xd0] sm:$0xff]
        %v2683 = vld [vmem:[%s6 + $0xd8] sm:$0xff]
        %v2684 = vld [vmem:[%s6 + $0xe0] sm:$0xff]
        %v2685 = vld [vmem:[%s6 + $0xe8] sm:$0xff]
        %v2686 = vld [vmem:[%s6 + $0xf0] sm:$0xff]
        %v2687 = vld [vmem:[%s6 + $0xf8] sm:$0xff]
        %v2688 = vld [vmem:[%s6 + $0x100] sm:$0xff]
        %v2689 = vld [vmem:[%s6 + $0x108] sm:$0xff]
        %v2690 = vld [vmem:[%s6 + $0x110] sm:$0xff]
        %v2691 = vld [vmem:[%s6 + $0x118] sm:$0xff]
        %v2692 = vld [vmem:[%s7] sm:$0xff]
        %v2693 = vld [vmem:[%s7 + $0x8] sm:$0xff]
        %v2694 = vld [vmem:[%s7 + $0x10] sm:$0xff]
        %v2695 = vld [vmem:[%s7 + $0x18] sm:$0xff]
        %v2697 = vsel %vm577, %v2656, 0
        %v2700 = vsel %vm577, %v2657, 0
        %v2703 = vsel %vm577, %v2658, 0
        %v2706 = vsel %vm577, %v2659, 0
        %v2709 = vsel %vm577, %v2660, 0
        %v2712 = vsel %vm577, %v2661, 0
        %v2715 = vsel %vm577, %v2662, 0
        %v2718 = vsel %vm577, %v2663, 0
        %v2721 = vsel %vm577, %v2664, 0
        %v2724 = vsel %vm577, %v2665, 0
        %v2727 = vsel %vm577, %v2666, 0
        %v2730 = vsel %vm577, %v2667, 0
        %v2733 = vsel %vm577, %v2668, 0
        %v2736 = vsel %vm577, %v2669, 0
        %v2739 = vsel %vm577, %v2670, 0
        %v2742 = vsel %vm577, %v2671, 0
        %v2745 = vsel %vm577, %v2672, 0
        %v2748 = vsel %vm577, %v2673, 0
        %v2751 = vsel %vm577, %v2674, 0
        %v2754 = vsel %vm577, %v2675, 0
        %v2757 = vsel %vm577, %v2676, 0
        %v2760 = vsel %vm577, %v2677, 0
        %v2763 = vsel %vm577, %v2678, 0
        %v2766 = vsel %vm577, %v2679, 0
        %v2769 = vsel %vm577, %v2680, 0
        %v2772 = vsel %vm577, %v2681, 0
        %v2775 = vsel %vm577, %v2682, 0
        %v2778 = vsel %vm577, %v2683, 0
        %v2781 = vsel %vm577, %v2684, 0
        %v2784 = vsel %vm577, %v2685, 0
        %v2787 = vsel %vm577, %v2686, 0
        %v2790 = vsel %vm577, %v2687, 0
        %v2793 = vsel %vm577, %v2688, 0
        %v2796 = vsel %vm577, %v2689, 0
        %v2799 = vsel %vm577, %v2690, 0
        %v2802 = vsel %vm577, %v2691, 0
        %2804 = vmatpush.msra.mxu0 0.0
        %2805 = vmatpush.msra.mxu0 0.0
        %2806 = vmatpush.msra.mxu0 0.0
        %2807 = vmatpush.msra.mxu0 0.0
        %2808 = vmatpush.msra.mxu0 0.0
        %2809 = vmatpush.msra.mxu0 0.0
        %2810 = vmatpush.msra.mxu0 0.0
        %2811 = vmatpush.msra.mxu0 0.0
        %2812 = vmatpush.msra.mxu0 0.0
        %2813 = vmatpush.msra.mxu0 0.0
        %2814 = vmatpush.msra.mxu0 0.0
        %2815 = vmatpush.msra.mxu0 0.0
        %2816 = vmatpush.msra.mxu0 %v2654
        %2817 = vmatpush.msra.mxu0 %v2652
        %2818 = vmatpush.msra.mxu0 %v2650
        %2819 = vmatpush.msra.mxu0 %v2648
        %2820 = vmatmul.f32.gmra.mxu0 %v2697
        %v2821 = vpop.f32.mrf.mxu0
        %v2822 = vadd.f32 0.0, %v2821
        %2823 = vmatmul.f32.gmra.mxu0 %v2700
        %v2824 = vpop.f32.mrf.mxu0
        %v2825 = vadd.f32 0.0, %v2824
        %2826 = vmatmul.f32.gmra.mxu0 %v2703
        %v2827 = vpop.f32.mrf.mxu0
        %v2828 = vadd.f32 0.0, %v2827
        %2829 = vmatmul.f32.gmra.mxu0 %v2706
        %v2830 = vpop.f32.mrf.mxu0
        %v2831 = vadd.f32 0.0, %v2830
        %2832 = vmatmul.f32.gmra.mxu0 %v2709
        %v2833 = vpop.f32.mrf.mxu0
        %v2834 = vadd.f32 0.0, %v2833
        %2835 = vmatmul.f32.gmra.mxu0 %v2712
        %v2836 = vpop.f32.mrf.mxu0
        %v2837 = vadd.f32 0.0, %v2836
        %2838 = vmatmul.f32.gmra.mxu0 %v2715
        %v2839 = vpop.f32.mrf.mxu0
        %v2840 = vadd.f32 0.0, %v2839
        %2841 = vmatmul.f32.gmra.mxu0 %v2718
        %v2842 = vpop.f32.mrf.mxu0
        %v2843 = vadd.f32 0.0, %v2842
        %2844 = vmatmul.f32.gmra.mxu0 %v2721
        %v2845 = vpop.f32.mrf.mxu0
        %v2846 = vadd.f32 0.0, %v2845
        %2847 = vmatmul.f32.gmra.mxu0 %v2724
        %v2848 = vpop.f32.mrf.mxu0
        %v2849 = vadd.f32 0.0, %v2848
        %2850 = vmatmul.f32.gmra.mxu0 %v2727
        %v2851 = vpop.f32.mrf.mxu0
        %v2852 = vadd.f32 0.0, %v2851
        %2853 = vmatmul.f32.gmra.mxu0 %v2730
        %v2854 = vpop.f32.mrf.mxu0
        %v2855 = vadd.f32 0.0, %v2854
        %2856 = vmatmul.f32.gmra.mxu0 %v2733
        %v2857 = vpop.f32.mrf.mxu0
        %v2858 = vadd.f32 0.0, %v2857
        %2859 = vmatmul.f32.gmra.mxu0 %v2736
        %v2860 = vpop.f32.mrf.mxu0
        %v2861 = vadd.f32 0.0, %v2860
        %2862 = vmatmul.f32.gmra.mxu0 %v2739
        %v2863 = vpop.f32.mrf.mxu0
        %v2864 = vadd.f32 0.0, %v2863
        %2865 = vmatmul.f32.gmra.mxu0 %v2742
        %v2866 = vpop.f32.mrf.mxu0
        %v2867 = vadd.f32 0.0, %v2866
        %2868 = vmatmul.f32.gmra.mxu0 %v2745
        %v2869 = vpop.f32.mrf.mxu0
        %v2870 = vadd.f32 0.0, %v2869
        %2871 = vmatmul.f32.gmra.mxu0 %v2748
        %v2872 = vpop.f32.mrf.mxu0
        %v2873 = vadd.f32 0.0, %v2872
        %2874 = vmatmul.f32.gmra.mxu0 %v2751
        %v2875 = vpop.f32.mrf.mxu0
        %v2876 = vadd.f32 0.0, %v2875
        %2877 = vmatmul.f32.gmra.mxu0 %v2754
        %v2878 = vpop.f32.mrf.mxu0
        %v2879 = vadd.f32 0.0, %v2878
        %2880 = vmatmul.f32.gmra.mxu0 %v2757
        %v2881 = vpop.f32.mrf.mxu0
        %v2882 = vadd.f32 0.0, %v2881
        %2883 = vmatmul.f32.gmra.mxu0 %v2760
        %v2884 = vpop.f32.mrf.mxu0
        %v2885 = vadd.f32 0.0, %v2884
        %2886 = vmatmul.f32.gmra.mxu0 %v2763
        %v2887 = vpop.f32.mrf.mxu0
        %v2888 = vadd.f32 0.0, %v2887
        %2889 = vmatmul.f32.gmra.mxu0 %v2766
        %v2890 = vpop.f32.mrf.mxu0
        %v2891 = vadd.f32 0.0, %v2890
        %2892 = vmatmul.f32.gmra.mxu0 %v2769
        %v2893 = vpop.f32.mrf.mxu0
        %v2894 = vadd.f32 0.0, %v2893
        %2895 = vmatmul.f32.gmra.mxu0 %v2772
        %v2896 = vpop.f32.mrf.mxu0
        %v2897 = vadd.f32 0.0, %v2896
        %2898 = vmatmul.f32.gmra.mxu0 %v2775
        %v2899 = vpop.f32.mrf.mxu0
        %v2900 = vadd.f32 0.0, %v2899
        %2901 = vmatmul.f32.gmra.mxu0 %v2778
        %v2902 = vpop.f32.mrf.mxu0
        %v2903 = vadd.f32 0.0, %v2902
        %2904 = vmatmul.f32.gmra.mxu0 %v2781
        %v2905 = vpop.f32.mrf.mxu0
        %v2906 = vadd.f32 0.0, %v2905
        %2907 = vmatmul.f32.gmra.mxu0 %v2784
        %v2908 = vpop.f32.mrf.mxu0
        %v2909 = vadd.f32 0.0, %v2908
        %2910 = vmatmul.f32.gmra.mxu0 %v2787
        %v2911 = vpop.f32.mrf.mxu0
        %v2912 = vadd.f32 0.0, %v2911
        %2913 = vmatmul.f32.gmra.mxu0 %v2790
        %v2914 = vpop.f32.mrf.mxu0
        %v2915 = vadd.f32 0.0, %v2914
        %2916 = vmatmul.f32.gmra.mxu0 %v2793
        %v2917 = vpop.f32.mrf.mxu0
        %v2918 = vadd.f32 0.0, %v2917
        %2919 = vmatmul.f32.gmra.mxu0 %v2796
        %v2920 = vpop.f32.mrf.mxu0
        %v2921 = vadd.f32 0.0, %v2920
        %2922 = vmatmul.f32.gmra.mxu0 %v2799
        %v2923 = vpop.f32.mrf.mxu0
        %v2924 = vadd.f32 0.0, %v2923
        %2925 = vmatmul.f32.gmra.mxu0 %v2802
        %v2926 = vpop.f32.mrf.mxu0
        %v2927 = vadd.f32 0.0, %v2926
        %2928 = vdwg.mxu0
        %2929 = vmatpush.msra.mxu0 0.0
        %2930 = vmatpush.msra.mxu0 0.0
        %2931 = vmatpush.msra.mxu0 0.0
        %2932 = vmatpush.msra.mxu0 0.0
        %2933 = vmatpush.msra.mxu0 0.0
        %2934 = vmatpush.msra.mxu0 0.0
        %2935 = vmatpush.msra.mxu0 0.0
        %2936 = vmatpush.msra.mxu0 0.0
        %2937 = vmatpush.msra.mxu0 0.0
        %2938 = vmatpush.msra.mxu0 0.0
        %2939 = vmatpush.msra.mxu0 0.0
        %2940 = vmatpush.msra.mxu0 0.0
        %2941 = vmatpush.msra.mxu0 %v2655
        %2942 = vmatpush.msra.mxu0 %v2653
        %2943 = vmatpush.msra.mxu0 %v2651
        %2944 = vmatpush.msra.mxu0 %v2649
        %2945 = vmatmul.f32.gmra.mxu0 %v2697
        %v2946 = vpop.f32.mrf.mxu0
        %v2947 = vadd.f32 0.0, %v2946
        %2948 = vmatmul.f32.gmra.mxu0 %v2700
        %v2949 = vpop.f32.mrf.mxu0
        %v2950 = vadd.f32 0.0, %v2949
        %2951 = vmatmul.f32.gmra.mxu0 %v2703
        %v2952 = vpop.f32.mrf.mxu0
        %v2953 = vadd.f32 0.0, %v2952
        %2954 = vmatmul.f32.gmra.mxu0 %v2706
        %v2955 = vpop.f32.mrf.mxu0
        %v2956 = vadd.f32 0.0, %v2955
        %2957 = vmatmul.f32.gmra.mxu0 %v2709
        %v2958 = vpop.f32.mrf.mxu0
        %v2959 = vadd.f32 0.0, %v2958
        %2960 = vmatmul.f32.gmra.mxu0 %v2712
        %v2961 = vpop.f32.mrf.mxu0
        %v2962 = vadd.f32 0.0, %v2961
        %2963 = vmatmul.f32.gmra.mxu0 %v2715
        %v2964 = vpop.f32.mrf.mxu0
        %v2965 = vadd.f32 0.0, %v2964
        %2966 = vmatmul.f32.gmra.mxu0 %v2718
        %v2967 = vpop.f32.mrf.mxu0
        %v2968 = vadd.f32 0.0, %v2967
        %2969 = vmatmul.f32.gmra.mxu0 %v2721
        %v2970 = vpop.f32.mrf.mxu0
        %v2971 = vadd.f32 0.0, %v2970
        %2972 = vmatmul.f32.gmra.mxu0 %v2724
        %v2973 = vpop.f32.mrf.mxu0
        %v2974 = vadd.f32 0.0, %v2973
        %2975 = vmatmul.f32.gmra.mxu0 %v2727
        %v2976 = vpop.f32.mrf.mxu0
        %v2977 = vadd.f32 0.0, %v2976
        %2978 = vmatmul.f32.gmra.mxu0 %v2730
        %v2979 = vpop.f32.mrf.mxu0
        %v2980 = vadd.f32 0.0, %v2979
        %2981 = vmatmul.f32.gmra.mxu0 %v2733
        %v2982 = vpop.f32.mrf.mxu0
        %v2983 = vadd.f32 0.0, %v2982
        %2984 = vmatmul.f32.gmra.mxu0 %v2736
        %v2985 = vpop.f32.mrf.mxu0
        %v2986 = vadd.f32 0.0, %v2985
        %2987 = vmatmul.f32.gmra.mxu0 %v2739
        %v2988 = vpop.f32.mrf.mxu0
        %v2989 = vadd.f32 0.0, %v2988
        %2990 = vmatmul.f32.gmra.mxu0 %v2742
        %v2991 = vpop.f32.mrf.mxu0
        %v2992 = vadd.f32 0.0, %v2991
        %2993 = vmatmul.f32.gmra.mxu0 %v2745
        %v2994 = vpop.f32.mrf.mxu0
        %v2995 = vadd.f32 0.0, %v2994
        %2996 = vmatmul.f32.gmra.mxu0 %v2748
        %v2997 = vpop.f32.mrf.mxu0
        %v2998 = vadd.f32 0.0, %v2997
        %2999 = vmatmul.f32.gmra.mxu0 %v2751
        %v3000 = vpop.f32.mrf.mxu0
        %v3001 = vadd.f32 0.0, %v3000
        %3002 = vmatmul.f32.gmra.mxu0 %v2754
        %v3003 = vpop.f32.mrf.mxu0
        %v3004 = vadd.f32 0.0, %v3003
        %3005 = vmatmul.f32.gmra.mxu0 %v2757
        %v3006 = vpop.f32.mrf.mxu0
        %v3007 = vadd.f32 0.0, %v3006
        %3008 = vmatmul.f32.gmra.mxu0 %v2760
        %v3009 = vpop.f32.mrf.mxu0
        %v3010 = vadd.f32 0.0, %v3009
        %3011 = vmatmul.f32.gmra.mxu0 %v2763
        %v3012 = vpop.f32.mrf.mxu0
        %v3013 = vadd.f32 0.0, %v3012
        %3014 = vmatmul.f32.gmra.mxu0 %v2766
        %v3015 = vpop.f32.mrf.mxu0
        %v3016 = vadd.f32 0.0, %v3015
        %3017 = vmatmul.f32.gmra.mxu0 %v2769
        %v3018 = vpop.f32.mrf.mxu0
        %v3019 = vadd.f32 0.0, %v3018
        %3020 = vmatmul.f32.gmra.mxu0 %v2772
        %v3021 = vpop.f32.mrf.mxu0
        %v3022 = vadd.f32 0.0, %v3021
        %3023 = vmatmul.f32.gmra.mxu0 %v2775
        %v3024 = vpop.f32.mrf.mxu0
        %v3025 = vadd.f32 0.0, %v3024
        %3026 = vmatmul.f32.gmra.mxu0 %v2778
        %v3027 = vpop.f32.mrf.mxu0
        %v3028 = vadd.f32 0.0, %v3027
        %3029 = vmatmul.f32.gmra.mxu0 %v2781
        %v3030 = vpop.f32.mrf.mxu0
        %v3031 = vadd.f32 0.0, %v3030
        %3032 = vmatmul.f32.gmra.mxu0 %v2784
        %v3033 = vpop.f32.mrf.mxu0
        %v3034 = vadd.f32 0.0, %v3033
        %3035 = vmatmul.f32.gmra.mxu0 %v2787
        %v3036 = vpop.f32.mrf.mxu0
        %v3037 = vadd.f32 0.0, %v3036
        %3038 = vmatmul.f32.gmra.mxu0 %v2790
        %v3039 = vpop.f32.mrf.mxu0
        %v3040 = vadd.f32 0.0, %v3039
        %3041 = vmatmul.f32.gmra.mxu0 %v2793
        %v3042 = vpop.f32.mrf.mxu0
        %v3043 = vadd.f32 0.0, %v3042
        %3044 = vmatmul.f32.gmra.mxu0 %v2796
        %v3045 = vpop.f32.mrf.mxu0
        %v3046 = vadd.f32 0.0, %v3045
        %3047 = vmatmul.f32.gmra.mxu0 %v2799
        %v3048 = vpop.f32.mrf.mxu0
        %v3049 = vadd.f32 0.0, %v3048
        %3050 = vmatmul.f32.gmra.mxu0 %v2802
        %v3051 = vpop.f32.mrf.mxu0
        %v3052 = vadd.f32 0.0, %v3051
        %3053 = vdwg.mxu0
        %3054 = vmatpush.msra.mxu0 %v1031
        %3055 = vmatpush.msra.mxu0 %v1029
        %3056 = vmatpush.msra.mxu0 %v1027
        %3057 = vmatpush.msra.mxu0 %v1025
        %3058 = vmatpush.msra.mxu0 %v1023
        %3059 = vmatpush.msra.mxu0 %v1021
        %3060 = vmatpush.msra.mxu0 %v1019
        %3061 = vmatpush.msra.mxu0 %v1017
        %3062 = vmatpush.msra.mxu0 %v1015
        %3063 = vmatpush.msra.mxu0 %v1013
        %3064 = vmatpush.msra.mxu0 %v1011
        %3065 = vmatpush.msra.mxu0 %v1009
        %3066 = vmatpush.msra.mxu0 %v1007
        %3067 = vmatpush.msra.mxu0 %v1005
        %3068 = vmatpush.msra.mxu0 %v1003
        %3069 = vmatpush.msra.mxu0 %v1001
        %3070 = vmatmul.f32.gmra.mxu0 %v2834
        %v3071 = vpop.f32.mrf.mxu0
        %v3072 = vadd.f32 0.0, %v3071
        %3073 = vmatmul.f32.gmra.mxu0 %v2837
        %v3074 = vpop.f32.mrf.mxu0
        %v3075 = vadd.f32 0.0, %v3074
        %3076 = vmatmul.f32.gmra.mxu0 %v2840
        %v3077 = vpop.f32.mrf.mxu0
        %v3078 = vadd.f32 0.0, %v3077
        %3079 = vmatmul.f32.gmra.mxu0 %v2843
        %v3080 = vpop.f32.mrf.mxu0
        %v3081 = vadd.f32 0.0, %v3080
        %3082 = vdwg.mxu0
        %3083 = vmatpush.msra.mxu0 %v1063
        %3084 = vmatpush.msra.mxu0 %v1061
        %3085 = vmatpush.msra.mxu0 %v1059
        %3086 = vmatpush.msra.mxu0 %v1057
        %3087 = vmatpush.msra.mxu0 %v1055
        %3088 = vmatpush.msra.mxu0 %v1053
        %3089 = vmatpush.msra.mxu0 %v1051
        %3090 = vmatpush.msra.mxu0 %v1049
        %3091 = vmatpush.msra.mxu0 %v1047
        %3092 = vmatpush.msra.mxu0 %v1045
        %3093 = vmatpush.msra.mxu0 %v1043
        %3094 = vmatpush.msra.mxu0 %v1041
        %3095 = vmatpush.msra.mxu0 %v1039
        %3096 = vmatpush.msra.mxu0 %v1037
        %3097 = vmatpush.msra.mxu0 %v1035
        %3098 = vmatpush.msra.mxu0 %v1033
        %3099 = vmatmul.f32.gmra.mxu0 %v2959
        %v3100 = vpop.f32.mrf.mxu0
        %v3101 = vadd.f32 %v3072, %v3100
        %3102 = vmatmul.f32.gmra.mxu0 %v2962
        %v3103 = vpop.f32.mrf.mxu0
        %v3104 = vadd.f32 %v3075, %v3103
        %3105 = vmatmul.f32.gmra.mxu0 %v2965
        %v3106 = vpop.f32.mrf.mxu0
        %v3107 = vadd.f32 %v3078, %v3106
        %3108 = vmatmul.f32.gmra.mxu0 %v2968
        %v3109 = vpop.f32.mrf.mxu0
        %v3110 = vadd.f32 %v3081, %v3109
        %3111 = vdwg.mxu0
        %3112 = vmatpush.msra.mxu0 %v1032
        %3113 = vmatpush.msra.mxu0 %v1030
        %3114 = vmatpush.msra.mxu0 %v1028
        %3115 = vmatpush.msra.mxu0 %v1026
        %3116 = vmatpush.msra.mxu0 %v1024
        %3117 = vmatpush.msra.mxu0 %v1022
        %3118 = vmatpush.msra.mxu0 %v1020
        %3119 = vmatpush.msra.mxu0 %v1018
        %3120 = vmatpush.msra.mxu0 %v1016
        %3121 = vmatpush.msra.mxu0 %v1014
        %3122 = vmatpush.msra.mxu0 %v1012
        %3123 = vmatpush.msra.mxu0 %v1010
        %3124 = vmatpush.msra.mxu0 %v1008
        %3125 = vmatpush.msra.mxu0 %v1006
        %3126 = vmatpush.msra.mxu0 %v1004
        %3127 = vmatpush.msra.mxu0 %v1002
        %3128 = vmatmul.f32.gmra.mxu0 %v2834
        %v3129 = vpop.f32.mrf.mxu0
        %v3130 = vadd.f32 0.0, %v3129
        %3131 = vmatmul.f32.gmra.mxu0 %v2837
        %v3132 = vpop.f32.mrf.mxu0
        %v3133 = vadd.f32 0.0, %v3132
        %3134 = vmatmul.f32.gmra.mxu0 %v2840
        %v3135 = vpop.f32.mrf.mxu0
        %v3136 = vadd.f32 0.0, %v3135
        %3137 = vmatmul.f32.gmra.mxu0 %v2843
        %v3138 = vpop.f32.mrf.mxu0
        %v3139 = vadd.f32 0.0, %v3138
        %3140 = vdwg.mxu0
        %3141 = vmatpush.msra.mxu0 %v1064
        %3142 = vmatpush.msra.mxu0 %v1062
        %3143 = vmatpush.msra.mxu0 %v1060
        %3144 = vmatpush.msra.mxu0 %v1058
        %3145 = vmatpush.msra.mxu0 %v1056
        %3146 = vmatpush.msra.mxu0 %v1054
        %3147 = vmatpush.msra.mxu0 %v1052
        %3148 = vmatpush.msra.mxu0 %v1050
        %3149 = vmatpush.msra.mxu0 %v1048
        %3150 = vmatpush.msra.mxu0 %v1046
        %3151 = vmatpush.msra.mxu0 %v1044
        %3152 = vmatpush.msra.mxu0 %v1042
        %3153 = vmatpush.msra.mxu0 %v1040
        %3154 = vmatpush.msra.mxu0 %v1038
        %3155 = vmatpush.msra.mxu0 %v1036
        %3156 = vmatpush.msra.mxu0 %v1034
        %3157 = vmatmul.f32.gmra.mxu0 %v2959
        %v3158 = vpop.f32.mrf.mxu0
        %v3159 = vadd.f32 %v3130, %v3158
        %3160 = vmatmul.f32.gmra.mxu0 %v2962
        %v3161 = vpop.f32.mrf.mxu0
        %v3162 = vadd.f32 %v3133, %v3161
        %3163 = vmatmul.f32.gmra.mxu0 %v2965
        %v3164 = vpop.f32.mrf.mxu0
        %v3165 = vadd.f32 %v3136, %v3164
        %3166 = vmatmul.f32.gmra.mxu0 %v2968
        %v3167 = vpop.f32.mrf.mxu0
        %v3168 = vadd.f32 %v3139, %v3167
        %3169 = vdwg.mxu0
        %3170 = vmatpush.msra.mxu0 %v966
        %3171 = vmatpush.msra.mxu0 %v964
        %3172 = vmatpush.msra.mxu0 %v962
        %3173 = vmatpush.msra.mxu0 %v960
        %3174 = vmatpush.msra.mxu0 %v958
        %3175 = vmatpush.msra.mxu0 %v956
        %3176 = vmatpush.msra.mxu0 %v954
        %3177 = vmatpush.msra.mxu0 %v952
        %3178 = vmatpush.msra.mxu0 %v950
        %3179 = vmatpush.msra.mxu0 %v948
        %3180 = vmatpush.msra.mxu0 %v946
        %3181 = vmatpush.msra.mxu0 %v944
        %3182 = vmatpush.msra.mxu0 %v942
        %3183 = vmatpush.msra.mxu0 %v940
        %3184 = vmatpush.msra.mxu0 %v938
        %3185 = vmatpush.msra.mxu0 %v936
        %3186 = vmatmul.f32.gmra.mxu0 %v2822
        %v3187 = vpop.f32.mrf.mxu0
        %v3188 = vadd.f32 %v3101, %v3187
        %3189 = vmatmul.f32.gmra.mxu0 %v2825
        %v3190 = vpop.f32.mrf.mxu0
        %v3191 = vadd.f32 %v3104, %v3190
        %3192 = vmatmul.f32.gmra.mxu0 %v2828
        %v3193 = vpop.f32.mrf.mxu0
        %v3194 = vadd.f32 %v3107, %v3193
        %3195 = vmatmul.f32.gmra.mxu0 %v2831
        %v3196 = vpop.f32.mrf.mxu0
        %v3197 = vadd.f32 %v3110, %v3196
        %3198 = vdwg.mxu0
        %3199 = vmatpush.msra.mxu0 %v998
        %3200 = vmatpush.msra.mxu0 %v996
        %3201 = vmatpush.msra.mxu0 %v994
        %3202 = vmatpush.msra.mxu0 %v992
        %3203 = vmatpush.msra.mxu0 %v990
        %3204 = vmatpush.msra.mxu0 %v988
        %3205 = vmatpush.msra.mxu0 %v986
        %3206 = vmatpush.msra.mxu0 %v984
        %3207 = vmatpush.msra.mxu0 %v982
        %3208 = vmatpush.msra.mxu0 %v980
        %3209 = vmatpush.msra.mxu0 %v978
        %3210 = vmatpush.msra.mxu0 %v976
        %3211 = vmatpush.msra.mxu0 %v974
        %3212 = vmatpush.msra.mxu0 %v972
        %3213 = vmatpush.msra.mxu0 %v970
        %3214 = vmatpush.msra.mxu0 %v968
        %3215 = vmatmul.f32.gmra.mxu0 %v2947
        %v3216 = vpop.f32.mrf.mxu0
        %v3217 = vadd.f32 %v3188, %v3216
        %3218 = vmatmul.f32.gmra.mxu0 %v2950
        %v3219 = vpop.f32.mrf.mxu0
        %v3220 = vadd.f32 %v3191, %v3219
        %3221 = vmatmul.f32.gmra.mxu0 %v2953
        %v3222 = vpop.f32.mrf.mxu0
        %v3223 = vadd.f32 %v3194, %v3222
        %3224 = vmatmul.f32.gmra.mxu0 %v2956
        %v3225 = vpop.f32.mrf.mxu0
        %v3226 = vadd.f32 %v3197, %v3225
        %3227 = vdwg.mxu0
        %3228 = vmatpush.msra.mxu0 %v967
        %3229 = vmatpush.msra.mxu0 %v965
        %3230 = vmatpush.msra.mxu0 %v963
        %3231 = vmatpush.msra.mxu0 %v961
        %3232 = vmatpush.msra.mxu0 %v959
        %3233 = vmatpush.msra.mxu0 %v957
        %3234 = vmatpush.msra.mxu0 %v955
        %3235 = vmatpush.msra.mxu0 %v953
        %3236 = vmatpush.msra.mxu0 %v951
        %3237 = vmatpush.msra.mxu0 %v949
        %3238 = vmatpush.msra.mxu0 %v947
        %3239 = vmatpush.msra.mxu0 %v945
        %3240 = vmatpush.msra.mxu0 %v943
        %3241 = vmatpush.msra.mxu0 %v941
        %3242 = vmatpush.msra.mxu0 %v939
        %3243 = vmatpush.msra.mxu0 %v937
        %3244 = vmatmul.f32.gmra.mxu0 %v2822
        %v3245 = vpop.f32.mrf.mxu0
        %v3246 = vadd.f32 %v3159, %v3245
        %3247 = vmatmul.f32.gmra.mxu0 %v2825
        %v3248 = vpop.f32.mrf.mxu0
        %v3249 = vadd.f32 %v3162, %v3248
        %3250 = vmatmul.f32.gmra.mxu0 %v2828
        %v3251 = vpop.f32.mrf.mxu0
        %v3252 = vadd.f32 %v3165, %v3251
        %3253 = vmatmul.f32.gmra.mxu0 %v2831
        %v3254 = vpop.f32.mrf.mxu0
        %v3255 = vadd.f32 %v3168, %v3254
        %3256 = vdwg.mxu0
        %3257 = vmatpush.msra.mxu0 %v999
        %3258 = vmatpush.msra.mxu0 %v997
        %3259 = vmatpush.msra.mxu0 %v995
        %3260 = vmatpush.msra.mxu0 %v993
        %3261 = vmatpush.msra.mxu0 %v991
        %3262 = vmatpush.msra.mxu0 %v989
        %3263 = vmatpush.msra.mxu0 %v987
        %3264 = vmatpush.msra.mxu0 %v985
        %3265 = vmatpush.msra.mxu0 %v983
        %3266 = vmatpush.msra.mxu0 %v981
        %3267 = vmatpush.msra.mxu0 %v979
        %3268 = vmatpush.msra.mxu0 %v977
        %3269 = vmatpush.msra.mxu0 %v975
        %3270 = vmatpush.msra.mxu0 %v973
        %3271 = vmatpush.msra.mxu0 %v971
        %3272 = vmatpush.msra.mxu0 %v969
        %3273 = vmatmul.f32.gmra.mxu0 %v2947
        %v3274 = vpop.f32.mrf.mxu0
        %v3275 = vadd.f32 %v3246, %v3274
        %3276 = vmatmul.f32.gmra.mxu0 %v2950
        %v3277 = vpop.f32.mrf.mxu0
        %v3278 = vadd.f32 %v3249, %v3277
        %3279 = vmatmul.f32.gmra.mxu0 %v2953
        %v3280 = vpop.f32.mrf.mxu0
        %v3281 = vadd.f32 %v3252, %v3280
        %3282 = vmatmul.f32.gmra.mxu0 %v2956
        %v3283 = vpop.f32.mrf.mxu0
        %v3284 = vadd.f32 %v3255, %v3283
        %3285 = vdwg.mxu0
        %3286 = vmatpush.msra.mxu0 %v1328
        %3287 = vmatpush.msra.mxu0 %v1326
        %3288 = vmatpush.msra.mxu0 %v1324
        %3289 = vmatpush.msra.mxu0 %v1322
        %3290 = vmatpush.msra.mxu0 %v1320
        %3291 = vmatpush.msra.mxu0 %v1318
        %3292 = vmatpush.msra.mxu0 %v1316
        %3293 = vmatpush.msra.mxu0 %v1314
        %3294 = vmatpush.msra.mxu0 %v1312
        %3295 = vmatpush.msra.mxu0 %v1310
        %3296 = vmatpush.msra.mxu0 %v1308
        %3297 = vmatpush.msra.mxu0 %v1306
        %3298 = vmatpush.msra.mxu0 %v1304
        %3299 = vmatpush.msra.mxu0 %v1302
        %3300 = vmatpush.msra.mxu0 %v1300
        %3301 = vmatpush.msra.mxu0 %v1298
        %3302 = vmatmul.f32.gmra.mxu0 %v2846
        %v3303 = vpop.f32.mrf.mxu0
        %v3304 = vadd.f32 0.0, %v3303
        %3305 = vmatmul.f32.gmra.mxu0 %v2849
        %v3306 = vpop.f32.mrf.mxu0
        %v3307 = vadd.f32 0.0, %v3306
        %3308 = vmatmul.f32.gmra.mxu0 %v2852
        %v3309 = vpop.f32.mrf.mxu0
        %v3310 = vadd.f32 0.0, %v3309
        %3311 = vmatmul.f32.gmra.mxu0 %v2855
        %v3312 = vpop.f32.mrf.mxu0
        %v3313 = vadd.f32 0.0, %v3312
        %3314 = vdwg.mxu0
        %3315 = vmatpush.msra.mxu0 %v1360
        %3316 = vmatpush.msra.mxu0 %v1358
        %3317 = vmatpush.msra.mxu0 %v1356
        %3318 = vmatpush.msra.mxu0 %v1354
        %3319 = vmatpush.msra.mxu0 %v1352
        %3320 = vmatpush.msra.mxu0 %v1350
        %3321 = vmatpush.msra.mxu0 %v1348
        %3322 = vmatpush.msra.mxu0 %v1346
        %3323 = vmatpush.msra.mxu0 %v1344
        %3324 = vmatpush.msra.mxu0 %v1342
        %3325 = vmatpush.msra.mxu0 %v1340
        %3326 = vmatpush.msra.mxu0 %v1338
        %3327 = vmatpush.msra.mxu0 %v1336
        %3328 = vmatpush.msra.mxu0 %v1334
        %3329 = vmatpush.msra.mxu0 %v1332
        %3330 = vmatpush.msra.mxu0 %v1330
        %3331 = vmatmul.f32.gmra.mxu0 %v2971
        %v3332 = vpop.f32.mrf.mxu0
        %v3333 = vadd.f32 %v3304, %v3332
        %3334 = vmatmul.f32.gmra.mxu0 %v2974
        %v3335 = vpop.f32.mrf.mxu0
        %v3336 = vadd.f32 %v3307, %v3335
        %3337 = vmatmul.f32.gmra.mxu0 %v2977
        %v3338 = vpop.f32.mrf.mxu0
        %v3339 = vadd.f32 %v3310, %v3338
        %3340 = vmatmul.f32.gmra.mxu0 %v2980
        %v3341 = vpop.f32.mrf.mxu0
        %v3342 = vadd.f32 %v3313, %v3341
        %3343 = vdwg.mxu0
        %3344 = vmatpush.msra.mxu0 %v1329
        %3345 = vmatpush.msra.mxu0 %v1327
        %3346 = vmatpush.msra.mxu0 %v1325
        %3347 = vmatpush.msra.mxu0 %v1323
        %3348 = vmatpush.msra.mxu0 %v1321
        %3349 = vmatpush.msra.mxu0 %v1319
        %3350 = vmatpush.msra.mxu0 %v1317
        %3351 = vmatpush.msra.mxu0 %v1315
        %3352 = vmatpush.msra.mxu0 %v1313
        %3353 = vmatpush.msra.mxu0 %v1311
        %3354 = vmatpush.msra.mxu0 %v1309
        %3355 = vmatpush.msra.mxu0 %v1307
        %3356 = vmatpush.msra.mxu0 %v1305
        %3357 = vmatpush.msra.mxu0 %v1303
        %3358 = vmatpush.msra.mxu0 %v1301
        %3359 = vmatpush.msra.mxu0 %v1299
        %3360 = vmatmul.f32.gmra.mxu0 %v2846
        %v3361 = vpop.f32.mrf.mxu0
        %v3362 = vadd.f32 0.0, %v3361
        %3363 = vmatmul.f32.gmra.mxu0 %v2849
        %v3364 = vpop.f32.mrf.mxu0
        %v3365 = vadd.f32 0.0, %v3364
        %3366 = vmatmul.f32.gmra.mxu0 %v2852
        %v3367 = vpop.f32.mrf.mxu0
        %v3368 = vadd.f32 0.0, %v3367
        %3369 = vmatmul.f32.gmra.mxu0 %v2855
        %v3370 = vpop.f32.mrf.mxu0
        %v3371 = vadd.f32 0.0, %v3370
        %3372 = vdwg.mxu0
        %3373 = vmatpush.msra.mxu0 %v1361
        %3374 = vmatpush.msra.mxu0 %v1359
        %3375 = vmatpush.msra.mxu0 %v1357
        %3376 = vmatpush.msra.mxu0 %v1355
        %3377 = vmatpush.msra.mxu0 %v1353
        %3378 = vmatpush.msra.mxu0 %v1351
        %3379 = vmatpush.msra.mxu0 %v1349
        %3380 = vmatpush.msra.mxu0 %v1347
        %3381 = vmatpush.msra.mxu0 %v1345
        %3382 = vmatpush.msra.mxu0 %v1343
        %3383 = vmatpush.msra.mxu0 %v1341
        %3384 = vmatpush.msra.mxu0 %v1339
        %3385 = vmatpush.msra.mxu0 %v1337
        %3386 = vmatpush.msra.mxu0 %v1335
        %3387 = vmatpush.msra.mxu0 %v1333
        %3388 = vmatpush.msra.mxu0 %v1331
        %3389 = vmatmul.f32.gmra.mxu0 %v2971
        %v3390 = vpop.f32.mrf.mxu0
        %v3391 = vadd.f32 %v3362, %v3390
        %3392 = vmatmul.f32.gmra.mxu0 %v2974
        %v3393 = vpop.f32.mrf.mxu0
        %v3394 = vadd.f32 %v3365, %v3393
        %3395 = vmatmul.f32.gmra.mxu0 %v2977
        %v3396 = vpop.f32.mrf.mxu0
        %v3397 = vadd.f32 %v3368, %v3396
        %3398 = vmatmul.f32.gmra.mxu0 %v2980
        %v3399 = vpop.f32.mrf.mxu0
        %v3400 = vadd.f32 %v3371, %v3399
        %3401 = vdwg.mxu0
        %v3402 = vadd.f32 %v3217, %v3333
        %v3403 = vadd.f32 %v3275, %v3391
        %v3404 = vadd.f32 %v3220, %v3336
        %v3405 = vadd.f32 %v3278, %v3394
        %v3406 = vadd.f32 %v3223, %v3339
        %v3407 = vadd.f32 %v3281, %v3397
        %v3408 = vadd.f32 %v3226, %v3342
        %v3409 = vadd.f32 %v3284, %v3400
        %3410 = vmatpush.msra.mxu0 %v1517
        %3411 = vmatpush.msra.mxu0 %v1515
        %3412 = vmatpush.msra.mxu0 %v1513
        %3413 = vmatpush.msra.mxu0 %v1511
        %3414 = vmatpush.msra.mxu0 %v1509
        %3415 = vmatpush.msra.mxu0 %v1507
        %3416 = vmatpush.msra.mxu0 %v1505
        %3417 = vmatpush.msra.mxu0 %v1503
        %3418 = vmatpush.msra.mxu0 %v1501
        %3419 = vmatpush.msra.mxu0 %v1499
        %3420 = vmatpush.msra.mxu0 %v1497
        %3421 = vmatpush.msra.mxu0 %v1495
        %3422 = vmatpush.msra.mxu0 %v1493
        %3423 = vmatpush.msra.mxu0 %v1491
        %3424 = vmatpush.msra.mxu0 %v1489
        %3425 = vmatpush.msra.mxu0 %v1487
        %3426 = vmatmul.f32.gmra.mxu0 %v2858
        %v3427 = vpop.f32.mrf.mxu0
        %v3428 = vadd.f32 0.0, %v3427
        %3429 = vmatmul.f32.gmra.mxu0 %v2861
        %v3430 = vpop.f32.mrf.mxu0
        %v3431 = vadd.f32 0.0, %v3430
        %3432 = vmatmul.f32.gmra.mxu0 %v2864
        %v3433 = vpop.f32.mrf.mxu0
        %v3434 = vadd.f32 0.0, %v3433
        %3435 = vmatmul.f32.gmra.mxu0 %v2867
        %v3436 = vpop.f32.mrf.mxu0
        %v3437 = vadd.f32 0.0, %v3436
        %3438 = vdwg.mxu0
        %3439 = vmatpush.msra.mxu0 %v1549
        %3440 = vmatpush.msra.mxu0 %v1547
        %3441 = vmatpush.msra.mxu0 %v1545
        %3442 = vmatpush.msra.mxu0 %v1543
        %3443 = vmatpush.msra.mxu0 %v1541
        %3444 = vmatpush.msra.mxu0 %v1539
        %3445 = vmatpush.msra.mxu0 %v1537
        %3446 = vmatpush.msra.mxu0 %v1535
        %3447 = vmatpush.msra.mxu0 %v1533
        %3448 = vmatpush.msra.mxu0 %v1531
        %3449 = vmatpush.msra.mxu0 %v1529
        %3450 = vmatpush.msra.mxu0 %v1527
        %3451 = vmatpush.msra.mxu0 %v1525
        %3452 = vmatpush.msra.mxu0 %v1523
        %3453 = vmatpush.msra.mxu0 %v1521
        %3454 = vmatpush.msra.mxu0 %v1519
        %3455 = vmatmul.f32.gmra.mxu0 %v2983
        %v3456 = vpop.f32.mrf.mxu0
        %v3457 = vadd.f32 %v3428, %v3456
        %3458 = vmatmul.f32.gmra.mxu0 %v2986
        %v3459 = vpop.f32.mrf.mxu0
        %v3460 = vadd.f32 %v3431, %v3459
        %3461 = vmatmul.f32.gmra.mxu0 %v2989
        %v3462 = vpop.f32.mrf.mxu0
        %v3463 = vadd.f32 %v3434, %v3462
        %3464 = vmatmul.f32.gmra.mxu0 %v2992
        %v3465 = vpop.f32.mrf.mxu0
        %v3466 = vadd.f32 %v3437, %v3465
        %3467 = vdwg.mxu0
        %3468 = vmatpush.msra.mxu0 %v1518
        %3469 = vmatpush.msra.mxu0 %v1516
        %3470 = vmatpush.msra.mxu0 %v1514
        %3471 = vmatpush.msra.mxu0 %v1512
        %3472 = vmatpush.msra.mxu0 %v1510
        %3473 = vmatpush.msra.mxu0 %v1508
        %3474 = vmatpush.msra.mxu0 %v1506
        %3475 = vmatpush.msra.mxu0 %v1504
        %3476 = vmatpush.msra.mxu0 %v1502
        %3477 = vmatpush.msra.mxu0 %v1500
        %3478 = vmatpush.msra.mxu0 %v1498
        %3479 = vmatpush.msra.mxu0 %v1496
        %3480 = vmatpush.msra.mxu0 %v1494
        %3481 = vmatpush.msra.mxu0 %v1492
        %3482 = vmatpush.msra.mxu0 %v1490
        %3483 = vmatpush.msra.mxu0 %v1488
        %3484 = vmatmul.f32.gmra.mxu0 %v2858
        %v3485 = vpop.f32.mrf.mxu0
        %v3486 = vadd.f32 0.0, %v3485
        %3487 = vmatmul.f32.gmra.mxu0 %v2861
        %v3488 = vpop.f32.mrf.mxu0
        %v3489 = vadd.f32 0.0, %v3488
        %3490 = vmatmul.f32.gmra.mxu0 %v2864
        %v3491 = vpop.f32.mrf.mxu0
        %v3492 = vadd.f32 0.0, %v3491
        %3493 = vmatmul.f32.gmra.mxu0 %v2867
        %v3494 = vpop.f32.mrf.mxu0
        %v3495 = vadd.f32 0.0, %v3494
        %3496 = vdwg.mxu0
        %3497 = vmatpush.msra.mxu0 %v1550
        %3498 = vmatpush.msra.mxu0 %v1548
        %3499 = vmatpush.msra.mxu0 %v1546
        %3500 = vmatpush.msra.mxu0 %v1544
        %3501 = vmatpush.msra.mxu0 %v1542
        %3502 = vmatpush.msra.mxu0 %v1540
        %3503 = vmatpush.msra.mxu0 %v1538
        %3504 = vmatpush.msra.mxu0 %v1536
        %3505 = vmatpush.msra.mxu0 %v1534
        %3506 = vmatpush.msra.mxu0 %v1532
        %3507 = vmatpush.msra.mxu0 %v1530
        %3508 = vmatpush.msra.mxu0 %v1528
        %3509 = vmatpush.msra.mxu0 %v1526
        %3510 = vmatpush.msra.mxu0 %v1524
        %3511 = vmatpush.msra.mxu0 %v1522
        %3512 = vmatpush.msra.mxu0 %v1520
        %3513 = vmatmul.f32.gmra.mxu0 %v2983
        %v3514 = vpop.f32.mrf.mxu0
        %v3515 = vadd.f32 %v3486, %v3514
        %3516 = vmatmul.f32.gmra.mxu0 %v2986
        %v3517 = vpop.f32.mrf.mxu0
        %v3518 = vadd.f32 %v3489, %v3517
        %3519 = vmatmul.f32.gmra.mxu0 %v2989
        %v3520 = vpop.f32.mrf.mxu0
        %v3521 = vadd.f32 %v3492, %v3520
        %3522 = vmatmul.f32.gmra.mxu0 %v2992
        %v3523 = vpop.f32.mrf.mxu0
        %v3524 = vadd.f32 %v3495, %v3523
        %3525 = vdwg.mxu0
        %v3526 = vadd.f32 %v3402, %v3457
        %v3527 = vadd.f32 %v3403, %v3515
        %v3528 = vadd.f32 %v3404, %v3460
        %v3529 = vadd.f32 %v3405, %v3518
        %v3530 = vadd.f32 %v3406, %v3463
        %v3531 = vadd.f32 %v3407, %v3521
        %v3532 = vadd.f32 %v3408, %v3466
        %v3533 = vadd.f32 %v3409, %v3524
        %3534 = vmatpush.msra.mxu0 %v1706
        %3535 = vmatpush.msra.mxu0 %v1704
        %3536 = vmatpush.msra.mxu0 %v1702
        %3537 = vmatpush.msra.mxu0 %v1700
        %3538 = vmatpush.msra.mxu0 %v1698
        %3539 = vmatpush.msra.mxu0 %v1696
        %3540 = vmatpush.msra.mxu0 %v1694
        %3541 = vmatpush.msra.mxu0 %v1692
        %3542 = vmatpush.msra.mxu0 %v1690
        %3543 = vmatpush.msra.mxu0 %v1688
        %3544 = vmatpush.msra.mxu0 %v1686
        %3545 = vmatpush.msra.mxu0 %v1684
        %3546 = vmatpush.msra.mxu0 %v1682
        %3547 = vmatpush.msra.mxu0 %v1680
        %3548 = vmatpush.msra.mxu0 %v1678
        %3549 = vmatpush.msra.mxu0 %v1676
        %3550 = vmatmul.f32.gmra.mxu0 %v2870
        %v3551 = vpop.f32.mrf.mxu0
        %v3552 = vadd.f32 0.0, %v3551
        %3553 = vmatmul.f32.gmra.mxu0 %v2873
        %v3554 = vpop.f32.mrf.mxu0
        %v3555 = vadd.f32 0.0, %v3554
        %3556 = vmatmul.f32.gmra.mxu0 %v2876
        %v3557 = vpop.f32.mrf.mxu0
        %v3558 = vadd.f32 0.0, %v3557
        %3559 = vmatmul.f32.gmra.mxu0 %v2879
        %v3560 = vpop.f32.mrf.mxu0
        %v3561 = vadd.f32 0.0, %v3560
        %3562 = vdwg.mxu0
        %3563 = vmatpush.msra.mxu0 %v1738
        %3564 = vmatpush.msra.mxu0 %v1736
        %3565 = vmatpush.msra.mxu0 %v1734
        %3566 = vmatpush.msra.mxu0 %v1732
        %3567 = vmatpush.msra.mxu0 %v1730
        %3568 = vmatpush.msra.mxu0 %v1728
        %3569 = vmatpush.msra.mxu0 %v1726
        %3570 = vmatpush.msra.mxu0 %v1724
        %3571 = vmatpush.msra.mxu0 %v1722
        %3572 = vmatpush.msra.mxu0 %v1720
        %3573 = vmatpush.msra.mxu0 %v1718
        %3574 = vmatpush.msra.mxu0 %v1716
        %3575 = vmatpush.msra.mxu0 %v1714
        %3576 = vmatpush.msra.mxu0 %v1712
        %3577 = vmatpush.msra.mxu0 %v1710
        %3578 = vmatpush.msra.mxu0 %v1708
        %3579 = vmatmul.f32.gmra.mxu0 %v2995
        %v3580 = vpop.f32.mrf.mxu0
        %v3581 = vadd.f32 %v3552, %v3580
        %3582 = vmatmul.f32.gmra.mxu0 %v2998
        %v3583 = vpop.f32.mrf.mxu0
        %v3584 = vadd.f32 %v3555, %v3583
        %3585 = vmatmul.f32.gmra.mxu0 %v3001
        %v3586 = vpop.f32.mrf.mxu0
        %v3587 = vadd.f32 %v3558, %v3586
        %3588 = vmatmul.f32.gmra.mxu0 %v3004
        %v3589 = vpop.f32.mrf.mxu0
        %v3590 = vadd.f32 %v3561, %v3589
        %3591 = vdwg.mxu0
        %3592 = vmatpush.msra.mxu0 %v1707
        %3593 = vmatpush.msra.mxu0 %v1705
        %3594 = vmatpush.msra.mxu0 %v1703
        %3595 = vmatpush.msra.mxu0 %v1701
        %3596 = vmatpush.msra.mxu0 %v1699
        %3597 = vmatpush.msra.mxu0 %v1697
        %3598 = vmatpush.msra.mxu0 %v1695
        %3599 = vmatpush.msra.mxu0 %v1693
        %3600 = vmatpush.msra.mxu0 %v1691
        %3601 = vmatpush.msra.mxu0 %v1689
        %3602 = vmatpush.msra.mxu0 %v1687
        %3603 = vmatpush.msra.mxu0 %v1685
        %3604 = vmatpush.msra.mxu0 %v1683
        %3605 = vmatpush.msra.mxu0 %v1681
        %3606 = vmatpush.msra.mxu0 %v1679
        %3607 = vmatpush.msra.mxu0 %v1677
        %3608 = vmatmul.f32.gmra.mxu0 %v2870
        %v3609 = vpop.f32.mrf.mxu0
        %v3610 = vadd.f32 0.0, %v3609
        %3611 = vmatmul.f32.gmra.mxu0 %v2873
        %v3612 = vpop.f32.mrf.mxu0
        %v3613 = vadd.f32 0.0, %v3612
        %3614 = vmatmul.f32.gmra.mxu0 %v2876
        %v3615 = vpop.f32.mrf.mxu0
        %v3616 = vadd.f32 0.0, %v3615
        %3617 = vmatmul.f32.gmra.mxu0 %v2879
        %v3618 = vpop.f32.mrf.mxu0
        %v3619 = vadd.f32 0.0, %v3618
        %3620 = vdwg.mxu0
        %3621 = vmatpush.msra.mxu0 %v1739
        %3622 = vmatpush.msra.mxu0 %v1737
        %3623 = vmatpush.msra.mxu0 %v1735
        %3624 = vmatpush.msra.mxu0 %v1733
        %3625 = vmatpush.msra.mxu0 %v1731
        %3626 = vmatpush.msra.mxu0 %v1729
        %3627 = vmatpush.msra.mxu0 %v1727
        %3628 = vmatpush.msra.mxu0 %v1725
        %3629 = vmatpush.msra.mxu0 %v1723
        %3630 = vmatpush.msra.mxu0 %v1721
        %3631 = vmatpush.msra.mxu0 %v1719
        %3632 = vmatpush.msra.mxu0 %v1717
        %3633 = vmatpush.msra.mxu0 %v1715
        %3634 = vmatpush.msra.mxu0 %v1713
        %3635 = vmatpush.msra.mxu0 %v1711
        %3636 = vmatpush.msra.mxu0 %v1709
        %3637 = vmatmul.f32.gmra.mxu0 %v2995
        %v3638 = vpop.f32.mrf.mxu0
        %v3639 = vadd.f32 %v3610, %v3638
        %3640 = vmatmul.f32.gmra.mxu0 %v2998
        %v3641 = vpop.f32.mrf.mxu0
        %v3642 = vadd.f32 %v3613, %v3641
        %3643 = vmatmul.f32.gmra.mxu0 %v3001
        %v3644 = vpop.f32.mrf.mxu0
        %v3645 = vadd.f32 %v3616, %v3644
        %3646 = vmatmul.f32.gmra.mxu0 %v3004
        %v3647 = vpop.f32.mrf.mxu0
        %v3648 = vadd.f32 %v3619, %v3647
        %3649 = vdwg.mxu0
        %v3650 = vadd.f32 %v3526, %v3581
        %v3651 = vadd.f32 %v3527, %v3639
        %v3652 = vadd.f32 %v3528, %v3584
        %v3653 = vadd.f32 %v3529, %v3642
        %v3654 = vadd.f32 %v3530, %v3587
        %v3655 = vadd.f32 %v3531, %v3645
        %v3656 = vadd.f32 %v3532, %v3590
        %v3657 = vadd.f32 %v3533, %v3648
        %3658 = vmatpush.msra.mxu0 %v1895
        %3659 = vmatpush.msra.mxu0 %v1893
        %3660 = vmatpush.msra.mxu0 %v1891
        %3661 = vmatpush.msra.mxu0 %v1889
        %3662 = vmatpush.msra.mxu0 %v1887
        %3663 = vmatpush.msra.mxu0 %v1885
        %3664 = vmatpush.msra.mxu0 %v1883
        %3665 = vmatpush.msra.mxu0 %v1881
        %3666 = vmatpush.msra.mxu0 %v1879
        %3667 = vmatpush.msra.mxu0 %v1877
        %3668 = vmatpush.msra.mxu0 %v1875
        %3669 = vmatpush.msra.mxu0 %v1873
        %3670 = vmatpush.msra.mxu0 %v1871
        %3671 = vmatpush.msra.mxu0 %v1869
        %3672 = vmatpush.msra.mxu0 %v1867
        %3673 = vmatpush.msra.mxu0 %v1865
        %3674 = vmatmul.f32.gmra.mxu0 %v2882
        %v3675 = vpop.f32.mrf.mxu0
        %v3676 = vadd.f32 0.0, %v3675
        %3677 = vmatmul.f32.gmra.mxu0 %v2885
        %v3678 = vpop.f32.mrf.mxu0
        %v3679 = vadd.f32 0.0, %v3678
        %3680 = vmatmul.f32.gmra.mxu0 %v2888
        %v3681 = vpop.f32.mrf.mxu0
        %v3682 = vadd.f32 0.0, %v3681
        %3683 = vmatmul.f32.gmra.mxu0 %v2891
        %v3684 = vpop.f32.mrf.mxu0
        %v3685 = vadd.f32 0.0, %v3684
        %3686 = vdwg.mxu0
        %3687 = vmatpush.msra.mxu0 %v1927
        %3688 = vmatpush.msra.mxu0 %v1925
        %3689 = vmatpush.msra.mxu0 %v1923
        %3690 = vmatpush.msra.mxu0 %v1921
        %3691 = vmatpush.msra.mxu0 %v1919
        %3692 = vmatpush.msra.mxu0 %v1917
        %3693 = vmatpush.msra.mxu0 %v1915
        %3694 = vmatpush.msra.mxu0 %v1913
        %3695 = vmatpush.msra.mxu0 %v1911
        %3696 = vmatpush.msra.mxu0 %v1909
        %3697 = vmatpush.msra.mxu0 %v1907
        %3698 = vmatpush.msra.mxu0 %v1905
        %3699 = vmatpush.msra.mxu0 %v1903
        %3700 = vmatpush.msra.mxu0 %v1901
        %3701 = vmatpush.msra.mxu0 %v1899
        %3702 = vmatpush.msra.mxu0 %v1897
        %3703 = vmatmul.f32.gmra.mxu0 %v3007
        %v3704 = vpop.f32.mrf.mxu0
        %v3705 = vadd.f32 %v3676, %v3704
        %3706 = vmatmul.f32.gmra.mxu0 %v3010
        %v3707 = vpop.f32.mrf.mxu0
        %v3708 = vadd.f32 %v3679, %v3707
        %3709 = vmatmul.f32.gmra.mxu0 %v3013
        %v3710 = vpop.f32.mrf.mxu0
        %v3711 = vadd.f32 %v3682, %v3710
        %3712 = vmatmul.f32.gmra.mxu0 %v3016
        %v3713 = vpop.f32.mrf.mxu0
        %v3714 = vadd.f32 %v3685, %v3713
        %3715 = vdwg.mxu0
        %3716 = vmatpush.msra.mxu0 %v1896
        %3717 = vmatpush.msra.mxu0 %v1894
        %3718 = vmatpush.msra.mxu0 %v1892
        %3719 = vmatpush.msra.mxu0 %v1890
        %3720 = vmatpush.msra.mxu0 %v1888
        %3721 = vmatpush.msra.mxu0 %v1886
        %3722 = vmatpush.msra.mxu0 %v1884
        %3723 = vmatpush.msra.mxu0 %v1882
        %3724 = vmatpush.msra.mxu0 %v1880
        %3725 = vmatpush.msra.mxu0 %v1878
        %3726 = vmatpush.msra.mxu0 %v1876
        %3727 = vmatpush.msra.mxu0 %v1874
        %3728 = vmatpush.msra.mxu0 %v1872
        %3729 = vmatpush.msra.mxu0 %v1870
        %3730 = vmatpush.msra.mxu0 %v1868
        %3731 = vmatpush.msra.mxu0 %v1866
        %3732 = vmatmul.f32.gmra.mxu0 %v2882
        %v3733 = vpop.f32.mrf.mxu0
        %v3734 = vadd.f32 0.0, %v3733
        %3735 = vmatmul.f32.gmra.mxu0 %v2885
        %v3736 = vpop.f32.mrf.mxu0
        %v3737 = vadd.f32 0.0, %v3736
        %3738 = vmatmul.f32.gmra.mxu0 %v2888
        %v3739 = vpop.f32.mrf.mxu0
        %v3740 = vadd.f32 0.0, %v3739
        %3741 = vmatmul.f32.gmra.mxu0 %v2891
        %v3742 = vpop.f32.mrf.mxu0
        %v3743 = vadd.f32 0.0, %v3742
        %3744 = vdwg.mxu0
        %3745 = vmatpush.msra.mxu0 %v1928
        %3746 = vmatpush.msra.mxu0 %v1926
        %3747 = vmatpush.msra.mxu0 %v1924
        %3748 = vmatpush.msra.mxu0 %v1922
        %3749 = vmatpush.msra.mxu0 %v1920
        %3750 = vmatpush.msra.mxu0 %v1918
        %3751 = vmatpush.msra.mxu0 %v1916
        %3752 = vmatpush.msra.mxu0 %v1914
        %3753 = vmatpush.msra.mxu0 %v1912
        %3754 = vmatpush.msra.mxu0 %v1910
        %3755 = vmatpush.msra.mxu0 %v1908
        %3756 = vmatpush.msra.mxu0 %v1906
        %3757 = vmatpush.msra.mxu0 %v1904
        %3758 = vmatpush.msra.mxu0 %v1902
        %3759 = vmatpush.msra.mxu0 %v1900
        %3760 = vmatpush.msra.mxu0 %v1898
        %3761 = vmatmul.f32.gmra.mxu0 %v3007
        %v3762 = vpop.f32.mrf.mxu0
        %v3763 = vadd.f32 %v3734, %v3762
        %3764 = vmatmul.f32.gmra.mxu0 %v3010
        %v3765 = vpop.f32.mrf.mxu0
        %v3766 = vadd.f32 %v3737, %v3765
        %3767 = vmatmul.f32.gmra.mxu0 %v3013
        %v3768 = vpop.f32.mrf.mxu0
        %v3769 = vadd.f32 %v3740, %v3768
        %3770 = vmatmul.f32.gmra.mxu0 %v3016
        %v3771 = vpop.f32.mrf.mxu0
        %v3772 = vadd.f32 %v3743, %v3771
        %3773 = vdwg.mxu0
        %v3774 = vadd.f32 %v3650, %v3705
        %v3775 = vadd.f32 %v3651, %v3763
        %v3776 = vadd.f32 %v3652, %v3708
        %v3777 = vadd.f32 %v3653, %v3766
        %v3778 = vadd.f32 %v3654, %v3711
        %v3779 = vadd.f32 %v3655, %v3769
        %v3780 = vadd.f32 %v3656, %v3714
        %v3781 = vadd.f32 %v3657, %v3772
        %3782 = vmatpush.msra.mxu0 %v2084
        %3783 = vmatpush.msra.mxu0 %v2082
        %3784 = vmatpush.msra.mxu0 %v2080
        %3785 = vmatpush.msra.mxu0 %v2078
        %3786 = vmatpush.msra.mxu0 %v2076
        %3787 = vmatpush.msra.mxu0 %v2074
        %3788 = vmatpush.msra.mxu0 %v2072
        %3789 = vmatpush.msra.mxu0 %v2070
        %3790 = vmatpush.msra.mxu0 %v2068
        %3791 = vmatpush.msra.mxu0 %v2066
        %3792 = vmatpush.msra.mxu0 %v2064
        %3793 = vmatpush.msra.mxu0 %v2062
        %3794 = vmatpush.msra.mxu0 %v2060
        %3795 = vmatpush.msra.mxu0 %v2058
        %3796 = vmatpush.msra.mxu0 %v2056
        %3797 = vmatpush.msra.mxu0 %v2054
        %3798 = vmatmul.f32.gmra.mxu0 %v2894
        %v3799 = vpop.f32.mrf.mxu0
        %v3800 = vadd.f32 0.0, %v3799
        %3801 = vmatmul.f32.gmra.mxu0 %v2897
        %v3802 = vpop.f32.mrf.mxu0
        %v3803 = vadd.f32 0.0, %v3802
        %3804 = vmatmul.f32.gmra.mxu0 %v2900
        %v3805 = vpop.f32.mrf.mxu0
        %v3806 = vadd.f32 0.0, %v3805
        %3807 = vmatmul.f32.gmra.mxu0 %v2903
        %v3808 = vpop.f32.mrf.mxu0
        %v3809 = vadd.f32 0.0, %v3808
        %3810 = vdwg.mxu0
        %3811 = vmatpush.msra.mxu0 %v2116
        %3812 = vmatpush.msra.mxu0 %v2114
        %3813 = vmatpush.msra.mxu0 %v2112
        %3814 = vmatpush.msra.mxu0 %v2110
        %3815 = vmatpush.msra.mxu0 %v2108
        %3816 = vmatpush.msra.mxu0 %v2106
        %3817 = vmatpush.msra.mxu0 %v2104
        %3818 = vmatpush.msra.mxu0 %v2102
        %3819 = vmatpush.msra.mxu0 %v2100
        %3820 = vmatpush.msra.mxu0 %v2098
        %3821 = vmatpush.msra.mxu0 %v2096
        %3822 = vmatpush.msra.mxu0 %v2094
        %3823 = vmatpush.msra.mxu0 %v2092
        %3824 = vmatpush.msra.mxu0 %v2090
        %3825 = vmatpush.msra.mxu0 %v2088
        %3826 = vmatpush.msra.mxu0 %v2086
        %3827 = vmatmul.f32.gmra.mxu0 %v3019
        %v3828 = vpop.f32.mrf.mxu0
        %v3829 = vadd.f32 %v3800, %v3828
        %3830 = vmatmul.f32.gmra.mxu0 %v3022
        %v3831 = vpop.f32.mrf.mxu0
        %v3832 = vadd.f32 %v3803, %v3831
        %3833 = vmatmul.f32.gmra.mxu0 %v3025
        %v3834 = vpop.f32.mrf.mxu0
        %v3835 = vadd.f32 %v3806, %v3834
        %3836 = vmatmul.f32.gmra.mxu0 %v3028
        %v3837 = vpop.f32.mrf.mxu0
        %v3838 = vadd.f32 %v3809, %v3837
        %3839 = vdwg.mxu0
        %3840 = vmatpush.msra.mxu0 %v2085
        %3841 = vmatpush.msra.mxu0 %v2083
        %3842 = vmatpush.msra.mxu0 %v2081
        %3843 = vmatpush.msra.mxu0 %v2079
        %3844 = vmatpush.msra.mxu0 %v2077
        %3845 = vmatpush.msra.mxu0 %v2075
        %3846 = vmatpush.msra.mxu0 %v2073
        %3847 = vmatpush.msra.mxu0 %v2071
        %3848 = vmatpush.msra.mxu0 %v2069
        %3849 = vmatpush.msra.mxu0 %v2067
        %3850 = vmatpush.msra.mxu0 %v2065
        %3851 = vmatpush.msra.mxu0 %v2063
        %3852 = vmatpush.msra.mxu0 %v2061
        %3853 = vmatpush.msra.mxu0 %v2059
        %3854 = vmatpush.msra.mxu0 %v2057
        %3855 = vmatpush.msra.mxu0 %v2055
        %3856 = vmatmul.f32.gmra.mxu0 %v2894
        %v3857 = vpop.f32.mrf.mxu0
        %v3858 = vadd.f32 0.0, %v3857
        %3859 = vmatmul.f32.gmra.mxu0 %v2897
        %v3860 = vpop.f32.mrf.mxu0
        %v3861 = vadd.f32 0.0, %v3860
        %3862 = vmatmul.f32.gmra.mxu0 %v2900
        %v3863 = vpop.f32.mrf.mxu0
        %v3864 = vadd.f32 0.0, %v3863
        %3865 = vmatmul.f32.gmra.mxu0 %v2903
        %v3866 = vpop.f32.mrf.mxu0
        %v3867 = vadd.f32 0.0, %v3866
        %3868 = vdwg.mxu0
        %3869 = vmatpush.msra.mxu0 %v2117
        %3870 = vmatpush.msra.mxu0 %v2115
        %3871 = vmatpush.msra.mxu0 %v2113
        %3872 = vmatpush.msra.mxu0 %v2111
        %3873 = vmatpush.msra.mxu0 %v2109
        %3874 = vmatpush.msra.mxu0 %v2107
        %3875 = vmatpush.msra.mxu0 %v2105
        %3876 = vmatpush.msra.mxu0 %v2103
        %3877 = vmatpush.msra.mxu0 %v2101
        %3878 = vmatpush.msra.mxu0 %v2099
        %3879 = vmatpush.msra.mxu0 %v2097
        %3880 = vmatpush.msra.mxu0 %v2095
        %3881 = vmatpush.msra.mxu0 %v2093
        %3882 = vmatpush.msra.mxu0 %v2091
        %3883 = vmatpush.msra.mxu0 %v2089
        %3884 = vmatpush.msra.mxu0 %v2087
        %3885 = vmatmul.f32.gmra.mxu0 %v3019
        %v3886 = vpop.f32.mrf.mxu0
        %v3887 = vadd.f32 %v3858, %v3886
        %3888 = vmatmul.f32.gmra.mxu0 %v3022
        %v3889 = vpop.f32.mrf.mxu0
        %v3890 = vadd.f32 %v3861, %v3889
        %3891 = vmatmul.f32.gmra.mxu0 %v3025
        %v3892 = vpop.f32.mrf.mxu0
        %v3893 = vadd.f32 %v3864, %v3892
        %3894 = vmatmul.f32.gmra.mxu0 %v3028
        %v3895 = vpop.f32.mrf.mxu0
        %v3896 = vadd.f32 %v3867, %v3895
        %3897 = vdwg.mxu0
        %v3898 = vadd.f32 %v3774, %v3829
        %v3899 = vadd.f32 %v3775, %v3887
        %v3900 = vadd.f32 %v3776, %v3832
        %v3901 = vadd.f32 %v3777, %v3890
        %v3902 = vadd.f32 %v3778, %v3835
        %v3903 = vadd.f32 %v3779, %v3893
        %v3904 = vadd.f32 %v3780, %v3838
        %v3905 = vadd.f32 %v3781, %v3896
        %3906 = vmatpush.msra.mxu0 %v2273
        %3907 = vmatpush.msra.mxu0 %v2271
        %3908 = vmatpush.msra.mxu0 %v2269
        %3909 = vmatpush.msra.mxu0 %v2267
        %3910 = vmatpush.msra.mxu0 %v2265
        %3911 = vmatpush.msra.mxu0 %v2263
        %3912 = vmatpush.msra.mxu0 %v2261
        %3913 = vmatpush.msra.mxu0 %v2259
        %3914 = vmatpush.msra.mxu0 %v2257
        %3915 = vmatpush.msra.mxu0 %v2255
        %3916 = vmatpush.msra.mxu0 %v2253
        %3917 = vmatpush.msra.mxu0 %v2251
        %3918 = vmatpush.msra.mxu0 %v2249
        %3919 = vmatpush.msra.mxu0 %v2247
        %3920 = vmatpush.msra.mxu0 %v2245
        %3921 = vmatpush.msra.mxu0 %v2243
        %3922 = vmatmul.f32.gmra.mxu0 %v2906
        %v3923 = vpop.f32.mrf.mxu0
        %v3924 = vadd.f32 0.0, %v3923
        %3925 = vmatmul.f32.gmra.mxu0 %v2909
        %v3926 = vpop.f32.mrf.mxu0
        %v3927 = vadd.f32 0.0, %v3926
        %3928 = vmatmul.f32.gmra.mxu0 %v2912
        %v3929 = vpop.f32.mrf.mxu0
        %v3930 = vadd.f32 0.0, %v3929
        %3931 = vmatmul.f32.gmra.mxu0 %v2915
        %v3932 = vpop.f32.mrf.mxu0
        %v3933 = vadd.f32 0.0, %v3932
        %3934 = vdwg.mxu0
        %3935 = vmatpush.msra.mxu0 %v2305
        %3936 = vmatpush.msra.mxu0 %v2303
        %3937 = vmatpush.msra.mxu0 %v2301
        %3938 = vmatpush.msra.mxu0 %v2299
        %3939 = vmatpush.msra.mxu0 %v2297
        %3940 = vmatpush.msra.mxu0 %v2295
        %3941 = vmatpush.msra.mxu0 %v2293
        %3942 = vmatpush.msra.mxu0 %v2291
        %3943 = vmatpush.msra.mxu0 %v2289
        %3944 = vmatpush.msra.mxu0 %v2287
        %3945 = vmatpush.msra.mxu0 %v2285
        %3946 = vmatpush.msra.mxu0 %v2283
        %3947 = vmatpush.msra.mxu0 %v2281
        %3948 = vmatpush.msra.mxu0 %v2279
        %3949 = vmatpush.msra.mxu0 %v2277
        %3950 = vmatpush.msra.mxu0 %v2275
        %3951 = vmatmul.f32.gmra.mxu0 %v3031
        %v3952 = vpop.f32.mrf.mxu0
        %v3953 = vadd.f32 %v3924, %v3952
        %3954 = vmatmul.f32.gmra.mxu0 %v3034
        %v3955 = vpop.f32.mrf.mxu0
        %v3956 = vadd.f32 %v3927, %v3955
        %3957 = vmatmul.f32.gmra.mxu0 %v3037
        %v3958 = vpop.f32.mrf.mxu0
        %v3959 = vadd.f32 %v3930, %v3958
        %3960 = vmatmul.f32.gmra.mxu0 %v3040
        %v3961 = vpop.f32.mrf.mxu0
        %v3962 = vadd.f32 %v3933, %v3961
        %3963 = vdwg.mxu0
        %3964 = vmatpush.msra.mxu0 %v2274
        %3965 = vmatpush.msra.mxu0 %v2272
        %3966 = vmatpush.msra.mxu0 %v2270
        %3967 = vmatpush.msra.mxu0 %v2268
        %3968 = vmatpush.msra.mxu0 %v2266
        %3969 = vmatpush.msra.mxu0 %v2264
        %3970 = vmatpush.msra.mxu0 %v2262
        %3971 = vmatpush.msra.mxu0 %v2260
        %3972 = vmatpush.msra.mxu0 %v2258
        %3973 = vmatpush.msra.mxu0 %v2256
        %3974 = vmatpush.msra.mxu0 %v2254
        %3975 = vmatpush.msra.mxu0 %v2252
        %3976 = vmatpush.msra.mxu0 %v2250
        %3977 = vmatpush.msra.mxu0 %v2248
        %3978 = vmatpush.msra.mxu0 %v2246
        %3979 = vmatpush.msra.mxu0 %v2244
        %3980 = vmatmul.f32.gmra.mxu0 %v2906
        %v3981 = vpop.f32.mrf.mxu0
        %v3982 = vadd.f32 0.0, %v3981
        %3983 = vmatmul.f32.gmra.mxu0 %v2909
        %v3984 = vpop.f32.mrf.mxu0
        %v3985 = vadd.f32 0.0, %v3984
        %3986 = vmatmul.f32.gmra.mxu0 %v2912
        %v3987 = vpop.f32.mrf.mxu0
        %v3988 = vadd.f32 0.0, %v3987
        %3989 = vmatmul.f32.gmra.mxu0 %v2915
        %v3990 = vpop.f32.mrf.mxu0
        %v3991 = vadd.f32 0.0, %v3990
        %3992 = vdwg.mxu0
        %3993 = vmatpush.msra.mxu0 %v2306
        %3994 = vmatpush.msra.mxu0 %v2304
        %3995 = vmatpush.msra.mxu0 %v2302
        %3996 = vmatpush.msra.mxu0 %v2300
        %3997 = vmatpush.msra.mxu0 %v2298
        %3998 = vmatpush.msra.mxu0 %v2296
        %3999 = vmatpush.msra.mxu0 %v2294
        %4000 = vmatpush.msra.mxu0 %v2292
        %4001 = vmatpush.msra.mxu0 %v2290
        %4002 = vmatpush.msra.mxu0 %v2288
        %4003 = vmatpush.msra.mxu0 %v2286
        %4004 = vmatpush.msra.mxu0 %v2284
        %4005 = vmatpush.msra.mxu0 %v2282
        %4006 = vmatpush.msra.mxu0 %v2280
        %4007 = vmatpush.msra.mxu0 %v2278
        %4008 = vmatpush.msra.mxu0 %v2276
        %4009 = vmatmul.f32.gmra.mxu0 %v3031
        %v4010 = vpop.f32.mrf.mxu0
        %v4011 = vadd.f32 %v3982, %v4010
        %4012 = vmatmul.f32.gmra.mxu0 %v3034
        %v4013 = vpop.f32.mrf.mxu0
        %v4014 = vadd.f32 %v3985, %v4013
        %4015 = vmatmul.f32.gmra.mxu0 %v3037
        %v4016 = vpop.f32.mrf.mxu0
        %v4017 = vadd.f32 %v3988, %v4016
        %4018 = vmatmul.f32.gmra.mxu0 %v3040
        %v4019 = vpop.f32.mrf.mxu0
        %v4020 = vadd.f32 %v3991, %v4019
        %4021 = vdwg.mxu0
        %v4022 = vadd.f32 %v3898, %v3953
        %v4023 = vadd.f32 %v3899, %v4011
        %v4024 = vadd.f32 %v3900, %v3956
        %v4025 = vadd.f32 %v3901, %v4014
        %v4026 = vadd.f32 %v3902, %v3959
        %v4027 = vadd.f32 %v3903, %v4017
        %v4028 = vadd.f32 %v3904, %v3962
        %v4029 = vadd.f32 %v3905, %v4020
        %4030 = vmatpush.msra.mxu0 %v2462
        %4031 = vmatpush.msra.mxu0 %v2460
        %4032 = vmatpush.msra.mxu0 %v2458
        %4033 = vmatpush.msra.mxu0 %v2456
        %4034 = vmatpush.msra.mxu0 %v2454
        %4035 = vmatpush.msra.mxu0 %v2452
        %4036 = vmatpush.msra.mxu0 %v2450
        %4037 = vmatpush.msra.mxu0 %v2448
        %4038 = vmatpush.msra.mxu0 %v2446
        %4039 = vmatpush.msra.mxu0 %v2444
        %4040 = vmatpush.msra.mxu0 %v2442
        %4041 = vmatpush.msra.mxu0 %v2440
        %4042 = vmatpush.msra.mxu0 %v2438
        %4043 = vmatpush.msra.mxu0 %v2436
        %4044 = vmatpush.msra.mxu0 %v2434
        %4045 = vmatpush.msra.mxu0 %v2432
        %4046 = vmatmul.f32.gmra.mxu0 %v2918
        %v4047 = vpop.f32.mrf.mxu0
        %v4048 = vadd.f32 0.0, %v4047
        %4049 = vmatmul.f32.gmra.mxu0 %v2921
        %v4050 = vpop.f32.mrf.mxu0
        %v4051 = vadd.f32 0.0, %v4050
        %4052 = vmatmul.f32.gmra.mxu0 %v2924
        %v4053 = vpop.f32.mrf.mxu0
        %v4054 = vadd.f32 0.0, %v4053
        %4055 = vmatmul.f32.gmra.mxu0 %v2927
        %v4056 = vpop.f32.mrf.mxu0
        %v4057 = vadd.f32 0.0, %v4056
        %4058 = vdwg.mxu0
        %4059 = vmatpush.msra.mxu0 %v2494
        %4060 = vmatpush.msra.mxu0 %v2492
        %4061 = vmatpush.msra.mxu0 %v2490
        %4062 = vmatpush.msra.mxu0 %v2488
        %4063 = vmatpush.msra.mxu0 %v2486
        %4064 = vmatpush.msra.mxu0 %v2484
        %4065 = vmatpush.msra.mxu0 %v2482
        %4066 = vmatpush.msra.mxu0 %v2480
        %4067 = vmatpush.msra.mxu0 %v2478
        %4068 = vmatpush.msra.mxu0 %v2476
        %4069 = vmatpush.msra.mxu0 %v2474
        %4070 = vmatpush.msra.mxu0 %v2472
        %4071 = vmatpush.msra.mxu0 %v2470
        %4072 = vmatpush.msra.mxu0 %v2468
        %4073 = vmatpush.msra.mxu0 %v2466
        %4074 = vmatpush.msra.mxu0 %v2464
        %4075 = vmatmul.f32.gmra.mxu0 %v3043
        %v4076 = vpop.f32.mrf.mxu0
        %v4077 = vadd.f32 %v4048, %v4076
        %4078 = vmatmul.f32.gmra.mxu0 %v3046
        %v4079 = vpop.f32.mrf.mxu0
        %v4080 = vadd.f32 %v4051, %v4079
        %4081 = vmatmul.f32.gmra.mxu0 %v3049
        %v4082 = vpop.f32.mrf.mxu0
        %v4083 = vadd.f32 %v4054, %v4082
        %4084 = vmatmul.f32.gmra.mxu0 %v3052
        %v4085 = vpop.f32.mrf.mxu0
        %v4086 = vadd.f32 %v4057, %v4085
        %4087 = vdwg.mxu0
        %4088 = vmatpush.msra.mxu0 %v2463
        %4089 = vmatpush.msra.mxu0 %v2461
        %4090 = vmatpush.msra.mxu0 %v2459
        %4091 = vmatpush.msra.mxu0 %v2457
        %4092 = vmatpush.msra.mxu0 %v2455
        %4093 = vmatpush.msra.mxu0 %v2453
        %4094 = vmatpush.msra.mxu0 %v2451
        %4095 = vmatpush.msra.mxu0 %v2449
        %4096 = vmatpush.msra.mxu0 %v2447
        %4097 = vmatpush.msra.mxu0 %v2445
        %4098 = vmatpush.msra.mxu0 %v2443
        %4099 = vmatpush.msra.mxu0 %v2441
        %4100 = vmatpush.msra.mxu0 %v2439
        %4101 = vmatpush.msra.mxu0 %v2437
        %4102 = vmatpush.msra.mxu0 %v2435
        %4103 = vmatpush.msra.mxu0 %v2433
        %4104 = vmatmul.f32.gmra.mxu0 %v2918
        %v4105 = vpop.f32.mrf.mxu0
        %v4106 = vadd.f32 0.0, %v4105
        %4107 = vmatmul.f32.gmra.mxu0 %v2921
        %v4108 = vpop.f32.mrf.mxu0
        %v4109 = vadd.f32 0.0, %v4108
        %4110 = vmatmul.f32.gmra.mxu0 %v2924
        %v4111 = vpop.f32.mrf.mxu0
        %v4112 = vadd.f32 0.0, %v4111
        %4113 = vmatmul.f32.gmra.mxu0 %v2927
        %v4114 = vpop.f32.mrf.mxu0
        %v4115 = vadd.f32 0.0, %v4114
        %4116 = vdwg.mxu0
        %4117 = vmatpush.msra.mxu0 %v2495
        %4118 = vmatpush.msra.mxu0 %v2493
        %4119 = vmatpush.msra.mxu0 %v2491
        %4120 = vmatpush.msra.mxu0 %v2489
        %4121 = vmatpush.msra.mxu0 %v2487
        %4122 = vmatpush.msra.mxu0 %v2485
        %4123 = vmatpush.msra.mxu0 %v2483
        %4124 = vmatpush.msra.mxu0 %v2481
        %4125 = vmatpush.msra.mxu0 %v2479
        %4126 = vmatpush.msra.mxu0 %v2477
        %4127 = vmatpush.msra.mxu0 %v2475
        %4128 = vmatpush.msra.mxu0 %v2473
        %4129 = vmatpush.msra.mxu0 %v2471
        %4130 = vmatpush.msra.mxu0 %v2469
        %4131 = vmatpush.msra.mxu0 %v2467
        %4132 = vmatpush.msra.mxu0 %v2465
        %4133 = vmatmul.f32.gmra.mxu0 %v3043
        %v4134 = vpop.f32.mrf.mxu0
        %v4135 = vadd.f32 %v4106, %v4134
        %4136 = vmatmul.f32.gmra.mxu0 %v3046
        %v4137 = vpop.f32.mrf.mxu0
        %v4138 = vadd.f32 %v4109, %v4137
        %4139 = vmatmul.f32.gmra.mxu0 %v3049
        %v4140 = vpop.f32.mrf.mxu0
        %v4141 = vadd.f32 %v4112, %v4140
        %4142 = vmatmul.f32.gmra.mxu0 %v3052
        %v4143 = vpop.f32.mrf.mxu0
        %v4144 = vadd.f32 %v4115, %v4143
        %4145 = vdwg.mxu0
        %v4146 = vadd.f32 %v4022, %v4077
        %v4147 = vadd.f32 %v4023, %v4135
        %v4148 = vadd.f32 %v4024, %v4080
        %v4149 = vadd.f32 %v4025, %v4138
        %v4150 = vadd.f32 %v4026, %v4083
        %v4151 = vadd.f32 %v4027, %v4141
        %v4152 = vadd.f32 %v4028, %v4086
        %v4153 = vadd.f32 %v4029, %v4144
        %4155 = vset.pattern.permute.xlu0 0
        %4156 = vperm.xlu0 %4155, %v2692
        %v4157 = vpop.permute.xlu0 %4156
        %4160 = vset.pattern.permute.xlu0 0
        %4161 = vperm.xlu0 %4160, %v2693
        %v4162 = vpop.permute.xlu0 %4161
        %4165 = vset.pattern.permute.xlu0 0
        %4166 = vperm.xlu0 %4165, %v2694
        %v4167 = vpop.permute.xlu0 %4166
        %4170 = vset.pattern.permute.xlu0 0
        %4171 = vperm.xlu0 %4170, %v2695
        %v4172 = vpop.permute.xlu0 %4171
        %v4174 = vadd.f32 %v4146, %v4157
        %v4175 = vadd.f32 %v4147, %v4157
        %v4176 = vadd.f32 %v4148, %v4162
        %v4177 = vadd.f32 %v4149, %v4162
        %v4178 = vadd.f32 %v4150, %v4167
        %v4179 = vadd.f32 %v4151, %v4167
        %v4180 = vadd.f32 %v4152, %v4172
        %v4181 = vadd.f32 %v4153, %v4172
        %v4182 = vmax.f32 %v4174, 0.0
        %v4183 = vmax.f32 %v4175, 0.0
        %v4184 = vmax.f32 %v4176, 0.0
        %v4185 = vmax.f32 %v4177, 0.0
        %v4186 = vmax.f32 %v4178, 0.0
        %v4187 = vmax.f32 %v4179, 0.0
        %v4188 = vmax.f32 %v4180, 0.0
        %v4189 = vmax.f32 %v4181, 0.0
        %v4190 = vld [vmem:[%s8] sm:$0xff]
        %v4191 = vld [vmem:[%s8 + $0x8] sm:$0xff]
        %v4192 = vld [vmem:[%s8 + $0x10] sm:$0xff]
        %v4193 = vld [vmem:[%s8 + $0x18] sm:$0xff]
        %4195 = vset.pattern.permute.xlu0 0
        %4196 = vperm.xlu0 %4195, %v4190
        %v4197 = vpop.permute.xlu0 %4196
        %4200 = vset.pattern.permute.xlu0 0
        %4201 = vperm.xlu0 %4200, %v4191
        %v4202 = vpop.permute.xlu0 %4201
        %4205 = vset.pattern.permute.xlu0 0
        %4206 = vperm.xlu0 %4205, %v4192
        %v4207 = vpop.permute.xlu0 %4206
        %4210 = vset.pattern.permute.xlu0 0
        %4211 = vperm.xlu0 %4210, %v4193
        %v4212 = vpop.permute.xlu0 %4211
        %v4214 = vmul.f32 %v4197, %v4182
        %v4215 = vmul.f32 %v4197, %v4183
        %v4216 = vmul.f32 %v4202, %v4184
        %v4217 = vmul.f32 %v4202, %v4185
        %v4218 = vmul.f32 %v4207, %v4186
        %v4219 = vmul.f32 %v4207, %v4187
        %v4220 = vmul.f32 %v4212, %v4188
        %v4221 = vmul.f32 %v4212, %v4189
        %v4222 = vadd.f32 %v497, %v4214
        %v4223 = vadd.f32 %v526, %v4215
        %v4224 = vadd.f32 %v500, %v4216
        %v4225 = vadd.f32 %v529, %v4217
        %v4226 = vadd.f32 %v503, %v4218
        %v4227 = vadd.f32 %v532, %v4219
        %v4228 = vadd.f32 %v506, %v4220
        %v4229 = vadd.f32 %v535, %v4221
        %s4230 = scalar_lea.vmem %s4, 288
        %v4231 = vld [vmem:[%s4230] sm:$0xff]
        %v4232 = vld [vmem:[%s4230 + $0x8] sm:$0xff]
        %v4233 = vld [vmem:[%s4230 + $0x10] sm:$0xff]
        %v4234 = vld [vmem:[%s4230 + $0x18] sm:$0xff]
        %v4235 = vld [vmem:[%s4230 + $0x20] sm:$0xff]
        %v4236 = vld [vmem:[%s4230 + $0x28] sm:$0xff]
        %v4237 = vld [vmem:[%s4230 + $0x30] sm:$0xff]
        %v4238 = vld [vmem:[%s4230 + $0x38] sm:$0xff]
        %v4239 = vld [vmem:[%s4230 + $0x40] sm:$0xff]
        %v4240 = vld [vmem:[%s4230 + $0x48] sm:$0xff]
        %v4241 = vld [vmem:[%s4230 + $0x50] sm:$0xff]
        %v4242 = vld [vmem:[%s4230 + $0x58] sm:$0xff]
        %v4243 = vld [vmem:[%s4230 + $0x60] sm:$0xff]
        %v4244 = vld [vmem:[%s4230 + $0x68] sm:$0xff]
        %v4245 = vld [vmem:[%s4230 + $0x70] sm:$0xff]
        %v4246 = vld [vmem:[%s4230 + $0x78] sm:$0xff]
        %v4247 = vld [vmem:[%s4230 + $0x80] sm:$0xff]
        %v4248 = vld [vmem:[%s4230 + $0x88] sm:$0xff]
        %v4249 = vld [vmem:[%s4230 + $0x90] sm:$0xff]
        %v4250 = vld [vmem:[%s4230 + $0x98] sm:$0xff]
        %v4251 = vld [vmem:[%s4230 + $0xa0] sm:$0xff]
        %v4252 = vld [vmem:[%s4230 + $0xa8] sm:$0xff]
        %v4253 = vld [vmem:[%s4230 + $0xb0] sm:$0xff]
        %v4254 = vld [vmem:[%s4230 + $0xb8] sm:$0xff]
        %v4255 = vld [vmem:[%s4230 + $0xc0] sm:$0xff]
        %v4256 = vld [vmem:[%s4230 + $0xc8] sm:$0xff]
        %v4257 = vld [vmem:[%s4230 + $0xd0] sm:$0xff]
        %v4258 = vld [vmem:[%s4230 + $0xd8] sm:$0xff]
        %v4259 = vld [vmem:[%s4230 + $0xe0] sm:$0xff]
        %v4260 = vld [vmem:[%s4230 + $0xe8] sm:$0xff]
        %v4261 = vld [vmem:[%s4230 + $0xf0] sm:$0xff]
        %v4262 = vld [vmem:[%s4230 + $0xf8] sm:$0xff]
        %v4263 = vld [vmem:[%s4230 + $0x100] sm:$0xff]
        %v4264 = vld [vmem:[%s4230 + $0x108] sm:$0xff]
        %v4265 = vld [vmem:[%s4230 + $0x110] sm:$0xff]
        %v4266 = vld [vmem:[%s4230 + $0x118] sm:$0xff]
        %s4267 = scalar_lea.vmem %s5, 32
        %v4268 = vld [vmem:[%s4267] sm:$0xff]
        %v4269 = vld [vmem:[%s4267 + $0x8] sm:$0xff]
        %v4270 = vld [vmem:[%s4267 + $0x10] sm:$0xff]
        %v4271 = vld [vmem:[%s4267 + $0x18] sm:$0xff]
        %v4273 = vsel %vm577, %v4231, 0
        %v4276 = vsel %vm577, %v4232, 0
        %v4279 = vsel %vm577, %v4233, 0
        %v4282 = vsel %vm577, %v4234, 0
        %v4285 = vsel %vm577, %v4235, 0
        %v4288 = vsel %vm577, %v4236, 0
        %v4291 = vsel %vm577, %v4237, 0
        %v4294 = vsel %vm577, %v4238, 0
        %v4297 = vsel %vm577, %v4239, 0
        %v4300 = vsel %vm577, %v4240, 0
        %v4303 = vsel %vm577, %v4241, 0
        %v4306 = vsel %vm577, %v4242, 0
        %v4309 = vsel %vm577, %v4243, 0
        %v4312 = vsel %vm577, %v4244, 0
        %v4315 = vsel %vm577, %v4245, 0
        %v4318 = vsel %vm577, %v4246, 0
        %v4321 = vsel %vm577, %v4247, 0
        %v4324 = vsel %vm577, %v4248, 0
        %v4327 = vsel %vm577, %v4249, 0
        %v4330 = vsel %vm577, %v4250, 0
        %v4333 = vsel %vm577, %v4251, 0
        %v4336 = vsel %vm577, %v4252, 0
        %v4339 = vsel %vm577, %v4253, 0
        %v4342 = vsel %vm577, %v4254, 0
        %v4345 = vsel %vm577, %v4255, 0
        %v4348 = vsel %vm577, %v4256, 0
        %v4351 = vsel %vm577, %v4257, 0
        %v4354 = vsel %vm577, %v4258, 0
        %v4357 = vsel %vm577, %v4259, 0
        %v4360 = vsel %vm577, %v4260, 0
        %v4363 = vsel %vm577, %v4261, 0
        %v4366 = vsel %vm577, %v4262, 0
        %v4369 = vsel %vm577, %v4263, 0
        %v4372 = vsel %vm577, %v4264, 0
        %v4375 = vsel %vm577, %v4265, 0
        %v4378 = vsel %vm577, %v4266, 0
        %4380 = vmatpush.msra.mxu0 0.0
        %4381 = vmatpush.msra.mxu0 0.0
        %4382 = vmatpush.msra.mxu0 0.0
        %4383 = vmatpush.msra.mxu0 0.0
        %4384 = vmatpush.msra.mxu0 0.0
        %4385 = vmatpush.msra.mxu0 0.0
        %4386 = vmatpush.msra.mxu0 0.0
        %4387 = vmatpush.msra.mxu0 0.0
        %4388 = vmatpush.msra.mxu0 0.0
        %4389 = vmatpush.msra.mxu0 0.0
        %4390 = vmatpush.msra.mxu0 0.0
        %4391 = vmatpush.msra.mxu0 0.0
        %4392 = vmatpush.msra.mxu0 %v4228
        %4393 = vmatpush.msra.mxu0 %v4226
        %4394 = vmatpush.msra.mxu0 %v4224
        %4395 = vmatpush.msra.mxu0 %v4222
        %4396 = vmatmul.f32.gmra.mxu0 %v4273
        %v4397 = vpop.f32.mrf.mxu0
        %v4398 = vadd.f32 0.0, %v4397
        %4399 = vmatmul.f32.gmra.mxu0 %v4276
        %v4400 = vpop.f32.mrf.mxu0
        %v4401 = vadd.f32 0.0, %v4400
        %4402 = vmatmul.f32.gmra.mxu0 %v4279
        %v4403 = vpop.f32.mrf.mxu0
        %v4404 = vadd.f32 0.0, %v4403
        %4405 = vmatmul.f32.gmra.mxu0 %v4282
        %v4406 = vpop.f32.mrf.mxu0
        %v4407 = vadd.f32 0.0, %v4406
        %4408 = vmatmul.f32.gmra.mxu0 %v4285
        %v4409 = vpop.f32.mrf.mxu0
        %v4410 = vadd.f32 0.0, %v4409
        %4411 = vmatmul.f32.gmra.mxu0 %v4288
        %v4412 = vpop.f32.mrf.mxu0
        %v4413 = vadd.f32 0.0, %v4412
        %4414 = vmatmul.f32.gmra.mxu0 %v4291
        %v4415 = vpop.f32.mrf.mxu0
        %v4416 = vadd.f32 0.0, %v4415
        %4417 = vmatmul.f32.gmra.mxu0 %v4294
        %v4418 = vpop.f32.mrf.mxu0
        %v4419 = vadd.f32 0.0, %v4418
        %4420 = vmatmul.f32.gmra.mxu0 %v4297
        %v4421 = vpop.f32.mrf.mxu0
        %v4422 = vadd.f32 0.0, %v4421
        %4423 = vmatmul.f32.gmra.mxu0 %v4300
        %v4424 = vpop.f32.mrf.mxu0
        %v4425 = vadd.f32 0.0, %v4424
        %4426 = vmatmul.f32.gmra.mxu0 %v4303
        %v4427 = vpop.f32.mrf.mxu0
        %v4428 = vadd.f32 0.0, %v4427
        %4429 = vmatmul.f32.gmra.mxu0 %v4306
        %v4430 = vpop.f32.mrf.mxu0
        %v4431 = vadd.f32 0.0, %v4430
        %4432 = vmatmul.f32.gmra.mxu0 %v4309
        %v4433 = vpop.f32.mrf.mxu0
        %v4434 = vadd.f32 0.0, %v4433
        %4435 = vmatmul.f32.gmra.mxu0 %v4312
        %v4436 = vpop.f32.mrf.mxu0
        %v4437 = vadd.f32 0.0, %v4436
        %4438 = vmatmul.f32.gmra.mxu0 %v4315
        %v4439 = vpop.f32.mrf.mxu0
        %v4440 = vadd.f32 0.0, %v4439
        %4441 = vmatmul.f32.gmra.mxu0 %v4318
        %v4442 = vpop.f32.mrf.mxu0
        %v4443 = vadd.f32 0.0, %v4442
        %4444 = vmatmul.f32.gmra.mxu0 %v4321
        %v4445 = vpop.f32.mrf.mxu0
        %v4446 = vadd.f32 0.0, %v4445
        %4447 = vmatmul.f32.gmra.mxu0 %v4324
        %v4448 = vpop.f32.mrf.mxu0
        %v4449 = vadd.f32 0.0, %v4448
        %4450 = vmatmul.f32.gmra.mxu0 %v4327
        %v4451 = vpop.f32.mrf.mxu0
        %v4452 = vadd.f32 0.0, %v4451
        %4453 = vmatmul.f32.gmra.mxu0 %v4330
        %v4454 = vpop.f32.mrf.mxu0
        %v4455 = vadd.f32 0.0, %v4454
        %4456 = vmatmul.f32.gmra.mxu0 %v4333
        %v4457 = vpop.f32.mrf.mxu0
        %v4458 = vadd.f32 0.0, %v4457
        %4459 = vmatmul.f32.gmra.mxu0 %v4336
        %v4460 = vpop.f32.mrf.mxu0
        %v4461 = vadd.f32 0.0, %v4460
        %4462 = vmatmul.f32.gmra.mxu0 %v4339
        %v4463 = vpop.f32.mrf.mxu0
        %v4464 = vadd.f32 0.0, %v4463
        %4465 = vmatmul.f32.gmra.mxu0 %v4342
        %v4466 = vpop.f32.mrf.mxu0
        %v4467 = vadd.f32 0.0, %v4466
        %4468 = vmatmul.f32.gmra.mxu0 %v4345
        %v4469 = vpop.f32.mrf.mxu0
        %v4470 = vadd.f32 0.0, %v4469
        %4471 = vmatmul.f32.gmra.mxu0 %v4348
        %v4472 = vpop.f32.mrf.mxu0
        %v4473 = vadd.f32 0.0, %v4472
        %4474 = vmatmul.f32.gmra.mxu0 %v4351
        %v4475 = vpop.f32.mrf.mxu0
        %v4476 = vadd.f32 0.0, %v4475
        %4477 = vmatmul.f32.gmra.mxu0 %v4354
        %v4478 = vpop.f32.mrf.mxu0
        %v4479 = vadd.f32 0.0, %v4478
        %4480 = vmatmul.f32.gmra.mxu0 %v4357
        %v4481 = vpop.f32.mrf.mxu0
        %v4482 = vadd.f32 0.0, %v4481
        %4483 = vmatmul.f32.gmra.mxu0 %v4360
        %v4484 = vpop.f32.mrf.mxu0
        %v4485 = vadd.f32 0.0, %v4484
        %4486 = vmatmul.f32.gmra.mxu0 %v4363
        %v4487 = vpop.f32.mrf.mxu0
        %v4488 = vadd.f32 0.0, %v4487
        %4489 = vmatmul.f32.gmra.mxu0 %v4366
        %v4490 = vpop.f32.mrf.mxu0
        %v4491 = vadd.f32 0.0, %v4490
        %4492 = vmatmul.f32.gmra.mxu0 %v4369
        %v4493 = vpop.f32.mrf.mxu0
        %v4494 = vadd.f32 0.0, %v4493
        %4495 = vmatmul.f32.gmra.mxu0 %v4372
        %v4496 = vpop.f32.mrf.mxu0
        %v4497 = vadd.f32 0.0, %v4496
        %4498 = vmatmul.f32.gmra.mxu0 %v4375
        %v4499 = vpop.f32.mrf.mxu0
        %v4500 = vadd.f32 0.0, %v4499
        %4501 = vmatmul.f32.gmra.mxu0 %v4378
        %v4502 = vpop.f32.mrf.mxu0
        %v4503 = vadd.f32 0.0, %v4502
        %4504 = vdwg.mxu0
        %4505 = vmatpush.msra.mxu0 0.0
        %4506 = vmatpush.msra.mxu0 0.0
        %4507 = vmatpush.msra.mxu0 0.0
        %4508 = vmatpush.msra.mxu0 0.0
        %4509 = vmatpush.msra.mxu0 0.0
        %4510 = vmatpush.msra.mxu0 0.0
        %4511 = vmatpush.msra.mxu0 0.0
        %4512 = vmatpush.msra.mxu0 0.0
        %4513 = vmatpush.msra.mxu0 0.0
        %4514 = vmatpush.msra.mxu0 0.0
        %4515 = vmatpush.msra.mxu0 0.0
        %4516 = vmatpush.msra.mxu0 0.0
        %4517 = vmatpush.msra.mxu0 %v4229
        %4518 = vmatpush.msra.mxu0 %v4227
        %4519 = vmatpush.msra.mxu0 %v4225
        %4520 = vmatpush.msra.mxu0 %v4223
        %4521 = vmatmul.f32.gmra.mxu0 %v4273
        %v4522 = vpop.f32.mrf.mxu0
        %v4523 = vadd.f32 0.0, %v4522
        %4524 = vmatmul.f32.gmra.mxu0 %v4276
        %v4525 = vpop.f32.mrf.mxu0
        %v4526 = vadd.f32 0.0, %v4525
        %4527 = vmatmul.f32.gmra.mxu0 %v4279
        %v4528 = vpop.f32.mrf.mxu0
        %v4529 = vadd.f32 0.0, %v4528
        %4530 = vmatmul.f32.gmra.mxu0 %v4282
        %v4531 = vpop.f32.mrf.mxu0
        %v4532 = vadd.f32 0.0, %v4531
        %4533 = vmatmul.f32.gmra.mxu0 %v4285
        %v4534 = vpop.f32.mrf.mxu0
        %v4535 = vadd.f32 0.0, %v4534
        %4536 = vmatmul.f32.gmra.mxu0 %v4288
        %v4537 = vpop.f32.mrf.mxu0
        %v4538 = vadd.f32 0.0, %v4537
        %4539 = vmatmul.f32.gmra.mxu0 %v4291
        %v4540 = vpop.f32.mrf.mxu0
        %v4541 = vadd.f32 0.0, %v4540
        %4542 = vmatmul.f32.gmra.mxu0 %v4294
        %v4543 = vpop.f32.mrf.mxu0
        %v4544 = vadd.f32 0.0, %v4543
        %4545 = vmatmul.f32.gmra.mxu0 %v4297
        %v4546 = vpop.f32.mrf.mxu0
        %v4547 = vadd.f32 0.0, %v4546
        %4548 = vmatmul.f32.gmra.mxu0 %v4300
        %v4549 = vpop.f32.mrf.mxu0
        %v4550 = vadd.f32 0.0, %v4549
        %4551 = vmatmul.f32.gmra.mxu0 %v4303
        %v4552 = vpop.f32.mrf.mxu0
        %v4553 = vadd.f32 0.0, %v4552
        %4554 = vmatmul.f32.gmra.mxu0 %v4306
        %v4555 = vpop.f32.mrf.mxu0
        %v4556 = vadd.f32 0.0, %v4555
        %4557 = vmatmul.f32.gmra.mxu0 %v4309
        %v4558 = vpop.f32.mrf.mxu0
        %v4559 = vadd.f32 0.0, %v4558
        %4560 = vmatmul.f32.gmra.mxu0 %v4312
        %v4561 = vpop.f32.mrf.mxu0
        %v4562 = vadd.f32 0.0, %v4561
        %4563 = vmatmul.f32.gmra.mxu0 %v4315
        %v4564 = vpop.f32.mrf.mxu0
        %v4565 = vadd.f32 0.0, %v4564
        %4566 = vmatmul.f32.gmra.mxu0 %v4318
        %v4567 = vpop.f32.mrf.mxu0
        %v4568 = vadd.f32 0.0, %v4567
        %4569 = vmatmul.f32.gmra.mxu0 %v4321
        %v4570 = vpop.f32.mrf.mxu0
        %v4571 = vadd.f32 0.0, %v4570
        %4572 = vmatmul.f32.gmra.mxu0 %v4324
        %v4573 = vpop.f32.mrf.mxu0
        %v4574 = vadd.f32 0.0, %v4573
        %4575 = vmatmul.f32.gmra.mxu0 %v4327
        %v4576 = vpop.f32.mrf.mxu0
        %v4577 = vadd.f32 0.0, %v4576
        %4578 = vmatmul.f32.gmra.mxu0 %v4330
        %v4579 = vpop.f32.mrf.mxu0
        %v4580 = vadd.f32 0.0, %v4579
        %4581 = vmatmul.f32.gmra.mxu0 %v4333
        %v4582 = vpop.f32.mrf.mxu0
        %v4583 = vadd.f32 0.0, %v4582
        %4584 = vmatmul.f32.gmra.mxu0 %v4336
        %v4585 = vpop.f32.mrf.mxu0
        %v4586 = vadd.f32 0.0, %v4585
        %4587 = vmatmul.f32.gmra.mxu0 %v4339
        %v4588 = vpop.f32.mrf.mxu0
        %v4589 = vadd.f32 0.0, %v4588
        %4590 = vmatmul.f32.gmra.mxu0 %v4342
        %v4591 = vpop.f32.mrf.mxu0
        %v4592 = vadd.f32 0.0, %v4591
        %4593 = vmatmul.f32.gmra.mxu0 %v4345
        %v4594 = vpop.f32.mrf.mxu0
        %v4595 = vadd.f32 0.0, %v4594
        %4596 = vmatmul.f32.gmra.mxu0 %v4348
        %v4597 = vpop.f32.mrf.mxu0
        %v4598 = vadd.f32 0.0, %v4597
        %4599 = vmatmul.f32.gmra.mxu0 %v4351
        %v4600 = vpop.f32.mrf.mxu0
        %v4601 = vadd.f32 0.0, %v4600
        %4602 = vmatmul.f32.gmra.mxu0 %v4354
        %v4603 = vpop.f32.mrf.mxu0
        %v4604 = vadd.f32 0.0, %v4603
        %4605 = vmatmul.f32.gmra.mxu0 %v4357
        %v4606 = vpop.f32.mrf.mxu0
        %v4607 = vadd.f32 0.0, %v4606
        %4608 = vmatmul.f32.gmra.mxu0 %v4360
        %v4609 = vpop.f32.mrf.mxu0
        %v4610 = vadd.f32 0.0, %v4609
        %4611 = vmatmul.f32.gmra.mxu0 %v4363
        %v4612 = vpop.f32.mrf.mxu0
        %v4613 = vadd.f32 0.0, %v4612
        %4614 = vmatmul.f32.gmra.mxu0 %v4366
        %v4615 = vpop.f32.mrf.mxu0
        %v4616 = vadd.f32 0.0, %v4615
        %4617 = vmatmul.f32.gmra.mxu0 %v4369
        %v4618 = vpop.f32.mrf.mxu0
        %v4619 = vadd.f32 0.0, %v4618
        %4620 = vmatmul.f32.gmra.mxu0 %v4372
        %v4621 = vpop.f32.mrf.mxu0
        %v4622 = vadd.f32 0.0, %v4621
        %4623 = vmatmul.f32.gmra.mxu0 %v4375
        %v4624 = vpop.f32.mrf.mxu0
        %v4625 = vadd.f32 0.0, %v4624
        %4626 = vmatmul.f32.gmra.mxu0 %v4378
        %v4627 = vpop.f32.mrf.mxu0
        %v4628 = vadd.f32 0.0, %v4627
        %4629 = vdwg.mxu0
        %4630 = vmatpush.msra.mxu0 %v1031
        %4631 = vmatpush.msra.mxu0 %v1029
        %4632 = vmatpush.msra.mxu0 %v1027
        %4633 = vmatpush.msra.mxu0 %v1025
        %4634 = vmatpush.msra.mxu0 %v1023
        %4635 = vmatpush.msra.mxu0 %v1021
        %4636 = vmatpush.msra.mxu0 %v1019
        %4637 = vmatpush.msra.mxu0 %v1017
        %4638 = vmatpush.msra.mxu0 %v1015
        %4639 = vmatpush.msra.mxu0 %v1013
        %4640 = vmatpush.msra.mxu0 %v1011
        %4641 = vmatpush.msra.mxu0 %v1009
        %4642 = vmatpush.msra.mxu0 %v1007
        %4643 = vmatpush.msra.mxu0 %v1005
        %4644 = vmatpush.msra.mxu0 %v1003
        %4645 = vmatpush.msra.mxu0 %v1001
        %4646 = vmatmul.f32.gmra.mxu0 %v4410
        %v4647 = vpop.f32.mrf.mxu0
        %v4648 = vadd.f32 0.0, %v4647
        %4649 = vmatmul.f32.gmra.mxu0 %v4413
        %v4650 = vpop.f32.mrf.mxu0
        %v4651 = vadd.f32 0.0, %v4650
        %4652 = vmatmul.f32.gmra.mxu0 %v4416
        %v4653 = vpop.f32.mrf.mxu0
        %v4654 = vadd.f32 0.0, %v4653
        %4655 = vmatmul.f32.gmra.mxu0 %v4419
        %v4656 = vpop.f32.mrf.mxu0
        %v4657 = vadd.f32 0.0, %v4656
        %4658 = vdwg.mxu0
        %4659 = vmatpush.msra.mxu0 %v1063
        %4660 = vmatpush.msra.mxu0 %v1061
        %4661 = vmatpush.msra.mxu0 %v1059
        %4662 = vmatpush.msra.mxu0 %v1057
        %4663 = vmatpush.msra.mxu0 %v1055
        %4664 = vmatpush.msra.mxu0 %v1053
        %4665 = vmatpush.msra.mxu0 %v1051
        %4666 = vmatpush.msra.mxu0 %v1049
        %4667 = vmatpush.msra.mxu0 %v1047
        %4668 = vmatpush.msra.mxu0 %v1045
        %4669 = vmatpush.msra.mxu0 %v1043
        %4670 = vmatpush.msra.mxu0 %v1041
        %4671 = vmatpush.msra.mxu0 %v1039
        %4672 = vmatpush.msra.mxu0 %v1037
        %4673 = vmatpush.msra.mxu0 %v1035
        %4674 = vmatpush.msra.mxu0 %v1033
        %4675 = vmatmul.f32.gmra.mxu0 %v4535
        %v4676 = vpop.f32.mrf.mxu0
        %v4677 = vadd.f32 %v4648, %v4676
        %4678 = vmatmul.f32.gmra.mxu0 %v4538
        %v4679 = vpop.f32.mrf.mxu0
        %v4680 = vadd.f32 %v4651, %v4679
        %4681 = vmatmul.f32.gmra.mxu0 %v4541
        %v4682 = vpop.f32.mrf.mxu0
        %v4683 = vadd.f32 %v4654, %v4682
        %4684 = vmatmul.f32.gmra.mxu0 %v4544
        %v4685 = vpop.f32.mrf.mxu0
        %v4686 = vadd.f32 %v4657, %v4685
        %4687 = vdwg.mxu0
        %4688 = vmatpush.msra.mxu0 %v1032
        %4689 = vmatpush.msra.mxu0 %v1030
        %4690 = vmatpush.msra.mxu0 %v1028
        %4691 = vmatpush.msra.mxu0 %v1026
        %4692 = vmatpush.msra.mxu0 %v1024
        %4693 = vmatpush.msra.mxu0 %v1022
        %4694 = vmatpush.msra.mxu0 %v1020
        %4695 = vmatpush.msra.mxu0 %v1018
        %4696 = vmatpush.msra.mxu0 %v1016
        %4697 = vmatpush.msra.mxu0 %v1014
        %4698 = vmatpush.msra.mxu0 %v1012
        %4699 = vmatpush.msra.mxu0 %v1010
        %4700 = vmatpush.msra.mxu0 %v1008
        %4701 = vmatpush.msra.mxu0 %v1006
        %4702 = vmatpush.msra.mxu0 %v1004
        %4703 = vmatpush.msra.mxu0 %v1002
        %4704 = vmatmul.f32.gmra.mxu0 %v4410
        %v4705 = vpop.f32.mrf.mxu0
        %v4706 = vadd.f32 0.0, %v4705
        %4707 = vmatmul.f32.gmra.mxu0 %v4413
        %v4708 = vpop.f32.mrf.mxu0
        %v4709 = vadd.f32 0.0, %v4708
        %4710 = vmatmul.f32.gmra.mxu0 %v4416
        %v4711 = vpop.f32.mrf.mxu0
        %v4712 = vadd.f32 0.0, %v4711
        %4713 = vmatmul.f32.gmra.mxu0 %v4419
        %v4714 = vpop.f32.mrf.mxu0
        %v4715 = vadd.f32 0.0, %v4714
        %4716 = vdwg.mxu0
        %4717 = vmatpush.msra.mxu0 %v1064
        %4718 = vmatpush.msra.mxu0 %v1062
        %4719 = vmatpush.msra.mxu0 %v1060
        %4720 = vmatpush.msra.mxu0 %v1058
        %4721 = vmatpush.msra.mxu0 %v1056
        %4722 = vmatpush.msra.mxu0 %v1054
        %4723 = vmatpush.msra.mxu0 %v1052
        %4724 = vmatpush.msra.mxu0 %v1050
        %4725 = vmatpush.msra.mxu0 %v1048
        %4726 = vmatpush.msra.mxu0 %v1046
        %4727 = vmatpush.msra.mxu0 %v1044
        %4728 = vmatpush.msra.mxu0 %v1042
        %4729 = vmatpush.msra.mxu0 %v1040
        %4730 = vmatpush.msra.mxu0 %v1038
        %4731 = vmatpush.msra.mxu0 %v1036
        %4732 = vmatpush.msra.mxu0 %v1034
        %4733 = vmatmul.f32.gmra.mxu0 %v4535
        %v4734 = vpop.f32.mrf.mxu0
        %v4735 = vadd.f32 %v4706, %v4734
        %4736 = vmatmul.f32.gmra.mxu0 %v4538
        %v4737 = vpop.f32.mrf.mxu0
        %v4738 = vadd.f32 %v4709, %v4737
        %4739 = vmatmul.f32.gmra.mxu0 %v4541
        %v4740 = vpop.f32.mrf.mxu0
        %v4741 = vadd.f32 %v4712, %v4740
        %4742 = vmatmul.f32.gmra.mxu0 %v4544
        %v4743 = vpop.f32.mrf.mxu0
        %v4744 = vadd.f32 %v4715, %v4743
        %4745 = vdwg.mxu0
        %4746 = vmatpush.msra.mxu0 %v966
        %4747 = vmatpush.msra.mxu0 %v964
        %4748 = vmatpush.msra.mxu0 %v962
        %4749 = vmatpush.msra.mxu0 %v960
        %4750 = vmatpush.msra.mxu0 %v958
        %4751 = vmatpush.msra.mxu0 %v956
        %4752 = vmatpush.msra.mxu0 %v954
        %4753 = vmatpush.msra.mxu0 %v952
        %4754 = vmatpush.msra.mxu0 %v950
        %4755 = vmatpush.msra.mxu0 %v948
        %4756 = vmatpush.msra.mxu0 %v946
        %4757 = vmatpush.msra.mxu0 %v944
        %4758 = vmatpush.msra.mxu0 %v942
        %4759 = vmatpush.msra.mxu0 %v940
        %4760 = vmatpush.msra.mxu0 %v938
        %4761 = vmatpush.msra.mxu0 %v936
        %4762 = vmatmul.f32.gmra.mxu0 %v4398
        %v4763 = vpop.f32.mrf.mxu0
        %v4764 = vadd.f32 %v4677, %v4763
        %4765 = vmatmul.f32.gmra.mxu0 %v4401
        %v4766 = vpop.f32.mrf.mxu0
        %v4767 = vadd.f32 %v4680, %v4766
        %4768 = vmatmul.f32.gmra.mxu0 %v4404
        %v4769 = vpop.f32.mrf.mxu0
        %v4770 = vadd.f32 %v4683, %v4769
        %4771 = vmatmul.f32.gmra.mxu0 %v4407
        %v4772 = vpop.f32.mrf.mxu0
        %v4773 = vadd.f32 %v4686, %v4772
        %4774 = vdwg.mxu0
        %4775 = vmatpush.msra.mxu0 %v998
        %4776 = vmatpush.msra.mxu0 %v996
        %4777 = vmatpush.msra.mxu0 %v994
        %4778 = vmatpush.msra.mxu0 %v992
        %4779 = vmatpush.msra.mxu0 %v990
        %4780 = vmatpush.msra.mxu0 %v988
        %4781 = vmatpush.msra.mxu0 %v986
        %4782 = vmatpush.msra.mxu0 %v984
        %4783 = vmatpush.msra.mxu0 %v982
        %4784 = vmatpush.msra.mxu0 %v980
        %4785 = vmatpush.msra.mxu0 %v978
        %4786 = vmatpush.msra.mxu0 %v976
        %4787 = vmatpush.msra.mxu0 %v974
        %4788 = vmatpush.msra.mxu0 %v972
        %4789 = vmatpush.msra.mxu0 %v970
        %4790 = vmatpush.msra.mxu0 %v968
        %4791 = vmatmul.f32.gmra.mxu0 %v4523
        %v4792 = vpop.f32.mrf.mxu0
        %v4793 = vadd.f32 %v4764, %v4792
        %4794 = vmatmul.f32.gmra.mxu0 %v4526
        %v4795 = vpop.f32.mrf.mxu0
        %v4796 = vadd.f32 %v4767, %v4795
        %4797 = vmatmul.f32.gmra.mxu0 %v4529
        %v4798 = vpop.f32.mrf.mxu0
        %v4799 = vadd.f32 %v4770, %v4798
        %4800 = vmatmul.f32.gmra.mxu0 %v4532
        %v4801 = vpop.f32.mrf.mxu0
        %v4802 = vadd.f32 %v4773, %v4801
        %4803 = vdwg.mxu0
        %4804 = vmatpush.msra.mxu0 %v967
        %4805 = vmatpush.msra.mxu0 %v965
        %4806 = vmatpush.msra.mxu0 %v963
        %4807 = vmatpush.msra.mxu0 %v961
        %4808 = vmatpush.msra.mxu0 %v959
        %4809 = vmatpush.msra.mxu0 %v957
        %4810 = vmatpush.msra.mxu0 %v955
        %4811 = vmatpush.msra.mxu0 %v953
        %4812 = vmatpush.msra.mxu0 %v951
        %4813 = vmatpush.msra.mxu0 %v949
        %4814 = vmatpush.msra.mxu0 %v947
        %4815 = vmatpush.msra.mxu0 %v945
        %4816 = vmatpush.msra.mxu0 %v943
        %4817 = vmatpush.msra.mxu0 %v941
        %4818 = vmatpush.msra.mxu0 %v939
        %4819 = vmatpush.msra.mxu0 %v937
        %4820 = vmatmul.f32.gmra.mxu0 %v4398
        %v4821 = vpop.f32.mrf.mxu0
        %v4822 = vadd.f32 %v4735, %v4821
        %4823 = vmatmul.f32.gmra.mxu0 %v4401
        %v4824 = vpop.f32.mrf.mxu0
        %v4825 = vadd.f32 %v4738, %v4824
        %4826 = vmatmul.f32.gmra.mxu0 %v4404
        %v4827 = vpop.f32.mrf.mxu0
        %v4828 = vadd.f32 %v4741, %v4827
        %4829 = vmatmul.f32.gmra.mxu0 %v4407
        %v4830 = vpop.f32.mrf.mxu0
        %v4831 = vadd.f32 %v4744, %v4830
        %4832 = vdwg.mxu0
        %4833 = vmatpush.msra.mxu0 %v999
        %4834 = vmatpush.msra.mxu0 %v997
        %4835 = vmatpush.msra.mxu0 %v995
        %4836 = vmatpush.msra.mxu0 %v993
        %4837 = vmatpush.msra.mxu0 %v991
        %4838 = vmatpush.msra.mxu0 %v989
        %4839 = vmatpush.msra.mxu0 %v987
        %4840 = vmatpush.msra.mxu0 %v985
        %4841 = vmatpush.msra.mxu0 %v983
        %4842 = vmatpush.msra.mxu0 %v981
        %4843 = vmatpush.msra.mxu0 %v979
        %4844 = vmatpush.msra.mxu0 %v977
        %4845 = vmatpush.msra.mxu0 %v975
        %4846 = vmatpush.msra.mxu0 %v973
        %4847 = vmatpush.msra.mxu0 %v971
        %4848 = vmatpush.msra.mxu0 %v969
        %4849 = vmatmul.f32.gmra.mxu0 %v4523
        %v4850 = vpop.f32.mrf.mxu0
        %v4851 = vadd.f32 %v4822, %v4850
        %4852 = vmatmul.f32.gmra.mxu0 %v4526
        %v4853 = vpop.f32.mrf.mxu0
        %v4854 = vadd.f32 %v4825, %v4853
        %4855 = vmatmul.f32.gmra.mxu0 %v4529
        %v4856 = vpop.f32.mrf.mxu0
        %v4857 = vadd.f32 %v4828, %v4856
        %4858 = vmatmul.f32.gmra.mxu0 %v4532
        %v4859 = vpop.f32.mrf.mxu0
        %v4860 = vadd.f32 %v4831, %v4859
        %4861 = vdwg.mxu0
        %4862 = vmatpush.msra.mxu0 %v1328
        %4863 = vmatpush.msra.mxu0 %v1326
        %4864 = vmatpush.msra.mxu0 %v1324
        %4865 = vmatpush.msra.mxu0 %v1322
        %4866 = vmatpush.msra.mxu0 %v1320
        %4867 = vmatpush.msra.mxu0 %v1318
        %4868 = vmatpush.msra.mxu0 %v1316
        %4869 = vmatpush.msra.mxu0 %v1314
        %4870 = vmatpush.msra.mxu0 %v1312
        %4871 = vmatpush.msra.mxu0 %v1310
        %4872 = vmatpush.msra.mxu0 %v1308
        %4873 = vmatpush.msra.mxu0 %v1306
        %4874 = vmatpush.msra.mxu0 %v1304
        %4875 = vmatpush.msra.mxu0 %v1302
        %4876 = vmatpush.msra.mxu0 %v1300
        %4877 = vmatpush.msra.mxu0 %v1298
        %4878 = vmatmul.f32.gmra.mxu0 %v4422
        %v4879 = vpop.f32.mrf.mxu0
        %v4880 = vadd.f32 0.0, %v4879
        %4881 = vmatmul.f32.gmra.mxu0 %v4425
        %v4882 = vpop.f32.mrf.mxu0
        %v4883 = vadd.f32 0.0, %v4882
        %4884 = vmatmul.f32.gmra.mxu0 %v4428
        %v4885 = vpop.f32.mrf.mxu0
        %v4886 = vadd.f32 0.0, %v4885
        %4887 = vmatmul.f32.gmra.mxu0 %v4431
        %v4888 = vpop.f32.mrf.mxu0
        %v4889 = vadd.f32 0.0, %v4888
        %4890 = vdwg.mxu0
        %4891 = vmatpush.msra.mxu0 %v1360
        %4892 = vmatpush.msra.mxu0 %v1358
        %4893 = vmatpush.msra.mxu0 %v1356
        %4894 = vmatpush.msra.mxu0 %v1354
        %4895 = vmatpush.msra.mxu0 %v1352
        %4896 = vmatpush.msra.mxu0 %v1350
        %4897 = vmatpush.msra.mxu0 %v1348
        %4898 = vmatpush.msra.mxu0 %v1346
        %4899 = vmatpush.msra.mxu0 %v1344
        %4900 = vmatpush.msra.mxu0 %v1342
        %4901 = vmatpush.msra.mxu0 %v1340
        %4902 = vmatpush.msra.mxu0 %v1338
        %4903 = vmatpush.msra.mxu0 %v1336
        %4904 = vmatpush.msra.mxu0 %v1334
        %4905 = vmatpush.msra.mxu0 %v1332
        %4906 = vmatpush.msra.mxu0 %v1330
        %4907 = vmatmul.f32.gmra.mxu0 %v4547
        %v4908 = vpop.f32.mrf.mxu0
        %v4909 = vadd.f32 %v4880, %v4908
        %4910 = vmatmul.f32.gmra.mxu0 %v4550
        %v4911 = vpop.f32.mrf.mxu0
        %v4912 = vadd.f32 %v4883, %v4911
        %4913 = vmatmul.f32.gmra.mxu0 %v4553
        %v4914 = vpop.f32.mrf.mxu0
        %v4915 = vadd.f32 %v4886, %v4914
        %4916 = vmatmul.f32.gmra.mxu0 %v4556
        %v4917 = vpop.f32.mrf.mxu0
        %v4918 = vadd.f32 %v4889, %v4917
        %4919 = vdwg.mxu0
        %4920 = vmatpush.msra.mxu0 %v1329
        %4921 = vmatpush.msra.mxu0 %v1327
        %4922 = vmatpush.msra.mxu0 %v1325
        %4923 = vmatpush.msra.mxu0 %v1323
        %4924 = vmatpush.msra.mxu0 %v1321
        %4925 = vmatpush.msra.mxu0 %v1319
        %4926 = vmatpush.msra.mxu0 %v1317
        %4927 = vmatpush.msra.mxu0 %v1315
        %4928 = vmatpush.msra.mxu0 %v1313
        %4929 = vmatpush.msra.mxu0 %v1311
        %4930 = vmatpush.msra.mxu0 %v1309
        %4931 = vmatpush.msra.mxu0 %v1307
        %4932 = vmatpush.msra.mxu0 %v1305
        %4933 = vmatpush.msra.mxu0 %v1303
        %4934 = vmatpush.msra.mxu0 %v1301
        %4935 = vmatpush.msra.mxu0 %v1299
        %4936 = vmatmul.f32.gmra.mxu0 %v4422
        %v4937 = vpop.f32.mrf.mxu0
        %v4938 = vadd.f32 0.0, %v4937
        %4939 = vmatmul.f32.gmra.mxu0 %v4425
        %v4940 = vpop.f32.mrf.mxu0
        %v4941 = vadd.f32 0.0, %v4940
        %4942 = vmatmul.f32.gmra.mxu0 %v4428
        %v4943 = vpop.f32.mrf.mxu0
        %v4944 = vadd.f32 0.0, %v4943
        %4945 = vmatmul.f32.gmra.mxu0 %v4431
        %v4946 = vpop.f32.mrf.mxu0
        %v4947 = vadd.f32 0.0, %v4946
        %4948 = vdwg.mxu0
        %4949 = vmatpush.msra.mxu0 %v1361
        %4950 = vmatpush.msra.mxu0 %v1359
        %4951 = vmatpush.msra.mxu0 %v1357
        %4952 = vmatpush.msra.mxu0 %v1355
        %4953 = vmatpush.msra.mxu0 %v1353
        %4954 = vmatpush.msra.mxu0 %v1351
        %4955 = vmatpush.msra.mxu0 %v1349
        %4956 = vmatpush.msra.mxu0 %v1347
        %4957 = vmatpush.msra.mxu0 %v1345
        %4958 = vmatpush.msra.mxu0 %v1343
        %4959 = vmatpush.msra.mxu0 %v1341
        %4960 = vmatpush.msra.mxu0 %v1339
        %4961 = vmatpush.msra.mxu0 %v1337
        %4962 = vmatpush.msra.mxu0 %v1335
        %4963 = vmatpush.msra.mxu0 %v1333
        %4964 = vmatpush.msra.mxu0 %v1331
        %4965 = vmatmul.f32.gmra.mxu0 %v4547
        %v4966 = vpop.f32.mrf.mxu0
        %v4967 = vadd.f32 %v4938, %v4966
        %4968 = vmatmul.f32.gmra.mxu0 %v4550
        %v4969 = vpop.f32.mrf.mxu0
        %v4970 = vadd.f32 %v4941, %v4969
        %4971 = vmatmul.f32.gmra.mxu0 %v4553
        %v4972 = vpop.f32.mrf.mxu0
        %v4973 = vadd.f32 %v4944, %v4972
        %4974 = vmatmul.f32.gmra.mxu0 %v4556
        %v4975 = vpop.f32.mrf.mxu0
        %v4976 = vadd.f32 %v4947, %v4975
        %4977 = vdwg.mxu0
        %v4978 = vadd.f32 %v4793, %v4909
        %v4979 = vadd.f32 %v4851, %v4967
        %v4980 = vadd.f32 %v4796, %v4912
        %v4981 = vadd.f32 %v4854, %v4970
        %v4982 = vadd.f32 %v4799, %v4915
        %v4983 = vadd.f32 %v4857, %v4973
        %v4984 = vadd.f32 %v4802, %v4918
        %v4985 = vadd.f32 %v4860, %v4976
        %4986 = vmatpush.msra.mxu0 %v1517
        %4987 = vmatpush.msra.mxu0 %v1515
        %4988 = vmatpush.msra.mxu0 %v1513
        %4989 = vmatpush.msra.mxu0 %v1511
        %4990 = vmatpush.msra.mxu0 %v1509
        %4991 = vmatpush.msra.mxu0 %v1507
        %4992 = vmatpush.msra.mxu0 %v1505
        %4993 = vmatpush.msra.mxu0 %v1503
        %4994 = vmatpush.msra.mxu0 %v1501
        %4995 = vmatpush.msra.mxu0 %v1499
        %4996 = vmatpush.msra.mxu0 %v1497
        %4997 = vmatpush.msra.mxu0 %v1495
        %4998 = vmatpush.msra.mxu0 %v1493
        %4999 = vmatpush.msra.mxu0 %v1491
        %5000 = vmatpush.msra.mxu0 %v1489
        %5001 = vmatpush.msra.mxu0 %v1487
        %5002 = vmatmul.f32.gmra.mxu0 %v4434
        %v5003 = vpop.f32.mrf.mxu0
        %v5004 = vadd.f32 0.0, %v5003
        %5005 = vmatmul.f32.gmra.mxu0 %v4437
        %v5006 = vpop.f32.mrf.mxu0
        %v5007 = vadd.f32 0.0, %v5006
        %5008 = vmatmul.f32.gmra.mxu0 %v4440
        %v5009 = vpop.f32.mrf.mxu0
        %v5010 = vadd.f32 0.0, %v5009
        %5011 = vmatmul.f32.gmra.mxu0 %v4443
        %v5012 = vpop.f32.mrf.mxu0
        %v5013 = vadd.f32 0.0, %v5012
        %5014 = vdwg.mxu0
        %5015 = vmatpush.msra.mxu0 %v1549
        %5016 = vmatpush.msra.mxu0 %v1547
        %5017 = vmatpush.msra.mxu0 %v1545
        %5018 = vmatpush.msra.mxu0 %v1543
        %5019 = vmatpush.msra.mxu0 %v1541
        %5020 = vmatpush.msra.mxu0 %v1539
        %5021 = vmatpush.msra.mxu0 %v1537
        %5022 = vmatpush.msra.mxu0 %v1535
        %5023 = vmatpush.msra.mxu0 %v1533
        %5024 = vmatpush.msra.mxu0 %v1531
        %5025 = vmatpush.msra.mxu0 %v1529
        %5026 = vmatpush.msra.mxu0 %v1527
        %5027 = vmatpush.msra.mxu0 %v1525
        %5028 = vmatpush.msra.mxu0 %v1523
        %5029 = vmatpush.msra.mxu0 %v1521
        %5030 = vmatpush.msra.mxu0 %v1519
        %5031 = vmatmul.f32.gmra.mxu0 %v4559
        %v5032 = vpop.f32.mrf.mxu0
        %v5033 = vadd.f32 %v5004, %v5032
        %5034 = vmatmul.f32.gmra.mxu0 %v4562
        %v5035 = vpop.f32.mrf.mxu0
        %v5036 = vadd.f32 %v5007, %v5035
        %5037 = vmatmul.f32.gmra.mxu0 %v4565
        %v5038 = vpop.f32.mrf.mxu0
        %v5039 = vadd.f32 %v5010, %v5038
        %5040 = vmatmul.f32.gmra.mxu0 %v4568
        %v5041 = vpop.f32.mrf.mxu0
        %v5042 = vadd.f32 %v5013, %v5041
        %5043 = vdwg.mxu0
        %5044 = vmatpush.msra.mxu0 %v1518
        %5045 = vmatpush.msra.mxu0 %v1516
        %5046 = vmatpush.msra.mxu0 %v1514
        %5047 = vmatpush.msra.mxu0 %v1512
        %5048 = vmatpush.msra.mxu0 %v1510
        %5049 = vmatpush.msra.mxu0 %v1508
        %5050 = vmatpush.msra.mxu0 %v1506
        %5051 = vmatpush.msra.mxu0 %v1504
        %5052 = vmatpush.msra.mxu0 %v1502
        %5053 = vmatpush.msra.mxu0 %v1500
        %5054 = vmatpush.msra.mxu0 %v1498
        %5055 = vmatpush.msra.mxu0 %v1496
        %5056 = vmatpush.msra.mxu0 %v1494
        %5057 = vmatpush.msra.mxu0 %v1492
        %5058 = vmatpush.msra.mxu0 %v1490
        %5059 = vmatpush.msra.mxu0 %v1488
        %5060 = vmatmul.f32.gmra.mxu0 %v4434
        %v5061 = vpop.f32.mrf.mxu0
        %v5062 = vadd.f32 0.0, %v5061
        %5063 = vmatmul.f32.gmra.mxu0 %v4437
        %v5064 = vpop.f32.mrf.mxu0
        %v5065 = vadd.f32 0.0, %v5064
        %5066 = vmatmul.f32.gmra.mxu0 %v4440
        %v5067 = vpop.f32.mrf.mxu0
        %v5068 = vadd.f32 0.0, %v5067
        %5069 = vmatmul.f32.gmra.mxu0 %v4443
        %v5070 = vpop.f32.mrf.mxu0
        %v5071 = vadd.f32 0.0, %v5070
        %5072 = vdwg.mxu0
        %5073 = vmatpush.msra.mxu0 %v1550
        %5074 = vmatpush.msra.mxu0 %v1548
        %5075 = vmatpush.msra.mxu0 %v1546
        %5076 = vmatpush.msra.mxu0 %v1544
        %5077 = vmatpush.msra.mxu0 %v1542
        %5078 = vmatpush.msra.mxu0 %v1540
        %5079 = vmatpush.msra.mxu0 %v1538
        %5080 = vmatpush.msra.mxu0 %v1536
        %5081 = vmatpush.msra.mxu0 %v1534
        %5082 = vmatpush.msra.mxu0 %v1532
        %5083 = vmatpush.msra.mxu0 %v1530
        %5084 = vmatpush.msra.mxu0 %v1528
        %5085 = vmatpush.msra.mxu0 %v1526
        %5086 = vmatpush.msra.mxu0 %v1524
        %5087 = vmatpush.msra.mxu0 %v1522
        %5088 = vmatpush.msra.mxu0 %v1520
        %5089 = vmatmul.f32.gmra.mxu0 %v4559
        %v5090 = vpop.f32.mrf.mxu0
        %v5091 = vadd.f32 %v5062, %v5090
        %5092 = vmatmul.f32.gmra.mxu0 %v4562
        %v5093 = vpop.f32.mrf.mxu0
        %v5094 = vadd.f32 %v5065, %v5093
        %5095 = vmatmul.f32.gmra.mxu0 %v4565
        %v5096 = vpop.f32.mrf.mxu0
        %v5097 = vadd.f32 %v5068, %v5096
        %5098 = vmatmul.f32.gmra.mxu0 %v4568
        %v5099 = vpop.f32.mrf.mxu0
        %v5100 = vadd.f32 %v5071, %v5099
        %5101 = vdwg.mxu0
        %v5102 = vadd.f32 %v4978, %v5033
        %v5103 = vadd.f32 %v4979, %v5091
        %v5104 = vadd.f32 %v4980, %v5036
        %v5105 = vadd.f32 %v4981, %v5094
        %v5106 = vadd.f32 %v4982, %v5039
        %v5107 = vadd.f32 %v4983, %v5097
        %v5108 = vadd.f32 %v4984, %v5042
        %v5109 = vadd.f32 %v4985, %v5100
        %5110 = vmatpush.msra.mxu0 %v1706
        %5111 = vmatpush.msra.mxu0 %v1704
        %5112 = vmatpush.msra.mxu0 %v1702
        %5113 = vmatpush.msra.mxu0 %v1700
        %5114 = vmatpush.msra.mxu0 %v1698
        %5115 = vmatpush.msra.mxu0 %v1696
        %5116 = vmatpush.msra.mxu0 %v1694
        %5117 = vmatpush.msra.mxu0 %v1692
        %5118 = vmatpush.msra.mxu0 %v1690
        %5119 = vmatpush.msra.mxu0 %v1688
        %5120 = vmatpush.msra.mxu0 %v1686
        %5121 = vmatpush.msra.mxu0 %v1684
        %5122 = vmatpush.msra.mxu0 %v1682
        %5123 = vmatpush.msra.mxu0 %v1680
        %5124 = vmatpush.msra.mxu0 %v1678
        %5125 = vmatpush.msra.mxu0 %v1676
        %5126 = vmatmul.f32.gmra.mxu0 %v4446
        %v5127 = vpop.f32.mrf.mxu0
        %v5128 = vadd.f32 0.0, %v5127
        %5129 = vmatmul.f32.gmra.mxu0 %v4449
        %v5130 = vpop.f32.mrf.mxu0
        %v5131 = vadd.f32 0.0, %v5130
        %5132 = vmatmul.f32.gmra.mxu0 %v4452
        %v5133 = vpop.f32.mrf.mxu0
        %v5134 = vadd.f32 0.0, %v5133
        %5135 = vmatmul.f32.gmra.mxu0 %v4455
        %v5136 = vpop.f32.mrf.mxu0
        %v5137 = vadd.f32 0.0, %v5136
        %5138 = vdwg.mxu0
        %5139 = vmatpush.msra.mxu0 %v1738
        %5140 = vmatpush.msra.mxu0 %v1736
        %5141 = vmatpush.msra.mxu0 %v1734
        %5142 = vmatpush.msra.mxu0 %v1732
        %5143 = vmatpush.msra.mxu0 %v1730
        %5144 = vmatpush.msra.mxu0 %v1728
        %5145 = vmatpush.msra.mxu0 %v1726
        %5146 = vmatpush.msra.mxu0 %v1724
        %5147 = vmatpush.msra.mxu0 %v1722
        %5148 = vmatpush.msra.mxu0 %v1720
        %5149 = vmatpush.msra.mxu0 %v1718
        %5150 = vmatpush.msra.mxu0 %v1716
        %5151 = vmatpush.msra.mxu0 %v1714
        %5152 = vmatpush.msra.mxu0 %v1712
        %5153 = vmatpush.msra.mxu0 %v1710
        %5154 = vmatpush.msra.mxu0 %v1708
        %5155 = vmatmul.f32.gmra.mxu0 %v4571
        %v5156 = vpop.f32.mrf.mxu0
        %v5157 = vadd.f32 %v5128, %v5156
        %5158 = vmatmul.f32.gmra.mxu0 %v4574
        %v5159 = vpop.f32.mrf.mxu0
        %v5160 = vadd.f32 %v5131, %v5159
        %5161 = vmatmul.f32.gmra.mxu0 %v4577
        %v5162 = vpop.f32.mrf.mxu0
        %v5163 = vadd.f32 %v5134, %v5162
        %5164 = vmatmul.f32.gmra.mxu0 %v4580
        %v5165 = vpop.f32.mrf.mxu0
        %v5166 = vadd.f32 %v5137, %v5165
        %5167 = vdwg.mxu0
        %5168 = vmatpush.msra.mxu0 %v1707
        %5169 = vmatpush.msra.mxu0 %v1705
        %5170 = vmatpush.msra.mxu0 %v1703
        %5171 = vmatpush.msra.mxu0 %v1701
        %5172 = vmatpush.msra.mxu0 %v1699
        %5173 = vmatpush.msra.mxu0 %v1697
        %5174 = vmatpush.msra.mxu0 %v1695
        %5175 = vmatpush.msra.mxu0 %v1693
        %5176 = vmatpush.msra.mxu0 %v1691
        %5177 = vmatpush.msra.mxu0 %v1689
        %5178 = vmatpush.msra.mxu0 %v1687
        %5179 = vmatpush.msra.mxu0 %v1685
        %5180 = vmatpush.msra.mxu0 %v1683
        %5181 = vmatpush.msra.mxu0 %v1681
        %5182 = vmatpush.msra.mxu0 %v1679
        %5183 = vmatpush.msra.mxu0 %v1677
        %5184 = vmatmul.f32.gmra.mxu0 %v4446
        %v5185 = vpop.f32.mrf.mxu0
        %v5186 = vadd.f32 0.0, %v5185
        %5187 = vmatmul.f32.gmra.mxu0 %v4449
        %v5188 = vpop.f32.mrf.mxu0
        %v5189 = vadd.f32 0.0, %v5188
        %5190 = vmatmul.f32.gmra.mxu0 %v4452
        %v5191 = vpop.f32.mrf.mxu0
        %v5192 = vadd.f32 0.0, %v5191
        %5193 = vmatmul.f32.gmra.mxu0 %v4455
        %v5194 = vpop.f32.mrf.mxu0
        %v5195 = vadd.f32 0.0, %v5194
        %5196 = vdwg.mxu0
        %5197 = vmatpush.msra.mxu0 %v1739
        %5198 = vmatpush.msra.mxu0 %v1737
        %5199 = vmatpush.msra.mxu0 %v1735
        %5200 = vmatpush.msra.mxu0 %v1733
        %5201 = vmatpush.msra.mxu0 %v1731
        %5202 = vmatpush.msra.mxu0 %v1729
        %5203 = vmatpush.msra.mxu0 %v1727
        %5204 = vmatpush.msra.mxu0 %v1725
        %5205 = vmatpush.msra.mxu0 %v1723
        %5206 = vmatpush.msra.mxu0 %v1721
        %5207 = vmatpush.msra.mxu0 %v1719
        %5208 = vmatpush.msra.mxu0 %v1717
        %5209 = vmatpush.msra.mxu0 %v1715
        %5210 = vmatpush.msra.mxu0 %v1713
        %5211 = vmatpush.msra.mxu0 %v1711
        %5212 = vmatpush.msra.mxu0 %v1709
        %5213 = vmatmul.f32.gmra.mxu0 %v4571
        %v5214 = vpop.f32.mrf.mxu0
        %v5215 = vadd.f32 %v5186, %v5214
        %5216 = vmatmul.f32.gmra.mxu0 %v4574
        %v5217 = vpop.f32.mrf.mxu0
        %v5218 = vadd.f32 %v5189, %v5217
        %5219 = vmatmul.f32.gmra.mxu0 %v4577
        %v5220 = vpop.f32.mrf.mxu0
        %v5221 = vadd.f32 %v5192, %v5220
        %5222 = vmatmul.f32.gmra.mxu0 %v4580
        %v5223 = vpop.f32.mrf.mxu0
        %v5224 = vadd.f32 %v5195, %v5223
        %5225 = vdwg.mxu0
        %v5226 = vadd.f32 %v5102, %v5157
        %v5227 = vadd.f32 %v5103, %v5215
        %v5228 = vadd.f32 %v5104, %v5160
        %v5229 = vadd.f32 %v5105, %v5218
        %v5230 = vadd.f32 %v5106, %v5163
        %v5231 = vadd.f32 %v5107, %v5221
        %v5232 = vadd.f32 %v5108, %v5166
        %v5233 = vadd.f32 %v5109, %v5224
        %5234 = vmatpush.msra.mxu0 %v1895
        %5235 = vmatpush.msra.mxu0 %v1893
        %5236 = vmatpush.msra.mxu0 %v1891
        %5237 = vmatpush.msra.mxu0 %v1889
        %5238 = vmatpush.msra.mxu0 %v1887
        %5239 = vmatpush.msra.mxu0 %v1885
        %5240 = vmatpush.msra.mxu0 %v1883
        %5241 = vmatpush.msra.mxu0 %v1881
        %5242 = vmatpush.msra.mxu0 %v1879
        %5243 = vmatpush.msra.mxu0 %v1877
        %5244 = vmatpush.msra.mxu0 %v1875
        %5245 = vmatpush.msra.mxu0 %v1873
        %5246 = vmatpush.msra.mxu0 %v1871
        %5247 = vmatpush.msra.mxu0 %v1869
        %5248 = vmatpush.msra.mxu0 %v1867
        %5249 = vmatpush.msra.mxu0 %v1865
        %5250 = vmatmul.f32.gmra.mxu0 %v4458
        %v5251 = vpop.f32.mrf.mxu0
        %v5252 = vadd.f32 0.0, %v5251
        %5253 = vmatmul.f32.gmra.mxu0 %v4461
        %v5254 = vpop.f32.mrf.mxu0
        %v5255 = vadd.f32 0.0, %v5254
        %5256 = vmatmul.f32.gmra.mxu0 %v4464
        %v5257 = vpop.f32.mrf.mxu0
        %v5258 = vadd.f32 0.0, %v5257
        %5259 = vmatmul.f32.gmra.mxu0 %v4467
        %v5260 = vpop.f32.mrf.mxu0
        %v5261 = vadd.f32 0.0, %v5260
        %5262 = vdwg.mxu0
        %5263 = vmatpush.msra.mxu0 %v1927
        %5264 = vmatpush.msra.mxu0 %v1925
        %5265 = vmatpush.msra.mxu0 %v1923
        %5266 = vmatpush.msra.mxu0 %v1921
        %5267 = vmatpush.msra.mxu0 %v1919
        %5268 = vmatpush.msra.mxu0 %v1917
        %5269 = vmatpush.msra.mxu0 %v1915
        %5270 = vmatpush.msra.mxu0 %v1913
        %5271 = vmatpush.msra.mxu0 %v1911
        %5272 = vmatpush.msra.mxu0 %v1909
        %5273 = vmatpush.msra.mxu0 %v1907
        %5274 = vmatpush.msra.mxu0 %v1905
        %5275 = vmatpush.msra.mxu0 %v1903
        %5276 = vmatpush.msra.mxu0 %v1901
        %5277 = vmatpush.msra.mxu0 %v1899
        %5278 = vmatpush.msra.mxu0 %v1897
        %5279 = vmatmul.f32.gmra.mxu0 %v4583
        %v5280 = vpop.f32.mrf.mxu0
        %v5281 = vadd.f32 %v5252, %v5280
        %5282 = vmatmul.f32.gmra.mxu0 %v4586
        %v5283 = vpop.f32.mrf.mxu0
        %v5284 = vadd.f32 %v5255, %v5283
        %5285 = vmatmul.f32.gmra.mxu0 %v4589
        %v5286 = vpop.f32.mrf.mxu0
        %v5287 = vadd.f32 %v5258, %v5286
        %5288 = vmatmul.f32.gmra.mxu0 %v4592
        %v5289 = vpop.f32.mrf.mxu0
        %v5290 = vadd.f32 %v5261, %v5289
        %5291 = vdwg.mxu0
        %5292 = vmatpush.msra.mxu0 %v1896
        %5293 = vmatpush.msra.mxu0 %v1894
        %5294 = vmatpush.msra.mxu0 %v1892
        %5295 = vmatpush.msra.mxu0 %v1890
        %5296 = vmatpush.msra.mxu0 %v1888
        %5297 = vmatpush.msra.mxu0 %v1886
        %5298 = vmatpush.msra.mxu0 %v1884
        %5299 = vmatpush.msra.mxu0 %v1882
        %5300 = vmatpush.msra.mxu0 %v1880
        %5301 = vmatpush.msra.mxu0 %v1878
        %5302 = vmatpush.msra.mxu0 %v1876
        %5303 = vmatpush.msra.mxu0 %v1874
        %5304 = vmatpush.msra.mxu0 %v1872
        %5305 = vmatpush.msra.mxu0 %v1870
        %5306 = vmatpush.msra.mxu0 %v1868
        %5307 = vmatpush.msra.mxu0 %v1866
        %5308 = vmatmul.f32.gmra.mxu0 %v4458
        %v5309 = vpop.f32.mrf.mxu0
        %v5310 = vadd.f32 0.0, %v5309
        %5311 = vmatmul.f32.gmra.mxu0 %v4461
        %v5312 = vpop.f32.mrf.mxu0
        %v5313 = vadd.f32 0.0, %v5312
        %5314 = vmatmul.f32.gmra.mxu0 %v4464
        %v5315 = vpop.f32.mrf.mxu0
        %v5316 = vadd.f32 0.0, %v5315
        %5317 = vmatmul.f32.gmra.mxu0 %v4467
        %v5318 = vpop.f32.mrf.mxu0
        %v5319 = vadd.f32 0.0, %v5318
        %5320 = vdwg.mxu0
        %5321 = vmatpush.msra.mxu0 %v1928
        %5322 = vmatpush.msra.mxu0 %v1926
        %5323 = vmatpush.msra.mxu0 %v1924
        %5324 = vmatpush.msra.mxu0 %v1922
        %5325 = vmatpush.msra.mxu0 %v1920
        %5326 = vmatpush.msra.mxu0 %v1918
        %5327 = vmatpush.msra.mxu0 %v1916
        %5328 = vmatpush.msra.mxu0 %v1914
        %5329 = vmatpush.msra.mxu0 %v1912
        %5330 = vmatpush.msra.mxu0 %v1910
        %5331 = vmatpush.msra.mxu0 %v1908
        %5332 = vmatpush.msra.mxu0 %v1906
        %5333 = vmatpush.msra.mxu0 %v1904
        %5334 = vmatpush.msra.mxu0 %v1902
        %5335 = vmatpush.msra.mxu0 %v1900
        %5336 = vmatpush.msra.mxu0 %v1898
        %5337 = vmatmul.f32.gmra.mxu0 %v4583
        %v5338 = vpop.f32.mrf.mxu0
        %v5339 = vadd.f32 %v5310, %v5338
        %5340 = vmatmul.f32.gmra.mxu0 %v4586
        %v5341 = vpop.f32.mrf.mxu0
        %v5342 = vadd.f32 %v5313, %v5341
        %5343 = vmatmul.f32.gmra.mxu0 %v4589
        %v5344 = vpop.f32.mrf.mxu0
        %v5345 = vadd.f32 %v5316, %v5344
        %5346 = vmatmul.f32.gmra.mxu0 %v4592
        %v5347 = vpop.f32.mrf.mxu0
        %v5348 = vadd.f32 %v5319, %v5347
        %5349 = vdwg.mxu0
        %v5350 = vadd.f32 %v5226, %v5281
        %v5351 = vadd.f32 %v5227, %v5339
        %v5352 = vadd.f32 %v5228, %v5284
        %v5353 = vadd.f32 %v5229, %v5342
        %v5354 = vadd.f32 %v5230, %v5287
        %v5355 = vadd.f32 %v5231, %v5345
        %v5356 = vadd.f32 %v5232, %v5290
        %v5357 = vadd.f32 %v5233, %v5348
        %5358 = vmatpush.msra.mxu0 %v2084
        %5359 = vmatpush.msra.mxu0 %v2082
        %5360 = vmatpush.msra.mxu0 %v2080
        %5361 = vmatpush.msra.mxu0 %v2078
        %5362 = vmatpush.msra.mxu0 %v2076
        %5363 = vmatpush.msra.mxu0 %v2074
        %5364 = vmatpush.msra.mxu0 %v2072
        %5365 = vmatpush.msra.mxu0 %v2070
        %5366 = vmatpush.msra.mxu0 %v2068
        %5367 = vmatpush.msra.mxu0 %v2066
        %5368 = vmatpush.msra.mxu0 %v2064
        %5369 = vmatpush.msra.mxu0 %v2062
        %5370 = vmatpush.msra.mxu0 %v2060
        %5371 = vmatpush.msra.mxu0 %v2058
        %5372 = vmatpush.msra.mxu0 %v2056
        %5373 = vmatpush.msra.mxu0 %v2054
        %5374 = vmatmul.f32.gmra.mxu0 %v4470
        %v5375 = vpop.f32.mrf.mxu0
        %v5376 = vadd.f32 0.0, %v5375
        %5377 = vmatmul.f32.gmra.mxu0 %v4473
        %v5378 = vpop.f32.mrf.mxu0
        %v5379 = vadd.f32 0.0, %v5378
        %5380 = vmatmul.f32.gmra.mxu0 %v4476
        %v5381 = vpop.f32.mrf.mxu0
        %v5382 = vadd.f32 0.0, %v5381
        %5383 = vmatmul.f32.gmra.mxu0 %v4479
        %v5384 = vpop.f32.mrf.mxu0
        %v5385 = vadd.f32 0.0, %v5384
        %5386 = vdwg.mxu0
        %5387 = vmatpush.msra.mxu0 %v2116
        %5388 = vmatpush.msra.mxu0 %v2114
        %5389 = vmatpush.msra.mxu0 %v2112
        %5390 = vmatpush.msra.mxu0 %v2110
        %5391 = vmatpush.msra.mxu0 %v2108
        %5392 = vmatpush.msra.mxu0 %v2106
        %5393 = vmatpush.msra.mxu0 %v2104
        %5394 = vmatpush.msra.mxu0 %v2102
        %5395 = vmatpush.msra.mxu0 %v2100
        %5396 = vmatpush.msra.mxu0 %v2098
        %5397 = vmatpush.msra.mxu0 %v2096
        %5398 = vmatpush.msra.mxu0 %v2094
        %5399 = vmatpush.msra.mxu0 %v2092
        %5400 = vmatpush.msra.mxu0 %v2090
        %5401 = vmatpush.msra.mxu0 %v2088
        %5402 = vmatpush.msra.mxu0 %v2086
        %5403 = vmatmul.f32.gmra.mxu0 %v4595
        %v5404 = vpop.f32.mrf.mxu0
        %v5405 = vadd.f32 %v5376, %v5404
        %5406 = vmatmul.f32.gmra.mxu0 %v4598
        %v5407 = vpop.f32.mrf.mxu0
        %v5408 = vadd.f32 %v5379, %v5407
        %5409 = vmatmul.f32.gmra.mxu0 %v4601
        %v5410 = vpop.f32.mrf.mxu0
        %v5411 = vadd.f32 %v5382, %v5410
        %5412 = vmatmul.f32.gmra.mxu0 %v4604
        %v5413 = vpop.f32.mrf.mxu0
        %v5414 = vadd.f32 %v5385, %v5413
        %5415 = vdwg.mxu0
        %5416 = vmatpush.msra.mxu0 %v2085
        %5417 = vmatpush.msra.mxu0 %v2083
        %5418 = vmatpush.msra.mxu0 %v2081
        %5419 = vmatpush.msra.mxu0 %v2079
        %5420 = vmatpush.msra.mxu0 %v2077
        %5421 = vmatpush.msra.mxu0 %v2075
        %5422 = vmatpush.msra.mxu0 %v2073
        %5423 = vmatpush.msra.mxu0 %v2071
        %5424 = vmatpush.msra.mxu0 %v2069
        %5425 = vmatpush.msra.mxu0 %v2067
        %5426 = vmatpush.msra.mxu0 %v2065
        %5427 = vmatpush.msra.mxu0 %v2063
        %5428 = vmatpush.msra.mxu0 %v2061
        %5429 = vmatpush.msra.mxu0 %v2059
        %5430 = vmatpush.msra.mxu0 %v2057
        %5431 = vmatpush.msra.mxu0 %v2055
        %5432 = vmatmul.f32.gmra.mxu0 %v4470
        %v5433 = vpop.f32.mrf.mxu0
        %v5434 = vadd.f32 0.0, %v5433
        %5435 = vmatmul.f32.gmra.mxu0 %v4473
        %v5436 = vpop.f32.mrf.mxu0
        %v5437 = vadd.f32 0.0, %v5436
        %5438 = vmatmul.f32.gmra.mxu0 %v4476
        %v5439 = vpop.f32.mrf.mxu0
        %v5440 = vadd.f32 0.0, %v5439
        %5441 = vmatmul.f32.gmra.mxu0 %v4479
        %v5442 = vpop.f32.mrf.mxu0
        %v5443 = vadd.f32 0.0, %v5442
        %5444 = vdwg.mxu0
        %5445 = vmatpush.msra.mxu0 %v2117
        %5446 = vmatpush.msra.mxu0 %v2115
        %5447 = vmatpush.msra.mxu0 %v2113
        %5448 = vmatpush.msra.mxu0 %v2111
        %5449 = vmatpush.msra.mxu0 %v2109
        %5450 = vmatpush.msra.mxu0 %v2107
        %5451 = vmatpush.msra.mxu0 %v2105
        %5452 = vmatpush.msra.mxu0 %v2103
        %5453 = vmatpush.msra.mxu0 %v2101
        %5454 = vmatpush.msra.mxu0 %v2099
        %5455 = vmatpush.msra.mxu0 %v2097
        %5456 = vmatpush.msra.mxu0 %v2095
        %5457 = vmatpush.msra.mxu0 %v2093
        %5458 = vmatpush.msra.mxu0 %v2091
        %5459 = vmatpush.msra.mxu0 %v2089
        %5460 = vmatpush.msra.mxu0 %v2087
        %5461 = vmatmul.f32.gmra.mxu0 %v4595
        %v5462 = vpop.f32.mrf.mxu0
        %v5463 = vadd.f32 %v5434, %v5462
        %5464 = vmatmul.f32.gmra.mxu0 %v4598
        %v5465 = vpop.f32.mrf.mxu0
        %v5466 = vadd.f32 %v5437, %v5465
        %5467 = vmatmul.f32.gmra.mxu0 %v4601
        %v5468 = vpop.f32.mrf.mxu0
        %v5469 = vadd.f32 %v5440, %v5468
        %5470 = vmatmul.f32.gmra.mxu0 %v4604
        %v5471 = vpop.f32.mrf.mxu0
        %v5472 = vadd.f32 %v5443, %v5471
        %5473 = vdwg.mxu0
        %v5474 = vadd.f32 %v5350, %v5405
        %v5475 = vadd.f32 %v5351, %v5463
        %v5476 = vadd.f32 %v5352, %v5408
        %v5477 = vadd.f32 %v5353, %v5466
        %v5478 = vadd.f32 %v5354, %v5411
        %v5479 = vadd.f32 %v5355, %v5469
        %v5480 = vadd.f32 %v5356, %v5414
        %v5481 = vadd.f32 %v5357, %v5472
        %5482 = vmatpush.msra.mxu0 %v2273
        %5483 = vmatpush.msra.mxu0 %v2271
        %5484 = vmatpush.msra.mxu0 %v2269
        %5485 = vmatpush.msra.mxu0 %v2267
        %5486 = vmatpush.msra.mxu0 %v2265
        %5487 = vmatpush.msra.mxu0 %v2263
        %5488 = vmatpush.msra.mxu0 %v2261
        %5489 = vmatpush.msra.mxu0 %v2259
        %5490 = vmatpush.msra.mxu0 %v2257
        %5491 = vmatpush.msra.mxu0 %v2255
        %5492 = vmatpush.msra.mxu0 %v2253
        %5493 = vmatpush.msra.mxu0 %v2251
        %5494 = vmatpush.msra.mxu0 %v2249
        %5495 = vmatpush.msra.mxu0 %v2247
        %5496 = vmatpush.msra.mxu0 %v2245
        %5497 = vmatpush.msra.mxu0 %v2243
        %5498 = vmatmul.f32.gmra.mxu0 %v4482
        %v5499 = vpop.f32.mrf.mxu0
        %v5500 = vadd.f32 0.0, %v5499
        %5501 = vmatmul.f32.gmra.mxu0 %v4485
        %v5502 = vpop.f32.mrf.mxu0
        %v5503 = vadd.f32 0.0, %v5502
        %5504 = vmatmul.f32.gmra.mxu0 %v4488
        %v5505 = vpop.f32.mrf.mxu0
        %v5506 = vadd.f32 0.0, %v5505
        %5507 = vmatmul.f32.gmra.mxu0 %v4491
        %v5508 = vpop.f32.mrf.mxu0
        %v5509 = vadd.f32 0.0, %v5508
        %5510 = vdwg.mxu0
        %5511 = vmatpush.msra.mxu0 %v2305
        %5512 = vmatpush.msra.mxu0 %v2303
        %5513 = vmatpush.msra.mxu0 %v2301
        %5514 = vmatpush.msra.mxu0 %v2299
        %5515 = vmatpush.msra.mxu0 %v2297
        %5516 = vmatpush.msra.mxu0 %v2295
        %5517 = vmatpush.msra.mxu0 %v2293
        %5518 = vmatpush.msra.mxu0 %v2291
        %5519 = vmatpush.msra.mxu0 %v2289
        %5520 = vmatpush.msra.mxu0 %v2287
        %5521 = vmatpush.msra.mxu0 %v2285
        %5522 = vmatpush.msra.mxu0 %v2283
        %5523 = vmatpush.msra.mxu0 %v2281
        %5524 = vmatpush.msra.mxu0 %v2279
        %5525 = vmatpush.msra.mxu0 %v2277
        %5526 = vmatpush.msra.mxu0 %v2275
        %5527 = vmatmul.f32.gmra.mxu0 %v4607
        %v5528 = vpop.f32.mrf.mxu0
        %v5529 = vadd.f32 %v5500, %v5528
        %5530 = vmatmul.f32.gmra.mxu0 %v4610
        %v5531 = vpop.f32.mrf.mxu0
        %v5532 = vadd.f32 %v5503, %v5531
        %5533 = vmatmul.f32.gmra.mxu0 %v4613
        %v5534 = vpop.f32.mrf.mxu0
        %v5535 = vadd.f32 %v5506, %v5534
        %5536 = vmatmul.f32.gmra.mxu0 %v4616
        %v5537 = vpop.f32.mrf.mxu0
        %v5538 = vadd.f32 %v5509, %v5537
        %5539 = vdwg.mxu0
        %5540 = vmatpush.msra.mxu0 %v2274
        %5541 = vmatpush.msra.mxu0 %v2272
        %5542 = vmatpush.msra.mxu0 %v2270
        %5543 = vmatpush.msra.mxu0 %v2268
        %5544 = vmatpush.msra.mxu0 %v2266
        %5545 = vmatpush.msra.mxu0 %v2264
        %5546 = vmatpush.msra.mxu0 %v2262
        %5547 = vmatpush.msra.mxu0 %v2260
        %5548 = vmatpush.msra.mxu0 %v2258
        %5549 = vmatpush.msra.mxu0 %v2256
        %5550 = vmatpush.msra.mxu0 %v2254
        %5551 = vmatpush.msra.mxu0 %v2252
        %5552 = vmatpush.msra.mxu0 %v2250
        %5553 = vmatpush.msra.mxu0 %v2248
        %5554 = vmatpush.msra.mxu0 %v2246
        %5555 = vmatpush.msra.mxu0 %v2244
        %5556 = vmatmul.f32.gmra.mxu0 %v4482
        %v5557 = vpop.f32.mrf.mxu0
        %v5558 = vadd.f32 0.0, %v5557
        %5559 = vmatmul.f32.gmra.mxu0 %v4485
        %v5560 = vpop.f32.mrf.mxu0
        %v5561 = vadd.f32 0.0, %v5560
        %5562 = vmatmul.f32.gmra.mxu0 %v4488
        %v5563 = vpop.f32.mrf.mxu0
        %v5564 = vadd.f32 0.0, %v5563
        %5565 = vmatmul.f32.gmra.mxu0 %v4491
        %v5566 = vpop.f32.mrf.mxu0
        %v5567 = vadd.f32 0.0, %v5566
        %5568 = vdwg.mxu0
        %5569 = vmatpush.msra.mxu0 %v2306
        %5570 = vmatpush.msra.mxu0 %v2304
        %5571 = vmatpush.msra.mxu0 %v2302
        %5572 = vmatpush.msra.mxu0 %v2300
        %5573 = vmatpush.msra.mxu0 %v2298
        %5574 = vmatpush.msra.mxu0 %v2296
        %5575 = vmatpush.msra.mxu0 %v2294
        %5576 = vmatpush.msra.mxu0 %v2292
        %5577 = vmatpush.msra.mxu0 %v2290
        %5578 = vmatpush.msra.mxu0 %v2288
        %5579 = vmatpush.msra.mxu0 %v2286
        %5580 = vmatpush.msra.mxu0 %v2284
        %5581 = vmatpush.msra.mxu0 %v2282
        %5582 = vmatpush.msra.mxu0 %v2280
        %5583 = vmatpush.msra.mxu0 %v2278
        %5584 = vmatpush.msra.mxu0 %v2276
        %5585 = vmatmul.f32.gmra.mxu0 %v4607
        %v5586 = vpop.f32.mrf.mxu0
        %v5587 = vadd.f32 %v5558, %v5586
        %5588 = vmatmul.f32.gmra.mxu0 %v4610
        %v5589 = vpop.f32.mrf.mxu0
        %v5590 = vadd.f32 %v5561, %v5589
        %5591 = vmatmul.f32.gmra.mxu0 %v4613
        %v5592 = vpop.f32.mrf.mxu0
        %v5593 = vadd.f32 %v5564, %v5592
        %5594 = vmatmul.f32.gmra.mxu0 %v4616
        %v5595 = vpop.f32.mrf.mxu0
        %v5596 = vadd.f32 %v5567, %v5595
        %5597 = vdwg.mxu0
        %v5598 = vadd.f32 %v5474, %v5529
        %v5599 = vadd.f32 %v5475, %v5587
        %v5600 = vadd.f32 %v5476, %v5532
        %v5601 = vadd.f32 %v5477, %v5590
        %v5602 = vadd.f32 %v5478, %v5535
        %v5603 = vadd.f32 %v5479, %v5593
        %v5604 = vadd.f32 %v5480, %v5538
        %v5605 = vadd.f32 %v5481, %v5596
        %5606 = vmatpush.msra.mxu0 %v2462
        %5607 = vmatpush.msra.mxu0 %v2460
        %5608 = vmatpush.msra.mxu0 %v2458
        %5609 = vmatpush.msra.mxu0 %v2456
        %5610 = vmatpush.msra.mxu0 %v2454
        %5611 = vmatpush.msra.mxu0 %v2452
        %5612 = vmatpush.msra.mxu0 %v2450
        %5613 = vmatpush.msra.mxu0 %v2448
        %5614 = vmatpush.msra.mxu0 %v2446
        %5615 = vmatpush.msra.mxu0 %v2444
        %5616 = vmatpush.msra.mxu0 %v2442
        %5617 = vmatpush.msra.mxu0 %v2440
        %5618 = vmatpush.msra.mxu0 %v2438
        %5619 = vmatpush.msra.mxu0 %v2436
        %5620 = vmatpush.msra.mxu0 %v2434
        %5621 = vmatpush.msra.mxu0 %v2432
        %5622 = vmatmul.f32.gmra.mxu0 %v4494
        %v5623 = vpop.f32.mrf.mxu0
        %v5624 = vadd.f32 0.0, %v5623
        %5625 = vmatmul.f32.gmra.mxu0 %v4497
        %v5626 = vpop.f32.mrf.mxu0
        %v5627 = vadd.f32 0.0, %v5626
        %5628 = vmatmul.f32.gmra.mxu0 %v4500
        %v5629 = vpop.f32.mrf.mxu0
        %v5630 = vadd.f32 0.0, %v5629
        %5631 = vmatmul.f32.gmra.mxu0 %v4503
        %v5632 = vpop.f32.mrf.mxu0
        %v5633 = vadd.f32 0.0, %v5632
        %5634 = vdwg.mxu0
        %5635 = vmatpush.msra.mxu0 %v2494
        %5636 = vmatpush.msra.mxu0 %v2492
        %5637 = vmatpush.msra.mxu0 %v2490
        %5638 = vmatpush.msra.mxu0 %v2488
        %5639 = vmatpush.msra.mxu0 %v2486
        %5640 = vmatpush.msra.mxu0 %v2484
        %5641 = vmatpush.msra.mxu0 %v2482
        %5642 = vmatpush.msra.mxu0 %v2480
        %5643 = vmatpush.msra.mxu0 %v2478
        %5644 = vmatpush.msra.mxu0 %v2476
        %5645 = vmatpush.msra.mxu0 %v2474
        %5646 = vmatpush.msra.mxu0 %v2472
        %5647 = vmatpush.msra.mxu0 %v2470
        %5648 = vmatpush.msra.mxu0 %v2468
        %5649 = vmatpush.msra.mxu0 %v2466
        %5650 = vmatpush.msra.mxu0 %v2464
        %5651 = vmatmul.f32.gmra.mxu0 %v4619
        %v5652 = vpop.f32.mrf.mxu0
        %v5653 = vadd.f32 %v5624, %v5652
        %5654 = vmatmul.f32.gmra.mxu0 %v4622
        %v5655 = vpop.f32.mrf.mxu0
        %v5656 = vadd.f32 %v5627, %v5655
        %5657 = vmatmul.f32.gmra.mxu0 %v4625
        %v5658 = vpop.f32.mrf.mxu0
        %v5659 = vadd.f32 %v5630, %v5658
        %5660 = vmatmul.f32.gmra.mxu0 %v4628
        %v5661 = vpop.f32.mrf.mxu0
        %v5662 = vadd.f32 %v5633, %v5661
        %5663 = vdwg.mxu0
        %5664 = vmatpush.msra.mxu0 %v2463
        %5665 = vmatpush.msra.mxu0 %v2461
        %5666 = vmatpush.msra.mxu0 %v2459
        %5667 = vmatpush.msra.mxu0 %v2457
        %5668 = vmatpush.msra.mxu0 %v2455
        %5669 = vmatpush.msra.mxu0 %v2453
        %5670 = vmatpush.msra.mxu0 %v2451
        %5671 = vmatpush.msra.mxu0 %v2449
        %5672 = vmatpush.msra.mxu0 %v2447
        %5673 = vmatpush.msra.mxu0 %v2445
        %5674 = vmatpush.msra.mxu0 %v2443
        %5675 = vmatpush.msra.mxu0 %v2441
        %5676 = vmatpush.msra.mxu0 %v2439
        %5677 = vmatpush.msra.mxu0 %v2437
        %5678 = vmatpush.msra.mxu0 %v2435
        %5679 = vmatpush.msra.mxu0 %v2433
        %5680 = vmatmul.f32.gmra.mxu0 %v4494
        %v5681 = vpop.f32.mrf.mxu0
        %v5682 = vadd.f32 0.0, %v5681
        %5683 = vmatmul.f32.gmra.mxu0 %v4497
        %v5684 = vpop.f32.mrf.mxu0
        %v5685 = vadd.f32 0.0, %v5684
        %5686 = vmatmul.f32.gmra.mxu0 %v4500
        %v5687 = vpop.f32.mrf.mxu0
        %v5688 = vadd.f32 0.0, %v5687
        %5689 = vmatmul.f32.gmra.mxu0 %v4503
        %v5690 = vpop.f32.mrf.mxu0
        %v5691 = vadd.f32 0.0, %v5690
        %5692 = vdwg.mxu0
        %5693 = vmatpush.msra.mxu0 %v2495
        %5694 = vmatpush.msra.mxu0 %v2493
        %5695 = vmatpush.msra.mxu0 %v2491
        %5696 = vmatpush.msra.mxu0 %v2489
        %5697 = vmatpush.msra.mxu0 %v2487
        %5698 = vmatpush.msra.mxu0 %v2485
        %5699 = vmatpush.msra.mxu0 %v2483
        %5700 = vmatpush.msra.mxu0 %v2481
        %5701 = vmatpush.msra.mxu0 %v2479
        %5702 = vmatpush.msra.mxu0 %v2477
        %5703 = vmatpush.msra.mxu0 %v2475
        %5704 = vmatpush.msra.mxu0 %v2473
        %5705 = vmatpush.msra.mxu0 %v2471
        %5706 = vmatpush.msra.mxu0 %v2469
        %5707 = vmatpush.msra.mxu0 %v2467
        %5708 = vmatpush.msra.mxu0 %v2465
        %5709 = vmatmul.f32.gmra.mxu0 %v4619
        %v5710 = vpop.f32.mrf.mxu0
        %v5711 = vadd.f32 %v5682, %v5710
        %5712 = vmatmul.f32.gmra.mxu0 %v4622
        %v5713 = vpop.f32.mrf.mxu0
        %v5714 = vadd.f32 %v5685, %v5713
        %5715 = vmatmul.f32.gmra.mxu0 %v4625
        %v5716 = vpop.f32.mrf.mxu0
        %v5717 = vadd.f32 %v5688, %v5716
        %5718 = vmatmul.f32.gmra.mxu0 %v4628
        %v5719 = vpop.f32.mrf.mxu0
        %v5720 = vadd.f32 %v5691, %v5719
        %5721 = vdwg.mxu0
        %v5722 = vadd.f32 %v5598, %v5653
        %v5723 = vadd.f32 %v5599, %v5711
        %v5724 = vadd.f32 %v5600, %v5656
        %v5725 = vadd.f32 %v5601, %v5714
        %v5726 = vadd.f32 %v5602, %v5659
        %v5727 = vadd.f32 %v5603, %v5717
        %v5728 = vadd.f32 %v5604, %v5662
        %v5729 = vadd.f32 %v5605, %v5720
        %5731 = vset.pattern.permute.xlu0 0
        %5732 = vperm.xlu0 %5731, %v4268
        %v5733 = vpop.permute.xlu0 %5732
        %5736 = vset.pattern.permute.xlu0 0
        %5737 = vperm.xlu0 %5736, %v4269
        %v5738 = vpop.permute.xlu0 %5737
        %5741 = vset.pattern.permute.xlu0 0
        %5742 = vperm.xlu0 %5741, %v4270
        %v5743 = vpop.permute.xlu0 %5742
        %5746 = vset.pattern.permute.xlu0 0
        %5747 = vperm.xlu0 %5746, %v4271
        %v5748 = vpop.permute.xlu0 %5747
        %v5750 = vadd.f32 %v5722, %v5733
        %v5751 = vadd.f32 %v5723, %v5733
        %v5752 = vadd.f32 %v5724, %v5738
        %v5753 = vadd.f32 %v5725, %v5738
        %v5754 = vadd.f32 %v5726, %v5743
        %v5755 = vadd.f32 %v5727, %v5743
        %v5756 = vadd.f32 %v5728, %v5748
        %v5757 = vadd.f32 %v5729, %v5748
        %v5758 = vmax.f32 %v5750, 0.0
        %v5759 = vmax.f32 %v5751, 0.0
        %v5760 = vmax.f32 %v5752, 0.0
        %v5761 = vmax.f32 %v5753, 0.0
        %v5762 = vmax.f32 %v5754, 0.0
        %v5763 = vmax.f32 %v5755, 0.0
        %v5764 = vmax.f32 %v5756, 0.0
        %v5765 = vmax.f32 %v5757, 0.0
        %s5766 = scalar_lea.vmem %s6, 288
        %v5767 = vld [vmem:[%s5766] sm:$0xff]
        %v5768 = vld [vmem:[%s5766 + $0x8] sm:$0xff]
        %v5769 = vld [vmem:[%s5766 + $0x10] sm:$0xff]
        %v5770 = vld [vmem:[%s5766 + $0x18] sm:$0xff]
        %v5771 = vld [vmem:[%s5766 + $0x20] sm:$0xff]
        %v5772 = vld [vmem:[%s5766 + $0x28] sm:$0xff]
        %v5773 = vld [vmem:[%s5766 + $0x30] sm:$0xff]
        %v5774 = vld [vmem:[%s5766 + $0x38] sm:$0xff]
        %v5775 = vld [vmem:[%s5766 + $0x40] sm:$0xff]
        %v5776 = vld [vmem:[%s5766 + $0x48] sm:$0xff]
        %v5777 = vld [vmem:[%s5766 + $0x50] sm:$0xff]
        %v5778 = vld [vmem:[%s5766 + $0x58] sm:$0xff]
        %v5779 = vld [vmem:[%s5766 + $0x60] sm:$0xff]
        %v5780 = vld [vmem:[%s5766 + $0x68] sm:$0xff]
        %v5781 = vld [vmem:[%s5766 + $0x70] sm:$0xff]
        %v5782 = vld [vmem:[%s5766 + $0x78] sm:$0xff]
        %v5783 = vld [vmem:[%s5766 + $0x80] sm:$0xff]
        %v5784 = vld [vmem:[%s5766 + $0x88] sm:$0xff]
        %v5785 = vld [vmem:[%s5766 + $0x90] sm:$0xff]
        %v5786 = vld [vmem:[%s5766 + $0x98] sm:$0xff]
        %v5787 = vld [vmem:[%s5766 + $0xa0] sm:$0xff]
        %v5788 = vld [vmem:[%s5766 + $0xa8] sm:$0xff]
        %v5789 = vld [vmem:[%s5766 + $0xb0] sm:$0xff]
        %v5790 = vld [vmem:[%s5766 + $0xb8] sm:$0xff]
        %v5791 = vld [vmem:[%s5766 + $0xc0] sm:$0xff]
        %v5792 = vld [vmem:[%s5766 + $0xc8] sm:$0xff]
        %v5793 = vld [vmem:[%s5766 + $0xd0] sm:$0xff]
        %v5794 = vld [vmem:[%s5766 + $0xd8] sm:$0xff]
        %v5795 = vld [vmem:[%s5766 + $0xe0] sm:$0xff]
        %v5796 = vld [vmem:[%s5766 + $0xe8] sm:$0xff]
        %v5797 = vld [vmem:[%s5766 + $0xf0] sm:$0xff]
        %v5798 = vld [vmem:[%s5766 + $0xf8] sm:$0xff]
        %v5799 = vld [vmem:[%s5766 + $0x100] sm:$0xff]
        %v5800 = vld [vmem:[%s5766 + $0x108] sm:$0xff]
        %v5801 = vld [vmem:[%s5766 + $0x110] sm:$0xff]
        %v5802 = vld [vmem:[%s5766 + $0x118] sm:$0xff]
        %s5803 = scalar_lea.vmem %s7, 32
        %v5804 = vld [vmem:[%s5803] sm:$0xff]
        %v5805 = vld [vmem:[%s5803 + $0x8] sm:$0xff]
        %v5806 = vld [vmem:[%s5803 + $0x10] sm:$0xff]
        %v5807 = vld [vmem:[%s5803 + $0x18] sm:$0xff]
        %v5809 = vsel %vm577, %v5767, 0
        %v5812 = vsel %vm577, %v5768, 0
        %v5815 = vsel %vm577, %v5769, 0
        %v5818 = vsel %vm577, %v5770, 0
        %v5821 = vsel %vm577, %v5771, 0
        %v5824 = vsel %vm577, %v5772, 0
        %v5827 = vsel %vm577, %v5773, 0
        %v5830 = vsel %vm577, %v5774, 0
        %v5833 = vsel %vm577, %v5775, 0
        %v5836 = vsel %vm577, %v5776, 0
        %v5839 = vsel %vm577, %v5777, 0
        %v5842 = vsel %vm577, %v5778, 0
        %v5845 = vsel %vm577, %v5779, 0
        %v5848 = vsel %vm577, %v5780, 0
        %v5851 = vsel %vm577, %v5781, 0
        %v5854 = vsel %vm577, %v5782, 0
        %v5857 = vsel %vm577, %v5783, 0
        %v5860 = vsel %vm577, %v5784, 0
        %v5863 = vsel %vm577, %v5785, 0
        %v5866 = vsel %vm577, %v5786, 0
        %v5869 = vsel %vm577, %v5787, 0
        %v5872 = vsel %vm577, %v5788, 0
        %v5875 = vsel %vm577, %v5789, 0
        %v5878 = vsel %vm577, %v5790, 0
        %v5881 = vsel %vm577, %v5791, 0
        %v5884 = vsel %vm577, %v5792, 0
        %v5887 = vsel %vm577, %v5793, 0
        %v5890 = vsel %vm577, %v5794, 0
        %v5893 = vsel %vm577, %v5795, 0
        %v5896 = vsel %vm577, %v5796, 0
        %v5899 = vsel %vm577, %v5797, 0
        %v5902 = vsel %vm577, %v5798, 0
        %v5905 = vsel %vm577, %v5799, 0
        %v5908 = vsel %vm577, %v5800, 0
        %v5911 = vsel %vm577, %v5801, 0
        %v5914 = vsel %vm577, %v5802, 0
        %5916 = vmatpush.msra.mxu0 0.0
        %5917 = vmatpush.msra.mxu0 0.0
        %5918 = vmatpush.msra.mxu0 0.0
        %5919 = vmatpush.msra.mxu0 0.0
        %5920 = vmatpush.msra.mxu0 0.0
        %5921 = vmatpush.msra.mxu0 0.0
        %5922 = vmatpush.msra.mxu0 0.0
        %5923 = vmatpush.msra.mxu0 0.0
        %5924 = vmatpush.msra.mxu0 0.0
        %5925 = vmatpush.msra.mxu0 0.0
        %5926 = vmatpush.msra.mxu0 0.0
        %5927 = vmatpush.msra.mxu0 0.0
        %5928 = vmatpush.msra.mxu0 %v5764
        %5929 = vmatpush.msra.mxu0 %v5762
        %5930 = vmatpush.msra.mxu0 %v5760
        %5931 = vmatpush.msra.mxu0 %v5758
        %5932 = vmatmul.f32.gmra.mxu0 %v5809
        %v5933 = vpop.f32.mrf.mxu0
        %v5934 = vadd.f32 0.0, %v5933
        %5935 = vmatmul.f32.gmra.mxu0 %v5812
        %v5936 = vpop.f32.mrf.mxu0
        %v5937 = vadd.f32 0.0, %v5936
        %5938 = vmatmul.f32.gmra.mxu0 %v5815
        %v5939 = vpop.f32.mrf.mxu0
        %v5940 = vadd.f32 0.0, %v5939
        %5941 = vmatmul.f32.gmra.mxu0 %v5818
        %v5942 = vpop.f32.mrf.mxu0
        %v5943 = vadd.f32 0.0, %v5942
        %5944 = vmatmul.f32.gmra.mxu0 %v5821
        %v5945 = vpop.f32.mrf.mxu0
        %v5946 = vadd.f32 0.0, %v5945
        %5947 = vmatmul.f32.gmra.mxu0 %v5824
        %v5948 = vpop.f32.mrf.mxu0
        %v5949 = vadd.f32 0.0, %v5948
        %5950 = vmatmul.f32.gmra.mxu0 %v5827
        %v5951 = vpop.f32.mrf.mxu0
        %v5952 = vadd.f32 0.0, %v5951
        %5953 = vmatmul.f32.gmra.mxu0 %v5830
        %v5954 = vpop.f32.mrf.mxu0
        %v5955 = vadd.f32 0.0, %v5954
        %5956 = vmatmul.f32.gmra.mxu0 %v5833
        %v5957 = vpop.f32.mrf.mxu0
        %v5958 = vadd.f32 0.0, %v5957
        %5959 = vmatmul.f32.gmra.mxu0 %v5836
        %v5960 = vpop.f32.mrf.mxu0
        %v5961 = vadd.f32 0.0, %v5960
        %5962 = vmatmul.f32.gmra.mxu0 %v5839
        %v5963 = vpop.f32.mrf.mxu0
        %v5964 = vadd.f32 0.0, %v5963
        %5965 = vmatmul.f32.gmra.mxu0 %v5842
        %v5966 = vpop.f32.mrf.mxu0
        %v5967 = vadd.f32 0.0, %v5966
        %5968 = vmatmul.f32.gmra.mxu0 %v5845
        %v5969 = vpop.f32.mrf.mxu0
        %v5970 = vadd.f32 0.0, %v5969
        %5971 = vmatmul.f32.gmra.mxu0 %v5848
        %v5972 = vpop.f32.mrf.mxu0
        %v5973 = vadd.f32 0.0, %v5972
        %5974 = vmatmul.f32.gmra.mxu0 %v5851
        %v5975 = vpop.f32.mrf.mxu0
        %v5976 = vadd.f32 0.0, %v5975
        %5977 = vmatmul.f32.gmra.mxu0 %v5854
        %v5978 = vpop.f32.mrf.mxu0
        %v5979 = vadd.f32 0.0, %v5978
        %5980 = vmatmul.f32.gmra.mxu0 %v5857
        %v5981 = vpop.f32.mrf.mxu0
        %v5982 = vadd.f32 0.0, %v5981
        %5983 = vmatmul.f32.gmra.mxu0 %v5860
        %v5984 = vpop.f32.mrf.mxu0
        %v5985 = vadd.f32 0.0, %v5984
        %5986 = vmatmul.f32.gmra.mxu0 %v5863
        %v5987 = vpop.f32.mrf.mxu0
        %v5988 = vadd.f32 0.0, %v5987
        %5989 = vmatmul.f32.gmra.mxu0 %v5866
        %v5990 = vpop.f32.mrf.mxu0
        %v5991 = vadd.f32 0.0, %v5990
        %5992 = vmatmul.f32.gmra.mxu0 %v5869
        %v5993 = vpop.f32.mrf.mxu0
        %v5994 = vadd.f32 0.0, %v5993
        %5995 = vmatmul.f32.gmra.mxu0 %v5872
        %v5996 = vpop.f32.mrf.mxu0
        %v5997 = vadd.f32 0.0, %v5996
        %5998 = vmatmul.f32.gmra.mxu0 %v5875
        %v5999 = vpop.f32.mrf.mxu0
        %v6000 = vadd.f32 0.0, %v5999
        %6001 = vmatmul.f32.gmra.mxu0 %v5878
        %v6002 = vpop.f32.mrf.mxu0
        %v6003 = vadd.f32 0.0, %v6002
        %6004 = vmatmul.f32.gmra.mxu0 %v5881
        %v6005 = vpop.f32.mrf.mxu0
        %v6006 = vadd.f32 0.0, %v6005
        %6007 = vmatmul.f32.gmra.mxu0 %v5884
        %v6008 = vpop.f32.mrf.mxu0
        %v6009 = vadd.f32 0.0, %v6008
        %6010 = vmatmul.f32.gmra.mxu0 %v5887
        %v6011 = vpop.f32.mrf.mxu0
        %v6012 = vadd.f32 0.0, %v6011
        %6013 = vmatmul.f32.gmra.mxu0 %v5890
        %v6014 = vpop.f32.mrf.mxu0
        %v6015 = vadd.f32 0.0, %v6014
        %6016 = vmatmul.f32.gmra.mxu0 %v5893
        %v6017 = vpop.f32.mrf.mxu0
        %v6018 = vadd.f32 0.0, %v6017
        %6019 = vmatmul.f32.gmra.mxu0 %v5896
        %v6020 = vpop.f32.mrf.mxu0
        %v6021 = vadd.f32 0.0, %v6020
        %6022 = vmatmul.f32.gmra.mxu0 %v5899
        %v6023 = vpop.f32.mrf.mxu0
        %v6024 = vadd.f32 0.0, %v6023
        %6025 = vmatmul.f32.gmra.mxu0 %v5902
        %v6026 = vpop.f32.mrf.mxu0
        %v6027 = vadd.f32 0.0, %v6026
        %6028 = vmatmul.f32.gmra.mxu0 %v5905
        %v6029 = vpop.f32.mrf.mxu0
        %v6030 = vadd.f32 0.0, %v6029
        %6031 = vmatmul.f32.gmra.mxu0 %v5908
        %v6032 = vpop.f32.mrf.mxu0
        %v6033 = vadd.f32 0.0, %v6032
        %6034 = vmatmul.f32.gmra.mxu0 %v5911
        %v6035 = vpop.f32.mrf.mxu0
        %v6036 = vadd.f32 0.0, %v6035
        %6037 = vmatmul.f32.gmra.mxu0 %v5914
        %v6038 = vpop.f32.mrf.mxu0
        %v6039 = vadd.f32 0.0, %v6038
        %6040 = vdwg.mxu0
        %6041 = vmatpush.msra.mxu0 0.0
        %6042 = vmatpush.msra.mxu0 0.0
        %6043 = vmatpush.msra.mxu0 0.0
        %6044 = vmatpush.msra.mxu0 0.0
        %6045 = vmatpush.msra.mxu0 0.0
        %6046 = vmatpush.msra.mxu0 0.0
        %6047 = vmatpush.msra.mxu0 0.0
        %6048 = vmatpush.msra.mxu0 0.0
        %6049 = vmatpush.msra.mxu0 0.0
        %6050 = vmatpush.msra.mxu0 0.0
        %6051 = vmatpush.msra.mxu0 0.0
        %6052 = vmatpush.msra.mxu0 0.0
        %6053 = vmatpush.msra.mxu0 %v5765
        %6054 = vmatpush.msra.mxu0 %v5763
        %6055 = vmatpush.msra.mxu0 %v5761
        %6056 = vmatpush.msra.mxu0 %v5759
        %6057 = vmatmul.f32.gmra.mxu0 %v5809
        %v6058 = vpop.f32.mrf.mxu0
        %v6059 = vadd.f32 0.0, %v6058
        %6060 = vmatmul.f32.gmra.mxu0 %v5812
        %v6061 = vpop.f32.mrf.mxu0
        %v6062 = vadd.f32 0.0, %v6061
        %6063 = vmatmul.f32.gmra.mxu0 %v5815
        %v6064 = vpop.f32.mrf.mxu0
        %v6065 = vadd.f32 0.0, %v6064
        %6066 = vmatmul.f32.gmra.mxu0 %v5818
        %v6067 = vpop.f32.mrf.mxu0
        %v6068 = vadd.f32 0.0, %v6067
        %6069 = vmatmul.f32.gmra.mxu0 %v5821
        %v6070 = vpop.f32.mrf.mxu0
        %v6071 = vadd.f32 0.0, %v6070
        %6072 = vmatmul.f32.gmra.mxu0 %v5824
        %v6073 = vpop.f32.mrf.mxu0
        %v6074 = vadd.f32 0.0, %v6073
        %6075 = vmatmul.f32.gmra.mxu0 %v5827
        %v6076 = vpop.f32.mrf.mxu0
        %v6077 = vadd.f32 0.0, %v6076
        %6078 = vmatmul.f32.gmra.mxu0 %v5830
        %v6079 = vpop.f32.mrf.mxu0
        %v6080 = vadd.f32 0.0, %v6079
        %6081 = vmatmul.f32.gmra.mxu0 %v5833
        %v6082 = vpop.f32.mrf.mxu0
        %v6083 = vadd.f32 0.0, %v6082
        %6084 = vmatmul.f32.gmra.mxu0 %v5836
        %v6085 = vpop.f32.mrf.mxu0
        %v6086 = vadd.f32 0.0, %v6085
        %6087 = vmatmul.f32.gmra.mxu0 %v5839
        %v6088 = vpop.f32.mrf.mxu0
        %v6089 = vadd.f32 0.0, %v6088
        %6090 = vmatmul.f32.gmra.mxu0 %v5842
        %v6091 = vpop.f32.mrf.mxu0
        %v6092 = vadd.f32 0.0, %v6091
        %6093 = vmatmul.f32.gmra.mxu0 %v5845
        %v6094 = vpop.f32.mrf.mxu0
        %v6095 = vadd.f32 0.0, %v6094
        %6096 = vmatmul.f32.gmra.mxu0 %v5848
        %v6097 = vpop.f32.mrf.mxu0
        %v6098 = vadd.f32 0.0, %v6097
        %6099 = vmatmul.f32.gmra.mxu0 %v5851
        %v6100 = vpop.f32.mrf.mxu0
        %v6101 = vadd.f32 0.0, %v6100
        %6102 = vmatmul.f32.gmra.mxu0 %v5854
        %v6103 = vpop.f32.mrf.mxu0
        %v6104 = vadd.f32 0.0, %v6103
        %6105 = vmatmul.f32.gmra.mxu0 %v5857
        %v6106 = vpop.f32.mrf.mxu0
        %v6107 = vadd.f32 0.0, %v6106
        %6108 = vmatmul.f32.gmra.mxu0 %v5860
        %v6109 = vpop.f32.mrf.mxu0
        %v6110 = vadd.f32 0.0, %v6109
        %6111 = vmatmul.f32.gmra.mxu0 %v5863
        %v6112 = vpop.f32.mrf.mxu0
        %v6113 = vadd.f32 0.0, %v6112
        %6114 = vmatmul.f32.gmra.mxu0 %v5866
        %v6115 = vpop.f32.mrf.mxu0
        %v6116 = vadd.f32 0.0, %v6115
        %6117 = vmatmul.f32.gmra.mxu0 %v5869
        %v6118 = vpop.f32.mrf.mxu0
        %v6119 = vadd.f32 0.0, %v6118
        %6120 = vmatmul.f32.gmra.mxu0 %v5872
        %v6121 = vpop.f32.mrf.mxu0
        %v6122 = vadd.f32 0.0, %v6121
        %6123 = vmatmul.f32.gmra.mxu0 %v5875
        %v6124 = vpop.f32.mrf.mxu0
        %v6125 = vadd.f32 0.0, %v6124
        %6126 = vmatmul.f32.gmra.mxu0 %v5878
        %v6127 = vpop.f32.mrf.mxu0
        %v6128 = vadd.f32 0.0, %v6127
        %6129 = vmatmul.f32.gmra.mxu0 %v5881
        %v6130 = vpop.f32.mrf.mxu0
        %v6131 = vadd.f32 0.0, %v6130
        %6132 = vmatmul.f32.gmra.mxu0 %v5884
        %v6133 = vpop.f32.mrf.mxu0
        %v6134 = vadd.f32 0.0, %v6133
        %6135 = vmatmul.f32.gmra.mxu0 %v5887
        %v6136 = vpop.f32.mrf.mxu0
        %v6137 = vadd.f32 0.0, %v6136
        %6138 = vmatmul.f32.gmra.mxu0 %v5890
        %v6139 = vpop.f32.mrf.mxu0
        %v6140 = vadd.f32 0.0, %v6139
        %6141 = vmatmul.f32.gmra.mxu0 %v5893
        %v6142 = vpop.f32.mrf.mxu0
        %v6143 = vadd.f32 0.0, %v6142
        %6144 = vmatmul.f32.gmra.mxu0 %v5896
        %v6145 = vpop.f32.mrf.mxu0
        %v6146 = vadd.f32 0.0, %v6145
        %6147 = vmatmul.f32.gmra.mxu0 %v5899
        %v6148 = vpop.f32.mrf.mxu0
        %v6149 = vadd.f32 0.0, %v6148
        %6150 = vmatmul.f32.gmra.mxu0 %v5902
        %v6151 = vpop.f32.mrf.mxu0
        %v6152 = vadd.f32 0.0, %v6151
        %6153 = vmatmul.f32.gmra.mxu0 %v5905
        %v6154 = vpop.f32.mrf.mxu0
        %v6155 = vadd.f32 0.0, %v6154
        %6156 = vmatmul.f32.gmra.mxu0 %v5908
        %v6157 = vpop.f32.mrf.mxu0
        %v6158 = vadd.f32 0.0, %v6157
        %6159 = vmatmul.f32.gmra.mxu0 %v5911
        %v6160 = vpop.f32.mrf.mxu0
        %v6161 = vadd.f32 0.0, %v6160
        %6162 = vmatmul.f32.gmra.mxu0 %v5914
        %v6163 = vpop.f32.mrf.mxu0
        %v6164 = vadd.f32 0.0, %v6163
        %6165 = vdwg.mxu0
        %6166 = vmatpush.msra.mxu0 %v1031
        %6167 = vmatpush.msra.mxu0 %v1029
        %6168 = vmatpush.msra.mxu0 %v1027
        %6169 = vmatpush.msra.mxu0 %v1025
        %6170 = vmatpush.msra.mxu0 %v1023
        %6171 = vmatpush.msra.mxu0 %v1021
        %6172 = vmatpush.msra.mxu0 %v1019
        %6173 = vmatpush.msra.mxu0 %v1017
        %6174 = vmatpush.msra.mxu0 %v1015
        %6175 = vmatpush.msra.mxu0 %v1013
        %6176 = vmatpush.msra.mxu0 %v1011
        %6177 = vmatpush.msra.mxu0 %v1009
        %6178 = vmatpush.msra.mxu0 %v1007
        %6179 = vmatpush.msra.mxu0 %v1005
        %6180 = vmatpush.msra.mxu0 %v1003
        %6181 = vmatpush.msra.mxu0 %v1001
        %6182 = vmatmul.f32.gmra.mxu0 %v5946
        %v6183 = vpop.f32.mrf.mxu0
        %v6184 = vadd.f32 0.0, %v6183
        %6185 = vmatmul.f32.gmra.mxu0 %v5949
        %v6186 = vpop.f32.mrf.mxu0
        %v6187 = vadd.f32 0.0, %v6186
        %6188 = vmatmul.f32.gmra.mxu0 %v5952
        %v6189 = vpop.f32.mrf.mxu0
        %v6190 = vadd.f32 0.0, %v6189
        %6191 = vmatmul.f32.gmra.mxu0 %v5955
        %v6192 = vpop.f32.mrf.mxu0
        %v6193 = vadd.f32 0.0, %v6192
        %6194 = vdwg.mxu0
        %6195 = vmatpush.msra.mxu0 %v1063
        %6196 = vmatpush.msra.mxu0 %v1061
        %6197 = vmatpush.msra.mxu0 %v1059
        %6198 = vmatpush.msra.mxu0 %v1057
        %6199 = vmatpush.msra.mxu0 %v1055
        %6200 = vmatpush.msra.mxu0 %v1053
        %6201 = vmatpush.msra.mxu0 %v1051
        %6202 = vmatpush.msra.mxu0 %v1049
        %6203 = vmatpush.msra.mxu0 %v1047
        %6204 = vmatpush.msra.mxu0 %v1045
        %6205 = vmatpush.msra.mxu0 %v1043
        %6206 = vmatpush.msra.mxu0 %v1041
        %6207 = vmatpush.msra.mxu0 %v1039
        %6208 = vmatpush.msra.mxu0 %v1037
        %6209 = vmatpush.msra.mxu0 %v1035
        %6210 = vmatpush.msra.mxu0 %v1033
        %6211 = vmatmul.f32.gmra.mxu0 %v6071
        %v6212 = vpop.f32.mrf.mxu0
        %v6213 = vadd.f32 %v6184, %v6212
        %6214 = vmatmul.f32.gmra.mxu0 %v6074
        %v6215 = vpop.f32.mrf.mxu0
        %v6216 = vadd.f32 %v6187, %v6215
        %6217 = vmatmul.f32.gmra.mxu0 %v6077
        %v6218 = vpop.f32.mrf.mxu0
        %v6219 = vadd.f32 %v6190, %v6218
        %6220 = vmatmul.f32.gmra.mxu0 %v6080
        %v6221 = vpop.f32.mrf.mxu0
        %v6222 = vadd.f32 %v6193, %v6221
        %6223 = vdwg.mxu0
        %6224 = vmatpush.msra.mxu0 %v1032
        %6225 = vmatpush.msra.mxu0 %v1030
        %6226 = vmatpush.msra.mxu0 %v1028
        %6227 = vmatpush.msra.mxu0 %v1026
        %6228 = vmatpush.msra.mxu0 %v1024
        %6229 = vmatpush.msra.mxu0 %v1022
        %6230 = vmatpush.msra.mxu0 %v1020
        %6231 = vmatpush.msra.mxu0 %v1018
        %6232 = vmatpush.msra.mxu0 %v1016
        %6233 = vmatpush.msra.mxu0 %v1014
        %6234 = vmatpush.msra.mxu0 %v1012
        %6235 = vmatpush.msra.mxu0 %v1010
        %6236 = vmatpush.msra.mxu0 %v1008
        %6237 = vmatpush.msra.mxu0 %v1006
        %6238 = vmatpush.msra.mxu0 %v1004
        %6239 = vmatpush.msra.mxu0 %v1002
        %6240 = vmatmul.f32.gmra.mxu0 %v5946
        %v6241 = vpop.f32.mrf.mxu0
        %v6242 = vadd.f32 0.0, %v6241
        %6243 = vmatmul.f32.gmra.mxu0 %v5949
        %v6244 = vpop.f32.mrf.mxu0
        %v6245 = vadd.f32 0.0, %v6244
        %6246 = vmatmul.f32.gmra.mxu0 %v5952
        %v6247 = vpop.f32.mrf.mxu0
        %v6248 = vadd.f32 0.0, %v6247
        %6249 = vmatmul.f32.gmra.mxu0 %v5955
        %v6250 = vpop.f32.mrf.mxu0
        %v6251 = vadd.f32 0.0, %v6250
        %6252 = vdwg.mxu0
        %6253 = vmatpush.msra.mxu0 %v1064
        %6254 = vmatpush.msra.mxu0 %v1062
        %6255 = vmatpush.msra.mxu0 %v1060
        %6256 = vmatpush.msra.mxu0 %v1058
        %6257 = vmatpush.msra.mxu0 %v1056
        %6258 = vmatpush.msra.mxu0 %v1054
        %6259 = vmatpush.msra.mxu0 %v1052
        %6260 = vmatpush.msra.mxu0 %v1050
        %6261 = vmatpush.msra.mxu0 %v1048
        %6262 = vmatpush.msra.mxu0 %v1046
        %6263 = vmatpush.msra.mxu0 %v1044
        %6264 = vmatpush.msra.mxu0 %v1042
        %6265 = vmatpush.msra.mxu0 %v1040
        %6266 = vmatpush.msra.mxu0 %v1038
        %6267 = vmatpush.msra.mxu0 %v1036
        %6268 = vmatpush.msra.mxu0 %v1034
        %6269 = vmatmul.f32.gmra.mxu0 %v6071
        %v6270 = vpop.f32.mrf.mxu0
        %v6271 = vadd.f32 %v6242, %v6270
        %6272 = vmatmul.f32.gmra.mxu0 %v6074
        %v6273 = vpop.f32.mrf.mxu0
        %v6274 = vadd.f32 %v6245, %v6273
        %6275 = vmatmul.f32.gmra.mxu0 %v6077
        %v6276 = vpop.f32.mrf.mxu0
        %v6277 = vadd.f32 %v6248, %v6276
        %6278 = vmatmul.f32.gmra.mxu0 %v6080
        %v6279 = vpop.f32.mrf.mxu0
        %v6280 = vadd.f32 %v6251, %v6279
        %6281 = vdwg.mxu0
        %6282 = vmatpush.msra.mxu0 %v966
        %6283 = vmatpush.msra.mxu0 %v964
        %6284 = vmatpush.msra.mxu0 %v962
        %6285 = vmatpush.msra.mxu0 %v960
        %6286 = vmatpush.msra.mxu0 %v958
        %6287 = vmatpush.msra.mxu0 %v956
        %6288 = vmatpush.msra.mxu0 %v954
        %6289 = vmatpush.msra.mxu0 %v952
        %6290 = vmatpush.msra.mxu0 %v950
        %6291 = vmatpush.msra.mxu0 %v948
        %6292 = vmatpush.msra.mxu0 %v946
        %6293 = vmatpush.msra.mxu0 %v944
        %6294 = vmatpush.msra.mxu0 %v942
        %6295 = vmatpush.msra.mxu0 %v940
        %6296 = vmatpush.msra.mxu0 %v938
        %6297 = vmatpush.msra.mxu0 %v936
        %6298 = vmatmul.f32.gmra.mxu0 %v5934
        %v6299 = vpop.f32.mrf.mxu0
        %v6300 = vadd.f32 %v6213, %v6299
        %6301 = vmatmul.f32.gmra.mxu0 %v5937
        %v6302 = vpop.f32.mrf.mxu0
        %v6303 = vadd.f32 %v6216, %v6302
        %6304 = vmatmul.f32.gmra.mxu0 %v5940
        %v6305 = vpop.f32.mrf.mxu0
        %v6306 = vadd.f32 %v6219, %v6305
        %6307 = vmatmul.f32.gmra.mxu0 %v5943
        %v6308 = vpop.f32.mrf.mxu0
        %v6309 = vadd.f32 %v6222, %v6308
        %6310 = vdwg.mxu0
        %6311 = vmatpush.msra.mxu0 %v998
        %6312 = vmatpush.msra.mxu0 %v996
        %6313 = vmatpush.msra.mxu0 %v994
        %6314 = vmatpush.msra.mxu0 %v992
        %6315 = vmatpush.msra.mxu0 %v990
        %6316 = vmatpush.msra.mxu0 %v988
        %6317 = vmatpush.msra.mxu0 %v986
        %6318 = vmatpush.msra.mxu0 %v984
        %6319 = vmatpush.msra.mxu0 %v982
        %6320 = vmatpush.msra.mxu0 %v980
        %6321 = vmatpush.msra.mxu0 %v978
        %6322 = vmatpush.msra.mxu0 %v976
        %6323 = vmatpush.msra.mxu0 %v974
        %6324 = vmatpush.msra.mxu0 %v972
        %6325 = vmatpush.msra.mxu0 %v970
        %6326 = vmatpush.msra.mxu0 %v968
        %6327 = vmatmul.f32.gmra.mxu0 %v6059
        %v6328 = vpop.f32.mrf.mxu0
        %v6329 = vadd.f32 %v6300, %v6328
        %6330 = vmatmul.f32.gmra.mxu0 %v6062
        %v6331 = vpop.f32.mrf.mxu0
        %v6332 = vadd.f32 %v6303, %v6331
        %6333 = vmatmul.f32.gmra.mxu0 %v6065
        %v6334 = vpop.f32.mrf.mxu0
        %v6335 = vadd.f32 %v6306, %v6334
        %6336 = vmatmul.f32.gmra.mxu0 %v6068
        %v6337 = vpop.f32.mrf.mxu0
        %v6338 = vadd.f32 %v6309, %v6337
        %6339 = vdwg.mxu0
        %6340 = vmatpush.msra.mxu0 %v967
        %6341 = vmatpush.msra.mxu0 %v965
        %6342 = vmatpush.msra.mxu0 %v963
        %6343 = vmatpush.msra.mxu0 %v961
        %6344 = vmatpush.msra.mxu0 %v959
        %6345 = vmatpush.msra.mxu0 %v957
        %6346 = vmatpush.msra.mxu0 %v955
        %6347 = vmatpush.msra.mxu0 %v953
        %6348 = vmatpush.msra.mxu0 %v951
        %6349 = vmatpush.msra.mxu0 %v949
        %6350 = vmatpush.msra.mxu0 %v947
        %6351 = vmatpush.msra.mxu0 %v945
        %6352 = vmatpush.msra.mxu0 %v943
        %6353 = vmatpush.msra.mxu0 %v941
        %6354 = vmatpush.msra.mxu0 %v939
        %6355 = vmatpush.msra.mxu0 %v937
        %6356 = vmatmul.f32.gmra.mxu0 %v5934
        %v6357 = vpop.f32.mrf.mxu0
        %v6358 = vadd.f32 %v6271, %v6357
        %6359 = vmatmul.f32.gmra.mxu0 %v5937
        %v6360 = vpop.f32.mrf.mxu0
        %v6361 = vadd.f32 %v6274, %v6360
        %6362 = vmatmul.f32.gmra.mxu0 %v5940
        %v6363 = vpop.f32.mrf.mxu0
        %v6364 = vadd.f32 %v6277, %v6363
        %6365 = vmatmul.f32.gmra.mxu0 %v5943
        %v6366 = vpop.f32.mrf.mxu0
        %v6367 = vadd.f32 %v6280, %v6366
        %6368 = vdwg.mxu0
        %6369 = vmatpush.msra.mxu0 %v999
        %6370 = vmatpush.msra.mxu0 %v997
        %6371 = vmatpush.msra.mxu0 %v995
        %6372 = vmatpush.msra.mxu0 %v993
        %6373 = vmatpush.msra.mxu0 %v991
        %6374 = vmatpush.msra.mxu0 %v989
        %6375 = vmatpush.msra.mxu0 %v987
        %6376 = vmatpush.msra.mxu0 %v985
        %6377 = vmatpush.msra.mxu0 %v983
        %6378 = vmatpush.msra.mxu0 %v981
        %6379 = vmatpush.msra.mxu0 %v979
        %6380 = vmatpush.msra.mxu0 %v977
        %6381 = vmatpush.msra.mxu0 %v975
        %6382 = vmatpush.msra.mxu0 %v973
        %6383 = vmatpush.msra.mxu0 %v971
        %6384 = vmatpush.msra.mxu0 %v969
        %6385 = vmatmul.f32.gmra.mxu0 %v6059
        %v6386 = vpop.f32.mrf.mxu0
        %v6387 = vadd.f32 %v6358, %v6386
        %6388 = vmatmul.f32.gmra.mxu0 %v6062
        %v6389 = vpop.f32.mrf.mxu0
        %v6390 = vadd.f32 %v6361, %v6389
        %6391 = vmatmul.f32.gmra.mxu0 %v6065
        %v6392 = vpop.f32.mrf.mxu0
        %v6393 = vadd.f32 %v6364, %v6392
        %6394 = vmatmul.f32.gmra.mxu0 %v6068
        %v6395 = vpop.f32.mrf.mxu0
        %v6396 = vadd.f32 %v6367, %v6395
        %6397 = vdwg.mxu0
        %6398 = vmatpush.msra.mxu0 %v1328
        %6399 = vmatpush.msra.mxu0 %v1326
        %6400 = vmatpush.msra.mxu0 %v1324
        %6401 = vmatpush.msra.mxu0 %v1322
        %6402 = vmatpush.msra.mxu0 %v1320
        %6403 = vmatpush.msra.mxu0 %v1318
        %6404 = vmatpush.msra.mxu0 %v1316
        %6405 = vmatpush.msra.mxu0 %v1314
        %6406 = vmatpush.msra.mxu0 %v1312
        %6407 = vmatpush.msra.mxu0 %v1310
        %6408 = vmatpush.msra.mxu0 %v1308
        %6409 = vmatpush.msra.mxu0 %v1306
        %6410 = vmatpush.msra.mxu0 %v1304
        %6411 = vmatpush.msra.mxu0 %v1302
        %6412 = vmatpush.msra.mxu0 %v1300
        %6413 = vmatpush.msra.mxu0 %v1298
        %6414 = vmatmul.f32.gmra.mxu0 %v5958
        %v6415 = vpop.f32.mrf.mxu0
        %v6416 = vadd.f32 0.0, %v6415
        %6417 = vmatmul.f32.gmra.mxu0 %v5961
        %v6418 = vpop.f32.mrf.mxu0
        %v6419 = vadd.f32 0.0, %v6418
        %6420 = vmatmul.f32.gmra.mxu0 %v5964
        %v6421 = vpop.f32.mrf.mxu0
        %v6422 = vadd.f32 0.0, %v6421
        %6423 = vmatmul.f32.gmra.mxu0 %v5967
        %v6424 = vpop.f32.mrf.mxu0
        %v6425 = vadd.f32 0.0, %v6424
        %6426 = vdwg.mxu0
        %6427 = vmatpush.msra.mxu0 %v1360
        %6428 = vmatpush.msra.mxu0 %v1358
        %6429 = vmatpush.msra.mxu0 %v1356
        %6430 = vmatpush.msra.mxu0 %v1354
        %6431 = vmatpush.msra.mxu0 %v1352
        %6432 = vmatpush.msra.mxu0 %v1350
        %6433 = vmatpush.msra.mxu0 %v1348
        %6434 = vmatpush.msra.mxu0 %v1346
        %6435 = vmatpush.msra.mxu0 %v1344
        %6436 = vmatpush.msra.mxu0 %v1342
        %6437 = vmatpush.msra.mxu0 %v1340
        %6438 = vmatpush.msra.mxu0 %v1338
        %6439 = vmatpush.msra.mxu0 %v1336
        %6440 = vmatpush.msra.mxu0 %v1334
        %6441 = vmatpush.msra.mxu0 %v1332
        %6442 = vmatpush.msra.mxu0 %v1330
        %6443 = vmatmul.f32.gmra.mxu0 %v6083
        %v6444 = vpop.f32.mrf.mxu0
        %v6445 = vadd.f32 %v6416, %v6444
        %6446 = vmatmul.f32.gmra.mxu0 %v6086
        %v6447 = vpop.f32.mrf.mxu0
        %v6448 = vadd.f32 %v6419, %v6447
        %6449 = vmatmul.f32.gmra.mxu0 %v6089
        %v6450 = vpop.f32.mrf.mxu0
        %v6451 = vadd.f32 %v6422, %v6450
        %6452 = vmatmul.f32.gmra.mxu0 %v6092
        %v6453 = vpop.f32.mrf.mxu0
        %v6454 = vadd.f32 %v6425, %v6453
        %6455 = vdwg.mxu0
        %6456 = vmatpush.msra.mxu0 %v1329
        %6457 = vmatpush.msra.mxu0 %v1327
        %6458 = vmatpush.msra.mxu0 %v1325
        %6459 = vmatpush.msra.mxu0 %v1323
        %6460 = vmatpush.msra.mxu0 %v1321
        %6461 = vmatpush.msra.mxu0 %v1319
        %6462 = vmatpush.msra.mxu0 %v1317
        %6463 = vmatpush.msra.mxu0 %v1315
        %6464 = vmatpush.msra.mxu0 %v1313
        %6465 = vmatpush.msra.mxu0 %v1311
        %6466 = vmatpush.msra.mxu0 %v1309
        %6467 = vmatpush.msra.mxu0 %v1307
        %6468 = vmatpush.msra.mxu0 %v1305
        %6469 = vmatpush.msra.mxu0 %v1303
        %6470 = vmatpush.msra.mxu0 %v1301
        %6471 = vmatpush.msra.mxu0 %v1299
        %6472 = vmatmul.f32.gmra.mxu0 %v5958
        %v6473 = vpop.f32.mrf.mxu0
        %v6474 = vadd.f32 0.0, %v6473
        %6475 = vmatmul.f32.gmra.mxu0 %v5961
        %v6476 = vpop.f32.mrf.mxu0
        %v6477 = vadd.f32 0.0, %v6476
        %6478 = vmatmul.f32.gmra.mxu0 %v5964
        %v6479 = vpop.f32.mrf.mxu0
        %v6480 = vadd.f32 0.0, %v6479
        %6481 = vmatmul.f32.gmra.mxu0 %v5967
        %v6482 = vpop.f32.mrf.mxu0
        %v6483 = vadd.f32 0.0, %v6482
        %6484 = vdwg.mxu0
        %6485 = vmatpush.msra.mxu0 %v1361
        %6486 = vmatpush.msra.mxu0 %v1359
        %6487 = vmatpush.msra.mxu0 %v1357
        %6488 = vmatpush.msra.mxu0 %v1355
        %6489 = vmatpush.msra.mxu0 %v1353
        %6490 = vmatpush.msra.mxu0 %v1351
        %6491 = vmatpush.msra.mxu0 %v1349
        %6492 = vmatpush.msra.mxu0 %v1347
        %6493 = vmatpush.msra.mxu0 %v1345
        %6494 = vmatpush.msra.mxu0 %v1343
        %6495 = vmatpush.msra.mxu0 %v1341
        %6496 = vmatpush.msra.mxu0 %v1339
        %6497 = vmatpush.msra.mxu0 %v1337
        %6498 = vmatpush.msra.mxu0 %v1335
        %6499 = vmatpush.msra.mxu0 %v1333
        %6500 = vmatpush.msra.mxu0 %v1331
        %6501 = vmatmul.f32.gmra.mxu0 %v6083
        %v6502 = vpop.f32.mrf.mxu0
        %v6503 = vadd.f32 %v6474, %v6502
        %6504 = vmatmul.f32.gmra.mxu0 %v6086
        %v6505 = vpop.f32.mrf.mxu0
        %v6506 = vadd.f32 %v6477, %v6505
        %6507 = vmatmul.f32.gmra.mxu0 %v6089
        %v6508 = vpop.f32.mrf.mxu0
        %v6509 = vadd.f32 %v6480, %v6508
        %6510 = vmatmul.f32.gmra.mxu0 %v6092
        %v6511 = vpop.f32.mrf.mxu0
        %v6512 = vadd.f32 %v6483, %v6511
        %6513 = vdwg.mxu0
        %v6514 = vadd.f32 %v6329, %v6445
        %v6515 = vadd.f32 %v6387, %v6503
        %v6516 = vadd.f32 %v6332, %v6448
        %v6517 = vadd.f32 %v6390, %v6506
        %v6518 = vadd.f32 %v6335, %v6451
        %v6519 = vadd.f32 %v6393, %v6509
        %v6520 = vadd.f32 %v6338, %v6454
        %v6521 = vadd.f32 %v6396, %v6512
        %6522 = vmatpush.msra.mxu0 %v1517
        %6523 = vmatpush.msra.mxu0 %v1515
        %6524 = vmatpush.msra.mxu0 %v1513
        %6525 = vmatpush.msra.mxu0 %v1511
        %6526 = vmatpush.msra.mxu0 %v1509
        %6527 = vmatpush.msra.mxu0 %v1507
        %6528 = vmatpush.msra.mxu0 %v1505
        %6529 = vmatpush.msra.mxu0 %v1503
        %6530 = vmatpush.msra.mxu0 %v1501
        %6531 = vmatpush.msra.mxu0 %v1499
        %6532 = vmatpush.msra.mxu0 %v1497
        %6533 = vmatpush.msra.mxu0 %v1495
        %6534 = vmatpush.msra.mxu0 %v1493
        %6535 = vmatpush.msra.mxu0 %v1491
        %6536 = vmatpush.msra.mxu0 %v1489
        %6537 = vmatpush.msra.mxu0 %v1487
        %6538 = vmatmul.f32.gmra.mxu0 %v5970
        %v6539 = vpop.f32.mrf.mxu0
        %v6540 = vadd.f32 0.0, %v6539
        %6541 = vmatmul.f32.gmra.mxu0 %v5973
        %v6542 = vpop.f32.mrf.mxu0
        %v6543 = vadd.f32 0.0, %v6542
        %6544 = vmatmul.f32.gmra.mxu0 %v5976
        %v6545 = vpop.f32.mrf.mxu0
        %v6546 = vadd.f32 0.0, %v6545
        %6547 = vmatmul.f32.gmra.mxu0 %v5979
        %v6548 = vpop.f32.mrf.mxu0
        %v6549 = vadd.f32 0.0, %v6548
        %6550 = vdwg.mxu0
        %6551 = vmatpush.msra.mxu0 %v1549
        %6552 = vmatpush.msra.mxu0 %v1547
        %6553 = vmatpush.msra.mxu0 %v1545
        %6554 = vmatpush.msra.mxu0 %v1543
        %6555 = vmatpush.msra.mxu0 %v1541
        %6556 = vmatpush.msra.mxu0 %v1539
        %6557 = vmatpush.msra.mxu0 %v1537
        %6558 = vmatpush.msra.mxu0 %v1535
        %6559 = vmatpush.msra.mxu0 %v1533
        %6560 = vmatpush.msra.mxu0 %v1531
        %6561 = vmatpush.msra.mxu0 %v1529
        %6562 = vmatpush.msra.mxu0 %v1527
        %6563 = vmatpush.msra.mxu0 %v1525
        %6564 = vmatpush.msra.mxu0 %v1523
        %6565 = vmatpush.msra.mxu0 %v1521
        %6566 = vmatpush.msra.mxu0 %v1519
        %6567 = vmatmul.f32.gmra.mxu0 %v6095
        %v6568 = vpop.f32.mrf.mxu0
        %v6569 = vadd.f32 %v6540, %v6568
        %6570 = vmatmul.f32.gmra.mxu0 %v6098
        %v6571 = vpop.f32.mrf.mxu0
        %v6572 = vadd.f32 %v6543, %v6571
        %6573 = vmatmul.f32.gmra.mxu0 %v6101
        %v6574 = vpop.f32.mrf.mxu0
        %v6575 = vadd.f32 %v6546, %v6574
        %6576 = vmatmul.f32.gmra.mxu0 %v6104
        %v6577 = vpop.f32.mrf.mxu0
        %v6578 = vadd.f32 %v6549, %v6577
        %6579 = vdwg.mxu0
        %6580 = vmatpush.msra.mxu0 %v1518
        %6581 = vmatpush.msra.mxu0 %v1516
        %6582 = vmatpush.msra.mxu0 %v1514
        %6583 = vmatpush.msra.mxu0 %v1512
        %6584 = vmatpush.msra.mxu0 %v1510
        %6585 = vmatpush.msra.mxu0 %v1508
        %6586 = vmatpush.msra.mxu0 %v1506
        %6587 = vmatpush.msra.mxu0 %v1504
        %6588 = vmatpush.msra.mxu0 %v1502
        %6589 = vmatpush.msra.mxu0 %v1500
        %6590 = vmatpush.msra.mxu0 %v1498
        %6591 = vmatpush.msra.mxu0 %v1496
        %6592 = vmatpush.msra.mxu0 %v1494
        %6593 = vmatpush.msra.mxu0 %v1492
        %6594 = vmatpush.msra.mxu0 %v1490
        %6595 = vmatpush.msra.mxu0 %v1488
        %6596 = vmatmul.f32.gmra.mxu0 %v5970
        %v6597 = vpop.f32.mrf.mxu0
        %v6598 = vadd.f32 0.0, %v6597
        %6599 = vmatmul.f32.gmra.mxu0 %v5973
        %v6600 = vpop.f32.mrf.mxu0
        %v6601 = vadd.f32 0.0, %v6600
        %6602 = vmatmul.f32.gmra.mxu0 %v5976
        %v6603 = vpop.f32.mrf.mxu0
        %v6604 = vadd.f32 0.0, %v6603
        %6605 = vmatmul.f32.gmra.mxu0 %v5979
        %v6606 = vpop.f32.mrf.mxu0
        %v6607 = vadd.f32 0.0, %v6606
        %6608 = vdwg.mxu0
        %6609 = vmatpush.msra.mxu0 %v1550
        %6610 = vmatpush.msra.mxu0 %v1548
        %6611 = vmatpush.msra.mxu0 %v1546
        %6612 = vmatpush.msra.mxu0 %v1544
        %6613 = vmatpush.msra.mxu0 %v1542
        %6614 = vmatpush.msra.mxu0 %v1540
        %6615 = vmatpush.msra.mxu0 %v1538
        %6616 = vmatpush.msra.mxu0 %v1536
        %6617 = vmatpush.msra.mxu0 %v1534
        %6618 = vmatpush.msra.mxu0 %v1532
        %6619 = vmatpush.msra.mxu0 %v1530
        %6620 = vmatpush.msra.mxu0 %v1528
        %6621 = vmatpush.msra.mxu0 %v1526
        %6622 = vmatpush.msra.mxu0 %v1524
        %6623 = vmatpush.msra.mxu0 %v1522
        %6624 = vmatpush.msra.mxu0 %v1520
        %6625 = vmatmul.f32.gmra.mxu0 %v6095
        %v6626 = vpop.f32.mrf.mxu0
        %v6627 = vadd.f32 %v6598, %v6626
        %6628 = vmatmul.f32.gmra.mxu0 %v6098
        %v6629 = vpop.f32.mrf.mxu0
        %v6630 = vadd.f32 %v6601, %v6629
        %6631 = vmatmul.f32.gmra.mxu0 %v6101
        %v6632 = vpop.f32.mrf.mxu0
        %v6633 = vadd.f32 %v6604, %v6632
        %6634 = vmatmul.f32.gmra.mxu0 %v6104
        %v6635 = vpop.f32.mrf.mxu0
        %v6636 = vadd.f32 %v6607, %v6635
        %6637 = vdwg.mxu0
        %v6638 = vadd.f32 %v6514, %v6569
        %v6639 = vadd.f32 %v6515, %v6627
        %v6640 = vadd.f32 %v6516, %v6572
        %v6641 = vadd.f32 %v6517, %v6630
        %v6642 = vadd.f32 %v6518, %v6575
        %v6643 = vadd.f32 %v6519, %v6633
        %v6644 = vadd.f32 %v6520, %v6578
        %v6645 = vadd.f32 %v6521, %v6636
        %6646 = vmatpush.msra.mxu0 %v1706
        %6647 = vmatpush.msra.mxu0 %v1704
        %6648 = vmatpush.msra.mxu0 %v1702
        %6649 = vmatpush.msra.mxu0 %v1700
        %6650 = vmatpush.msra.mxu0 %v1698
        %6651 = vmatpush.msra.mxu0 %v1696
        %6652 = vmatpush.msra.mxu0 %v1694
        %6653 = vmatpush.msra.mxu0 %v1692
        %6654 = vmatpush.msra.mxu0 %v1690
        %6655 = vmatpush.msra.mxu0 %v1688
        %6656 = vmatpush.msra.mxu0 %v1686
        %6657 = vmatpush.msra.mxu0 %v1684
        %6658 = vmatpush.msra.mxu0 %v1682
        %6659 = vmatpush.msra.mxu0 %v1680
        %6660 = vmatpush.msra.mxu0 %v1678
        %6661 = vmatpush.msra.mxu0 %v1676
        %6662 = vmatmul.f32.gmra.mxu0 %v5982
        %v6663 = vpop.f32.mrf.mxu0
        %v6664 = vadd.f32 0.0, %v6663
        %6665 = vmatmul.f32.gmra.mxu0 %v5985
        %v6666 = vpop.f32.mrf.mxu0
        %v6667 = vadd.f32 0.0, %v6666
        %6668 = vmatmul.f32.gmra.mxu0 %v5988
        %v6669 = vpop.f32.mrf.mxu0
        %v6670 = vadd.f32 0.0, %v6669
        %6671 = vmatmul.f32.gmra.mxu0 %v5991
        %v6672 = vpop.f32.mrf.mxu0
        %v6673 = vadd.f32 0.0, %v6672
        %6674 = vdwg.mxu0
        %6675 = vmatpush.msra.mxu0 %v1738
        %6676 = vmatpush.msra.mxu0 %v1736
        %6677 = vmatpush.msra.mxu0 %v1734
        %6678 = vmatpush.msra.mxu0 %v1732
        %6679 = vmatpush.msra.mxu0 %v1730
        %6680 = vmatpush.msra.mxu0 %v1728
        %6681 = vmatpush.msra.mxu0 %v1726
        %6682 = vmatpush.msra.mxu0 %v1724
        %6683 = vmatpush.msra.mxu0 %v1722
        %6684 = vmatpush.msra.mxu0 %v1720
        %6685 = vmatpush.msra.mxu0 %v1718
        %6686 = vmatpush.msra.mxu0 %v1716
        %6687 = vmatpush.msra.mxu0 %v1714
        %6688 = vmatpush.msra.mxu0 %v1712
        %6689 = vmatpush.msra.mxu0 %v1710
        %6690 = vmatpush.msra.mxu0 %v1708
        %6691 = vmatmul.f32.gmra.mxu0 %v6107
        %v6692 = vpop.f32.mrf.mxu0
        %v6693 = vadd.f32 %v6664, %v6692
        %6694 = vmatmul.f32.gmra.mxu0 %v6110
        %v6695 = vpop.f32.mrf.mxu0
        %v6696 = vadd.f32 %v6667, %v6695
        %6697 = vmatmul.f32.gmra.mxu0 %v6113
        %v6698 = vpop.f32.mrf.mxu0
        %v6699 = vadd.f32 %v6670, %v6698
        %6700 = vmatmul.f32.gmra.mxu0 %v6116
        %v6701 = vpop.f32.mrf.mxu0
        %v6702 = vadd.f32 %v6673, %v6701
        %6703 = vdwg.mxu0
        %6704 = vmatpush.msra.mxu0 %v1707
        %6705 = vmatpush.msra.mxu0 %v1705
        %6706 = vmatpush.msra.mxu0 %v1703
        %6707 = vmatpush.msra.mxu0 %v1701
        %6708 = vmatpush.msra.mxu0 %v1699
        %6709 = vmatpush.msra.mxu0 %v1697
        %6710 = vmatpush.msra.mxu0 %v1695
        %6711 = vmatpush.msra.mxu0 %v1693
        %6712 = vmatpush.msra.mxu0 %v1691
        %6713 = vmatpush.msra.mxu0 %v1689
        %6714 = vmatpush.msra.mxu0 %v1687
        %6715 = vmatpush.msra.mxu0 %v1685
        %6716 = vmatpush.msra.mxu0 %v1683
        %6717 = vmatpush.msra.mxu0 %v1681
        %6718 = vmatpush.msra.mxu0 %v1679
        %6719 = vmatpush.msra.mxu0 %v1677
        %6720 = vmatmul.f32.gmra.mxu0 %v5982
        %v6721 = vpop.f32.mrf.mxu0
        %v6722 = vadd.f32 0.0, %v6721
        %6723 = vmatmul.f32.gmra.mxu0 %v5985
        %v6724 = vpop.f32.mrf.mxu0
        %v6725 = vadd.f32 0.0, %v6724
        %6726 = vmatmul.f32.gmra.mxu0 %v5988
        %v6727 = vpop.f32.mrf.mxu0
        %v6728 = vadd.f32 0.0, %v6727
        %6729 = vmatmul.f32.gmra.mxu0 %v5991
        %v6730 = vpop.f32.mrf.mxu0
        %v6731 = vadd.f32 0.0, %v6730
        %6732 = vdwg.mxu0
        %6733 = vmatpush.msra.mxu0 %v1739
        %6734 = vmatpush.msra.mxu0 %v1737
        %6735 = vmatpush.msra.mxu0 %v1735
        %6736 = vmatpush.msra.mxu0 %v1733
        %6737 = vmatpush.msra.mxu0 %v1731
        %6738 = vmatpush.msra.mxu0 %v1729
        %6739 = vmatpush.msra.mxu0 %v1727
        %6740 = vmatpush.msra.mxu0 %v1725
        %6741 = vmatpush.msra.mxu0 %v1723
        %6742 = vmatpush.msra.mxu0 %v1721
        %6743 = vmatpush.msra.mxu0 %v1719
        %6744 = vmatpush.msra.mxu0 %v1717
        %6745 = vmatpush.msra.mxu0 %v1715
        %6746 = vmatpush.msra.mxu0 %v1713
        %6747 = vmatpush.msra.mxu0 %v1711
        %6748 = vmatpush.msra.mxu0 %v1709
        %6749 = vmatmul.f32.gmra.mxu0 %v6107
        %v6750 = vpop.f32.mrf.mxu0
        %v6751 = vadd.f32 %v6722, %v6750
        %6752 = vmatmul.f32.gmra.mxu0 %v6110
        %v6753 = vpop.f32.mrf.mxu0
        %v6754 = vadd.f32 %v6725, %v6753
        %6755 = vmatmul.f32.gmra.mxu0 %v6113
        %v6756 = vpop.f32.mrf.mxu0
        %v6757 = vadd.f32 %v6728, %v6756
        %6758 = vmatmul.f32.gmra.mxu0 %v6116
        %v6759 = vpop.f32.mrf.mxu0
        %v6760 = vadd.f32 %v6731, %v6759
        %6761 = vdwg.mxu0
        %v6762 = vadd.f32 %v6638, %v6693
        %v6763 = vadd.f32 %v6639, %v6751
        %v6764 = vadd.f32 %v6640, %v6696
        %v6765 = vadd.f32 %v6641, %v6754
        %v6766 = vadd.f32 %v6642, %v6699
        %v6767 = vadd.f32 %v6643, %v6757
        %v6768 = vadd.f32 %v6644, %v6702
        %v6769 = vadd.f32 %v6645, %v6760
        %6770 = vmatpush.msra.mxu0 %v1895
        %6771 = vmatpush.msra.mxu0 %v1893
        %6772 = vmatpush.msra.mxu0 %v1891
        %6773 = vmatpush.msra.mxu0 %v1889
        %6774 = vmatpush.msra.mxu0 %v1887
        %6775 = vmatpush.msra.mxu0 %v1885
        %6776 = vmatpush.msra.mxu0 %v1883
        %6777 = vmatpush.msra.mxu0 %v1881
        %6778 = vmatpush.msra.mxu0 %v1879
        %6779 = vmatpush.msra.mxu0 %v1877
        %6780 = vmatpush.msra.mxu0 %v1875
        %6781 = vmatpush.msra.mxu0 %v1873
        %6782 = vmatpush.msra.mxu0 %v1871
        %6783 = vmatpush.msra.mxu0 %v1869
        %6784 = vmatpush.msra.mxu0 %v1867
        %6785 = vmatpush.msra.mxu0 %v1865
        %6786 = vmatmul.f32.gmra.mxu0 %v5994
        %v6787 = vpop.f32.mrf.mxu0
        %v6788 = vadd.f32 0.0, %v6787
        %6789 = vmatmul.f32.gmra.mxu0 %v5997
        %v6790 = vpop.f32.mrf.mxu0
        %v6791 = vadd.f32 0.0, %v6790
        %6792 = vmatmul.f32.gmra.mxu0 %v6000
        %v6793 = vpop.f32.mrf.mxu0
        %v6794 = vadd.f32 0.0, %v6793
        %6795 = vmatmul.f32.gmra.mxu0 %v6003
        %v6796 = vpop.f32.mrf.mxu0
        %v6797 = vadd.f32 0.0, %v6796
        %6798 = vdwg.mxu0
        %6799 = vmatpush.msra.mxu0 %v1927
        %6800 = vmatpush.msra.mxu0 %v1925
        %6801 = vmatpush.msra.mxu0 %v1923
        %6802 = vmatpush.msra.mxu0 %v1921
        %6803 = vmatpush.msra.mxu0 %v1919
        %6804 = vmatpush.msra.mxu0 %v1917
        %6805 = vmatpush.msra.mxu0 %v1915
        %6806 = vmatpush.msra.mxu0 %v1913
        %6807 = vmatpush.msra.mxu0 %v1911
        %6808 = vmatpush.msra.mxu0 %v1909
        %6809 = vmatpush.msra.mxu0 %v1907
        %6810 = vmatpush.msra.mxu0 %v1905
        %6811 = vmatpush.msra.mxu0 %v1903
        %6812 = vmatpush.msra.mxu0 %v1901
        %6813 = vmatpush.msra.mxu0 %v1899
        %6814 = vmatpush.msra.mxu0 %v1897
        %6815 = vmatmul.f32.gmra.mxu0 %v6119
        %v6816 = vpop.f32.mrf.mxu0
        %v6817 = vadd.f32 %v6788, %v6816
        %6818 = vmatmul.f32.gmra.mxu0 %v6122
        %v6819 = vpop.f32.mrf.mxu0
        %v6820 = vadd.f32 %v6791, %v6819
        %6821 = vmatmul.f32.gmra.mxu0 %v6125
        %v6822 = vpop.f32.mrf.mxu0
        %v6823 = vadd.f32 %v6794, %v6822
        %6824 = vmatmul.f32.gmra.mxu0 %v6128
        %v6825 = vpop.f32.mrf.mxu0
        %v6826 = vadd.f32 %v6797, %v6825
        %6827 = vdwg.mxu0
        %6828 = vmatpush.msra.mxu0 %v1896
        %6829 = vmatpush.msra.mxu0 %v1894
        %6830 = vmatpush.msra.mxu0 %v1892
        %6831 = vmatpush.msra.mxu0 %v1890
        %6832 = vmatpush.msra.mxu0 %v1888
        %6833 = vmatpush.msra.mxu0 %v1886
        %6834 = vmatpush.msra.mxu0 %v1884
        %6835 = vmatpush.msra.mxu0 %v1882
        %6836 = vmatpush.msra.mxu0 %v1880
        %6837 = vmatpush.msra.mxu0 %v1878
        %6838 = vmatpush.msra.mxu0 %v1876
        %6839 = vmatpush.msra.mxu0 %v1874
        %6840 = vmatpush.msra.mxu0 %v1872
        %6841 = vmatpush.msra.mxu0 %v1870
        %6842 = vmatpush.msra.mxu0 %v1868
        %6843 = vmatpush.msra.mxu0 %v1866
        %6844 = vmatmul.f32.gmra.mxu0 %v5994
        %v6845 = vpop.f32.mrf.mxu0
        %v6846 = vadd.f32 0.0, %v6845
        %6847 = vmatmul.f32.gmra.mxu0 %v5997
        %v6848 = vpop.f32.mrf.mxu0
        %v6849 = vadd.f32 0.0, %v6848
        %6850 = vmatmul.f32.gmra.mxu0 %v6000
        %v6851 = vpop.f32.mrf.mxu0
        %v6852 = vadd.f32 0.0, %v6851
        %6853 = vmatmul.f32.gmra.mxu0 %v6003
        %v6854 = vpop.f32.mrf.mxu0
        %v6855 = vadd.f32 0.0, %v6854
        %6856 = vdwg.mxu0
        %6857 = vmatpush.msra.mxu0 %v1928
        %6858 = vmatpush.msra.mxu0 %v1926
        %6859 = vmatpush.msra.mxu0 %v1924
        %6860 = vmatpush.msra.mxu0 %v1922
        %6861 = vmatpush.msra.mxu0 %v1920
        %6862 = vmatpush.msra.mxu0 %v1918
        %6863 = vmatpush.msra.mxu0 %v1916
        %6864 = vmatpush.msra.mxu0 %v1914
        %6865 = vmatpush.msra.mxu0 %v1912
        %6866 = vmatpush.msra.mxu0 %v1910
        %6867 = vmatpush.msra.mxu0 %v1908
        %6868 = vmatpush.msra.mxu0 %v1906
        %6869 = vmatpush.msra.mxu0 %v1904
        %6870 = vmatpush.msra.mxu0 %v1902
        %6871 = vmatpush.msra.mxu0 %v1900
        %6872 = vmatpush.msra.mxu0 %v1898
        %6873 = vmatmul.f32.gmra.mxu0 %v6119
        %v6874 = vpop.f32.mrf.mxu0
        %v6875 = vadd.f32 %v6846, %v6874
        %6876 = vmatmul.f32.gmra.mxu0 %v6122
        %v6877 = vpop.f32.mrf.mxu0
        %v6878 = vadd.f32 %v6849, %v6877
        %6879 = vmatmul.f32.gmra.mxu0 %v6125
        %v6880 = vpop.f32.mrf.mxu0
        %v6881 = vadd.f32 %v6852, %v6880
        %6882 = vmatmul.f32.gmra.mxu0 %v6128
        %v6883 = vpop.f32.mrf.mxu0
        %v6884 = vadd.f32 %v6855, %v6883
        %6885 = vdwg.mxu0
        %v6886 = vadd.f32 %v6762, %v6817
        %v6887 = vadd.f32 %v6763, %v6875
        %v6888 = vadd.f32 %v6764, %v6820
        %v6889 = vadd.f32 %v6765, %v6878
        %v6890 = vadd.f32 %v6766, %v6823
        %v6891 = vadd.f32 %v6767, %v6881
        %v6892 = vadd.f32 %v6768, %v6826
        %v6893 = vadd.f32 %v6769, %v6884
        %6894 = vmatpush.msra.mxu0 %v2084
        %6895 = vmatpush.msra.mxu0 %v2082
        %6896 = vmatpush.msra.mxu0 %v2080
        %6897 = vmatpush.msra.mxu0 %v2078
        %6898 = vmatpush.msra.mxu0 %v2076
        %6899 = vmatpush.msra.mxu0 %v2074
        %6900 = vmatpush.msra.mxu0 %v2072
        %6901 = vmatpush.msra.mxu0 %v2070
        %6902 = vmatpush.msra.mxu0 %v2068
        %6903 = vmatpush.msra.mxu0 %v2066
        %6904 = vmatpush.msra.mxu0 %v2064
        %6905 = vmatpush.msra.mxu0 %v2062
        %6906 = vmatpush.msra.mxu0 %v2060
        %6907 = vmatpush.msra.mxu0 %v2058
        %6908 = vmatpush.msra.mxu0 %v2056
        %6909 = vmatpush.msra.mxu0 %v2054
        %6910 = vmatmul.f32.gmra.mxu0 %v6006
        %v6911 = vpop.f32.mrf.mxu0
        %v6912 = vadd.f32 0.0, %v6911
        %6913 = vmatmul.f32.gmra.mxu0 %v6009
        %v6914 = vpop.f32.mrf.mxu0
        %v6915 = vadd.f32 0.0, %v6914
        %6916 = vmatmul.f32.gmra.mxu0 %v6012
        %v6917 = vpop.f32.mrf.mxu0
        %v6918 = vadd.f32 0.0, %v6917
        %6919 = vmatmul.f32.gmra.mxu0 %v6015
        %v6920 = vpop.f32.mrf.mxu0
        %v6921 = vadd.f32 0.0, %v6920
        %6922 = vdwg.mxu0
        %6923 = vmatpush.msra.mxu0 %v2116
        %6924 = vmatpush.msra.mxu0 %v2114
        %6925 = vmatpush.msra.mxu0 %v2112
        %6926 = vmatpush.msra.mxu0 %v2110
        %6927 = vmatpush.msra.mxu0 %v2108
        %6928 = vmatpush.msra.mxu0 %v2106
        %6929 = vmatpush.msra.mxu0 %v2104
        %6930 = vmatpush.msra.mxu0 %v2102
        %6931 = vmatpush.msra.mxu0 %v2100
        %6932 = vmatpush.msra.mxu0 %v2098
        %6933 = vmatpush.msra.mxu0 %v2096
        %6934 = vmatpush.msra.mxu0 %v2094
        %6935 = vmatpush.msra.mxu0 %v2092
        %6936 = vmatpush.msra.mxu0 %v2090
        %6937 = vmatpush.msra.mxu0 %v2088
        %6938 = vmatpush.msra.mxu0 %v2086
        %6939 = vmatmul.f32.gmra.mxu0 %v6131
        %v6940 = vpop.f32.mrf.mxu0
        %v6941 = vadd.f32 %v6912, %v6940
        %6942 = vmatmul.f32.gmra.mxu0 %v6134
        %v6943 = vpop.f32.mrf.mxu0
        %v6944 = vadd.f32 %v6915, %v6943
        %6945 = vmatmul.f32.gmra.mxu0 %v6137
        %v6946 = vpop.f32.mrf.mxu0
        %v6947 = vadd.f32 %v6918, %v6946
        %6948 = vmatmul.f32.gmra.mxu0 %v6140
        %v6949 = vpop.f32.mrf.mxu0
        %v6950 = vadd.f32 %v6921, %v6949
        %6951 = vdwg.mxu0
        %6952 = vmatpush.msra.mxu0 %v2085
        %6953 = vmatpush.msra.mxu0 %v2083
        %6954 = vmatpush.msra.mxu0 %v2081
        %6955 = vmatpush.msra.mxu0 %v2079
        %6956 = vmatpush.msra.mxu0 %v2077
        %6957 = vmatpush.msra.mxu0 %v2075
        %6958 = vmatpush.msra.mxu0 %v2073
        %6959 = vmatpush.msra.mxu0 %v2071
        %6960 = vmatpush.msra.mxu0 %v2069
        %6961 = vmatpush.msra.mxu0 %v2067
        %6962 = vmatpush.msra.mxu0 %v2065
        %6963 = vmatpush.msra.mxu0 %v2063
        %6964 = vmatpush.msra.mxu0 %v2061
        %6965 = vmatpush.msra.mxu0 %v2059
        %6966 = vmatpush.msra.mxu0 %v2057
        %6967 = vmatpush.msra.mxu0 %v2055
        %6968 = vmatmul.f32.gmra.mxu0 %v6006
        %v6969 = vpop.f32.mrf.mxu0
        %v6970 = vadd.f32 0.0, %v6969
        %6971 = vmatmul.f32.gmra.mxu0 %v6009
        %v6972 = vpop.f32.mrf.mxu0
        %v6973 = vadd.f32 0.0, %v6972
        %6974 = vmatmul.f32.gmra.mxu0 %v6012
        %v6975 = vpop.f32.mrf.mxu0
        %v6976 = vadd.f32 0.0, %v6975
        %6977 = vmatmul.f32.gmra.mxu0 %v6015
        %v6978 = vpop.f32.mrf.mxu0
        %v6979 = vadd.f32 0.0, %v6978
        %6980 = vdwg.mxu0
        %6981 = vmatpush.msra.mxu0 %v2117
        %6982 = vmatpush.msra.mxu0 %v2115
        %6983 = vmatpush.msra.mxu0 %v2113
        %6984 = vmatpush.msra.mxu0 %v2111
        %6985 = vmatpush.msra.mxu0 %v2109
        %6986 = vmatpush.msra.mxu0 %v2107
        %6987 = vmatpush.msra.mxu0 %v2105
        %6988 = vmatpush.msra.mxu0 %v2103
        %6989 = vmatpush.msra.mxu0 %v2101
        %6990 = vmatpush.msra.mxu0 %v2099
        %6991 = vmatpush.msra.mxu0 %v2097
        %6992 = vmatpush.msra.mxu0 %v2095
        %6993 = vmatpush.msra.mxu0 %v2093
        %6994 = vmatpush.msra.mxu0 %v2091
        %6995 = vmatpush.msra.mxu0 %v2089
        %6996 = vmatpush.msra.mxu0 %v2087
        %6997 = vmatmul.f32.gmra.mxu0 %v6131
        %v6998 = vpop.f32.mrf.mxu0
        %v6999 = vadd.f32 %v6970, %v6998
        %7000 = vmatmul.f32.gmra.mxu0 %v6134
        %v7001 = vpop.f32.mrf.mxu0
        %v7002 = vadd.f32 %v6973, %v7001
        %7003 = vmatmul.f32.gmra.mxu0 %v6137
        %v7004 = vpop.f32.mrf.mxu0
        %v7005 = vadd.f32 %v6976, %v7004
        %7006 = vmatmul.f32.gmra.mxu0 %v6140
        %v7007 = vpop.f32.mrf.mxu0
        %v7008 = vadd.f32 %v6979, %v7007
        %7009 = vdwg.mxu0
        %v7010 = vadd.f32 %v6886, %v6941
        %v7011 = vadd.f32 %v6887, %v6999
        %v7012 = vadd.f32 %v6888, %v6944
        %v7013 = vadd.f32 %v6889, %v7002
        %v7014 = vadd.f32 %v6890, %v6947
        %v7015 = vadd.f32 %v6891, %v7005
        %v7016 = vadd.f32 %v6892, %v6950
        %v7017 = vadd.f32 %v6893, %v7008
        %7018 = vmatpush.msra.mxu0 %v2273
        %7019 = vmatpush.msra.mxu0 %v2271
        %7020 = vmatpush.msra.mxu0 %v2269
        %7021 = vmatpush.msra.mxu0 %v2267
        %7022 = vmatpush.msra.mxu0 %v2265
        %7023 = vmatpush.msra.mxu0 %v2263
        %7024 = vmatpush.msra.mxu0 %v2261
        %7025 = vmatpush.msra.mxu0 %v2259
        %7026 = vmatpush.msra.mxu0 %v2257
        %7027 = vmatpush.msra.mxu0 %v2255
        %7028 = vmatpush.msra.mxu0 %v2253
        %7029 = vmatpush.msra.mxu0 %v2251
        %7030 = vmatpush.msra.mxu0 %v2249
        %7031 = vmatpush.msra.mxu0 %v2247
        %7032 = vmatpush.msra.mxu0 %v2245
        %7033 = vmatpush.msra.mxu0 %v2243
        %7034 = vmatmul.f32.gmra.mxu0 %v6018
        %v7035 = vpop.f32.mrf.mxu0
        %v7036 = vadd.f32 0.0, %v7035
        %7037 = vmatmul.f32.gmra.mxu0 %v6021
        %v7038 = vpop.f32.mrf.mxu0
        %v7039 = vadd.f32 0.0, %v7038
        %7040 = vmatmul.f32.gmra.mxu0 %v6024
        %v7041 = vpop.f32.mrf.mxu0
        %v7042 = vadd.f32 0.0, %v7041
        %7043 = vmatmul.f32.gmra.mxu0 %v6027
        %v7044 = vpop.f32.mrf.mxu0
        %v7045 = vadd.f32 0.0, %v7044
        %7046 = vdwg.mxu0
        %7047 = vmatpush.msra.mxu0 %v2305
        %7048 = vmatpush.msra.mxu0 %v2303
        %7049 = vmatpush.msra.mxu0 %v2301
        %7050 = vmatpush.msra.mxu0 %v2299
        %7051 = vmatpush.msra.mxu0 %v2297
        %7052 = vmatpush.msra.mxu0 %v2295
        %7053 = vmatpush.msra.mxu0 %v2293
        %7054 = vmatpush.msra.mxu0 %v2291
        %7055 = vmatpush.msra.mxu0 %v2289
        %7056 = vmatpush.msra.mxu0 %v2287
        %7057 = vmatpush.msra.mxu0 %v2285
        %7058 = vmatpush.msra.mxu0 %v2283
        %7059 = vmatpush.msra.mxu0 %v2281
        %7060 = vmatpush.msra.mxu0 %v2279
        %7061 = vmatpush.msra.mxu0 %v2277
        %7062 = vmatpush.msra.mxu0 %v2275
        %7063 = vmatmul.f32.gmra.mxu0 %v6143
        %v7064 = vpop.f32.mrf.mxu0
        %v7065 = vadd.f32 %v7036, %v7064
        %7066 = vmatmul.f32.gmra.mxu0 %v6146
        %v7067 = vpop.f32.mrf.mxu0
        %v7068 = vadd.f32 %v7039, %v7067
        %7069 = vmatmul.f32.gmra.mxu0 %v6149
        %v7070 = vpop.f32.mrf.mxu0
        %v7071 = vadd.f32 %v7042, %v7070
        %7072 = vmatmul.f32.gmra.mxu0 %v6152
        %v7073 = vpop.f32.mrf.mxu0
        %v7074 = vadd.f32 %v7045, %v7073
        %7075 = vdwg.mxu0
        %7076 = vmatpush.msra.mxu0 %v2274
        %7077 = vmatpush.msra.mxu0 %v2272
        %7078 = vmatpush.msra.mxu0 %v2270
        %7079 = vmatpush.msra.mxu0 %v2268
        %7080 = vmatpush.msra.mxu0 %v2266
        %7081 = vmatpush.msra.mxu0 %v2264
        %7082 = vmatpush.msra.mxu0 %v2262
        %7083 = vmatpush.msra.mxu0 %v2260
        %7084 = vmatpush.msra.mxu0 %v2258
        %7085 = vmatpush.msra.mxu0 %v2256
        %7086 = vmatpush.msra.mxu0 %v2254
        %7087 = vmatpush.msra.mxu0 %v2252
        %7088 = vmatpush.msra.mxu0 %v2250
        %7089 = vmatpush.msra.mxu0 %v2248
        %7090 = vmatpush.msra.mxu0 %v2246
        %7091 = vmatpush.msra.mxu0 %v2244
        %7092 = vmatmul.f32.gmra.mxu0 %v6018
        %v7093 = vpop.f32.mrf.mxu0
        %v7094 = vadd.f32 0.0, %v7093
        %7095 = vmatmul.f32.gmra.mxu0 %v6021
        %v7096 = vpop.f32.mrf.mxu0
        %v7097 = vadd.f32 0.0, %v7096
        %7098 = vmatmul.f32.gmra.mxu0 %v6024
        %v7099 = vpop.f32.mrf.mxu0
        %v7100 = vadd.f32 0.0, %v7099
        %7101 = vmatmul.f32.gmra.mxu0 %v6027
        %v7102 = vpop.f32.mrf.mxu0
        %v7103 = vadd.f32 0.0, %v7102
        %7104 = vdwg.mxu0
        %7105 = vmatpush.msra.mxu0 %v2306
        %7106 = vmatpush.msra.mxu0 %v2304
        %7107 = vmatpush.msra.mxu0 %v2302
        %7108 = vmatpush.msra.mxu0 %v2300
        %7109 = vmatpush.msra.mxu0 %v2298
        %7110 = vmatpush.msra.mxu0 %v2296
        %7111 = vmatpush.msra.mxu0 %v2294
        %7112 = vmatpush.msra.mxu0 %v2292
        %7113 = vmatpush.msra.mxu0 %v2290
        %7114 = vmatpush.msra.mxu0 %v2288
        %7115 = vmatpush.msra.mxu0 %v2286
        %7116 = vmatpush.msra.mxu0 %v2284
        %7117 = vmatpush.msra.mxu0 %v2282
        %7118 = vmatpush.msra.mxu0 %v2280
        %7119 = vmatpush.msra.mxu0 %v2278
        %7120 = vmatpush.msra.mxu0 %v2276
        %7121 = vmatmul.f32.gmra.mxu0 %v6143
        %v7122 = vpop.f32.mrf.mxu0
        %v7123 = vadd.f32 %v7094, %v7122
        %7124 = vmatmul.f32.gmra.mxu0 %v6146
        %v7125 = vpop.f32.mrf.mxu0
        %v7126 = vadd.f32 %v7097, %v7125
        %7127 = vmatmul.f32.gmra.mxu0 %v6149
        %v7128 = vpop.f32.mrf.mxu0
        %v7129 = vadd.f32 %v7100, %v7128
        %7130 = vmatmul.f32.gmra.mxu0 %v6152
        %v7131 = vpop.f32.mrf.mxu0
        %v7132 = vadd.f32 %v7103, %v7131
        %7133 = vdwg.mxu0
        %v7134 = vadd.f32 %v7010, %v7065
        %v7135 = vadd.f32 %v7011, %v7123
        %v7136 = vadd.f32 %v7012, %v7068
        %v7137 = vadd.f32 %v7013, %v7126
        %v7138 = vadd.f32 %v7014, %v7071
        %v7139 = vadd.f32 %v7015, %v7129
        %v7140 = vadd.f32 %v7016, %v7074
        %v7141 = vadd.f32 %v7017, %v7132
        %7142 = vmatpush.msra.mxu0 %v2462
        %7143 = vmatpush.msra.mxu0 %v2460
        %7144 = vmatpush.msra.mxu0 %v2458
        %7145 = vmatpush.msra.mxu0 %v2456
        %7146 = vmatpush.msra.mxu0 %v2454
        %7147 = vmatpush.msra.mxu0 %v2452
        %7148 = vmatpush.msra.mxu0 %v2450
        %7149 = vmatpush.msra.mxu0 %v2448
        %7150 = vmatpush.msra.mxu0 %v2446
        %7151 = vmatpush.msra.mxu0 %v2444
        %7152 = vmatpush.msra.mxu0 %v2442
        %7153 = vmatpush.msra.mxu0 %v2440
        %7154 = vmatpush.msra.mxu0 %v2438
        %7155 = vmatpush.msra.mxu0 %v2436
        %7156 = vmatpush.msra.mxu0 %v2434
        %7157 = vmatpush.msra.mxu0 %v2432
        %7158 = vmatmul.f32.gmra.mxu0 %v6030
        %v7159 = vpop.f32.mrf.mxu0
        %v7160 = vadd.f32 0.0, %v7159
        %7161 = vmatmul.f32.gmra.mxu0 %v6033
        %v7162 = vpop.f32.mrf.mxu0
        %v7163 = vadd.f32 0.0, %v7162
        %7164 = vmatmul.f32.gmra.mxu0 %v6036
        %v7165 = vpop.f32.mrf.mxu0
        %v7166 = vadd.f32 0.0, %v7165
        %7167 = vmatmul.f32.gmra.mxu0 %v6039
        %v7168 = vpop.f32.mrf.mxu0
        %v7169 = vadd.f32 0.0, %v7168
        %7170 = vdwg.mxu0
        %7171 = vmatpush.msra.mxu0 %v2494
        %7172 = vmatpush.msra.mxu0 %v2492
        %7173 = vmatpush.msra.mxu0 %v2490
        %7174 = vmatpush.msra.mxu0 %v2488
        %7175 = vmatpush.msra.mxu0 %v2486
        %7176 = vmatpush.msra.mxu0 %v2484
        %7177 = vmatpush.msra.mxu0 %v2482
        %7178 = vmatpush.msra.mxu0 %v2480
        %7179 = vmatpush.msra.mxu0 %v2478
        %7180 = vmatpush.msra.mxu0 %v2476
        %7181 = vmatpush.msra.mxu0 %v2474
        %7182 = vmatpush.msra.mxu0 %v2472
        %7183 = vmatpush.msra.mxu0 %v2470
        %7184 = vmatpush.msra.mxu0 %v2468
        %7185 = vmatpush.msra.mxu0 %v2466
        %7186 = vmatpush.msra.mxu0 %v2464
        %7187 = vmatmul.f32.gmra.mxu0 %v6155
        %v7188 = vpop.f32.mrf.mxu0
        %v7189 = vadd.f32 %v7160, %v7188
        %7190 = vmatmul.f32.gmra.mxu0 %v6158
        %v7191 = vpop.f32.mrf.mxu0
        %v7192 = vadd.f32 %v7163, %v7191
        %7193 = vmatmul.f32.gmra.mxu0 %v6161
        %v7194 = vpop.f32.mrf.mxu0
        %v7195 = vadd.f32 %v7166, %v7194
        %7196 = vmatmul.f32.gmra.mxu0 %v6164
        %v7197 = vpop.f32.mrf.mxu0
        %v7198 = vadd.f32 %v7169, %v7197
        %7199 = vdwg.mxu0
        %7200 = vmatpush.msra.mxu0 %v2463
        %7201 = vmatpush.msra.mxu0 %v2461
        %7202 = vmatpush.msra.mxu0 %v2459
        %7203 = vmatpush.msra.mxu0 %v2457
        %7204 = vmatpush.msra.mxu0 %v2455
        %7205 = vmatpush.msra.mxu0 %v2453
        %7206 = vmatpush.msra.mxu0 %v2451
        %7207 = vmatpush.msra.mxu0 %v2449
        %7208 = vmatpush.msra.mxu0 %v2447
        %7209 = vmatpush.msra.mxu0 %v2445
        %7210 = vmatpush.msra.mxu0 %v2443
        %7211 = vmatpush.msra.mxu0 %v2441
        %7212 = vmatpush.msra.mxu0 %v2439
        %7213 = vmatpush.msra.mxu0 %v2437
        %7214 = vmatpush.msra.mxu0 %v2435
        %7215 = vmatpush.msra.mxu0 %v2433
        %7216 = vmatmul.f32.gmra.mxu0 %v6030
        %v7217 = vpop.f32.mrf.mxu0
        %v7218 = vadd.f32 0.0, %v7217
        %7219 = vmatmul.f32.gmra.mxu0 %v6033
        %v7220 = vpop.f32.mrf.mxu0
        %v7221 = vadd.f32 0.0, %v7220
        %7222 = vmatmul.f32.gmra.mxu0 %v6036
        %v7223 = vpop.f32.mrf.mxu0
        %v7224 = vadd.f32 0.0, %v7223
        %7225 = vmatmul.f32.gmra.mxu0 %v6039
        %v7226 = vpop.f32.mrf.mxu0
        %v7227 = vadd.f32 0.0, %v7226
        %7228 = vdwg.mxu0
        %7229 = vmatpush.msra.mxu0 %v2495
        %7230 = vmatpush.msra.mxu0 %v2493
        %7231 = vmatpush.msra.mxu0 %v2491
        %7232 = vmatpush.msra.mxu0 %v2489
        %7233 = vmatpush.msra.mxu0 %v2487
        %7234 = vmatpush.msra.mxu0 %v2485
        %7235 = vmatpush.msra.mxu0 %v2483
        %7236 = vmatpush.msra.mxu0 %v2481
        %7237 = vmatpush.msra.mxu0 %v2479
        %7238 = vmatpush.msra.mxu0 %v2477
        %7239 = vmatpush.msra.mxu0 %v2475
        %7240 = vmatpush.msra.mxu0 %v2473
        %7241 = vmatpush.msra.mxu0 %v2471
        %7242 = vmatpush.msra.mxu0 %v2469
        %7243 = vmatpush.msra.mxu0 %v2467
        %7244 = vmatpush.msra.mxu0 %v2465
        %7245 = vmatmul.f32.gmra.mxu0 %v6155
        %v7246 = vpop.f32.mrf.mxu0
        %v7247 = vadd.f32 %v7218, %v7246
        %7248 = vmatmul.f32.gmra.mxu0 %v6158
        %v7249 = vpop.f32.mrf.mxu0
        %v7250 = vadd.f32 %v7221, %v7249
        %7251 = vmatmul.f32.gmra.mxu0 %v6161
        %v7252 = vpop.f32.mrf.mxu0
        %v7253 = vadd.f32 %v7224, %v7252
        %7254 = vmatmul.f32.gmra.mxu0 %v6164
        %v7255 = vpop.f32.mrf.mxu0
        %v7256 = vadd.f32 %v7227, %v7255
        %7257 = vdwg.mxu0
        %v7258 = vadd.f32 %v7134, %v7189
        %v7259 = vadd.f32 %v7135, %v7247
        %v7260 = vadd.f32 %v7136, %v7192
        %v7261 = vadd.f32 %v7137, %v7250
        %v7262 = vadd.f32 %v7138, %v7195
        %v7263 = vadd.f32 %v7139, %v7253
        %v7264 = vadd.f32 %v7140, %v7198
        %v7265 = vadd.f32 %v7141, %v7256
        %7267 = vset.pattern.permute.xlu0 0
        %7268 = vperm.xlu0 %7267, %v5804
        %v7269 = vpop.permute.xlu0 %7268
        %7272 = vset.pattern.permute.xlu0 0
        %7273 = vperm.xlu0 %7272, %v5805
        %v7274 = vpop.permute.xlu0 %7273
        %7277 = vset.pattern.permute.xlu0 0
        %7278 = vperm.xlu0 %7277, %v5806
        %v7279 = vpop.permute.xlu0 %7278
        %7282 = vset.pattern.permute.xlu0 0
        %7283 = vperm.xlu0 %7282, %v5807
        %v7284 = vpop.permute.xlu0 %7283
        %v7286 = vadd.f32 %v7258, %v7269
        %v7287 = vadd.f32 %v7259, %v7269
        %v7288 = vadd.f32 %v7260, %v7274
        %v7289 = vadd.f32 %v7261, %v7274
        %v7290 = vadd.f32 %v7262, %v7279
        %v7291 = vadd.f32 %v7263, %v7279
        %v7292 = vadd.f32 %v7264, %v7284
        %v7293 = vadd.f32 %v7265, %v7284
        %v7294 = vmax.f32 %v7286, 0.0
        %v7295 = vmax.f32 %v7287, 0.0
        %v7296 = vmax.f32 %v7288, 0.0
        %v7297 = vmax.f32 %v7289, 0.0
        %v7298 = vmax.f32 %v7290, 0.0
        %v7299 = vmax.f32 %v7291, 0.0
        %v7300 = vmax.f32 %v7292, 0.0
        %v7301 = vmax.f32 %v7293, 0.0
        %s7302 = scalar_lea.vmem %s8, 32
        %v7303 = vld [vmem:[%s7302] sm:$0xff]
        %v7304 = vld [vmem:[%s7302 + $0x8] sm:$0xff]
        %v7305 = vld [vmem:[%s7302 + $0x10] sm:$0xff]
        %v7306 = vld [vmem:[%s7302 + $0x18] sm:$0xff]
        %7308 = vset.pattern.permute.xlu0 0
        %7309 = vperm.xlu0 %7308, %v7303
        %v7310 = vpop.permute.xlu0 %7309
        %7313 = vset.pattern.permute.xlu0 0
        %7314 = vperm.xlu0 %7313, %v7304
        %v7315 = vpop.permute.xlu0 %7314
        %7318 = vset.pattern.permute.xlu0 0
        %7319 = vperm.xlu0 %7318, %v7305
        %v7320 = vpop.permute.xlu0 %7319
        %7323 = vset.pattern.permute.xlu0 0
        %7324 = vperm.xlu0 %7323, %v7306
        %v7325 = vpop.permute.xlu0 %7324
        %v7327 = vmul.f32 %v7310, %v7294
        %v7328 = vmul.f32 %v7310, %v7295
        %v7329 = vmul.f32 %v7315, %v7296
        %v7330 = vmul.f32 %v7315, %v7297
        %v7331 = vmul.f32 %v7320, %v7298
        %v7332 = vmul.f32 %v7320, %v7299
        %v7333 = vmul.f32 %v7325, %v7300
        %v7334 = vmul.f32 %v7325, %v7301
        %v7335 = vadd.f32 %v4222, %v7327
        %v7336 = vadd.f32 %v4223, %v7328
        %v7337 = vadd.f32 %v4224, %v7329
        %v7338 = vadd.f32 %v4225, %v7330
        %v7339 = vadd.f32 %v4226, %v7331
        %v7340 = vadd.f32 %v4227, %v7332
        %v7341 = vadd.f32 %v4228, %v7333
        %v7342 = vadd.f32 %v4229, %v7334
        %s7343 = scalar_lea.vmem %s4, 576
        %v7344 = vld [vmem:[%s7343] sm:$0xff]
        %v7345 = vld [vmem:[%s7343 + $0x8] sm:$0xff]
        %v7346 = vld [vmem:[%s7343 + $0x10] sm:$0xff]
        %v7347 = vld [vmem:[%s7343 + $0x18] sm:$0xff]
        %v7348 = vld [vmem:[%s7343 + $0x20] sm:$0xff]
        %v7349 = vld [vmem:[%s7343 + $0x28] sm:$0xff]
        %v7350 = vld [vmem:[%s7343 + $0x30] sm:$0xff]
        %v7351 = vld [vmem:[%s7343 + $0x38] sm:$0xff]
        %v7352 = vld [vmem:[%s7343 + $0x40] sm:$0xff]
        %v7353 = vld [vmem:[%s7343 + $0x48] sm:$0xff]
        %v7354 = vld [vmem:[%s7343 + $0x50] sm:$0xff]
        %v7355 = vld [vmem:[%s7343 + $0x58] sm:$0xff]
        %v7356 = vld [vmem:[%s7343 + $0x60] sm:$0xff]
        %v7357 = vld [vmem:[%s7343 + $0x68] sm:$0xff]
        %v7358 = vld [vmem:[%s7343 + $0x70] sm:$0xff]
        %v7359 = vld [vmem:[%s7343 + $0x78] sm:$0xff]
        %v7360 = vld [vmem:[%s7343 + $0x80] sm:$0xff]
        %v7361 = vld [vmem:[%s7343 + $0x88] sm:$0xff]
        %v7362 = vld [vmem:[%s7343 + $0x90] sm:$0xff]
        %v7363 = vld [vmem:[%s7343 + $0x98] sm:$0xff]
        %v7364 = vld [vmem:[%s7343 + $0xa0] sm:$0xff]
        %v7365 = vld [vmem:[%s7343 + $0xa8] sm:$0xff]
        %v7366 = vld [vmem:[%s7343 + $0xb0] sm:$0xff]
        %v7367 = vld [vmem:[%s7343 + $0xb8] sm:$0xff]
        %v7368 = vld [vmem:[%s7343 + $0xc0] sm:$0xff]
        %v7369 = vld [vmem:[%s7343 + $0xc8] sm:$0xff]
        %v7370 = vld [vmem:[%s7343 + $0xd0] sm:$0xff]
        %v7371 = vld [vmem:[%s7343 + $0xd8] sm:$0xff]
        %v7372 = vld [vmem:[%s7343 + $0xe0] sm:$0xff]
        %v7373 = vld [vmem:[%s7343 + $0xe8] sm:$0xff]
        %v7374 = vld [vmem:[%s7343 + $0xf0] sm:$0xff]
        %v7375 = vld [vmem:[%s7343 + $0xf8] sm:$0xff]
        %v7376 = vld [vmem:[%s7343 + $0x100] sm:$0xff]
        %v7377 = vld [vmem:[%s7343 + $0x108] sm:$0xff]
        %v7378 = vld [vmem:[%s7343 + $0x110] sm:$0xff]
        %v7379 = vld [vmem:[%s7343 + $0x118] sm:$0xff]
        %s7380 = scalar_lea.vmem %s5, 64
        %v7381 = vld [vmem:[%s7380] sm:$0xff]
        %v7382 = vld [vmem:[%s7380 + $0x8] sm:$0xff]
        %v7383 = vld [vmem:[%s7380 + $0x10] sm:$0xff]
        %v7384 = vld [vmem:[%s7380 + $0x18] sm:$0xff]
        %v7386 = vsel %vm577, %v7344, 0
        %v7389 = vsel %vm577, %v7345, 0
        %v7392 = vsel %vm577, %v7346, 0
        %v7395 = vsel %vm577, %v7347, 0
        %v7398 = vsel %vm577, %v7348, 0
        %v7401 = vsel %vm577, %v7349, 0
        %v7404 = vsel %vm577, %v7350, 0
        %v7407 = vsel %vm577, %v7351, 0
        %v7410 = vsel %vm577, %v7352, 0
        %v7413 = vsel %vm577, %v7353, 0
        %v7416 = vsel %vm577, %v7354, 0
        %v7419 = vsel %vm577, %v7355, 0
        %v7422 = vsel %vm577, %v7356, 0
        %v7425 = vsel %vm577, %v7357, 0
        %v7428 = vsel %vm577, %v7358, 0
        %v7431 = vsel %vm577, %v7359, 0
        %v7434 = vsel %vm577, %v7360, 0
        %v7437 = vsel %vm577, %v7361, 0
        %v7440 = vsel %vm577, %v7362, 0
        %v7443 = vsel %vm577, %v7363, 0
        %v7446 = vsel %vm577, %v7364, 0
        %v7449 = vsel %vm577, %v7365, 0
        %v7452 = vsel %vm577, %v7366, 0
        %v7455 = vsel %vm577, %v7367, 0
        %v7458 = vsel %vm577, %v7368, 0
        %v7461 = vsel %vm577, %v7369, 0
        %v7464 = vsel %vm577, %v7370, 0
        %v7467 = vsel %vm577, %v7371, 0
        %v7470 = vsel %vm577, %v7372, 0
        %v7473 = vsel %vm577, %v7373, 0
        %v7476 = vsel %vm577, %v7374, 0
        %v7479 = vsel %vm577, %v7375, 0
        %v7482 = vsel %vm577, %v7376, 0
        %v7485 = vsel %vm577, %v7377, 0
        %v7488 = vsel %vm577, %v7378, 0
        %v7491 = vsel %vm577, %v7379, 0
        %7493 = vmatpush.msra.mxu0 0.0
        %7494 = vmatpush.msra.mxu0 0.0
        %7495 = vmatpush.msra.mxu0 0.0
        %7496 = vmatpush.msra.mxu0 0.0
        %7497 = vmatpush.msra.mxu0 0.0
        %7498 = vmatpush.msra.mxu0 0.0
        %7499 = vmatpush.msra.mxu0 0.0
        %7500 = vmatpush.msra.mxu0 0.0
        %7501 = vmatpush.msra.mxu0 0.0
        %7502 = vmatpush.msra.mxu0 0.0
        %7503 = vmatpush.msra.mxu0 0.0
        %7504 = vmatpush.msra.mxu0 0.0
        %7505 = vmatpush.msra.mxu0 %v7341
        %7506 = vmatpush.msra.mxu0 %v7339
        %7507 = vmatpush.msra.mxu0 %v7337
        %7508 = vmatpush.msra.mxu0 %v7335
        %7509 = vmatmul.f32.gmra.mxu0 %v7386
        %v7510 = vpop.f32.mrf.mxu0
        %v7511 = vadd.f32 0.0, %v7510
        %7512 = vmatmul.f32.gmra.mxu0 %v7389
        %v7513 = vpop.f32.mrf.mxu0
        %v7514 = vadd.f32 0.0, %v7513
        %7515 = vmatmul.f32.gmra.mxu0 %v7392
        %v7516 = vpop.f32.mrf.mxu0
        %v7517 = vadd.f32 0.0, %v7516
        %7518 = vmatmul.f32.gmra.mxu0 %v7395
        %v7519 = vpop.f32.mrf.mxu0
        %v7520 = vadd.f32 0.0, %v7519
        %7521 = vmatmul.f32.gmra.mxu0 %v7398
        %v7522 = vpop.f32.mrf.mxu0
        %v7523 = vadd.f32 0.0, %v7522
        %7524 = vmatmul.f32.gmra.mxu0 %v7401
        %v7525 = vpop.f32.mrf.mxu0
        %v7526 = vadd.f32 0.0, %v7525
        %7527 = vmatmul.f32.gmra.mxu0 %v7404
        %v7528 = vpop.f32.mrf.mxu0
        %v7529 = vadd.f32 0.0, %v7528
        %7530 = vmatmul.f32.gmra.mxu0 %v7407
        %v7531 = vpop.f32.mrf.mxu0
        %v7532 = vadd.f32 0.0, %v7531
        %7533 = vmatmul.f32.gmra.mxu0 %v7410
        %v7534 = vpop.f32.mrf.mxu0
        %v7535 = vadd.f32 0.0, %v7534
        %7536 = vmatmul.f32.gmra.mxu0 %v7413
        %v7537 = vpop.f32.mrf.mxu0
        %v7538 = vadd.f32 0.0, %v7537
        %7539 = vmatmul.f32.gmra.mxu0 %v7416
        %v7540 = vpop.f32.mrf.mxu0
        %v7541 = vadd.f32 0.0, %v7540
        %7542 = vmatmul.f32.gmra.mxu0 %v7419
        %v7543 = vpop.f32.mrf.mxu0
        %v7544 = vadd.f32 0.0, %v7543
        %7545 = vmatmul.f32.gmra.mxu0 %v7422
        %v7546 = vpop.f32.mrf.mxu0
        %v7547 = vadd.f32 0.0, %v7546
        %7548 = vmatmul.f32.gmra.mxu0 %v7425
        %v7549 = vpop.f32.mrf.mxu0
        %v7550 = vadd.f32 0.0, %v7549
        %7551 = vmatmul.f32.gmra.mxu0 %v7428
        %v7552 = vpop.f32.mrf.mxu0
        %v7553 = vadd.f32 0.0, %v7552
        %7554 = vmatmul.f32.gmra.mxu0 %v7431
        %v7555 = vpop.f32.mrf.mxu0
        %v7556 = vadd.f32 0.0, %v7555
        %7557 = vmatmul.f32.gmra.mxu0 %v7434
        %v7558 = vpop.f32.mrf.mxu0
        %v7559 = vadd.f32 0.0, %v7558
        %7560 = vmatmul.f32.gmra.mxu0 %v7437
        %v7561 = vpop.f32.mrf.mxu0
        %v7562 = vadd.f32 0.0, %v7561
        %7563 = vmatmul.f32.gmra.mxu0 %v7440
        %v7564 = vpop.f32.mrf.mxu0
        %v7565 = vadd.f32 0.0, %v7564
        %7566 = vmatmul.f32.gmra.mxu0 %v7443
        %v7567 = vpop.f32.mrf.mxu0
        %v7568 = vadd.f32 0.0, %v7567
        %7569 = vmatmul.f32.gmra.mxu0 %v7446
        %v7570 = vpop.f32.mrf.mxu0
        %v7571 = vadd.f32 0.0, %v7570
        %7572 = vmatmul.f32.gmra.mxu0 %v7449
        %v7573 = vpop.f32.mrf.mxu0
        %v7574 = vadd.f32 0.0, %v7573
        %7575 = vmatmul.f32.gmra.mxu0 %v7452
        %v7576 = vpop.f32.mrf.mxu0
        %v7577 = vadd.f32 0.0, %v7576
        %7578 = vmatmul.f32.gmra.mxu0 %v7455
        %v7579 = vpop.f32.mrf.mxu0
        %v7580 = vadd.f32 0.0, %v7579
        %7581 = vmatmul.f32.gmra.mxu0 %v7458
        %v7582 = vpop.f32.mrf.mxu0
        %v7583 = vadd.f32 0.0, %v7582
        %7584 = vmatmul.f32.gmra.mxu0 %v7461
        %v7585 = vpop.f32.mrf.mxu0
        %v7586 = vadd.f32 0.0, %v7585
        %7587 = vmatmul.f32.gmra.mxu0 %v7464
        %v7588 = vpop.f32.mrf.mxu0
        %v7589 = vadd.f32 0.0, %v7588
        %7590 = vmatmul.f32.gmra.mxu0 %v7467
        %v7591 = vpop.f32.mrf.mxu0
        %v7592 = vadd.f32 0.0, %v7591
        %7593 = vmatmul.f32.gmra.mxu0 %v7470
        %v7594 = vpop.f32.mrf.mxu0
        %v7595 = vadd.f32 0.0, %v7594
        %7596 = vmatmul.f32.gmra.mxu0 %v7473
        %v7597 = vpop.f32.mrf.mxu0
        %v7598 = vadd.f32 0.0, %v7597
        %7599 = vmatmul.f32.gmra.mxu0 %v7476
        %v7600 = vpop.f32.mrf.mxu0
        %v7601 = vadd.f32 0.0, %v7600
        %7602 = vmatmul.f32.gmra.mxu0 %v7479
        %v7603 = vpop.f32.mrf.mxu0
        %v7604 = vadd.f32 0.0, %v7603
        %7605 = vmatmul.f32.gmra.mxu0 %v7482
        %v7606 = vpop.f32.mrf.mxu0
        %v7607 = vadd.f32 0.0, %v7606
        %7608 = vmatmul.f32.gmra.mxu0 %v7485
        %v7609 = vpop.f32.mrf.mxu0
        %v7610 = vadd.f32 0.0, %v7609
        %7611 = vmatmul.f32.gmra.mxu0 %v7488
        %v7612 = vpop.f32.mrf.mxu0
        %v7613 = vadd.f32 0.0, %v7612
        %7614 = vmatmul.f32.gmra.mxu0 %v7491
        %v7615 = vpop.f32.mrf.mxu0
        %v7616 = vadd.f32 0.0, %v7615
        %7617 = vdwg.mxu0
        %7618 = vmatpush.msra.mxu0 0.0
        %7619 = vmatpush.msra.mxu0 0.0
        %7620 = vmatpush.msra.mxu0 0.0
        %7621 = vmatpush.msra.mxu0 0.0
        %7622 = vmatpush.msra.mxu0 0.0
        %7623 = vmatpush.msra.mxu0 0.0
        %7624 = vmatpush.msra.mxu0 0.0
        %7625 = vmatpush.msra.mxu0 0.0
        %7626 = vmatpush.msra.mxu0 0.0
        %7627 = vmatpush.msra.mxu0 0.0
        %7628 = vmatpush.msra.mxu0 0.0
        %7629 = vmatpush.msra.mxu0 0.0
        %7630 = vmatpush.msra.mxu0 %v7342
        %7631 = vmatpush.msra.mxu0 %v7340
        %7632 = vmatpush.msra.mxu0 %v7338
        %7633 = vmatpush.msra.mxu0 %v7336
        %7634 = vmatmul.f32.gmra.mxu0 %v7386
        %v7635 = vpop.f32.mrf.mxu0
        %v7636 = vadd.f32 0.0, %v7635
        %7637 = vmatmul.f32.gmra.mxu0 %v7389
        %v7638 = vpop.f32.mrf.mxu0
        %v7639 = vadd.f32 0.0, %v7638
        %7640 = vmatmul.f32.gmra.mxu0 %v7392
        %v7641 = vpop.f32.mrf.mxu0
        %v7642 = vadd.f32 0.0, %v7641
        %7643 = vmatmul.f32.gmra.mxu0 %v7395
        %v7644 = vpop.f32.mrf.mxu0
        %v7645 = vadd.f32 0.0, %v7644
        %7646 = vmatmul.f32.gmra.mxu0 %v7398
        %v7647 = vpop.f32.mrf.mxu0
        %v7648 = vadd.f32 0.0, %v7647
        %7649 = vmatmul.f32.gmra.mxu0 %v7401
        %v7650 = vpop.f32.mrf.mxu0
        %v7651 = vadd.f32 0.0, %v7650
        %7652 = vmatmul.f32.gmra.mxu0 %v7404
        %v7653 = vpop.f32.mrf.mxu0
        %v7654 = vadd.f32 0.0, %v7653
        %7655 = vmatmul.f32.gmra.mxu0 %v7407
        %v7656 = vpop.f32.mrf.mxu0
        %v7657 = vadd.f32 0.0, %v7656
        %7658 = vmatmul.f32.gmra.mxu0 %v7410
        %v7659 = vpop.f32.mrf.mxu0
        %v7660 = vadd.f32 0.0, %v7659
        %7661 = vmatmul.f32.gmra.mxu0 %v7413
        %v7662 = vpop.f32.mrf.mxu0
        %v7663 = vadd.f32 0.0, %v7662
        %7664 = vmatmul.f32.gmra.mxu0 %v7416
        %v7665 = vpop.f32.mrf.mxu0
        %v7666 = vadd.f32 0.0, %v7665
        %7667 = vmatmul.f32.gmra.mxu0 %v7419
        %v7668 = vpop.f32.mrf.mxu0
        %v7669 = vadd.f32 0.0, %v7668
        %7670 = vmatmul.f32.gmra.mxu0 %v7422
        %v7671 = vpop.f32.mrf.mxu0
        %v7672 = vadd.f32 0.0, %v7671
        %7673 = vmatmul.f32.gmra.mxu0 %v7425
        %v7674 = vpop.f32.mrf.mxu0
        %v7675 = vadd.f32 0.0, %v7674
        %7676 = vmatmul.f32.gmra.mxu0 %v7428
        %v7677 = vpop.f32.mrf.mxu0
        %v7678 = vadd.f32 0.0, %v7677
        %7679 = vmatmul.f32.gmra.mxu0 %v7431
        %v7680 = vpop.f32.mrf.mxu0
        %v7681 = vadd.f32 0.0, %v7680
        %7682 = vmatmul.f32.gmra.mxu0 %v7434
        %v7683 = vpop.f32.mrf.mxu0
        %v7684 = vadd.f32 0.0, %v7683
        %7685 = vmatmul.f32.gmra.mxu0 %v7437
        %v7686 = vpop.f32.mrf.mxu0
        %v7687 = vadd.f32 0.0, %v7686
        %7688 = vmatmul.f32.gmra.mxu0 %v7440
        %v7689 = vpop.f32.mrf.mxu0
        %v7690 = vadd.f32 0.0, %v7689
        %7691 = vmatmul.f32.gmra.mxu0 %v7443
        %v7692 = vpop.f32.mrf.mxu0
        %v7693 = vadd.f32 0.0, %v7692
        %7694 = vmatmul.f32.gmra.mxu0 %v7446
        %v7695 = vpop.f32.mrf.mxu0
        %v7696 = vadd.f32 0.0, %v7695
        %7697 = vmatmul.f32.gmra.mxu0 %v7449
        %v7698 = vpop.f32.mrf.mxu0
        %v7699 = vadd.f32 0.0, %v7698
        %7700 = vmatmul.f32.gmra.mxu0 %v7452
        %v7701 = vpop.f32.mrf.mxu0
        %v7702 = vadd.f32 0.0, %v7701
        %7703 = vmatmul.f32.gmra.mxu0 %v7455
        %v7704 = vpop.f32.mrf.mxu0
        %v7705 = vadd.f32 0.0, %v7704
        %7706 = vmatmul.f32.gmra.mxu0 %v7458
        %v7707 = vpop.f32.mrf.mxu0
        %v7708 = vadd.f32 0.0, %v7707
        %7709 = vmatmul.f32.gmra.mxu0 %v7461
        %v7710 = vpop.f32.mrf.mxu0
        %v7711 = vadd.f32 0.0, %v7710
        %7712 = vmatmul.f32.gmra.mxu0 %v7464
        %v7713 = vpop.f32.mrf.mxu0
        %v7714 = vadd.f32 0.0, %v7713
        %7715 = vmatmul.f32.gmra.mxu0 %v7467
        %v7716 = vpop.f32.mrf.mxu0
        %v7717 = vadd.f32 0.0, %v7716
        %7718 = vmatmul.f32.gmra.mxu0 %v7470
        %v7719 = vpop.f32.mrf.mxu0
        %v7720 = vadd.f32 0.0, %v7719
        %7721 = vmatmul.f32.gmra.mxu0 %v7473
        %v7722 = vpop.f32.mrf.mxu0
        %v7723 = vadd.f32 0.0, %v7722
        %7724 = vmatmul.f32.gmra.mxu0 %v7476
        %v7725 = vpop.f32.mrf.mxu0
        %v7726 = vadd.f32 0.0, %v7725
        %7727 = vmatmul.f32.gmra.mxu0 %v7479
        %v7728 = vpop.f32.mrf.mxu0
        %v7729 = vadd.f32 0.0, %v7728
        %7730 = vmatmul.f32.gmra.mxu0 %v7482
        %v7731 = vpop.f32.mrf.mxu0
        %v7732 = vadd.f32 0.0, %v7731
        %7733 = vmatmul.f32.gmra.mxu0 %v7485
        %v7734 = vpop.f32.mrf.mxu0
        %v7735 = vadd.f32 0.0, %v7734
        %7736 = vmatmul.f32.gmra.mxu0 %v7488
        %v7737 = vpop.f32.mrf.mxu0
        %v7738 = vadd.f32 0.0, %v7737
        %7739 = vmatmul.f32.gmra.mxu0 %v7491
        %v7740 = vpop.f32.mrf.mxu0
        %v7741 = vadd.f32 0.0, %v7740
        %7742 = vdwg.mxu0
        %7743 = vmatpush.msra.mxu0 %v1031
        %7744 = vmatpush.msra.mxu0 %v1029
        %7745 = vmatpush.msra.mxu0 %v1027
        %7746 = vmatpush.msra.mxu0 %v1025
        %7747 = vmatpush.msra.mxu0 %v1023
        %7748 = vmatpush.msra.mxu0 %v1021
        %7749 = vmatpush.msra.mxu0 %v1019
        %7750 = vmatpush.msra.mxu0 %v1017
        %7751 = vmatpush.msra.mxu0 %v1015
        %7752 = vmatpush.msra.mxu0 %v1013
        %7753 = vmatpush.msra.mxu0 %v1011
        %7754 = vmatpush.msra.mxu0 %v1009
        %7755 = vmatpush.msra.mxu0 %v1007
        %7756 = vmatpush.msra.mxu0 %v1005
        %7757 = vmatpush.msra.mxu0 %v1003
        %7758 = vmatpush.msra.mxu0 %v1001
        %7759 = vmatmul.f32.gmra.mxu0 %v7523
        %v7760 = vpop.f32.mrf.mxu0
        %v7761 = vadd.f32 0.0, %v7760
        %7762 = vmatmul.f32.gmra.mxu0 %v7526
        %v7763 = vpop.f32.mrf.mxu0
        %v7764 = vadd.f32 0.0, %v7763
        %7765 = vmatmul.f32.gmra.mxu0 %v7529
        %v7766 = vpop.f32.mrf.mxu0
        %v7767 = vadd.f32 0.0, %v7766
        %7768 = vmatmul.f32.gmra.mxu0 %v7532
        %v7769 = vpop.f32.mrf.mxu0
        %v7770 = vadd.f32 0.0, %v7769
        %7771 = vdwg.mxu0
        %7772 = vmatpush.msra.mxu0 %v1063
        %7773 = vmatpush.msra.mxu0 %v1061
        %7774 = vmatpush.msra.mxu0 %v1059
        %7775 = vmatpush.msra.mxu0 %v1057
        %7776 = vmatpush.msra.mxu0 %v1055
        %7777 = vmatpush.msra.mxu0 %v1053
        %7778 = vmatpush.msra.mxu0 %v1051
        %7779 = vmatpush.msra.mxu0 %v1049
        %7780 = vmatpush.msra.mxu0 %v1047
        %7781 = vmatpush.msra.mxu0 %v1045
        %7782 = vmatpush.msra.mxu0 %v1043
        %7783 = vmatpush.msra.mxu0 %v1041
        %7784 = vmatpush.msra.mxu0 %v1039
        %7785 = vmatpush.msra.mxu0 %v1037
        %7786 = vmatpush.msra.mxu0 %v1035
        %7787 = vmatpush.msra.mxu0 %v1033
        %7788 = vmatmul.f32.gmra.mxu0 %v7648
        %v7789 = vpop.f32.mrf.mxu0
        %v7790 = vadd.f32 %v7761, %v7789
        %7791 = vmatmul.f32.gmra.mxu0 %v7651
        %v7792 = vpop.f32.mrf.mxu0
        %v7793 = vadd.f32 %v7764, %v7792
        %7794 = vmatmul.f32.gmra.mxu0 %v7654
        %v7795 = vpop.f32.mrf.mxu0
        %v7796 = vadd.f32 %v7767, %v7795
        %7797 = vmatmul.f32.gmra.mxu0 %v7657
        %v7798 = vpop.f32.mrf.mxu0
        %v7799 = vadd.f32 %v7770, %v7798
        %7800 = vdwg.mxu0
        %7801 = vmatpush.msra.mxu0 %v1032
        %7802 = vmatpush.msra.mxu0 %v1030
        %7803 = vmatpush.msra.mxu0 %v1028
        %7804 = vmatpush.msra.mxu0 %v1026
        %7805 = vmatpush.msra.mxu0 %v1024
        %7806 = vmatpush.msra.mxu0 %v1022
        %7807 = vmatpush.msra.mxu0 %v1020
        %7808 = vmatpush.msra.mxu0 %v1018
        %7809 = vmatpush.msra.mxu0 %v1016
        %7810 = vmatpush.msra.mxu0 %v1014
        %7811 = vmatpush.msra.mxu0 %v1012
        %7812 = vmatpush.msra.mxu0 %v1010
        %7813 = vmatpush.msra.mxu0 %v1008
        %7814 = vmatpush.msra.mxu0 %v1006
        %7815 = vmatpush.msra.mxu0 %v1004
        %7816 = vmatpush.msra.mxu0 %v1002
        %7817 = vmatmul.f32.gmra.mxu0 %v7523
        %v7818 = vpop.f32.mrf.mxu0
        %v7819 = vadd.f32 0.0, %v7818
        %7820 = vmatmul.f32.gmra.mxu0 %v7526
        %v7821 = vpop.f32.mrf.mxu0
        %v7822 = vadd.f32 0.0, %v7821
        %7823 = vmatmul.f32.gmra.mxu0 %v7529
        %v7824 = vpop.f32.mrf.mxu0
        %v7825 = vadd.f32 0.0, %v7824
        %7826 = vmatmul.f32.gmra.mxu0 %v7532
        %v7827 = vpop.f32.mrf.mxu0
        %v7828 = vadd.f32 0.0, %v7827
        %7829 = vdwg.mxu0
        %7830 = vmatpush.msra.mxu0 %v1064
        %7831 = vmatpush.msra.mxu0 %v1062
        %7832 = vmatpush.msra.mxu0 %v1060
        %7833 = vmatpush.msra.mxu0 %v1058
        %7834 = vmatpush.msra.mxu0 %v1056
        %7835 = vmatpush.msra.mxu0 %v1054
        %7836 = vmatpush.msra.mxu0 %v1052
        %7837 = vmatpush.msra.mxu0 %v1050
        %7838 = vmatpush.msra.mxu0 %v1048
        %7839 = vmatpush.msra.mxu0 %v1046
        %7840 = vmatpush.msra.mxu0 %v1044
        %7841 = vmatpush.msra.mxu0 %v1042
        %7842 = vmatpush.msra.mxu0 %v1040
        %7843 = vmatpush.msra.mxu0 %v1038
        %7844 = vmatpush.msra.mxu0 %v1036
        %7845 = vmatpush.msra.mxu0 %v1034
        %7846 = vmatmul.f32.gmra.mxu0 %v7648
        %v7847 = vpop.f32.mrf.mxu0
        %v7848 = vadd.f32 %v7819, %v7847
        %7849 = vmatmul.f32.gmra.mxu0 %v7651
        %v7850 = vpop.f32.mrf.mxu0
        %v7851 = vadd.f32 %v7822, %v7850
        %7852 = vmatmul.f32.gmra.mxu0 %v7654
        %v7853 = vpop.f32.mrf.mxu0
        %v7854 = vadd.f32 %v7825, %v7853
        %7855 = vmatmul.f32.gmra.mxu0 %v7657
        %v7856 = vpop.f32.mrf.mxu0
        %v7857 = vadd.f32 %v7828, %v7856
        %7858 = vdwg.mxu0
        %7859 = vmatpush.msra.mxu0 %v966
        %7860 = vmatpush.msra.mxu0 %v964
        %7861 = vmatpush.msra.mxu0 %v962
        %7862 = vmatpush.msra.mxu0 %v960
        %7863 = vmatpush.msra.mxu0 %v958
        %7864 = vmatpush.msra.mxu0 %v956
        %7865 = vmatpush.msra.mxu0 %v954
        %7866 = vmatpush.msra.mxu0 %v952
        %7867 = vmatpush.msra.mxu0 %v950
        %7868 = vmatpush.msra.mxu0 %v948
        %7869 = vmatpush.msra.mxu0 %v946
        %7870 = vmatpush.msra.mxu0 %v944
        %7871 = vmatpush.msra.mxu0 %v942
        %7872 = vmatpush.msra.mxu0 %v940
        %7873 = vmatpush.msra.mxu0 %v938
        %7874 = vmatpush.msra.mxu0 %v936
        %7875 = vmatmul.f32.gmra.mxu0 %v7511
        %v7876 = vpop.f32.mrf.mxu0
        %v7877 = vadd.f32 %v7790, %v7876
        %7878 = vmatmul.f32.gmra.mxu0 %v7514
        %v7879 = vpop.f32.mrf.mxu0
        %v7880 = vadd.f32 %v7793, %v7879
        %7881 = vmatmul.f32.gmra.mxu0 %v7517
        %v7882 = vpop.f32.mrf.mxu0
        %v7883 = vadd.f32 %v7796, %v7882
        %7884 = vmatmul.f32.gmra.mxu0 %v7520
        %v7885 = vpop.f32.mrf.mxu0
        %v7886 = vadd.f32 %v7799, %v7885
        %7887 = vdwg.mxu0
        %7888 = vmatpush.msra.mxu0 %v998
        %7889 = vmatpush.msra.mxu0 %v996
        %7890 = vmatpush.msra.mxu0 %v994
        %7891 = vmatpush.msra.mxu0 %v992
        %7892 = vmatpush.msra.mxu0 %v990
        %7893 = vmatpush.msra.mxu0 %v988
        %7894 = vmatpush.msra.mxu0 %v986
        %7895 = vmatpush.msra.mxu0 %v984
        %7896 = vmatpush.msra.mxu0 %v982
        %7897 = vmatpush.msra.mxu0 %v980
        %7898 = vmatpush.msra.mxu0 %v978
        %7899 = vmatpush.msra.mxu0 %v976
        %7900 = vmatpush.msra.mxu0 %v974
        %7901 = vmatpush.msra.mxu0 %v972
        %7902 = vmatpush.msra.mxu0 %v970
        %7903 = vmatpush.msra.mxu0 %v968
        %7904 = vmatmul.f32.gmra.mxu0 %v7636
        %v7905 = vpop.f32.mrf.mxu0
        %v7906 = vadd.f32 %v7877, %v7905
        %7907 = vmatmul.f32.gmra.mxu0 %v7639
        %v7908 = vpop.f32.mrf.mxu0
        %v7909 = vadd.f32 %v7880, %v7908
        %7910 = vmatmul.f32.gmra.mxu0 %v7642
        %v7911 = vpop.f32.mrf.mxu0
        %v7912 = vadd.f32 %v7883, %v7911
        %7913 = vmatmul.f32.gmra.mxu0 %v7645
        %v7914 = vpop.f32.mrf.mxu0
        %v7915 = vadd.f32 %v7886, %v7914
        %7916 = vdwg.mxu0
        %7917 = vmatpush.msra.mxu0 %v967
        %7918 = vmatpush.msra.mxu0 %v965
        %7919 = vmatpush.msra.mxu0 %v963
        %7920 = vmatpush.msra.mxu0 %v961
        %7921 = vmatpush.msra.mxu0 %v959
        %7922 = vmatpush.msra.mxu0 %v957
        %7923 = vmatpush.msra.mxu0 %v955
        %7924 = vmatpush.msra.mxu0 %v953
        %7925 = vmatpush.msra.mxu0 %v951
        %7926 = vmatpush.msra.mxu0 %v949
        %7927 = vmatpush.msra.mxu0 %v947
        %7928 = vmatpush.msra.mxu0 %v945
        %7929 = vmatpush.msra.mxu0 %v943
        %7930 = vmatpush.msra.mxu0 %v941
        %7931 = vmatpush.msra.mxu0 %v939
        %7932 = vmatpush.msra.mxu0 %v937
        %7933 = vmatmul.f32.gmra.mxu0 %v7511
        %v7934 = vpop.f32.mrf.mxu0
        %v7935 = vadd.f32 %v7848, %v7934
        %7936 = vmatmul.f32.gmra.mxu0 %v7514
        %v7937 = vpop.f32.mrf.mxu0
        %v7938 = vadd.f32 %v7851, %v7937
        %7939 = vmatmul.f32.gmra.mxu0 %v7517
        %v7940 = vpop.f32.mrf.mxu0
        %v7941 = vadd.f32 %v7854, %v7940
        %7942 = vmatmul.f32.gmra.mxu0 %v7520
        %v7943 = vpop.f32.mrf.mxu0
        %v7944 = vadd.f32 %v7857, %v7943
        %7945 = vdwg.mxu0
        %7946 = vmatpush.msra.mxu0 %v999
        %7947 = vmatpush.msra.mxu0 %v997
        %7948 = vmatpush.msra.mxu0 %v995
        %7949 = vmatpush.msra.mxu0 %v993
        %7950 = vmatpush.msra.mxu0 %v991
        %7951 = vmatpush.msra.mxu0 %v989
        %7952 = vmatpush.msra.mxu0 %v987
        %7953 = vmatpush.msra.mxu0 %v985
        %7954 = vmatpush.msra.mxu0 %v983
        %7955 = vmatpush.msra.mxu0 %v981
        %7956 = vmatpush.msra.mxu0 %v979
        %7957 = vmatpush.msra.mxu0 %v977
        %7958 = vmatpush.msra.mxu0 %v975
        %7959 = vmatpush.msra.mxu0 %v973
        %7960 = vmatpush.msra.mxu0 %v971
        %7961 = vmatpush.msra.mxu0 %v969
        %7962 = vmatmul.f32.gmra.mxu0 %v7636
        %v7963 = vpop.f32.mrf.mxu0
        %v7964 = vadd.f32 %v7935, %v7963
        %7965 = vmatmul.f32.gmra.mxu0 %v7639
        %v7966 = vpop.f32.mrf.mxu0
        %v7967 = vadd.f32 %v7938, %v7966
        %7968 = vmatmul.f32.gmra.mxu0 %v7642
        %v7969 = vpop.f32.mrf.mxu0
        %v7970 = vadd.f32 %v7941, %v7969
        %7971 = vmatmul.f32.gmra.mxu0 %v7645
        %v7972 = vpop.f32.mrf.mxu0
        %v7973 = vadd.f32 %v7944, %v7972
        %7974 = vdwg.mxu0
        %7975 = vmatpush.msra.mxu0 %v1328
        %7976 = vmatpush.msra.mxu0 %v1326
        %7977 = vmatpush.msra.mxu0 %v1324
        %7978 = vmatpush.msra.mxu0 %v1322
        %7979 = vmatpush.msra.mxu0 %v1320
        %7980 = vmatpush.msra.mxu0 %v1318
        %7981 = vmatpush.msra.mxu0 %v1316
        %7982 = vmatpush.msra.mxu0 %v1314
        %7983 = vmatpush.msra.mxu0 %v1312
        %7984 = vmatpush.msra.mxu0 %v1310
        %7985 = vmatpush.msra.mxu0 %v1308
        %7986 = vmatpush.msra.mxu0 %v1306
        %7987 = vmatpush.msra.mxu0 %v1304
        %7988 = vmatpush.msra.mxu0 %v1302
        %7989 = vmatpush.msra.mxu0 %v1300
        %7990 = vmatpush.msra.mxu0 %v1298
        %7991 = vmatmul.f32.gmra.mxu0 %v7535
        %v7992 = vpop.f32.mrf.mxu0
        %v7993 = vadd.f32 0.0, %v7992
        %7994 = vmatmul.f32.gmra.mxu0 %v7538
        %v7995 = vpop.f32.mrf.mxu0
        %v7996 = vadd.f32 0.0, %v7995
        %7997 = vmatmul.f32.gmra.mxu0 %v7541
        %v7998 = vpop.f32.mrf.mxu0
        %v7999 = vadd.f32 0.0, %v7998
        %8000 = vmatmul.f32.gmra.mxu0 %v7544
        %v8001 = vpop.f32.mrf.mxu0
        %v8002 = vadd.f32 0.0, %v8001
        %8003 = vdwg.mxu0
        %8004 = vmatpush.msra.mxu0 %v1360
        %8005 = vmatpush.msra.mxu0 %v1358
        %8006 = vmatpush.msra.mxu0 %v1356
        %8007 = vmatpush.msra.mxu0 %v1354
        %8008 = vmatpush.msra.mxu0 %v1352
        %8009 = vmatpush.msra.mxu0 %v1350
        %8010 = vmatpush.msra.mxu0 %v1348
        %8011 = vmatpush.msra.mxu0 %v1346
        %8012 = vmatpush.msra.mxu0 %v1344
        %8013 = vmatpush.msra.mxu0 %v1342
        %8014 = vmatpush.msra.mxu0 %v1340
        %8015 = vmatpush.msra.mxu0 %v1338
        %8016 = vmatpush.msra.mxu0 %v1336
        %8017 = vmatpush.msra.mxu0 %v1334
        %8018 = vmatpush.msra.mxu0 %v1332
        %8019 = vmatpush.msra.mxu0 %v1330
        %8020 = vmatmul.f32.gmra.mxu0 %v7660
        %v8021 = vpop.f32.mrf.mxu0
        %v8022 = vadd.f32 %v7993, %v8021
        %8023 = vmatmul.f32.gmra.mxu0 %v7663
        %v8024 = vpop.f32.mrf.mxu0
        %v8025 = vadd.f32 %v7996, %v8024
        %8026 = vmatmul.f32.gmra.mxu0 %v7666
        %v8027 = vpop.f32.mrf.mxu0
        %v8028 = vadd.f32 %v7999, %v8027
        %8029 = vmatmul.f32.gmra.mxu0 %v7669
        %v8030 = vpop.f32.mrf.mxu0
        %v8031 = vadd.f32 %v8002, %v8030
        %8032 = vdwg.mxu0
        %8033 = vmatpush.msra.mxu0 %v1329
        %8034 = vmatpush.msra.mxu0 %v1327
        %8035 = vmatpush.msra.mxu0 %v1325
        %8036 = vmatpush.msra.mxu0 %v1323
        %8037 = vmatpush.msra.mxu0 %v1321
        %8038 = vmatpush.msra.mxu0 %v1319
        %8039 = vmatpush.msra.mxu0 %v1317
        %8040 = vmatpush.msra.mxu0 %v1315
        %8041 = vmatpush.msra.mxu0 %v1313
        %8042 = vmatpush.msra.mxu0 %v1311
        %8043 = vmatpush.msra.mxu0 %v1309
        %8044 = vmatpush.msra.mxu0 %v1307
        %8045 = vmatpush.msra.mxu0 %v1305
        %8046 = vmatpush.msra.mxu0 %v1303
        %8047 = vmatpush.msra.mxu0 %v1301
        %8048 = vmatpush.msra.mxu0 %v1299
        %8049 = vmatmul.f32.gmra.mxu0 %v7535
        %v8050 = vpop.f32.mrf.mxu0
        %v8051 = vadd.f32 0.0, %v8050
        %8052 = vmatmul.f32.gmra.mxu0 %v7538
        %v8053 = vpop.f32.mrf.mxu0
        %v8054 = vadd.f32 0.0, %v8053
        %8055 = vmatmul.f32.gmra.mxu0 %v7541
        %v8056 = vpop.f32.mrf.mxu0
        %v8057 = vadd.f32 0.0, %v8056
        %8058 = vmatmul.f32.gmra.mxu0 %v7544
        %v8059 = vpop.f32.mrf.mxu0
        %v8060 = vadd.f32 0.0, %v8059
        %8061 = vdwg.mxu0
        %8062 = vmatpush.msra.mxu0 %v1361
        %8063 = vmatpush.msra.mxu0 %v1359
        %8064 = vmatpush.msra.mxu0 %v1357
        %8065 = vmatpush.msra.mxu0 %v1355
        %8066 = vmatpush.msra.mxu0 %v1353
        %8067 = vmatpush.msra.mxu0 %v1351
        %8068 = vmatpush.msra.mxu0 %v1349
        %8069 = vmatpush.msra.mxu0 %v1347
        %8070 = vmatpush.msra.mxu0 %v1345
        %8071 = vmatpush.msra.mxu0 %v1343
        %8072 = vmatpush.msra.mxu0 %v1341
        %8073 = vmatpush.msra.mxu0 %v1339
        %8074 = vmatpush.msra.mxu0 %v1337
        %8075 = vmatpush.msra.mxu0 %v1335
        %8076 = vmatpush.msra.mxu0 %v1333
        %8077 = vmatpush.msra.mxu0 %v1331
        %8078 = vmatmul.f32.gmra.mxu0 %v7660
        %v8079 = vpop.f32.mrf.mxu0
        %v8080 = vadd.f32 %v8051, %v8079
        %8081 = vmatmul.f32.gmra.mxu0 %v7663
        %v8082 = vpop.f32.mrf.mxu0
        %v8083 = vadd.f32 %v8054, %v8082
        %8084 = vmatmul.f32.gmra.mxu0 %v7666
        %v8085 = vpop.f32.mrf.mxu0
        %v8086 = vadd.f32 %v8057, %v8085
        %8087 = vmatmul.f32.gmra.mxu0 %v7669
        %v8088 = vpop.f32.mrf.mxu0
        %v8089 = vadd.f32 %v8060, %v8088
        %8090 = vdwg.mxu0
        %v8091 = vadd.f32 %v7906, %v8022
        %v8092 = vadd.f32 %v7964, %v8080
        %v8093 = vadd.f32 %v7909, %v8025
        %v8094 = vadd.f32 %v7967, %v8083
        %v8095 = vadd.f32 %v7912, %v8028
        %v8096 = vadd.f32 %v7970, %v8086
        %v8097 = vadd.f32 %v7915, %v8031
        %v8098 = vadd.f32 %v7973, %v8089
        %8099 = vmatpush.msra.mxu0 %v1517
        %8100 = vmatpush.msra.mxu0 %v1515
        %8101 = vmatpush.msra.mxu0 %v1513
        %8102 = vmatpush.msra.mxu0 %v1511
        %8103 = vmatpush.msra.mxu0 %v1509
        %8104 = vmatpush.msra.mxu0 %v1507
        %8105 = vmatpush.msra.mxu0 %v1505
        %8106 = vmatpush.msra.mxu0 %v1503
        %8107 = vmatpush.msra.mxu0 %v1501
        %8108 = vmatpush.msra.mxu0 %v1499
        %8109 = vmatpush.msra.mxu0 %v1497
        %8110 = vmatpush.msra.mxu0 %v1495
        %8111 = vmatpush.msra.mxu0 %v1493
        %8112 = vmatpush.msra.mxu0 %v1491
        %8113 = vmatpush.msra.mxu0 %v1489
        %8114 = vmatpush.msra.mxu0 %v1487
        %8115 = vmatmul.f32.gmra.mxu0 %v7547
        %v8116 = vpop.f32.mrf.mxu0
        %v8117 = vadd.f32 0.0, %v8116
        %8118 = vmatmul.f32.gmra.mxu0 %v7550
        %v8119 = vpop.f32.mrf.mxu0
        %v8120 = vadd.f32 0.0, %v8119
        %8121 = vmatmul.f32.gmra.mxu0 %v7553
        %v8122 = vpop.f32.mrf.mxu0
        %v8123 = vadd.f32 0.0, %v8122
        %8124 = vmatmul.f32.gmra.mxu0 %v7556
        %v8125 = vpop.f32.mrf.mxu0
        %v8126 = vadd.f32 0.0, %v8125
        %8127 = vdwg.mxu0
        %8128 = vmatpush.msra.mxu0 %v1549
        %8129 = vmatpush.msra.mxu0 %v1547
        %8130 = vmatpush.msra.mxu0 %v1545
        %8131 = vmatpush.msra.mxu0 %v1543
        %8132 = vmatpush.msra.mxu0 %v1541
        %8133 = vmatpush.msra.mxu0 %v1539
        %8134 = vmatpush.msra.mxu0 %v1537
        %8135 = vmatpush.msra.mxu0 %v1535
        %8136 = vmatpush.msra.mxu0 %v1533
        %8137 = vmatpush.msra.mxu0 %v1531
        %8138 = vmatpush.msra.mxu0 %v1529
        %8139 = vmatpush.msra.mxu0 %v1527
        %8140 = vmatpush.msra.mxu0 %v1525
        %8141 = vmatpush.msra.mxu0 %v1523
        %8142 = vmatpush.msra.mxu0 %v1521
        %8143 = vmatpush.msra.mxu0 %v1519
        %8144 = vmatmul.f32.gmra.mxu0 %v7672
        %v8145 = vpop.f32.mrf.mxu0
        %v8146 = vadd.f32 %v8117, %v8145
        %8147 = vmatmul.f32.gmra.mxu0 %v7675
        %v8148 = vpop.f32.mrf.mxu0
        %v8149 = vadd.f32 %v8120, %v8148
        %8150 = vmatmul.f32.gmra.mxu0 %v7678
        %v8151 = vpop.f32.mrf.mxu0
        %v8152 = vadd.f32 %v8123, %v8151
        %8153 = vmatmul.f32.gmra.mxu0 %v7681
        %v8154 = vpop.f32.mrf.mxu0
        %v8155 = vadd.f32 %v8126, %v8154
        %8156 = vdwg.mxu0
        %8157 = vmatpush.msra.mxu0 %v1518
        %8158 = vmatpush.msra.mxu0 %v1516
        %8159 = vmatpush.msra.mxu0 %v1514
        %8160 = vmatpush.msra.mxu0 %v1512
        %8161 = vmatpush.msra.mxu0 %v1510
        %8162 = vmatpush.msra.mxu0 %v1508
        %8163 = vmatpush.msra.mxu0 %v1506
        %8164 = vmatpush.msra.mxu0 %v1504
        %8165 = vmatpush.msra.mxu0 %v1502
        %8166 = vmatpush.msra.mxu0 %v1500
        %8167 = vmatpush.msra.mxu0 %v1498
        %8168 = vmatpush.msra.mxu0 %v1496
        %8169 = vmatpush.msra.mxu0 %v1494
        %8170 = vmatpush.msra.mxu0 %v1492
        %8171 = vmatpush.msra.mxu0 %v1490
        %8172 = vmatpush.msra.mxu0 %v1488
        %8173 = vmatmul.f32.gmra.mxu0 %v7547
        %v8174 = vpop.f32.mrf.mxu0
        %v8175 = vadd.f32 0.0, %v8174
        %8176 = vmatmul.f32.gmra.mxu0 %v7550
        %v8177 = vpop.f32.mrf.mxu0
        %v8178 = vadd.f32 0.0, %v8177
        %8179 = vmatmul.f32.gmra.mxu0 %v7553
        %v8180 = vpop.f32.mrf.mxu0
        %v8181 = vadd.f32 0.0, %v8180
        %8182 = vmatmul.f32.gmra.mxu0 %v7556
        %v8183 = vpop.f32.mrf.mxu0
        %v8184 = vadd.f32 0.0, %v8183
        %8185 = vdwg.mxu0
        %8186 = vmatpush.msra.mxu0 %v1550
        %8187 = vmatpush.msra.mxu0 %v1548
        %8188 = vmatpush.msra.mxu0 %v1546
        %8189 = vmatpush.msra.mxu0 %v1544
        %8190 = vmatpush.msra.mxu0 %v1542
        %8191 = vmatpush.msra.mxu0 %v1540
        %8192 = vmatpush.msra.mxu0 %v1538
        %8193 = vmatpush.msra.mxu0 %v1536
        %8194 = vmatpush.msra.mxu0 %v1534
        %8195 = vmatpush.msra.mxu0 %v1532
        %8196 = vmatpush.msra.mxu0 %v1530
        %8197 = vmatpush.msra.mxu0 %v1528
        %8198 = vmatpush.msra.mxu0 %v1526
        %8199 = vmatpush.msra.mxu0 %v1524
        %8200 = vmatpush.msra.mxu0 %v1522
        %8201 = vmatpush.msra.mxu0 %v1520
        %8202 = vmatmul.f32.gmra.mxu0 %v7672
        %v8203 = vpop.f32.mrf.mxu0
        %v8204 = vadd.f32 %v8175, %v8203
        %8205 = vmatmul.f32.gmra.mxu0 %v7675
        %v8206 = vpop.f32.mrf.mxu0
        %v8207 = vadd.f32 %v8178, %v8206
        %8208 = vmatmul.f32.gmra.mxu0 %v7678
        %v8209 = vpop.f32.mrf.mxu0
        %v8210 = vadd.f32 %v8181, %v8209
        %8211 = vmatmul.f32.gmra.mxu0 %v7681
        %v8212 = vpop.f32.mrf.mxu0
        %v8213 = vadd.f32 %v8184, %v8212
        %8214 = vdwg.mxu0
        %v8215 = vadd.f32 %v8091, %v8146
        %v8216 = vadd.f32 %v8092, %v8204
        %v8217 = vadd.f32 %v8093, %v8149
        %v8218 = vadd.f32 %v8094, %v8207
        %v8219 = vadd.f32 %v8095, %v8152
        %v8220 = vadd.f32 %v8096, %v8210
        %v8221 = vadd.f32 %v8097, %v8155
        %v8222 = vadd.f32 %v8098, %v8213
        %8223 = vmatpush.msra.mxu0 %v1706
        %8224 = vmatpush.msra.mxu0 %v1704
        %8225 = vmatpush.msra.mxu0 %v1702
        %8226 = vmatpush.msra.mxu0 %v1700
        %8227 = vmatpush.msra.mxu0 %v1698
        %8228 = vmatpush.msra.mxu0 %v1696
        %8229 = vmatpush.msra.mxu0 %v1694
        %8230 = vmatpush.msra.mxu0 %v1692
        %8231 = vmatpush.msra.mxu0 %v1690
        %8232 = vmatpush.msra.mxu0 %v1688
        %8233 = vmatpush.msra.mxu0 %v1686
        %8234 = vmatpush.msra.mxu0 %v1684
        %8235 = vmatpush.msra.mxu0 %v1682
        %8236 = vmatpush.msra.mxu0 %v1680
        %8237 = vmatpush.msra.mxu0 %v1678
        %8238 = vmatpush.msra.mxu0 %v1676
        %8239 = vmatmul.f32.gmra.mxu0 %v7559
        %v8240 = vpop.f32.mrf.mxu0
        %v8241 = vadd.f32 0.0, %v8240
        %8242 = vmatmul.f32.gmra.mxu0 %v7562
        %v8243 = vpop.f32.mrf.mxu0
        %v8244 = vadd.f32 0.0, %v8243
        %8245 = vmatmul.f32.gmra.mxu0 %v7565
        %v8246 = vpop.f32.mrf.mxu0
        %v8247 = vadd.f32 0.0, %v8246
        %8248 = vmatmul.f32.gmra.mxu0 %v7568
        %v8249 = vpop.f32.mrf.mxu0
        %v8250 = vadd.f32 0.0, %v8249
        %8251 = vdwg.mxu0
        %8252 = vmatpush.msra.mxu0 %v1738
        %8253 = vmatpush.msra.mxu0 %v1736
        %8254 = vmatpush.msra.mxu0 %v1734
        %8255 = vmatpush.msra.mxu0 %v1732
        %8256 = vmatpush.msra.mxu0 %v1730
        %8257 = vmatpush.msra.mxu0 %v1728
        %8258 = vmatpush.msra.mxu0 %v1726
        %8259 = vmatpush.msra.mxu0 %v1724
        %8260 = vmatpush.msra.mxu0 %v1722
        %8261 = vmatpush.msra.mxu0 %v1720
        %8262 = vmatpush.msra.mxu0 %v1718
        %8263 = vmatpush.msra.mxu0 %v1716
        %8264 = vmatpush.msra.mxu0 %v1714
        %8265 = vmatpush.msra.mxu0 %v1712
        %8266 = vmatpush.msra.mxu0 %v1710
        %8267 = vmatpush.msra.mxu0 %v1708
        %8268 = vmatmul.f32.gmra.mxu0 %v7684
        %v8269 = vpop.f32.mrf.mxu0
        %v8270 = vadd.f32 %v8241, %v8269
        %8271 = vmatmul.f32.gmra.mxu0 %v7687
        %v8272 = vpop.f32.mrf.mxu0
        %v8273 = vadd.f32 %v8244, %v8272
        %8274 = vmatmul.f32.gmra.mxu0 %v7690
        %v8275 = vpop.f32.mrf.mxu0
        %v8276 = vadd.f32 %v8247, %v8275
        %8277 = vmatmul.f32.gmra.mxu0 %v7693
        %v8278 = vpop.f32.mrf.mxu0
        %v8279 = vadd.f32 %v8250, %v8278
        %8280 = vdwg.mxu0
        %8281 = vmatpush.msra.mxu0 %v1707
        %8282 = vmatpush.msra.mxu0 %v1705
        %8283 = vmatpush.msra.mxu0 %v1703
        %8284 = vmatpush.msra.mxu0 %v1701
        %8285 = vmatpush.msra.mxu0 %v1699
        %8286 = vmatpush.msra.mxu0 %v1697
        %8287 = vmatpush.msra.mxu0 %v1695
        %8288 = vmatpush.msra.mxu0 %v1693
        %8289 = vmatpush.msra.mxu0 %v1691
        %8290 = vmatpush.msra.mxu0 %v1689
        %8291 = vmatpush.msra.mxu0 %v1687
        %8292 = vmatpush.msra.mxu0 %v1685
        %8293 = vmatpush.msra.mxu0 %v1683
        %8294 = vmatpush.msra.mxu0 %v1681
        %8295 = vmatpush.msra.mxu0 %v1679
        %8296 = vmatpush.msra.mxu0 %v1677
        %8297 = vmatmul.f32.gmra.mxu0 %v7559
        %v8298 = vpop.f32.mrf.mxu0
        %v8299 = vadd.f32 0.0, %v8298
        %8300 = vmatmul.f32.gmra.mxu0 %v7562
        %v8301 = vpop.f32.mrf.mxu0
        %v8302 = vadd.f32 0.0, %v8301
        %8303 = vmatmul.f32.gmra.mxu0 %v7565
        %v8304 = vpop.f32.mrf.mxu0
        %v8305 = vadd.f32 0.0, %v8304
        %8306 = vmatmul.f32.gmra.mxu0 %v7568
        %v8307 = vpop.f32.mrf.mxu0
        %v8308 = vadd.f32 0.0, %v8307
        %8309 = vdwg.mxu0
        %8310 = vmatpush.msra.mxu0 %v1739
        %8311 = vmatpush.msra.mxu0 %v1737
        %8312 = vmatpush.msra.mxu0 %v1735
        %8313 = vmatpush.msra.mxu0 %v1733
        %8314 = vmatpush.msra.mxu0 %v1731
        %8315 = vmatpush.msra.mxu0 %v1729
        %8316 = vmatpush.msra.mxu0 %v1727
        %8317 = vmatpush.msra.mxu0 %v1725
        %8318 = vmatpush.msra.mxu0 %v1723
        %8319 = vmatpush.msra.mxu0 %v1721
        %8320 = vmatpush.msra.mxu0 %v1719
        %8321 = vmatpush.msra.mxu0 %v1717
        %8322 = vmatpush.msra.mxu0 %v1715
        %8323 = vmatpush.msra.mxu0 %v1713
        %8324 = vmatpush.msra.mxu0 %v1711
        %8325 = vmatpush.msra.mxu0 %v1709
        %8326 = vmatmul.f32.gmra.mxu0 %v7684
        %v8327 = vpop.f32.mrf.mxu0
        %v8328 = vadd.f32 %v8299, %v8327
        %8329 = vmatmul.f32.gmra.mxu0 %v7687
        %v8330 = vpop.f32.mrf.mxu0
        %v8331 = vadd.f32 %v8302, %v8330
        %8332 = vmatmul.f32.gmra.mxu0 %v7690
        %v8333 = vpop.f32.mrf.mxu0
        %v8334 = vadd.f32 %v8305, %v8333
        %8335 = vmatmul.f32.gmra.mxu0 %v7693
        %v8336 = vpop.f32.mrf.mxu0
        %v8337 = vadd.f32 %v8308, %v8336
        %8338 = vdwg.mxu0
        %v8339 = vadd.f32 %v8215, %v8270
        %v8340 = vadd.f32 %v8216, %v8328
        %v8341 = vadd.f32 %v8217, %v8273
        %v8342 = vadd.f32 %v8218, %v8331
        %v8343 = vadd.f32 %v8219, %v8276
        %v8344 = vadd.f32 %v8220, %v8334
        %v8345 = vadd.f32 %v8221, %v8279
        %v8346 = vadd.f32 %v8222, %v8337
        %8347 = vmatpush.msra.mxu0 %v1895
        %8348 = vmatpush.msra.mxu0 %v1893
        %8349 = vmatpush.msra.mxu0 %v1891
        %8350 = vmatpush.msra.mxu0 %v1889
        %8351 = vmatpush.msra.mxu0 %v1887
        %8352 = vmatpush.msra.mxu0 %v1885
        %8353 = vmatpush.msra.mxu0 %v1883
        %8354 = vmatpush.msra.mxu0 %v1881
        %8355 = vmatpush.msra.mxu0 %v1879
        %8356 = vmatpush.msra.mxu0 %v1877
        %8357 = vmatpush.msra.mxu0 %v1875
        %8358 = vmatpush.msra.mxu0 %v1873
        %8359 = vmatpush.msra.mxu0 %v1871
        %8360 = vmatpush.msra.mxu0 %v1869
        %8361 = vmatpush.msra.mxu0 %v1867
        %8362 = vmatpush.msra.mxu0 %v1865
        %8363 = vmatmul.f32.gmra.mxu0 %v7571
        %v8364 = vpop.f32.mrf.mxu0
        %v8365 = vadd.f32 0.0, %v8364
        %8366 = vmatmul.f32.gmra.mxu0 %v7574
        %v8367 = vpop.f32.mrf.mxu0
        %v8368 = vadd.f32 0.0, %v8367
        %8369 = vmatmul.f32.gmra.mxu0 %v7577
        %v8370 = vpop.f32.mrf.mxu0
        %v8371 = vadd.f32 0.0, %v8370
        %8372 = vmatmul.f32.gmra.mxu0 %v7580
        %v8373 = vpop.f32.mrf.mxu0
        %v8374 = vadd.f32 0.0, %v8373
        %8375 = vdwg.mxu0
        %8376 = vmatpush.msra.mxu0 %v1927
        %8377 = vmatpush.msra.mxu0 %v1925
        %8378 = vmatpush.msra.mxu0 %v1923
        %8379 = vmatpush.msra.mxu0 %v1921
        %8380 = vmatpush.msra.mxu0 %v1919
        %8381 = vmatpush.msra.mxu0 %v1917
        %8382 = vmatpush.msra.mxu0 %v1915
        %8383 = vmatpush.msra.mxu0 %v1913
        %8384 = vmatpush.msra.mxu0 %v1911
        %8385 = vmatpush.msra.mxu0 %v1909
        %8386 = vmatpush.msra.mxu0 %v1907
        %8387 = vmatpush.msra.mxu0 %v1905
        %8388 = vmatpush.msra.mxu0 %v1903
        %8389 = vmatpush.msra.mxu0 %v1901
        %8390 = vmatpush.msra.mxu0 %v1899
        %8391 = vmatpush.msra.mxu0 %v1897
        %8392 = vmatmul.f32.gmra.mxu0 %v7696
        %v8393 = vpop.f32.mrf.mxu0
        %v8394 = vadd.f32 %v8365, %v8393
        %8395 = vmatmul.f32.gmra.mxu0 %v7699
        %v8396 = vpop.f32.mrf.mxu0
        %v8397 = vadd.f32 %v8368, %v8396
        %8398 = vmatmul.f32.gmra.mxu0 %v7702
        %v8399 = vpop.f32.mrf.mxu0
        %v8400 = vadd.f32 %v8371, %v8399
        %8401 = vmatmul.f32.gmra.mxu0 %v7705
        %v8402 = vpop.f32.mrf.mxu0
        %v8403 = vadd.f32 %v8374, %v8402
        %8404 = vdwg.mxu0
        %8405 = vmatpush.msra.mxu0 %v1896
        %8406 = vmatpush.msra.mxu0 %v1894
        %8407 = vmatpush.msra.mxu0 %v1892
        %8408 = vmatpush.msra.mxu0 %v1890
        %8409 = vmatpush.msra.mxu0 %v1888
        %8410 = vmatpush.msra.mxu0 %v1886
        %8411 = vmatpush.msra.mxu0 %v1884
        %8412 = vmatpush.msra.mxu0 %v1882
        %8413 = vmatpush.msra.mxu0 %v1880
        %8414 = vmatpush.msra.mxu0 %v1878
        %8415 = vmatpush.msra.mxu0 %v1876
        %8416 = vmatpush.msra.mxu0 %v1874
        %8417 = vmatpush.msra.mxu0 %v1872
        %8418 = vmatpush.msra.mxu0 %v1870
        %8419 = vmatpush.msra.mxu0 %v1868
        %8420 = vmatpush.msra.mxu0 %v1866
        %8421 = vmatmul.f32.gmra.mxu0 %v7571
        %v8422 = vpop.f32.mrf.mxu0
        %v8423 = vadd.f32 0.0, %v8422
        %8424 = vmatmul.f32.gmra.mxu0 %v7574
        %v8425 = vpop.f32.mrf.mxu0
        %v8426 = vadd.f32 0.0, %v8425
        %8427 = vmatmul.f32.gmra.mxu0 %v7577
        %v8428 = vpop.f32.mrf.mxu0
        %v8429 = vadd.f32 0.0, %v8428
        %8430 = vmatmul.f32.gmra.mxu0 %v7580
        %v8431 = vpop.f32.mrf.mxu0
        %v8432 = vadd.f32 0.0, %v8431
        %8433 = vdwg.mxu0
        %8434 = vmatpush.msra.mxu0 %v1928
        %8435 = vmatpush.msra.mxu0 %v1926
        %8436 = vmatpush.msra.mxu0 %v1924
        %8437 = vmatpush.msra.mxu0 %v1922
        %8438 = vmatpush.msra.mxu0 %v1920
        %8439 = vmatpush.msra.mxu0 %v1918
        %8440 = vmatpush.msra.mxu0 %v1916
        %8441 = vmatpush.msra.mxu0 %v1914
        %8442 = vmatpush.msra.mxu0 %v1912
        %8443 = vmatpush.msra.mxu0 %v1910
        %8444 = vmatpush.msra.mxu0 %v1908
        %8445 = vmatpush.msra.mxu0 %v1906
        %8446 = vmatpush.msra.mxu0 %v1904
        %8447 = vmatpush.msra.mxu0 %v1902
        %8448 = vmatpush.msra.mxu0 %v1900
        %8449 = vmatpush.msra.mxu0 %v1898
        %8450 = vmatmul.f32.gmra.mxu0 %v7696
        %v8451 = vpop.f32.mrf.mxu0
        %v8452 = vadd.f32 %v8423, %v8451
        %8453 = vmatmul.f32.gmra.mxu0 %v7699
        %v8454 = vpop.f32.mrf.mxu0
        %v8455 = vadd.f32 %v8426, %v8454
        %8456 = vmatmul.f32.gmra.mxu0 %v7702
        %v8457 = vpop.f32.mrf.mxu0
        %v8458 = vadd.f32 %v8429, %v8457
        %8459 = vmatmul.f32.gmra.mxu0 %v7705
        %v8460 = vpop.f32.mrf.mxu0
        %v8461 = vadd.f32 %v8432, %v8460
        %8462 = vdwg.mxu0
        %v8463 = vadd.f32 %v8339, %v8394
        %v8464 = vadd.f32 %v8340, %v8452
        %v8465 = vadd.f32 %v8341, %v8397
        %v8466 = vadd.f32 %v8342, %v8455
        %v8467 = vadd.f32 %v8343, %v8400
        %v8468 = vadd.f32 %v8344, %v8458
        %v8469 = vadd.f32 %v8345, %v8403
        %v8470 = vadd.f32 %v8346, %v8461
        %8471 = vmatpush.msra.mxu0 %v2084
        %8472 = vmatpush.msra.mxu0 %v2082
        %8473 = vmatpush.msra.mxu0 %v2080
        %8474 = vmatpush.msra.mxu0 %v2078
        %8475 = vmatpush.msra.mxu0 %v2076
        %8476 = vmatpush.msra.mxu0 %v2074
        %8477 = vmatpush.msra.mxu0 %v2072
        %8478 = vmatpush.msra.mxu0 %v2070
        %8479 = vmatpush.msra.mxu0 %v2068
        %8480 = vmatpush.msra.mxu0 %v2066
        %8481 = vmatpush.msra.mxu0 %v2064
        %8482 = vmatpush.msra.mxu0 %v2062
        %8483 = vmatpush.msra.mxu0 %v2060
        %8484 = vmatpush.msra.mxu0 %v2058
        %8485 = vmatpush.msra.mxu0 %v2056
        %8486 = vmatpush.msra.mxu0 %v2054
        %8487 = vmatmul.f32.gmra.mxu0 %v7583
        %v8488 = vpop.f32.mrf.mxu0
        %v8489 = vadd.f32 0.0, %v8488
        %8490 = vmatmul.f32.gmra.mxu0 %v7586
        %v8491 = vpop.f32.mrf.mxu0
        %v8492 = vadd.f32 0.0, %v8491
        %8493 = vmatmul.f32.gmra.mxu0 %v7589
        %v8494 = vpop.f32.mrf.mxu0
        %v8495 = vadd.f32 0.0, %v8494
        %8496 = vmatmul.f32.gmra.mxu0 %v7592
        %v8497 = vpop.f32.mrf.mxu0
        %v8498 = vadd.f32 0.0, %v8497
        %8499 = vdwg.mxu0
        %8500 = vmatpush.msra.mxu0 %v2116
        %8501 = vmatpush.msra.mxu0 %v2114
        %8502 = vmatpush.msra.mxu0 %v2112
        %8503 = vmatpush.msra.mxu0 %v2110
        %8504 = vmatpush.msra.mxu0 %v2108
        %8505 = vmatpush.msra.mxu0 %v2106
        %8506 = vmatpush.msra.mxu0 %v2104
        %8507 = vmatpush.msra.mxu0 %v2102
        %8508 = vmatpush.msra.mxu0 %v2100
        %8509 = vmatpush.msra.mxu0 %v2098
        %8510 = vmatpush.msra.mxu0 %v2096
        %8511 = vmatpush.msra.mxu0 %v2094
        %8512 = vmatpush.msra.mxu0 %v2092
        %8513 = vmatpush.msra.mxu0 %v2090
        %8514 = vmatpush.msra.mxu0 %v2088
        %8515 = vmatpush.msra.mxu0 %v2086
        %8516 = vmatmul.f32.gmra.mxu0 %v7708
        %v8517 = vpop.f32.mrf.mxu0
        %v8518 = vadd.f32 %v8489, %v8517
        %8519 = vmatmul.f32.gmra.mxu0 %v7711
        %v8520 = vpop.f32.mrf.mxu0
        %v8521 = vadd.f32 %v8492, %v8520
        %8522 = vmatmul.f32.gmra.mxu0 %v7714
        %v8523 = vpop.f32.mrf.mxu0
        %v8524 = vadd.f32 %v8495, %v8523
        %8525 = vmatmul.f32.gmra.mxu0 %v7717
        %v8526 = vpop.f32.mrf.mxu0
        %v8527 = vadd.f32 %v8498, %v8526
        %8528 = vdwg.mxu0
        %8529 = vmatpush.msra.mxu0 %v2085
        %8530 = vmatpush.msra.mxu0 %v2083
        %8531 = vmatpush.msra.mxu0 %v2081
        %8532 = vmatpush.msra.mxu0 %v2079
        %8533 = vmatpush.msra.mxu0 %v2077
        %8534 = vmatpush.msra.mxu0 %v2075
        %8535 = vmatpush.msra.mxu0 %v2073
        %8536 = vmatpush.msra.mxu0 %v2071
        %8537 = vmatpush.msra.mxu0 %v2069
        %8538 = vmatpush.msra.mxu0 %v2067
        %8539 = vmatpush.msra.mxu0 %v2065
        %8540 = vmatpush.msra.mxu0 %v2063
        %8541 = vmatpush.msra.mxu0 %v2061
        %8542 = vmatpush.msra.mxu0 %v2059
        %8543 = vmatpush.msra.mxu0 %v2057
        %8544 = vmatpush.msra.mxu0 %v2055
        %8545 = vmatmul.f32.gmra.mxu0 %v7583
        %v8546 = vpop.f32.mrf.mxu0
        %v8547 = vadd.f32 0.0, %v8546
        %8548 = vmatmul.f32.gmra.mxu0 %v7586
        %v8549 = vpop.f32.mrf.mxu0
        %v8550 = vadd.f32 0.0, %v8549
        %8551 = vmatmul.f32.gmra.mxu0 %v7589
        %v8552 = vpop.f32.mrf.mxu0
        %v8553 = vadd.f32 0.0, %v8552
        %8554 = vmatmul.f32.gmra.mxu0 %v7592
        %v8555 = vpop.f32.mrf.mxu0
        %v8556 = vadd.f32 0.0, %v8555
        %8557 = vdwg.mxu0
        %8558 = vmatpush.msra.mxu0 %v2117
        %8559 = vmatpush.msra.mxu0 %v2115
        %8560 = vmatpush.msra.mxu0 %v2113
        %8561 = vmatpush.msra.mxu0 %v2111
        %8562 = vmatpush.msra.mxu0 %v2109
        %8563 = vmatpush.msra.mxu0 %v2107
        %8564 = vmatpush.msra.mxu0 %v2105
        %8565 = vmatpush.msra.mxu0 %v2103
        %8566 = vmatpush.msra.mxu0 %v2101
        %8567 = vmatpush.msra.mxu0 %v2099
        %8568 = vmatpush.msra.mxu0 %v2097
        %8569 = vmatpush.msra.mxu0 %v2095
        %8570 = vmatpush.msra.mxu0 %v2093
        %8571 = vmatpush.msra.mxu0 %v2091
        %8572 = vmatpush.msra.mxu0 %v2089
        %8573 = vmatpush.msra.mxu0 %v2087
        %8574 = vmatmul.f32.gmra.mxu0 %v7708
        %v8575 = vpop.f32.mrf.mxu0
        %v8576 = vadd.f32 %v8547, %v8575
        %8577 = vmatmul.f32.gmra.mxu0 %v7711
        %v8578 = vpop.f32.mrf.mxu0
        %v8579 = vadd.f32 %v8550, %v8578
        %8580 = vmatmul.f32.gmra.mxu0 %v7714
        %v8581 = vpop.f32.mrf.mxu0
        %v8582 = vadd.f32 %v8553, %v8581
        %8583 = vmatmul.f32.gmra.mxu0 %v7717
        %v8584 = vpop.f32.mrf.mxu0
        %v8585 = vadd.f32 %v8556, %v8584
        %8586 = vdwg.mxu0
        %v8587 = vadd.f32 %v8463, %v8518
        %v8588 = vadd.f32 %v8464, %v8576
        %v8589 = vadd.f32 %v8465, %v8521
        %v8590 = vadd.f32 %v8466, %v8579
        %v8591 = vadd.f32 %v8467, %v8524
        %v8592 = vadd.f32 %v8468, %v8582
        %v8593 = vadd.f32 %v8469, %v8527
        %v8594 = vadd.f32 %v8470, %v8585
        %8595 = vmatpush.msra.mxu0 %v2273
        %8596 = vmatpush.msra.mxu0 %v2271
        %8597 = vmatpush.msra.mxu0 %v2269
        %8598 = vmatpush.msra.mxu0 %v2267
        %8599 = vmatpush.msra.mxu0 %v2265
        %8600 = vmatpush.msra.mxu0 %v2263
        %8601 = vmatpush.msra.mxu0 %v2261
        %8602 = vmatpush.msra.mxu0 %v2259
        %8603 = vmatpush.msra.mxu0 %v2257
        %8604 = vmatpush.msra.mxu0 %v2255
        %8605 = vmatpush.msra.mxu0 %v2253
        %8606 = vmatpush.msra.mxu0 %v2251
        %8607 = vmatpush.msra.mxu0 %v2249
        %8608 = vmatpush.msra.mxu0 %v2247
        %8609 = vmatpush.msra.mxu0 %v2245
        %8610 = vmatpush.msra.mxu0 %v2243
        %8611 = vmatmul.f32.gmra.mxu0 %v7595
        %v8612 = vpop.f32.mrf.mxu0
        %v8613 = vadd.f32 0.0, %v8612
        %8614 = vmatmul.f32.gmra.mxu0 %v7598
        %v8615 = vpop.f32.mrf.mxu0
        %v8616 = vadd.f32 0.0, %v8615
        %8617 = vmatmul.f32.gmra.mxu0 %v7601
        %v8618 = vpop.f32.mrf.mxu0
        %v8619 = vadd.f32 0.0, %v8618
        %8620 = vmatmul.f32.gmra.mxu0 %v7604
        %v8621 = vpop.f32.mrf.mxu0
        %v8622 = vadd.f32 0.0, %v8621
        %8623 = vdwg.mxu0
        %8624 = vmatpush.msra.mxu0 %v2305
        %8625 = vmatpush.msra.mxu0 %v2303
        %8626 = vmatpush.msra.mxu0 %v2301
        %8627 = vmatpush.msra.mxu0 %v2299
        %8628 = vmatpush.msra.mxu0 %v2297
        %8629 = vmatpush.msra.mxu0 %v2295
        %8630 = vmatpush.msra.mxu0 %v2293
        %8631 = vmatpush.msra.mxu0 %v2291
        %8632 = vmatpush.msra.mxu0 %v2289
        %8633 = vmatpush.msra.mxu0 %v2287
        %8634 = vmatpush.msra.mxu0 %v2285
        %8635 = vmatpush.msra.mxu0 %v2283
        %8636 = vmatpush.msra.mxu0 %v2281
        %8637 = vmatpush.msra.mxu0 %v2279
        %8638 = vmatpush.msra.mxu0 %v2277
        %8639 = vmatpush.msra.mxu0 %v2275
        %8640 = vmatmul.f32.gmra.mxu0 %v7720
        %v8641 = vpop.f32.mrf.mxu0
        %v8642 = vadd.f32 %v8613, %v8641
        %8643 = vmatmul.f32.gmra.mxu0 %v7723
        %v8644 = vpop.f32.mrf.mxu0
        %v8645 = vadd.f32 %v8616, %v8644
        %8646 = vmatmul.f32.gmra.mxu0 %v7726
        %v8647 = vpop.f32.mrf.mxu0
        %v8648 = vadd.f32 %v8619, %v8647
        %8649 = vmatmul.f32.gmra.mxu0 %v7729
        %v8650 = vpop.f32.mrf.mxu0
        %v8651 = vadd.f32 %v8622, %v8650
        %8652 = vdwg.mxu0
        %8653 = vmatpush.msra.mxu0 %v2274
        %8654 = vmatpush.msra.mxu0 %v2272
        %8655 = vmatpush.msra.mxu0 %v2270
        %8656 = vmatpush.msra.mxu0 %v2268
        %8657 = vmatpush.msra.mxu0 %v2266
        %8658 = vmatpush.msra.mxu0 %v2264
        %8659 = vmatpush.msra.mxu0 %v2262
        %8660 = vmatpush.msra.mxu0 %v2260
        %8661 = vmatpush.msra.mxu0 %v2258
        %8662 = vmatpush.msra.mxu0 %v2256
        %8663 = vmatpush.msra.mxu0 %v2254
        %8664 = vmatpush.msra.mxu0 %v2252
        %8665 = vmatpush.msra.mxu0 %v2250
        %8666 = vmatpush.msra.mxu0 %v2248
        %8667 = vmatpush.msra.mxu0 %v2246
        %8668 = vmatpush.msra.mxu0 %v2244
        %8669 = vmatmul.f32.gmra.mxu0 %v7595
        %v8670 = vpop.f32.mrf.mxu0
        %v8671 = vadd.f32 0.0, %v8670
        %8672 = vmatmul.f32.gmra.mxu0 %v7598
        %v8673 = vpop.f32.mrf.mxu0
        %v8674 = vadd.f32 0.0, %v8673
        %8675 = vmatmul.f32.gmra.mxu0 %v7601
        %v8676 = vpop.f32.mrf.mxu0
        %v8677 = vadd.f32 0.0, %v8676
        %8678 = vmatmul.f32.gmra.mxu0 %v7604
        %v8679 = vpop.f32.mrf.mxu0
        %v8680 = vadd.f32 0.0, %v8679
        %8681 = vdwg.mxu0
        %8682 = vmatpush.msra.mxu0 %v2306
        %8683 = vmatpush.msra.mxu0 %v2304
        %8684 = vmatpush.msra.mxu0 %v2302
        %8685 = vmatpush.msra.mxu0 %v2300
        %8686 = vmatpush.msra.mxu0 %v2298
        %8687 = vmatpush.msra.mxu0 %v2296
        %8688 = vmatpush.msra.mxu0 %v2294
        %8689 = vmatpush.msra.mxu0 %v2292
        %8690 = vmatpush.msra.mxu0 %v2290
        %8691 = vmatpush.msra.mxu0 %v2288
        %8692 = vmatpush.msra.mxu0 %v2286
        %8693 = vmatpush.msra.mxu0 %v2284
        %8694 = vmatpush.msra.mxu0 %v2282
        %8695 = vmatpush.msra.mxu0 %v2280
        %8696 = vmatpush.msra.mxu0 %v2278
        %8697 = vmatpush.msra.mxu0 %v2276
        %8698 = vmatmul.f32.gmra.mxu0 %v7720
        %v8699 = vpop.f32.mrf.mxu0
        %v8700 = vadd.f32 %v8671, %v8699
        %8701 = vmatmul.f32.gmra.mxu0 %v7723
        %v8702 = vpop.f32.mrf.mxu0
        %v8703 = vadd.f32 %v8674, %v8702
        %8704 = vmatmul.f32.gmra.mxu0 %v7726
        %v8705 = vpop.f32.mrf.mxu0
        %v8706 = vadd.f32 %v8677, %v8705
        %8707 = vmatmul.f32.gmra.mxu0 %v7729
        %v8708 = vpop.f32.mrf.mxu0
        %v8709 = vadd.f32 %v8680, %v8708
        %8710 = vdwg.mxu0
        %v8711 = vadd.f32 %v8587, %v8642
        %v8712 = vadd.f32 %v8588, %v8700
        %v8713 = vadd.f32 %v8589, %v8645
        %v8714 = vadd.f32 %v8590, %v8703
        %v8715 = vadd.f32 %v8591, %v8648
        %v8716 = vadd.f32 %v8592, %v8706
        %v8717 = vadd.f32 %v8593, %v8651
        %v8718 = vadd.f32 %v8594, %v8709
        %8719 = vmatpush.msra.mxu0 %v2462
        %8720 = vmatpush.msra.mxu0 %v2460
        %8721 = vmatpush.msra.mxu0 %v2458
        %8722 = vmatpush.msra.mxu0 %v2456
        %8723 = vmatpush.msra.mxu0 %v2454
        %8724 = vmatpush.msra.mxu0 %v2452
        %8725 = vmatpush.msra.mxu0 %v2450
        %8726 = vmatpush.msra.mxu0 %v2448
        %8727 = vmatpush.msra.mxu0 %v2446
        %8728 = vmatpush.msra.mxu0 %v2444
        %8729 = vmatpush.msra.mxu0 %v2442
        %8730 = vmatpush.msra.mxu0 %v2440
        %8731 = vmatpush.msra.mxu0 %v2438
        %8732 = vmatpush.msra.mxu0 %v2436
        %8733 = vmatpush.msra.mxu0 %v2434
        %8734 = vmatpush.msra.mxu0 %v2432
        %8735 = vmatmul.f32.gmra.mxu0 %v7607
        %v8736 = vpop.f32.mrf.mxu0
        %v8737 = vadd.f32 0.0, %v8736
        %8738 = vmatmul.f32.gmra.mxu0 %v7610
        %v8739 = vpop.f32.mrf.mxu0
        %v8740 = vadd.f32 0.0, %v8739
        %8741 = vmatmul.f32.gmra.mxu0 %v7613
        %v8742 = vpop.f32.mrf.mxu0
        %v8743 = vadd.f32 0.0, %v8742
        %8744 = vmatmul.f32.gmra.mxu0 %v7616
        %v8745 = vpop.f32.mrf.mxu0
        %v8746 = vadd.f32 0.0, %v8745
        %8747 = vdwg.mxu0
        %8748 = vmatpush.msra.mxu0 %v2494
        %8749 = vmatpush.msra.mxu0 %v2492
        %8750 = vmatpush.msra.mxu0 %v2490
        %8751 = vmatpush.msra.mxu0 %v2488
        %8752 = vmatpush.msra.mxu0 %v2486
        %8753 = vmatpush.msra.mxu0 %v2484
        %8754 = vmatpush.msra.mxu0 %v2482
        %8755 = vmatpush.msra.mxu0 %v2480
        %8756 = vmatpush.msra.mxu0 %v2478
        %8757 = vmatpush.msra.mxu0 %v2476
        %8758 = vmatpush.msra.mxu0 %v2474
        %8759 = vmatpush.msra.mxu0 %v2472
        %8760 = vmatpush.msra.mxu0 %v2470
        %8761 = vmatpush.msra.mxu0 %v2468
        %8762 = vmatpush.msra.mxu0 %v2466
        %8763 = vmatpush.msra.mxu0 %v2464
        %8764 = vmatmul.f32.gmra.mxu0 %v7732
        %v8765 = vpop.f32.mrf.mxu0
        %v8766 = vadd.f32 %v8737, %v8765
        %8767 = vmatmul.f32.gmra.mxu0 %v7735
        %v8768 = vpop.f32.mrf.mxu0
        %v8769 = vadd.f32 %v8740, %v8768
        %8770 = vmatmul.f32.gmra.mxu0 %v7738
        %v8771 = vpop.f32.mrf.mxu0
        %v8772 = vadd.f32 %v8743, %v8771
        %8773 = vmatmul.f32.gmra.mxu0 %v7741
        %v8774 = vpop.f32.mrf.mxu0
        %v8775 = vadd.f32 %v8746, %v8774
        %8776 = vdwg.mxu0
        %8777 = vmatpush.msra.mxu0 %v2463
        %8778 = vmatpush.msra.mxu0 %v2461
        %8779 = vmatpush.msra.mxu0 %v2459
        %8780 = vmatpush.msra.mxu0 %v2457
        %8781 = vmatpush.msra.mxu0 %v2455
        %8782 = vmatpush.msra.mxu0 %v2453
        %8783 = vmatpush.msra.mxu0 %v2451
        %8784 = vmatpush.msra.mxu0 %v2449
        %8785 = vmatpush.msra.mxu0 %v2447
        %8786 = vmatpush.msra.mxu0 %v2445
        %8787 = vmatpush.msra.mxu0 %v2443
        %8788 = vmatpush.msra.mxu0 %v2441
        %8789 = vmatpush.msra.mxu0 %v2439
        %8790 = vmatpush.msra.mxu0 %v2437
        %8791 = vmatpush.msra.mxu0 %v2435
        %8792 = vmatpush.msra.mxu0 %v2433
        %8793 = vmatmul.f32.gmra.mxu0 %v7607
        %v8794 = vpop.f32.mrf.mxu0
        %v8795 = vadd.f32 0.0, %v8794
        %8796 = vmatmul.f32.gmra.mxu0 %v7610
        %v8797 = vpop.f32.mrf.mxu0
        %v8798 = vadd.f32 0.0, %v8797
        %8799 = vmatmul.f32.gmra.mxu0 %v7613
        %v8800 = vpop.f32.mrf.mxu0
        %v8801 = vadd.f32 0.0, %v8800
        %8802 = vmatmul.f32.gmra.mxu0 %v7616
        %v8803 = vpop.f32.mrf.mxu0
        %v8804 = vadd.f32 0.0, %v8803
        %8805 = vdwg.mxu0
        %8806 = vmatpush.msra.mxu0 %v2495
        %8807 = vmatpush.msra.mxu0 %v2493
        %8808 = vmatpush.msra.mxu0 %v2491
        %8809 = vmatpush.msra.mxu0 %v2489
        %8810 = vmatpush.msra.mxu0 %v2487
        %8811 = vmatpush.msra.mxu0 %v2485
        %8812 = vmatpush.msra.mxu0 %v2483
        %8813 = vmatpush.msra.mxu0 %v2481
        %8814 = vmatpush.msra.mxu0 %v2479
        %8815 = vmatpush.msra.mxu0 %v2477
        %8816 = vmatpush.msra.mxu0 %v2475
        %8817 = vmatpush.msra.mxu0 %v2473
        %8818 = vmatpush.msra.mxu0 %v2471
        %8819 = vmatpush.msra.mxu0 %v2469
        %8820 = vmatpush.msra.mxu0 %v2467
        %8821 = vmatpush.msra.mxu0 %v2465
        %8822 = vmatmul.f32.gmra.mxu0 %v7732
        %v8823 = vpop.f32.mrf.mxu0
        %v8824 = vadd.f32 %v8795, %v8823
        %8825 = vmatmul.f32.gmra.mxu0 %v7735
        %v8826 = vpop.f32.mrf.mxu0
        %v8827 = vadd.f32 %v8798, %v8826
        %8828 = vmatmul.f32.gmra.mxu0 %v7738
        %v8829 = vpop.f32.mrf.mxu0
        %v8830 = vadd.f32 %v8801, %v8829
        %8831 = vmatmul.f32.gmra.mxu0 %v7741
        %v8832 = vpop.f32.mrf.mxu0
        %v8833 = vadd.f32 %v8804, %v8832
        %8834 = vdwg.mxu0
        %v8835 = vadd.f32 %v8711, %v8766
        %v8836 = vadd.f32 %v8712, %v8824
        %v8837 = vadd.f32 %v8713, %v8769
        %v8838 = vadd.f32 %v8714, %v8827
        %v8839 = vadd.f32 %v8715, %v8772
        %v8840 = vadd.f32 %v8716, %v8830
        %v8841 = vadd.f32 %v8717, %v8775
        %v8842 = vadd.f32 %v8718, %v8833
        %8844 = vset.pattern.permute.xlu0 0
        %8845 = vperm.xlu0 %8844, %v7381
        %v8846 = vpop.permute.xlu0 %8845
        %8849 = vset.pattern.permute.xlu0 0
        %8850 = vperm.xlu0 %8849, %v7382
        %v8851 = vpop.permute.xlu0 %8850
        %8854 = vset.pattern.permute.xlu0 0
        %8855 = vperm.xlu0 %8854, %v7383
        %v8856 = vpop.permute.xlu0 %8855
        %8859 = vset.pattern.permute.xlu0 0
        %8860 = vperm.xlu0 %8859, %v7384
        %v8861 = vpop.permute.xlu0 %8860
        %v8863 = vadd.f32 %v8835, %v8846
        %v8864 = vadd.f32 %v8836, %v8846
        %v8865 = vadd.f32 %v8837, %v8851
        %v8866 = vadd.f32 %v8838, %v8851
        %v8867 = vadd.f32 %v8839, %v8856
        %v8868 = vadd.f32 %v8840, %v8856
        %v8869 = vadd.f32 %v8841, %v8861
        %v8870 = vadd.f32 %v8842, %v8861
        %v8871 = vmax.f32 %v8863, 0.0
        %v8872 = vmax.f32 %v8864, 0.0
        %v8873 = vmax.f32 %v8865, 0.0
        %v8874 = vmax.f32 %v8866, 0.0
        %v8875 = vmax.f32 %v8867, 0.0
        %v8876 = vmax.f32 %v8868, 0.0
        %v8877 = vmax.f32 %v8869, 0.0
        %v8878 = vmax.f32 %v8870, 0.0
        %s8879 = scalar_lea.vmem %s6, 576
        %v8880 = vld [vmem:[%s8879] sm:$0xff]
        %v8881 = vld [vmem:[%s8879 + $0x8] sm:$0xff]
        %v8882 = vld [vmem:[%s8879 + $0x10] sm:$0xff]
        %v8883 = vld [vmem:[%s8879 + $0x18] sm:$0xff]
        %v8884 = vld [vmem:[%s8879 + $0x20] sm:$0xff]
        %v8885 = vld [vmem:[%s8879 + $0x28] sm:$0xff]
        %v8886 = vld [vmem:[%s8879 + $0x30] sm:$0xff]
        %v8887 = vld [vmem:[%s8879 + $0x38] sm:$0xff]
        %v8888 = vld [vmem:[%s8879 + $0x40] sm:$0xff]
        %v8889 = vld [vmem:[%s8879 + $0x48] sm:$0xff]
        %v8890 = vld [vmem:[%s8879 + $0x50] sm:$0xff]
        %v8891 = vld [vmem:[%s8879 + $0x58] sm:$0xff]
        %v8892 = vld [vmem:[%s8879 + $0x60] sm:$0xff]
        %v8893 = vld [vmem:[%s8879 + $0x68] sm:$0xff]
        %v8894 = vld [vmem:[%s8879 + $0x70] sm:$0xff]
        %v8895 = vld [vmem:[%s8879 + $0x78] sm:$0xff]
        %v8896 = vld [vmem:[%s8879 + $0x80] sm:$0xff]
        %v8897 = vld [vmem:[%s8879 + $0x88] sm:$0xff]
        %v8898 = vld [vmem:[%s8879 + $0x90] sm:$0xff]
        %v8899 = vld [vmem:[%s8879 + $0x98] sm:$0xff]
        %v8900 = vld [vmem:[%s8879 + $0xa0] sm:$0xff]
        %v8901 = vld [vmem:[%s8879 + $0xa8] sm:$0xff]
        %v8902 = vld [vmem:[%s8879 + $0xb0] sm:$0xff]
        %v8903 = vld [vmem:[%s8879 + $0xb8] sm:$0xff]
        %v8904 = vld [vmem:[%s8879 + $0xc0] sm:$0xff]
        %v8905 = vld [vmem:[%s8879 + $0xc8] sm:$0xff]
        %v8906 = vld [vmem:[%s8879 + $0xd0] sm:$0xff]
        %v8907 = vld [vmem:[%s8879 + $0xd8] sm:$0xff]
        %v8908 = vld [vmem:[%s8879 + $0xe0] sm:$0xff]
        %v8909 = vld [vmem:[%s8879 + $0xe8] sm:$0xff]
        %v8910 = vld [vmem:[%s8879 + $0xf0] sm:$0xff]
        %v8911 = vld [vmem:[%s8879 + $0xf8] sm:$0xff]
        %v8912 = vld [vmem:[%s8879 + $0x100] sm:$0xff]
        %v8913 = vld [vmem:[%s8879 + $0x108] sm:$0xff]
        %v8914 = vld [vmem:[%s8879 + $0x110] sm:$0xff]
        %v8915 = vld [vmem:[%s8879 + $0x118] sm:$0xff]
        %s8916 = scalar_lea.vmem %s7, 64
        %v8917 = vld [vmem:[%s8916] sm:$0xff]
        %v8918 = vld [vmem:[%s8916 + $0x8] sm:$0xff]
        %v8919 = vld [vmem:[%s8916 + $0x10] sm:$0xff]
        %v8920 = vld [vmem:[%s8916 + $0x18] sm:$0xff]
        %v8922 = vsel %vm577, %v8880, 0
        %v8925 = vsel %vm577, %v8881, 0
        %v8928 = vsel %vm577, %v8882, 0
        %v8931 = vsel %vm577, %v8883, 0
        %v8934 = vsel %vm577, %v8884, 0
        %v8937 = vsel %vm577, %v8885, 0
        %v8940 = vsel %vm577, %v8886, 0
        %v8943 = vsel %vm577, %v8887, 0
        %v8946 = vsel %vm577, %v8888, 0
        %v8949 = vsel %vm577, %v8889, 0
        %v8952 = vsel %vm577, %v8890, 0
        %v8955 = vsel %vm577, %v8891, 0
        %v8958 = vsel %vm577, %v8892, 0
        %v8961 = vsel %vm577, %v8893, 0
        %v8964 = vsel %vm577, %v8894, 0
        %v8967 = vsel %vm577, %v8895, 0
        %v8970 = vsel %vm577, %v8896, 0
        %v8973 = vsel %vm577, %v8897, 0
        %v8976 = vsel %vm577, %v8898, 0
        %v8979 = vsel %vm577, %v8899, 0
        %v8982 = vsel %vm577, %v8900, 0
        %v8985 = vsel %vm577, %v8901, 0
        %v8988 = vsel %vm577, %v8902, 0
        %v8991 = vsel %vm577, %v8903, 0
        %v8994 = vsel %vm577, %v8904, 0
        %v8997 = vsel %vm577, %v8905, 0
        %v9000 = vsel %vm577, %v8906, 0
        %v9003 = vsel %vm577, %v8907, 0
        %v9006 = vsel %vm577, %v8908, 0
        %v9009 = vsel %vm577, %v8909, 0
        %v9012 = vsel %vm577, %v8910, 0
        %v9015 = vsel %vm577, %v8911, 0
        %v9018 = vsel %vm577, %v8912, 0
        %v9021 = vsel %vm577, %v8913, 0
        %v9024 = vsel %vm577, %v8914, 0
        %v9027 = vsel %vm577, %v8915, 0
        %9029 = vmatpush.msra.mxu0 0.0
        %9030 = vmatpush.msra.mxu0 0.0
        %9031 = vmatpush.msra.mxu0 0.0
        %9032 = vmatpush.msra.mxu0 0.0
        %9033 = vmatpush.msra.mxu0 0.0
        %9034 = vmatpush.msra.mxu0 0.0
        %9035 = vmatpush.msra.mxu0 0.0
        %9036 = vmatpush.msra.mxu0 0.0
        %9037 = vmatpush.msra.mxu0 0.0
        %9038 = vmatpush.msra.mxu0 0.0
        %9039 = vmatpush.msra.mxu0 0.0
        %9040 = vmatpush.msra.mxu0 0.0
        %9041 = vmatpush.msra.mxu0 %v8877
        %9042 = vmatpush.msra.mxu0 %v8875
        %9043 = vmatpush.msra.mxu0 %v8873
        %9044 = vmatpush.msra.mxu0 %v8871
        %9045 = vmatmul.f32.gmra.mxu0 %v8922
        %v9046 = vpop.f32.mrf.mxu0
        %v9047 = vadd.f32 0.0, %v9046
        %9048 = vmatmul.f32.gmra.mxu0 %v8925
        %v9049 = vpop.f32.mrf.mxu0
        %v9050 = vadd.f32 0.0, %v9049
        %9051 = vmatmul.f32.gmra.mxu0 %v8928
        %v9052 = vpop.f32.mrf.mxu0
        %v9053 = vadd.f32 0.0, %v9052
        %9054 = vmatmul.f32.gmra.mxu0 %v8931
        %v9055 = vpop.f32.mrf.mxu0
        %v9056 = vadd.f32 0.0, %v9055
        %9057 = vmatmul.f32.gmra.mxu0 %v8934
        %v9058 = vpop.f32.mrf.mxu0
        %v9059 = vadd.f32 0.0, %v9058
        %9060 = vmatmul.f32.gmra.mxu0 %v8937
        %v9061 = vpop.f32.mrf.mxu0
        %v9062 = vadd.f32 0.0, %v9061
        %9063 = vmatmul.f32.gmra.mxu0 %v8940
        %v9064 = vpop.f32.mrf.mxu0
        %v9065 = vadd.f32 0.0, %v9064
        %9066 = vmatmul.f32.gmra.mxu0 %v8943
        %v9067 = vpop.f32.mrf.mxu0
        %v9068 = vadd.f32 0.0, %v9067
        %9069 = vmatmul.f32.gmra.mxu0 %v8946
        %v9070 = vpop.f32.mrf.mxu0
        %v9071 = vadd.f32 0.0, %v9070
        %9072 = vmatmul.f32.gmra.mxu0 %v8949
        %v9073 = vpop.f32.mrf.mxu0
        %v9074 = vadd.f32 0.0, %v9073
        %9075 = vmatmul.f32.gmra.mxu0 %v8952
        %v9076 = vpop.f32.mrf.mxu0
        %v9077 = vadd.f32 0.0, %v9076
        %9078 = vmatmul.f32.gmra.mxu0 %v8955
        %v9079 = vpop.f32.mrf.mxu0
        %v9080 = vadd.f32 0.0, %v9079
        %9081 = vmatmul.f32.gmra.mxu0 %v8958
        %v9082 = vpop.f32.mrf.mxu0
        %v9083 = vadd.f32 0.0, %v9082
        %9084 = vmatmul.f32.gmra.mxu0 %v8961
        %v9085 = vpop.f32.mrf.mxu0
        %v9086 = vadd.f32 0.0, %v9085
        %9087 = vmatmul.f32.gmra.mxu0 %v8964
        %v9088 = vpop.f32.mrf.mxu0
        %v9089 = vadd.f32 0.0, %v9088
        %9090 = vmatmul.f32.gmra.mxu0 %v8967
        %v9091 = vpop.f32.mrf.mxu0
        %v9092 = vadd.f32 0.0, %v9091
        %9093 = vmatmul.f32.gmra.mxu0 %v8970
        %v9094 = vpop.f32.mrf.mxu0
        %v9095 = vadd.f32 0.0, %v9094
        %9096 = vmatmul.f32.gmra.mxu0 %v8973
        %v9097 = vpop.f32.mrf.mxu0
        %v9098 = vadd.f32 0.0, %v9097
        %9099 = vmatmul.f32.gmra.mxu0 %v8976
        %v9100 = vpop.f32.mrf.mxu0
        %v9101 = vadd.f32 0.0, %v9100
        %9102 = vmatmul.f32.gmra.mxu0 %v8979
        %v9103 = vpop.f32.mrf.mxu0
        %v9104 = vadd.f32 0.0, %v9103
        %9105 = vmatmul.f32.gmra.mxu0 %v8982
        %v9106 = vpop.f32.mrf.mxu0
        %v9107 = vadd.f32 0.0, %v9106
        %9108 = vmatmul.f32.gmra.mxu0 %v8985
        %v9109 = vpop.f32.mrf.mxu0
        %v9110 = vadd.f32 0.0, %v9109
        %9111 = vmatmul.f32.gmra.mxu0 %v8988
        %v9112 = vpop.f32.mrf.mxu0
        %v9113 = vadd.f32 0.0, %v9112
        %9114 = vmatmul.f32.gmra.mxu0 %v8991
        %v9115 = vpop.f32.mrf.mxu0
        %v9116 = vadd.f32 0.0, %v9115
        %9117 = vmatmul.f32.gmra.mxu0 %v8994
        %v9118 = vpop.f32.mrf.mxu0
        %v9119 = vadd.f32 0.0, %v9118
        %9120 = vmatmul.f32.gmra.mxu0 %v8997
        %v9121 = vpop.f32.mrf.mxu0
        %v9122 = vadd.f32 0.0, %v9121
        %9123 = vmatmul.f32.gmra.mxu0 %v9000
        %v9124 = vpop.f32.mrf.mxu0
        %v9125 = vadd.f32 0.0, %v9124
        %9126 = vmatmul.f32.gmra.mxu0 %v9003
        %v9127 = vpop.f32.mrf.mxu0
        %v9128 = vadd.f32 0.0, %v9127
        %9129 = vmatmul.f32.gmra.mxu0 %v9006
        %v9130 = vpop.f32.mrf.mxu0
        %v9131 = vadd.f32 0.0, %v9130
        %9132 = vmatmul.f32.gmra.mxu0 %v9009
        %v9133 = vpop.f32.mrf.mxu0
        %v9134 = vadd.f32 0.0, %v9133
        %9135 = vmatmul.f32.gmra.mxu0 %v9012
        %v9136 = vpop.f32.mrf.mxu0
        %v9137 = vadd.f32 0.0, %v9136
        %9138 = vmatmul.f32.gmra.mxu0 %v9015
        %v9139 = vpop.f32.mrf.mxu0
        %v9140 = vadd.f32 0.0, %v9139
        %9141 = vmatmul.f32.gmra.mxu0 %v9018
        %v9142 = vpop.f32.mrf.mxu0
        %v9143 = vadd.f32 0.0, %v9142
        %9144 = vmatmul.f32.gmra.mxu0 %v9021
        %v9145 = vpop.f32.mrf.mxu0
        %v9146 = vadd.f32 0.0, %v9145
        %9147 = vmatmul.f32.gmra.mxu0 %v9024
        %v9148 = vpop.f32.mrf.mxu0
        %v9149 = vadd.f32 0.0, %v9148
        %9150 = vmatmul.f32.gmra.mxu0 %v9027
        %v9151 = vpop.f32.mrf.mxu0
        %v9152 = vadd.f32 0.0, %v9151
        %9153 = vdwg.mxu0
        %9154 = vmatpush.msra.mxu0 0.0
        %9155 = vmatpush.msra.mxu0 0.0
        %9156 = vmatpush.msra.mxu0 0.0
        %9157 = vmatpush.msra.mxu0 0.0
        %9158 = vmatpush.msra.mxu0 0.0
        %9159 = vmatpush.msra.mxu0 0.0
        %9160 = vmatpush.msra.mxu0 0.0
        %9161 = vmatpush.msra.mxu0 0.0
        %9162 = vmatpush.msra.mxu0 0.0
        %9163 = vmatpush.msra.mxu0 0.0
        %9164 = vmatpush.msra.mxu0 0.0
        %9165 = vmatpush.msra.mxu0 0.0
        %9166 = vmatpush.msra.mxu0 %v8878
        %9167 = vmatpush.msra.mxu0 %v8876
        %9168 = vmatpush.msra.mxu0 %v8874
        %9169 = vmatpush.msra.mxu0 %v8872
        %9170 = vmatmul.f32.gmra.mxu0 %v8922
        %v9171 = vpop.f32.mrf.mxu0
        %v9172 = vadd.f32 0.0, %v9171
        %9173 = vmatmul.f32.gmra.mxu0 %v8925
        %v9174 = vpop.f32.mrf.mxu0
        %v9175 = vadd.f32 0.0, %v9174
        %9176 = vmatmul.f32.gmra.mxu0 %v8928
        %v9177 = vpop.f32.mrf.mxu0
        %v9178 = vadd.f32 0.0, %v9177
        %9179 = vmatmul.f32.gmra.mxu0 %v8931
        %v9180 = vpop.f32.mrf.mxu0
        %v9181 = vadd.f32 0.0, %v9180
        %9182 = vmatmul.f32.gmra.mxu0 %v8934
        %v9183 = vpop.f32.mrf.mxu0
        %v9184 = vadd.f32 0.0, %v9183
        %9185 = vmatmul.f32.gmra.mxu0 %v8937
        %v9186 = vpop.f32.mrf.mxu0
        %v9187 = vadd.f32 0.0, %v9186
        %9188 = vmatmul.f32.gmra.mxu0 %v8940
        %v9189 = vpop.f32.mrf.mxu0
        %v9190 = vadd.f32 0.0, %v9189
        %9191 = vmatmul.f32.gmra.mxu0 %v8943
        %v9192 = vpop.f32.mrf.mxu0
        %v9193 = vadd.f32 0.0, %v9192
        %9194 = vmatmul.f32.gmra.mxu0 %v8946
        %v9195 = vpop.f32.mrf.mxu0
        %v9196 = vadd.f32 0.0, %v9195
        %9197 = vmatmul.f32.gmra.mxu0 %v8949
        %v9198 = vpop.f32.mrf.mxu0
        %v9199 = vadd.f32 0.0, %v9198
        %9200 = vmatmul.f32.gmra.mxu0 %v8952
        %v9201 = vpop.f32.mrf.mxu0
        %v9202 = vadd.f32 0.0, %v9201
        %9203 = vmatmul.f32.gmra.mxu0 %v8955
        %v9204 = vpop.f32.mrf.mxu0
        %v9205 = vadd.f32 0.0, %v9204
        %9206 = vmatmul.f32.gmra.mxu0 %v8958
        %v9207 = vpop.f32.mrf.mxu0
        %v9208 = vadd.f32 0.0, %v9207
        %9209 = vmatmul.f32.gmra.mxu0 %v8961
        %v9210 = vpop.f32.mrf.mxu0
        %v9211 = vadd.f32 0.0, %v9210
        %9212 = vmatmul.f32.gmra.mxu0 %v8964
        %v9213 = vpop.f32.mrf.mxu0
        %v9214 = vadd.f32 0.0, %v9213
        %9215 = vmatmul.f32.gmra.mxu0 %v8967
        %v9216 = vpop.f32.mrf.mxu0
        %v9217 = vadd.f32 0.0, %v9216
        %9218 = vmatmul.f32.gmra.mxu0 %v8970
        %v9219 = vpop.f32.mrf.mxu0
        %v9220 = vadd.f32 0.0, %v9219
        %9221 = vmatmul.f32.gmra.mxu0 %v8973
        %v9222 = vpop.f32.mrf.mxu0
        %v9223 = vadd.f32 0.0, %v9222
        %9224 = vmatmul.f32.gmra.mxu0 %v8976
        %v9225 = vpop.f32.mrf.mxu0
        %v9226 = vadd.f32 0.0, %v9225
        %9227 = vmatmul.f32.gmra.mxu0 %v8979
        %v9228 = vpop.f32.mrf.mxu0
        %v9229 = vadd.f32 0.0, %v9228
        %9230 = vmatmul.f32.gmra.mxu0 %v8982
        %v9231 = vpop.f32.mrf.mxu0
        %v9232 = vadd.f32 0.0, %v9231
        %9233 = vmatmul.f32.gmra.mxu0 %v8985
        %v9234 = vpop.f32.mrf.mxu0
        %v9235 = vadd.f32 0.0, %v9234
        %9236 = vmatmul.f32.gmra.mxu0 %v8988
        %v9237 = vpop.f32.mrf.mxu0
        %v9238 = vadd.f32 0.0, %v9237
        %9239 = vmatmul.f32.gmra.mxu0 %v8991
        %v9240 = vpop.f32.mrf.mxu0
        %v9241 = vadd.f32 0.0, %v9240
        %9242 = vmatmul.f32.gmra.mxu0 %v8994
        %v9243 = vpop.f32.mrf.mxu0
        %v9244 = vadd.f32 0.0, %v9243
        %9245 = vmatmul.f32.gmra.mxu0 %v8997
        %v9246 = vpop.f32.mrf.mxu0
        %v9247 = vadd.f32 0.0, %v9246
        %9248 = vmatmul.f32.gmra.mxu0 %v9000
        %v9249 = vpop.f32.mrf.mxu0
        %v9250 = vadd.f32 0.0, %v9249
        %9251 = vmatmul.f32.gmra.mxu0 %v9003
        %v9252 = vpop.f32.mrf.mxu0
        %v9253 = vadd.f32 0.0, %v9252
        %9254 = vmatmul.f32.gmra.mxu0 %v9006
        %v9255 = vpop.f32.mrf.mxu0
        %v9256 = vadd.f32 0.0, %v9255
        %9257 = vmatmul.f32.gmra.mxu0 %v9009
        %v9258 = vpop.f32.mrf.mxu0
        %v9259 = vadd.f32 0.0, %v9258
        %9260 = vmatmul.f32.gmra.mxu0 %v9012
        %v9261 = vpop.f32.mrf.mxu0
        %v9262 = vadd.f32 0.0, %v9261
        %9263 = vmatmul.f32.gmra.mxu0 %v9015
        %v9264 = vpop.f32.mrf.mxu0
        %v9265 = vadd.f32 0.0, %v9264
        %9266 = vmatmul.f32.gmra.mxu0 %v9018
        %v9267 = vpop.f32.mrf.mxu0
        %v9268 = vadd.f32 0.0, %v9267
        %9269 = vmatmul.f32.gmra.mxu0 %v9021
        %v9270 = vpop.f32.mrf.mxu0
        %v9271 = vadd.f32 0.0, %v9270
        %9272 = vmatmul.f32.gmra.mxu0 %v9024
        %v9273 = vpop.f32.mrf.mxu0
        %v9274 = vadd.f32 0.0, %v9273
        %9275 = vmatmul.f32.gmra.mxu0 %v9027
        %v9276 = vpop.f32.mrf.mxu0
        %v9277 = vadd.f32 0.0, %v9276
        %9278 = vdwg.mxu0
        %9279 = vmatpush.msra.mxu0 %v1031
        %9280 = vmatpush.msra.mxu0 %v1029
        %9281 = vmatpush.msra.mxu0 %v1027
        %9282 = vmatpush.msra.mxu0 %v1025
        %9283 = vmatpush.msra.mxu0 %v1023
        %9284 = vmatpush.msra.mxu0 %v1021
        %9285 = vmatpush.msra.mxu0 %v1019
        %9286 = vmatpush.msra.mxu0 %v1017
        %9287 = vmatpush.msra.mxu0 %v1015
        %9288 = vmatpush.msra.mxu0 %v1013
        %9289 = vmatpush.msra.mxu0 %v1011
        %9290 = vmatpush.msra.mxu0 %v1009
        %9291 = vmatpush.msra.mxu0 %v1007
        %9292 = vmatpush.msra.mxu0 %v1005
        %9293 = vmatpush.msra.mxu0 %v1003
        %9294 = vmatpush.msra.mxu0 %v1001
        %9295 = vmatmul.f32.gmra.mxu0 %v9059
        %v9296 = vpop.f32.mrf.mxu0
        %v9297 = vadd.f32 0.0, %v9296
        %9298 = vmatmul.f32.gmra.mxu0 %v9062
        %v9299 = vpop.f32.mrf.mxu0
        %v9300 = vadd.f32 0.0, %v9299
        %9301 = vmatmul.f32.gmra.mxu0 %v9065
        %v9302 = vpop.f32.mrf.mxu0
        %v9303 = vadd.f32 0.0, %v9302
        %9304 = vmatmul.f32.gmra.mxu0 %v9068
        %v9305 = vpop.f32.mrf.mxu0
        %v9306 = vadd.f32 0.0, %v9305
        %9307 = vdwg.mxu0
        %9308 = vmatpush.msra.mxu0 %v1063
        %9309 = vmatpush.msra.mxu0 %v1061
        %9310 = vmatpush.msra.mxu0 %v1059
        %9311 = vmatpush.msra.mxu0 %v1057
        %9312 = vmatpush.msra.mxu0 %v1055
        %9313 = vmatpush.msra.mxu0 %v1053
        %9314 = vmatpush.msra.mxu0 %v1051
        %9315 = vmatpush.msra.mxu0 %v1049
        %9316 = vmatpush.msra.mxu0 %v1047
        %9317 = vmatpush.msra.mxu0 %v1045
        %9318 = vmatpush.msra.mxu0 %v1043
        %9319 = vmatpush.msra.mxu0 %v1041
        %9320 = vmatpush.msra.mxu0 %v1039
        %9321 = vmatpush.msra.mxu0 %v1037
        %9322 = vmatpush.msra.mxu0 %v1035
        %9323 = vmatpush.msra.mxu0 %v1033
        %9324 = vmatmul.f32.gmra.mxu0 %v9184
        %v9325 = vpop.f32.mrf.mxu0
        %v9326 = vadd.f32 %v9297, %v9325
        %9327 = vmatmul.f32.gmra.mxu0 %v9187
        %v9328 = vpop.f32.mrf.mxu0
        %v9329 = vadd.f32 %v9300, %v9328
        %9330 = vmatmul.f32.gmra.mxu0 %v9190
        %v9331 = vpop.f32.mrf.mxu0
        %v9332 = vadd.f32 %v9303, %v9331
        %9333 = vmatmul.f32.gmra.mxu0 %v9193
        %v9334 = vpop.f32.mrf.mxu0
        %v9335 = vadd.f32 %v9306, %v9334
        %9336 = vdwg.mxu0
        %9337 = vmatpush.msra.mxu0 %v1032
        %9338 = vmatpush.msra.mxu0 %v1030
        %9339 = vmatpush.msra.mxu0 %v1028
        %9340 = vmatpush.msra.mxu0 %v1026
        %9341 = vmatpush.msra.mxu0 %v1024
        %9342 = vmatpush.msra.mxu0 %v1022
        %9343 = vmatpush.msra.mxu0 %v1020
        %9344 = vmatpush.msra.mxu0 %v1018
        %9345 = vmatpush.msra.mxu0 %v1016
        %9346 = vmatpush.msra.mxu0 %v1014
        %9347 = vmatpush.msra.mxu0 %v1012
        %9348 = vmatpush.msra.mxu0 %v1010
        %9349 = vmatpush.msra.mxu0 %v1008
        %9350 = vmatpush.msra.mxu0 %v1006
        %9351 = vmatpush.msra.mxu0 %v1004
        %9352 = vmatpush.msra.mxu0 %v1002
        %9353 = vmatmul.f32.gmra.mxu0 %v9059
        %v9354 = vpop.f32.mrf.mxu0
        %v9355 = vadd.f32 0.0, %v9354
        %9356 = vmatmul.f32.gmra.mxu0 %v9062
        %v9357 = vpop.f32.mrf.mxu0
        %v9358 = vadd.f32 0.0, %v9357
        %9359 = vmatmul.f32.gmra.mxu0 %v9065
        %v9360 = vpop.f32.mrf.mxu0
        %v9361 = vadd.f32 0.0, %v9360
        %9362 = vmatmul.f32.gmra.mxu0 %v9068
        %v9363 = vpop.f32.mrf.mxu0
        %v9364 = vadd.f32 0.0, %v9363
        %9365 = vdwg.mxu0
        %9366 = vmatpush.msra.mxu0 %v1064
        %9367 = vmatpush.msra.mxu0 %v1062
        %9368 = vmatpush.msra.mxu0 %v1060
        %9369 = vmatpush.msra.mxu0 %v1058
        %9370 = vmatpush.msra.mxu0 %v1056
        %9371 = vmatpush.msra.mxu0 %v1054
        %9372 = vmatpush.msra.mxu0 %v1052
        %9373 = vmatpush.msra.mxu0 %v1050
        %9374 = vmatpush.msra.mxu0 %v1048
        %9375 = vmatpush.msra.mxu0 %v1046
        %9376 = vmatpush.msra.mxu0 %v1044
        %9377 = vmatpush.msra.mxu0 %v1042
        %9378 = vmatpush.msra.mxu0 %v1040
        %9379 = vmatpush.msra.mxu0 %v1038
        %9380 = vmatpush.msra.mxu0 %v1036
        %9381 = vmatpush.msra.mxu0 %v1034
        %9382 = vmatmul.f32.gmra.mxu0 %v9184
        %v9383 = vpop.f32.mrf.mxu0
        %v9384 = vadd.f32 %v9355, %v9383
        %9385 = vmatmul.f32.gmra.mxu0 %v9187
        %v9386 = vpop.f32.mrf.mxu0
        %v9387 = vadd.f32 %v9358, %v9386
        %9388 = vmatmul.f32.gmra.mxu0 %v9190
        %v9389 = vpop.f32.mrf.mxu0
        %v9390 = vadd.f32 %v9361, %v9389
        %9391 = vmatmul.f32.gmra.mxu0 %v9193
        %v9392 = vpop.f32.mrf.mxu0
        %v9393 = vadd.f32 %v9364, %v9392
        %9394 = vdwg.mxu0
        %9395 = vmatpush.msra.mxu0 %v966
        %9396 = vmatpush.msra.mxu0 %v964
        %9397 = vmatpush.msra.mxu0 %v962
        %9398 = vmatpush.msra.mxu0 %v960
        %9399 = vmatpush.msra.mxu0 %v958
        %9400 = vmatpush.msra.mxu0 %v956
        %9401 = vmatpush.msra.mxu0 %v954
        %9402 = vmatpush.msra.mxu0 %v952
        %9403 = vmatpush.msra.mxu0 %v950
        %9404 = vmatpush.msra.mxu0 %v948
        %9405 = vmatpush.msra.mxu0 %v946
        %9406 = vmatpush.msra.mxu0 %v944
        %9407 = vmatpush.msra.mxu0 %v942
        %9408 = vmatpush.msra.mxu0 %v940
        %9409 = vmatpush.msra.mxu0 %v938
        %9410 = vmatpush.msra.mxu0 %v936
        %9411 = vmatmul.f32.gmra.mxu0 %v9047
        %v9412 = vpop.f32.mrf.mxu0
        %v9413 = vadd.f32 %v9326, %v9412
        %9414 = vmatmul.f32.gmra.mxu0 %v9050
        %v9415 = vpop.f32.mrf.mxu0
        %v9416 = vadd.f32 %v9329, %v9415
        %9417 = vmatmul.f32.gmra.mxu0 %v9053
        %v9418 = vpop.f32.mrf.mxu0
        %v9419 = vadd.f32 %v9332, %v9418
        %9420 = vmatmul.f32.gmra.mxu0 %v9056
        %v9421 = vpop.f32.mrf.mxu0
        %v9422 = vadd.f32 %v9335, %v9421
        %9423 = vdwg.mxu0
        %9424 = vmatpush.msra.mxu0 %v998
        %9425 = vmatpush.msra.mxu0 %v996
        %9426 = vmatpush.msra.mxu0 %v994
        %9427 = vmatpush.msra.mxu0 %v992
        %9428 = vmatpush.msra.mxu0 %v990
        %9429 = vmatpush.msra.mxu0 %v988
        %9430 = vmatpush.msra.mxu0 %v986
        %9431 = vmatpush.msra.mxu0 %v984
        %9432 = vmatpush.msra.mxu0 %v982
        %9433 = vmatpush.msra.mxu0 %v980
        %9434 = vmatpush.msra.mxu0 %v978
        %9435 = vmatpush.msra.mxu0 %v976
        %9436 = vmatpush.msra.mxu0 %v974
        %9437 = vmatpush.msra.mxu0 %v972
        %9438 = vmatpush.msra.mxu0 %v970
        %9439 = vmatpush.msra.mxu0 %v968
        %9440 = vmatmul.f32.gmra.mxu0 %v9172
        %v9441 = vpop.f32.mrf.mxu0
        %v9442 = vadd.f32 %v9413, %v9441
        %9443 = vmatmul.f32.gmra.mxu0 %v9175
        %v9444 = vpop.f32.mrf.mxu0
        %v9445 = vadd.f32 %v9416, %v9444
        %9446 = vmatmul.f32.gmra.mxu0 %v9178
        %v9447 = vpop.f32.mrf.mxu0
        %v9448 = vadd.f32 %v9419, %v9447
        %9449 = vmatmul.f32.gmra.mxu0 %v9181
        %v9450 = vpop.f32.mrf.mxu0
        %v9451 = vadd.f32 %v9422, %v9450
        %9452 = vdwg.mxu0
        %9453 = vmatpush.msra.mxu0 %v967
        %9454 = vmatpush.msra.mxu0 %v965
        %9455 = vmatpush.msra.mxu0 %v963
        %9456 = vmatpush.msra.mxu0 %v961
        %9457 = vmatpush.msra.mxu0 %v959
        %9458 = vmatpush.msra.mxu0 %v957
        %9459 = vmatpush.msra.mxu0 %v955
        %9460 = vmatpush.msra.mxu0 %v953
        %9461 = vmatpush.msra.mxu0 %v951
        %9462 = vmatpush.msra.mxu0 %v949
        %9463 = vmatpush.msra.mxu0 %v947
        %9464 = vmatpush.msra.mxu0 %v945
        %9465 = vmatpush.msra.mxu0 %v943
        %9466 = vmatpush.msra.mxu0 %v941
        %9467 = vmatpush.msra.mxu0 %v939
        %9468 = vmatpush.msra.mxu0 %v937
        %9469 = vmatmul.f32.gmra.mxu0 %v9047
        %v9470 = vpop.f32.mrf.mxu0
        %v9471 = vadd.f32 %v9384, %v9470
        %9472 = vmatmul.f32.gmra.mxu0 %v9050
        %v9473 = vpop.f32.mrf.mxu0
        %v9474 = vadd.f32 %v9387, %v9473
        %9475 = vmatmul.f32.gmra.mxu0 %v9053
        %v9476 = vpop.f32.mrf.mxu0
        %v9477 = vadd.f32 %v9390, %v9476
        %9478 = vmatmul.f32.gmra.mxu0 %v9056
        %v9479 = vpop.f32.mrf.mxu0
        %v9480 = vadd.f32 %v9393, %v9479
        %9481 = vdwg.mxu0
        %9482 = vmatpush.msra.mxu0 %v999
        %9483 = vmatpush.msra.mxu0 %v997
        %9484 = vmatpush.msra.mxu0 %v995
        %9485 = vmatpush.msra.mxu0 %v993
        %9486 = vmatpush.msra.mxu0 %v991
        %9487 = vmatpush.msra.mxu0 %v989
        %9488 = vmatpush.msra.mxu0 %v987
        %9489 = vmatpush.msra.mxu0 %v985
        %9490 = vmatpush.msra.mxu0 %v983
        %9491 = vmatpush.msra.mxu0 %v981
        %9492 = vmatpush.msra.mxu0 %v979
        %9493 = vmatpush.msra.mxu0 %v977
        %9494 = vmatpush.msra.mxu0 %v975
        %9495 = vmatpush.msra.mxu0 %v973
        %9496 = vmatpush.msra.mxu0 %v971
        %9497 = vmatpush.msra.mxu0 %v969
        %9498 = vmatmul.f32.gmra.mxu0 %v9172
        %v9499 = vpop.f32.mrf.mxu0
        %v9500 = vadd.f32 %v9471, %v9499
        %9501 = vmatmul.f32.gmra.mxu0 %v9175
        %v9502 = vpop.f32.mrf.mxu0
        %v9503 = vadd.f32 %v9474, %v9502
        %9504 = vmatmul.f32.gmra.mxu0 %v9178
        %v9505 = vpop.f32.mrf.mxu0
        %v9506 = vadd.f32 %v9477, %v9505
        %9507 = vmatmul.f32.gmra.mxu0 %v9181
        %v9508 = vpop.f32.mrf.mxu0
        %v9509 = vadd.f32 %v9480, %v9508
        %9510 = vdwg.mxu0
        %9511 = vmatpush.msra.mxu0 %v1328
        %9512 = vmatpush.msra.mxu0 %v1326
        %9513 = vmatpush.msra.mxu0 %v1324
        %9514 = vmatpush.msra.mxu0 %v1322
        %9515 = vmatpush.msra.mxu0 %v1320
        %9516 = vmatpush.msra.mxu0 %v1318
        %9517 = vmatpush.msra.mxu0 %v1316
        %9518 = vmatpush.msra.mxu0 %v1314
        %9519 = vmatpush.msra.mxu0 %v1312
        %9520 = vmatpush.msra.mxu0 %v1310
        %9521 = vmatpush.msra.mxu0 %v1308
        %9522 = vmatpush.msra.mxu0 %v1306
        %9523 = vmatpush.msra.mxu0 %v1304
        %9524 = vmatpush.msra.mxu0 %v1302
        %9525 = vmatpush.msra.mxu0 %v1300
        %9526 = vmatpush.msra.mxu0 %v1298
        %9527 = vmatmul.f32.gmra.mxu0 %v9071
        %v9528 = vpop.f32.mrf.mxu0
        %v9529 = vadd.f32 0.0, %v9528
        %9530 = vmatmul.f32.gmra.mxu0 %v9074
        %v9531 = vpop.f32.mrf.mxu0
        %v9532 = vadd.f32 0.0, %v9531
        %9533 = vmatmul.f32.gmra.mxu0 %v9077
        %v9534 = vpop.f32.mrf.mxu0
        %v9535 = vadd.f32 0.0, %v9534
        %9536 = vmatmul.f32.gmra.mxu0 %v9080
        %v9537 = vpop.f32.mrf.mxu0
        %v9538 = vadd.f32 0.0, %v9537
        %9539 = vdwg.mxu0
        %9540 = vmatpush.msra.mxu0 %v1360
        %9541 = vmatpush.msra.mxu0 %v1358
        %9542 = vmatpush.msra.mxu0 %v1356
        %9543 = vmatpush.msra.mxu0 %v1354
        %9544 = vmatpush.msra.mxu0 %v1352
        %9545 = vmatpush.msra.mxu0 %v1350
        %9546 = vmatpush.msra.mxu0 %v1348
        %9547 = vmatpush.msra.mxu0 %v1346
        %9548 = vmatpush.msra.mxu0 %v1344
        %9549 = vmatpush.msra.mxu0 %v1342
        %9550 = vmatpush.msra.mxu0 %v1340
        %9551 = vmatpush.msra.mxu0 %v1338
        %9552 = vmatpush.msra.mxu0 %v1336
        %9553 = vmatpush.msra.mxu0 %v1334
        %9554 = vmatpush.msra.mxu0 %v1332
        %9555 = vmatpush.msra.mxu0 %v1330
        %9556 = vmatmul.f32.gmra.mxu0 %v9196
        %v9557 = vpop.f32.mrf.mxu0
        %v9558 = vadd.f32 %v9529, %v9557
        %9559 = vmatmul.f32.gmra.mxu0 %v9199
        %v9560 = vpop.f32.mrf.mxu0
        %v9561 = vadd.f32 %v9532, %v9560
        %9562 = vmatmul.f32.gmra.mxu0 %v9202
        %v9563 = vpop.f32.mrf.mxu0
        %v9564 = vadd.f32 %v9535, %v9563
        %9565 = vmatmul.f32.gmra.mxu0 %v9205
        %v9566 = vpop.f32.mrf.mxu0
        %v9567 = vadd.f32 %v9538, %v9566
        %9568 = vdwg.mxu0
        %9569 = vmatpush.msra.mxu0 %v1329
        %9570 = vmatpush.msra.mxu0 %v1327
        %9571 = vmatpush.msra.mxu0 %v1325
        %9572 = vmatpush.msra.mxu0 %v1323
        %9573 = vmatpush.msra.mxu0 %v1321
        %9574 = vmatpush.msra.mxu0 %v1319
        %9575 = vmatpush.msra.mxu0 %v1317
        %9576 = vmatpush.msra.mxu0 %v1315
        %9577 = vmatpush.msra.mxu0 %v1313
        %9578 = vmatpush.msra.mxu0 %v1311
        %9579 = vmatpush.msra.mxu0 %v1309
        %9580 = vmatpush.msra.mxu0 %v1307
        %9581 = vmatpush.msra.mxu0 %v1305
        %9582 = vmatpush.msra.mxu0 %v1303
        %9583 = vmatpush.msra.mxu0 %v1301
        %9584 = vmatpush.msra.mxu0 %v1299
        %9585 = vmatmul.f32.gmra.mxu0 %v9071
        %v9586 = vpop.f32.mrf.mxu0
        %v9587 = vadd.f32 0.0, %v9586
        %9588 = vmatmul.f32.gmra.mxu0 %v9074
        %v9589 = vpop.f32.mrf.mxu0
        %v9590 = vadd.f32 0.0, %v9589
        %9591 = vmatmul.f32.gmra.mxu0 %v9077
        %v9592 = vpop.f32.mrf.mxu0
        %v9593 = vadd.f32 0.0, %v9592
        %9594 = vmatmul.f32.gmra.mxu0 %v9080
        %v9595 = vpop.f32.mrf.mxu0
        %v9596 = vadd.f32 0.0, %v9595
        %9597 = vdwg.mxu0
        %9598 = vmatpush.msra.mxu0 %v1361
        %9599 = vmatpush.msra.mxu0 %v1359
        %9600 = vmatpush.msra.mxu0 %v1357
        %9601 = vmatpush.msra.mxu0 %v1355
        %9602 = vmatpush.msra.mxu0 %v1353
        %9603 = vmatpush.msra.mxu0 %v1351
        %9604 = vmatpush.msra.mxu0 %v1349
        %9605 = vmatpush.msra.mxu0 %v1347
        %9606 = vmatpush.msra.mxu0 %v1345
        %9607 = vmatpush.msra.mxu0 %v1343
        %9608 = vmatpush.msra.mxu0 %v1341
        %9609 = vmatpush.msra.mxu0 %v1339
        %9610 = vmatpush.msra.mxu0 %v1337
        %9611 = vmatpush.msra.mxu0 %v1335
        %9612 = vmatpush.msra.mxu0 %v1333
        %9613 = vmatpush.msra.mxu0 %v1331
        %9614 = vmatmul.f32.gmra.mxu0 %v9196
        %v9615 = vpop.f32.mrf.mxu0
        %v9616 = vadd.f32 %v9587, %v9615
        %9617 = vmatmul.f32.gmra.mxu0 %v9199
        %v9618 = vpop.f32.mrf.mxu0
        %v9619 = vadd.f32 %v9590, %v9618
        %9620 = vmatmul.f32.gmra.mxu0 %v9202
        %v9621 = vpop.f32.mrf.mxu0
        %v9622 = vadd.f32 %v9593, %v9621
        %9623 = vmatmul.f32.gmra.mxu0 %v9205
        %v9624 = vpop.f32.mrf.mxu0
        %v9625 = vadd.f32 %v9596, %v9624
        %9626 = vdwg.mxu0
        %v9627 = vadd.f32 %v9442, %v9558
        %v9628 = vadd.f32 %v9500, %v9616
        %v9629 = vadd.f32 %v9445, %v9561
        %v9630 = vadd.f32 %v9503, %v9619
        %v9631 = vadd.f32 %v9448, %v9564
        %v9632 = vadd.f32 %v9506, %v9622
        %v9633 = vadd.f32 %v9451, %v9567
        %v9634 = vadd.f32 %v9509, %v9625
        %9635 = vmatpush.msra.mxu0 %v1517
        %9636 = vmatpush.msra.mxu0 %v1515
        %9637 = vmatpush.msra.mxu0 %v1513
        %9638 = vmatpush.msra.mxu0 %v1511
        %9639 = vmatpush.msra.mxu0 %v1509
        %9640 = vmatpush.msra.mxu0 %v1507
        %9641 = vmatpush.msra.mxu0 %v1505
        %9642 = vmatpush.msra.mxu0 %v1503
        %9643 = vmatpush.msra.mxu0 %v1501
        %9644 = vmatpush.msra.mxu0 %v1499
        %9645 = vmatpush.msra.mxu0 %v1497
        %9646 = vmatpush.msra.mxu0 %v1495
        %9647 = vmatpush.msra.mxu0 %v1493
        %9648 = vmatpush.msra.mxu0 %v1491
        %9649 = vmatpush.msra.mxu0 %v1489
        %9650 = vmatpush.msra.mxu0 %v1487
        %9651 = vmatmul.f32.gmra.mxu0 %v9083
        %v9652 = vpop.f32.mrf.mxu0
        %v9653 = vadd.f32 0.0, %v9652
        %9654 = vmatmul.f32.gmra.mxu0 %v9086
        %v9655 = vpop.f32.mrf.mxu0
        %v9656 = vadd.f32 0.0, %v9655
        %9657 = vmatmul.f32.gmra.mxu0 %v9089
        %v9658 = vpop.f32.mrf.mxu0
        %v9659 = vadd.f32 0.0, %v9658
        %9660 = vmatmul.f32.gmra.mxu0 %v9092
        %v9661 = vpop.f32.mrf.mxu0
        %v9662 = vadd.f32 0.0, %v9661
        %9663 = vdwg.mxu0
        %9664 = vmatpush.msra.mxu0 %v1549
        %9665 = vmatpush.msra.mxu0 %v1547
        %9666 = vmatpush.msra.mxu0 %v1545
        %9667 = vmatpush.msra.mxu0 %v1543
        %9668 = vmatpush.msra.mxu0 %v1541
        %9669 = vmatpush.msra.mxu0 %v1539
        %9670 = vmatpush.msra.mxu0 %v1537
        %9671 = vmatpush.msra.mxu0 %v1535
        %9672 = vmatpush.msra.mxu0 %v1533
        %9673 = vmatpush.msra.mxu0 %v1531
        %9674 = vmatpush.msra.mxu0 %v1529
        %9675 = vmatpush.msra.mxu0 %v1527
        %9676 = vmatpush.msra.mxu0 %v1525
        %9677 = vmatpush.msra.mxu0 %v1523
        %9678 = vmatpush.msra.mxu0 %v1521
        %9679 = vmatpush.msra.mxu0 %v1519
        %9680 = vmatmul.f32.gmra.mxu0 %v9208
        %v9681 = vpop.f32.mrf.mxu0
        %v9682 = vadd.f32 %v9653, %v9681
        %9683 = vmatmul.f32.gmra.mxu0 %v9211
        %v9684 = vpop.f32.mrf.mxu0
        %v9685 = vadd.f32 %v9656, %v9684
        %9686 = vmatmul.f32.gmra.mxu0 %v9214
        %v9687 = vpop.f32.mrf.mxu0
        %v9688 = vadd.f32 %v9659, %v9687
        %9689 = vmatmul.f32.gmra.mxu0 %v9217
        %v9690 = vpop.f32.mrf.mxu0
        %v9691 = vadd.f32 %v9662, %v9690
        %9692 = vdwg.mxu0
        %9693 = vmatpush.msra.mxu0 %v1518
        %9694 = vmatpush.msra.mxu0 %v1516
        %9695 = vmatpush.msra.mxu0 %v1514
        %9696 = vmatpush.msra.mxu0 %v1512
        %9697 = vmatpush.msra.mxu0 %v1510
        %9698 = vmatpush.msra.mxu0 %v1508
        %9699 = vmatpush.msra.mxu0 %v1506
        %9700 = vmatpush.msra.mxu0 %v1504
        %9701 = vmatpush.msra.mxu0 %v1502
        %9702 = vmatpush.msra.mxu0 %v1500
        %9703 = vmatpush.msra.mxu0 %v1498
        %9704 = vmatpush.msra.mxu0 %v1496
        %9705 = vmatpush.msra.mxu0 %v1494
        %9706 = vmatpush.msra.mxu0 %v1492
        %9707 = vmatpush.msra.mxu0 %v1490
        %9708 = vmatpush.msra.mxu0 %v1488
        %9709 = vmatmul.f32.gmra.mxu0 %v9083
        %v9710 = vpop.f32.mrf.mxu0
        %v9711 = vadd.f32 0.0, %v9710
        %9712 = vmatmul.f32.gmra.mxu0 %v9086
        %v9713 = vpop.f32.mrf.mxu0
        %v9714 = vadd.f32 0.0, %v9713
        %9715 = vmatmul.f32.gmra.mxu0 %v9089
        %v9716 = vpop.f32.mrf.mxu0
        %v9717 = vadd.f32 0.0, %v9716
        %9718 = vmatmul.f32.gmra.mxu0 %v9092
        %v9719 = vpop.f32.mrf.mxu0
        %v9720 = vadd.f32 0.0, %v9719
        %9721 = vdwg.mxu0
        %9722 = vmatpush.msra.mxu0 %v1550
        %9723 = vmatpush.msra.mxu0 %v1548
        %9724 = vmatpush.msra.mxu0 %v1546
        %9725 = vmatpush.msra.mxu0 %v1544
        %9726 = vmatpush.msra.mxu0 %v1542
        %9727 = vmatpush.msra.mxu0 %v1540
        %9728 = vmatpush.msra.mxu0 %v1538
        %9729 = vmatpush.msra.mxu0 %v1536
        %9730 = vmatpush.msra.mxu0 %v1534
        %9731 = vmatpush.msra.mxu0 %v1532
        %9732 = vmatpush.msra.mxu0 %v1530
        %9733 = vmatpush.msra.mxu0 %v1528
        %9734 = vmatpush.msra.mxu0 %v1526
        %9735 = vmatpush.msra.mxu0 %v1524
        %9736 = vmatpush.msra.mxu0 %v1522
        %9737 = vmatpush.msra.mxu0 %v1520
        %9738 = vmatmul.f32.gmra.mxu0 %v9208
        %v9739 = vpop.f32.mrf.mxu0
        %v9740 = vadd.f32 %v9711, %v9739
        %9741 = vmatmul.f32.gmra.mxu0 %v9211
        %v9742 = vpop.f32.mrf.mxu0
        %v9743 = vadd.f32 %v9714, %v9742
        %9744 = vmatmul.f32.gmra.mxu0 %v9214
        %v9745 = vpop.f32.mrf.mxu0
        %v9746 = vadd.f32 %v9717, %v9745
        %9747 = vmatmul.f32.gmra.mxu0 %v9217
        %v9748 = vpop.f32.mrf.mxu0
        %v9749 = vadd.f32 %v9720, %v9748
        %9750 = vdwg.mxu0
        %v9751 = vadd.f32 %v9627, %v9682
        %v9752 = vadd.f32 %v9628, %v9740
        %v9753 = vadd.f32 %v9629, %v9685
        %v9754 = vadd.f32 %v9630, %v9743
        %v9755 = vadd.f32 %v9631, %v9688
        %v9756 = vadd.f32 %v9632, %v9746
        %v9757 = vadd.f32 %v9633, %v9691
        %v9758 = vadd.f32 %v9634, %v9749
        %9759 = vmatpush.msra.mxu0 %v1706
        %9760 = vmatpush.msra.mxu0 %v1704
        %9761 = vmatpush.msra.mxu0 %v1702
        %9762 = vmatpush.msra.mxu0 %v1700
        %9763 = vmatpush.msra.mxu0 %v1698
        %9764 = vmatpush.msra.mxu0 %v1696
        %9765 = vmatpush.msra.mxu0 %v1694
        %9766 = vmatpush.msra.mxu0 %v1692
        %9767 = vmatpush.msra.mxu0 %v1690
        %9768 = vmatpush.msra.mxu0 %v1688
        %9769 = vmatpush.msra.mxu0 %v1686
        %9770 = vmatpush.msra.mxu0 %v1684
        %9771 = vmatpush.msra.mxu0 %v1682
        %9772 = vmatpush.msra.mxu0 %v1680
        %9773 = vmatpush.msra.mxu0 %v1678
        %9774 = vmatpush.msra.mxu0 %v1676
        %9775 = vmatmul.f32.gmra.mxu0 %v9095
        %v9776 = vpop.f32.mrf.mxu0
        %v9777 = vadd.f32 0.0, %v9776
        %9778 = vmatmul.f32.gmra.mxu0 %v9098
        %v9779 = vpop.f32.mrf.mxu0
        %v9780 = vadd.f32 0.0, %v9779
        %9781 = vmatmul.f32.gmra.mxu0 %v9101
        %v9782 = vpop.f32.mrf.mxu0
        %v9783 = vadd.f32 0.0, %v9782
        %9784 = vmatmul.f32.gmra.mxu0 %v9104
        %v9785 = vpop.f32.mrf.mxu0
        %v9786 = vadd.f32 0.0, %v9785
        %9787 = vdwg.mxu0
        %9788 = vmatpush.msra.mxu0 %v1738
        %9789 = vmatpush.msra.mxu0 %v1736
        %9790 = vmatpush.msra.mxu0 %v1734
        %9791 = vmatpush.msra.mxu0 %v1732
        %9792 = vmatpush.msra.mxu0 %v1730
        %9793 = vmatpush.msra.mxu0 %v1728
        %9794 = vmatpush.msra.mxu0 %v1726
        %9795 = vmatpush.msra.mxu0 %v1724
        %9796 = vmatpush.msra.mxu0 %v1722
        %9797 = vmatpush.msra.mxu0 %v1720
        %9798 = vmatpush.msra.mxu0 %v1718
        %9799 = vmatpush.msra.mxu0 %v1716
        %9800 = vmatpush.msra.mxu0 %v1714
        %9801 = vmatpush.msra.mxu0 %v1712
        %9802 = vmatpush.msra.mxu0 %v1710
        %9803 = vmatpush.msra.mxu0 %v1708
        %9804 = vmatmul.f32.gmra.mxu0 %v9220
        %v9805 = vpop.f32.mrf.mxu0
        %v9806 = vadd.f32 %v9777, %v9805
        %9807 = vmatmul.f32.gmra.mxu0 %v9223
        %v9808 = vpop.f32.mrf.mxu0
        %v9809 = vadd.f32 %v9780, %v9808
        %9810 = vmatmul.f32.gmra.mxu0 %v9226
        %v9811 = vpop.f32.mrf.mxu0
        %v9812 = vadd.f32 %v9783, %v9811
        %9813 = vmatmul.f32.gmra.mxu0 %v9229
        %v9814 = vpop.f32.mrf.mxu0
        %v9815 = vadd.f32 %v9786, %v9814
        %9816 = vdwg.mxu0
        %9817 = vmatpush.msra.mxu0 %v1707
        %9818 = vmatpush.msra.mxu0 %v1705
        %9819 = vmatpush.msra.mxu0 %v1703
        %9820 = vmatpush.msra.mxu0 %v1701
        %9821 = vmatpush.msra.mxu0 %v1699
        %9822 = vmatpush.msra.mxu0 %v1697
        %9823 = vmatpush.msra.mxu0 %v1695
        %9824 = vmatpush.msra.mxu0 %v1693
        %9825 = vmatpush.msra.mxu0 %v1691
        %9826 = vmatpush.msra.mxu0 %v1689
        %9827 = vmatpush.msra.mxu0 %v1687
        %9828 = vmatpush.msra.mxu0 %v1685
        %9829 = vmatpush.msra.mxu0 %v1683
        %9830 = vmatpush.msra.mxu0 %v1681
        %9831 = vmatpush.msra.mxu0 %v1679
        %9832 = vmatpush.msra.mxu0 %v1677
        %9833 = vmatmul.f32.gmra.mxu0 %v9095
        %v9834 = vpop.f32.mrf.mxu0
        %v9835 = vadd.f32 0.0, %v9834
        %9836 = vmatmul.f32.gmra.mxu0 %v9098
        %v9837 = vpop.f32.mrf.mxu0
        %v9838 = vadd.f32 0.0, %v9837
        %9839 = vmatmul.f32.gmra.mxu0 %v9101
        %v9840 = vpop.f32.mrf.mxu0
        %v9841 = vadd.f32 0.0, %v9840
        %9842 = vmatmul.f32.gmra.mxu0 %v9104
        %v9843 = vpop.f32.mrf.mxu0
        %v9844 = vadd.f32 0.0, %v9843
        %9845 = vdwg.mxu0
        %9846 = vmatpush.msra.mxu0 %v1739
        %9847 = vmatpush.msra.mxu0 %v1737
        %9848 = vmatpush.msra.mxu0 %v1735
        %9849 = vmatpush.msra.mxu0 %v1733
        %9850 = vmatpush.msra.mxu0 %v1731
        %9851 = vmatpush.msra.mxu0 %v1729
        %9852 = vmatpush.msra.mxu0 %v1727
        %9853 = vmatpush.msra.mxu0 %v1725
        %9854 = vmatpush.msra.mxu0 %v1723
        %9855 = vmatpush.msra.mxu0 %v1721
        %9856 = vmatpush.msra.mxu0 %v1719
        %9857 = vmatpush.msra.mxu0 %v1717
        %9858 = vmatpush.msra.mxu0 %v1715
        %9859 = vmatpush.msra.mxu0 %v1713
        %9860 = vmatpush.msra.mxu0 %v1711
        %9861 = vmatpush.msra.mxu0 %v1709
        %9862 = vmatmul.f32.gmra.mxu0 %v9220
        %v9863 = vpop.f32.mrf.mxu0
        %v9864 = vadd.f32 %v9835, %v9863
        %9865 = vmatmul.f32.gmra.mxu0 %v9223
        %v9866 = vpop.f32.mrf.mxu0
        %v9867 = vadd.f32 %v9838, %v9866
        %9868 = vmatmul.f32.gmra.mxu0 %v9226
        %v9869 = vpop.f32.mrf.mxu0
        %v9870 = vadd.f32 %v9841, %v9869
        %9871 = vmatmul.f32.gmra.mxu0 %v9229
        %v9872 = vpop.f32.mrf.mxu0
        %v9873 = vadd.f32 %v9844, %v9872
        %9874 = vdwg.mxu0
        %v9875 = vadd.f32 %v9751, %v9806
        %v9876 = vadd.f32 %v9752, %v9864
        %v9877 = vadd.f32 %v9753, %v9809
        %v9878 = vadd.f32 %v9754, %v9867
        %v9879 = vadd.f32 %v9755, %v9812
        %v9880 = vadd.f32 %v9756, %v9870
        %v9881 = vadd.f32 %v9757, %v9815
        %v9882 = vadd.f32 %v9758, %v9873
        %9883 = vmatpush.msra.mxu0 %v1895
        %9884 = vmatpush.msra.mxu0 %v1893
        %9885 = vmatpush.msra.mxu0 %v1891
        %9886 = vmatpush.msra.mxu0 %v1889
        %9887 = vmatpush.msra.mxu0 %v1887
        %9888 = vmatpush.msra.mxu0 %v1885
        %9889 = vmatpush.msra.mxu0 %v1883
        %9890 = vmatpush.msra.mxu0 %v1881
        %9891 = vmatpush.msra.mxu0 %v1879
        %9892 = vmatpush.msra.mxu0 %v1877
        %9893 = vmatpush.msra.mxu0 %v1875
        %9894 = vmatpush.msra.mxu0 %v1873
        %9895 = vmatpush.msra.mxu0 %v1871
        %9896 = vmatpush.msra.mxu0 %v1869
        %9897 = vmatpush.msra.mxu0 %v1867
        %9898 = vmatpush.msra.mxu0 %v1865
        %9899 = vmatmul.f32.gmra.mxu0 %v9107
        %v9900 = vpop.f32.mrf.mxu0
        %v9901 = vadd.f32 0.0, %v9900
        %9902 = vmatmul.f32.gmra.mxu0 %v9110
        %v9903 = vpop.f32.mrf.mxu0
        %v9904 = vadd.f32 0.0, %v9903
        %9905 = vmatmul.f32.gmra.mxu0 %v9113
        %v9906 = vpop.f32.mrf.mxu0
        %v9907 = vadd.f32 0.0, %v9906
        %9908 = vmatmul.f32.gmra.mxu0 %v9116
        %v9909 = vpop.f32.mrf.mxu0
        %v9910 = vadd.f32 0.0, %v9909
        %9911 = vdwg.mxu0
        %9912 = vmatpush.msra.mxu0 %v1927
        %9913 = vmatpush.msra.mxu0 %v1925
        %9914 = vmatpush.msra.mxu0 %v1923
        %9915 = vmatpush.msra.mxu0 %v1921
        %9916 = vmatpush.msra.mxu0 %v1919
        %9917 = vmatpush.msra.mxu0 %v1917
        %9918 = vmatpush.msra.mxu0 %v1915
        %9919 = vmatpush.msra.mxu0 %v1913
        %9920 = vmatpush.msra.mxu0 %v1911
        %9921 = vmatpush.msra.mxu0 %v1909
        %9922 = vmatpush.msra.mxu0 %v1907
        %9923 = vmatpush.msra.mxu0 %v1905
        %9924 = vmatpush.msra.mxu0 %v1903
        %9925 = vmatpush.msra.mxu0 %v1901
        %9926 = vmatpush.msra.mxu0 %v1899
        %9927 = vmatpush.msra.mxu0 %v1897
        %9928 = vmatmul.f32.gmra.mxu0 %v9232
        %v9929 = vpop.f32.mrf.mxu0
        %v9930 = vadd.f32 %v9901, %v9929
        %9931 = vmatmul.f32.gmra.mxu0 %v9235
        %v9932 = vpop.f32.mrf.mxu0
        %v9933 = vadd.f32 %v9904, %v9932
        %9934 = vmatmul.f32.gmra.mxu0 %v9238
        %v9935 = vpop.f32.mrf.mxu0
        %v9936 = vadd.f32 %v9907, %v9935
        %9937 = vmatmul.f32.gmra.mxu0 %v9241
        %v9938 = vpop.f32.mrf.mxu0
        %v9939 = vadd.f32 %v9910, %v9938
        %9940 = vdwg.mxu0
        %9941 = vmatpush.msra.mxu0 %v1896
        %9942 = vmatpush.msra.mxu0 %v1894
        %9943 = vmatpush.msra.mxu0 %v1892
        %9944 = vmatpush.msra.mxu0 %v1890
        %9945 = vmatpush.msra.mxu0 %v1888
        %9946 = vmatpush.msra.mxu0 %v1886
        %9947 = vmatpush.msra.mxu0 %v1884
        %9948 = vmatpush.msra.mxu0 %v1882
        %9949 = vmatpush.msra.mxu0 %v1880
        %9950 = vmatpush.msra.mxu0 %v1878
        %9951 = vmatpush.msra.mxu0 %v1876
        %9952 = vmatpush.msra.mxu0 %v1874
        %9953 = vmatpush.msra.mxu0 %v1872
        %9954 = vmatpush.msra.mxu0 %v1870
        %9955 = vmatpush.msra.mxu0 %v1868
        %9956 = vmatpush.msra.mxu0 %v1866
        %9957 = vmatmul.f32.gmra.mxu0 %v9107
        %v9958 = vpop.f32.mrf.mxu0
        %v9959 = vadd.f32 0.0, %v9958
        %9960 = vmatmul.f32.gmra.mxu0 %v9110
        %v9961 = vpop.f32.mrf.mxu0
        %v9962 = vadd.f32 0.0, %v9961
        %9963 = vmatmul.f32.gmra.mxu0 %v9113
        %v9964 = vpop.f32.mrf.mxu0
        %v9965 = vadd.f32 0.0, %v9964
        %9966 = vmatmul.f32.gmra.mxu0 %v9116
        %v9967 = vpop.f32.mrf.mxu0
        %v9968 = vadd.f32 0.0, %v9967
        %9969 = vdwg.mxu0
        %9970 = vmatpush.msra.mxu0 %v1928
        %9971 = vmatpush.msra.mxu0 %v1926
        %9972 = vmatpush.msra.mxu0 %v1924
        %9973 = vmatpush.msra.mxu0 %v1922
        %9974 = vmatpush.msra.mxu0 %v1920
        %9975 = vmatpush.msra.mxu0 %v1918
        %9976 = vmatpush.msra.mxu0 %v1916
        %9977 = vmatpush.msra.mxu0 %v1914
        %9978 = vmatpush.msra.mxu0 %v1912
        %9979 = vmatpush.msra.mxu0 %v1910
        %9980 = vmatpush.msra.mxu0 %v1908
        %9981 = vmatpush.msra.mxu0 %v1906
        %9982 = vmatpush.msra.mxu0 %v1904
        %9983 = vmatpush.msra.mxu0 %v1902
        %9984 = vmatpush.msra.mxu0 %v1900
        %9985 = vmatpush.msra.mxu0 %v1898
        %9986 = vmatmul.f32.gmra.mxu0 %v9232
        %v9987 = vpop.f32.mrf.mxu0
        %v9988 = vadd.f32 %v9959, %v9987
        %9989 = vmatmul.f32.gmra.mxu0 %v9235
        %v9990 = vpop.f32.mrf.mxu0
        %v9991 = vadd.f32 %v9962, %v9990
        %9992 = vmatmul.f32.gmra.mxu0 %v9238
        %v9993 = vpop.f32.mrf.mxu0
        %v9994 = vadd.f32 %v9965, %v9993
        %9995 = vmatmul.f32.gmra.mxu0 %v9241
        %v9996 = vpop.f32.mrf.mxu0
        %v9997 = vadd.f32 %v9968, %v9996
        %9998 = vdwg.mxu0
        %v9999 = vadd.f32 %v9875, %v9930
        %v10000 = vadd.f32 %v9876, %v9988
        %v10001 = vadd.f32 %v9877, %v9933
        %v10002 = vadd.f32 %v9878, %v9991
        %v10003 = vadd.f32 %v9879, %v9936
        %v10004 = vadd.f32 %v9880, %v9994
        %v10005 = vadd.f32 %v9881, %v9939
        %v10006 = vadd.f32 %v9882, %v9997
        %10007 = vmatpush.msra.mxu0 %v2084
        %10008 = vmatpush.msra.mxu0 %v2082
        %10009 = vmatpush.msra.mxu0 %v2080
        %10010 = vmatpush.msra.mxu0 %v2078
        %10011 = vmatpush.msra.mxu0 %v2076
        %10012 = vmatpush.msra.mxu0 %v2074
        %10013 = vmatpush.msra.mxu0 %v2072
        %10014 = vmatpush.msra.mxu0 %v2070
        %10015 = vmatpush.msra.mxu0 %v2068
        %10016 = vmatpush.msra.mxu0 %v2066
        %10017 = vmatpush.msra.mxu0 %v2064
        %10018 = vmatpush.msra.mxu0 %v2062
        %10019 = vmatpush.msra.mxu0 %v2060
        %10020 = vmatpush.msra.mxu0 %v2058
        %10021 = vmatpush.msra.mxu0 %v2056
        %10022 = vmatpush.msra.mxu0 %v2054
        %10023 = vmatmul.f32.gmra.mxu0 %v9119
        %v10024 = vpop.f32.mrf.mxu0
        %v10025 = vadd.f32 0.0, %v10024
        %10026 = vmatmul.f32.gmra.mxu0 %v9122
        %v10027 = vpop.f32.mrf.mxu0
        %v10028 = vadd.f32 0.0, %v10027
        %10029 = vmatmul.f32.gmra.mxu0 %v9125
        %v10030 = vpop.f32.mrf.mxu0
        %v10031 = vadd.f32 0.0, %v10030
        %10032 = vmatmul.f32.gmra.mxu0 %v9128
        %v10033 = vpop.f32.mrf.mxu0
        %v10034 = vadd.f32 0.0, %v10033
        %10035 = vdwg.mxu0
        %10036 = vmatpush.msra.mxu0 %v2116
        %10037 = vmatpush.msra.mxu0 %v2114
        %10038 = vmatpush.msra.mxu0 %v2112
        %10039 = vmatpush.msra.mxu0 %v2110
        %10040 = vmatpush.msra.mxu0 %v2108
        %10041 = vmatpush.msra.mxu0 %v2106
        %10042 = vmatpush.msra.mxu0 %v2104
        %10043 = vmatpush.msra.mxu0 %v2102
        %10044 = vmatpush.msra.mxu0 %v2100
        %10045 = vmatpush.msra.mxu0 %v2098
        %10046 = vmatpush.msra.mxu0 %v2096
        %10047 = vmatpush.msra.mxu0 %v2094
        %10048 = vmatpush.msra.mxu0 %v2092
        %10049 = vmatpush.msra.mxu0 %v2090
        %10050 = vmatpush.msra.mxu0 %v2088
        %10051 = vmatpush.msra.mxu0 %v2086
        %10052 = vmatmul.f32.gmra.mxu0 %v9244
        %v10053 = vpop.f32.mrf.mxu0
        %v10054 = vadd.f32 %v10025, %v10053
        %10055 = vmatmul.f32.gmra.mxu0 %v9247
        %v10056 = vpop.f32.mrf.mxu0
        %v10057 = vadd.f32 %v10028, %v10056
        %10058 = vmatmul.f32.gmra.mxu0 %v9250
        %v10059 = vpop.f32.mrf.mxu0
        %v10060 = vadd.f32 %v10031, %v10059
        %10061 = vmatmul.f32.gmra.mxu0 %v9253
        %v10062 = vpop.f32.mrf.mxu0
        %v10063 = vadd.f32 %v10034, %v10062
        %10064 = vdwg.mxu0
        %10065 = vmatpush.msra.mxu0 %v2085
        %10066 = vmatpush.msra.mxu0 %v2083
        %10067 = vmatpush.msra.mxu0 %v2081
        %10068 = vmatpush.msra.mxu0 %v2079
        %10069 = vmatpush.msra.mxu0 %v2077
        %10070 = vmatpush.msra.mxu0 %v2075
        %10071 = vmatpush.msra.mxu0 %v2073
        %10072 = vmatpush.msra.mxu0 %v2071
        %10073 = vmatpush.msra.mxu0 %v2069
        %10074 = vmatpush.msra.mxu0 %v2067
        %10075 = vmatpush.msra.mxu0 %v2065
        %10076 = vmatpush.msra.mxu0 %v2063
        %10077 = vmatpush.msra.mxu0 %v2061
        %10078 = vmatpush.msra.mxu0 %v2059
        %10079 = vmatpush.msra.mxu0 %v2057
        %10080 = vmatpush.msra.mxu0 %v2055
        %10081 = vmatmul.f32.gmra.mxu0 %v9119
        %v10082 = vpop.f32.mrf.mxu0
        %v10083 = vadd.f32 0.0, %v10082
        %10084 = vmatmul.f32.gmra.mxu0 %v9122
        %v10085 = vpop.f32.mrf.mxu0
        %v10086 = vadd.f32 0.0, %v10085
        %10087 = vmatmul.f32.gmra.mxu0 %v9125
        %v10088 = vpop.f32.mrf.mxu0
        %v10089 = vadd.f32 0.0, %v10088
        %10090 = vmatmul.f32.gmra.mxu0 %v9128
        %v10091 = vpop.f32.mrf.mxu0
        %v10092 = vadd.f32 0.0, %v10091
        %10093 = vdwg.mxu0
        %10094 = vmatpush.msra.mxu0 %v2117
        %10095 = vmatpush.msra.mxu0 %v2115
        %10096 = vmatpush.msra.mxu0 %v2113
        %10097 = vmatpush.msra.mxu0 %v2111
        %10098 = vmatpush.msra.mxu0 %v2109
        %10099 = vmatpush.msra.mxu0 %v2107
        %10100 = vmatpush.msra.mxu0 %v2105
        %10101 = vmatpush.msra.mxu0 %v2103
        %10102 = vmatpush.msra.mxu0 %v2101
        %10103 = vmatpush.msra.mxu0 %v2099
        %10104 = vmatpush.msra.mxu0 %v2097
        %10105 = vmatpush.msra.mxu0 %v2095
        %10106 = vmatpush.msra.mxu0 %v2093
        %10107 = vmatpush.msra.mxu0 %v2091
        %10108 = vmatpush.msra.mxu0 %v2089
        %10109 = vmatpush.msra.mxu0 %v2087
        %10110 = vmatmul.f32.gmra.mxu0 %v9244
        %v10111 = vpop.f32.mrf.mxu0
        %v10112 = vadd.f32 %v10083, %v10111
        %10113 = vmatmul.f32.gmra.mxu0 %v9247
        %v10114 = vpop.f32.mrf.mxu0
        %v10115 = vadd.f32 %v10086, %v10114
        %10116 = vmatmul.f32.gmra.mxu0 %v9250
        %v10117 = vpop.f32.mrf.mxu0
        %v10118 = vadd.f32 %v10089, %v10117
        %10119 = vmatmul.f32.gmra.mxu0 %v9253
        %v10120 = vpop.f32.mrf.mxu0
        %v10121 = vadd.f32 %v10092, %v10120
        %10122 = vdwg.mxu0
        %v10123 = vadd.f32 %v9999, %v10054
        %v10124 = vadd.f32 %v10000, %v10112
        %v10125 = vadd.f32 %v10001, %v10057
        %v10126 = vadd.f32 %v10002, %v10115
        %v10127 = vadd.f32 %v10003, %v10060
        %v10128 = vadd.f32 %v10004, %v10118
        %v10129 = vadd.f32 %v10005, %v10063
        %v10130 = vadd.f32 %v10006, %v10121
        %10131 = vmatpush.msra.mxu0 %v2273
        %10132 = vmatpush.msra.mxu0 %v2271
        %10133 = vmatpush.msra.mxu0 %v2269
        %10134 = vmatpush.msra.mxu0 %v2267
        %10135 = vmatpush.msra.mxu0 %v2265
        %10136 = vmatpush.msra.mxu0 %v2263
        %10137 = vmatpush.msra.mxu0 %v2261
        %10138 = vmatpush.msra.mxu0 %v2259
        %10139 = vmatpush.msra.mxu0 %v2257
        %10140 = vmatpush.msra.mxu0 %v2255
        %10141 = vmatpush.msra.mxu0 %v2253
        %10142 = vmatpush.msra.mxu0 %v2251
        %10143 = vmatpush.msra.mxu0 %v2249
        %10144 = vmatpush.msra.mxu0 %v2247
        %10145 = vmatpush.msra.mxu0 %v2245
        %10146 = vmatpush.msra.mxu0 %v2243
        %10147 = vmatmul.f32.gmra.mxu0 %v9131
        %v10148 = vpop.f32.mrf.mxu0
        %v10149 = vadd.f32 0.0, %v10148
        %10150 = vmatmul.f32.gmra.mxu0 %v9134
        %v10151 = vpop.f32.mrf.mxu0
        %v10152 = vadd.f32 0.0, %v10151
        %10153 = vmatmul.f32.gmra.mxu0 %v9137
        %v10154 = vpop.f32.mrf.mxu0
        %v10155 = vadd.f32 0.0, %v10154
        %10156 = vmatmul.f32.gmra.mxu0 %v9140
        %v10157 = vpop.f32.mrf.mxu0
        %v10158 = vadd.f32 0.0, %v10157
        %10159 = vdwg.mxu0
        %10160 = vmatpush.msra.mxu0 %v2305
        %10161 = vmatpush.msra.mxu0 %v2303
        %10162 = vmatpush.msra.mxu0 %v2301
        %10163 = vmatpush.msra.mxu0 %v2299
        %10164 = vmatpush.msra.mxu0 %v2297
        %10165 = vmatpush.msra.mxu0 %v2295
        %10166 = vmatpush.msra.mxu0 %v2293
        %10167 = vmatpush.msra.mxu0 %v2291
        %10168 = vmatpush.msra.mxu0 %v2289
        %10169 = vmatpush.msra.mxu0 %v2287
        %10170 = vmatpush.msra.mxu0 %v2285
        %10171 = vmatpush.msra.mxu0 %v2283
        %10172 = vmatpush.msra.mxu0 %v2281
        %10173 = vmatpush.msra.mxu0 %v2279
        %10174 = vmatpush.msra.mxu0 %v2277
        %10175 = vmatpush.msra.mxu0 %v2275
        %10176 = vmatmul.f32.gmra.mxu0 %v9256
        %v10177 = vpop.f32.mrf.mxu0
        %v10178 = vadd.f32 %v10149, %v10177
        %10179 = vmatmul.f32.gmra.mxu0 %v9259
        %v10180 = vpop.f32.mrf.mxu0
        %v10181 = vadd.f32 %v10152, %v10180
        %10182 = vmatmul.f32.gmra.mxu0 %v9262
        %v10183 = vpop.f32.mrf.mxu0
        %v10184 = vadd.f32 %v10155, %v10183
        %10185 = vmatmul.f32.gmra.mxu0 %v9265
        %v10186 = vpop.f32.mrf.mxu0
        %v10187 = vadd.f32 %v10158, %v10186
        %10188 = vdwg.mxu0
        %10189 = vmatpush.msra.mxu0 %v2274
        %10190 = vmatpush.msra.mxu0 %v2272
        %10191 = vmatpush.msra.mxu0 %v2270
        %10192 = vmatpush.msra.mxu0 %v2268
        %10193 = vmatpush.msra.mxu0 %v2266
        %10194 = vmatpush.msra.mxu0 %v2264
        %10195 = vmatpush.msra.mxu0 %v2262
        %10196 = vmatpush.msra.mxu0 %v2260
        %10197 = vmatpush.msra.mxu0 %v2258
        %10198 = vmatpush.msra.mxu0 %v2256
        %10199 = vmatpush.msra.mxu0 %v2254
        %10200 = vmatpush.msra.mxu0 %v2252
        %10201 = vmatpush.msra.mxu0 %v2250
        %10202 = vmatpush.msra.mxu0 %v2248
        %10203 = vmatpush.msra.mxu0 %v2246
        %10204 = vmatpush.msra.mxu0 %v2244
        %10205 = vmatmul.f32.gmra.mxu0 %v9131
        %v10206 = vpop.f32.mrf.mxu0
        %v10207 = vadd.f32 0.0, %v10206
        %10208 = vmatmul.f32.gmra.mxu0 %v9134
        %v10209 = vpop.f32.mrf.mxu0
        %v10210 = vadd.f32 0.0, %v10209
        %10211 = vmatmul.f32.gmra.mxu0 %v9137
        %v10212 = vpop.f32.mrf.mxu0
        %v10213 = vadd.f32 0.0, %v10212
        %10214 = vmatmul.f32.gmra.mxu0 %v9140
        %v10215 = vpop.f32.mrf.mxu0
        %v10216 = vadd.f32 0.0, %v10215
        %10217 = vdwg.mxu0
        %10218 = vmatpush.msra.mxu0 %v2306
        %10219 = vmatpush.msra.mxu0 %v2304
        %10220 = vmatpush.msra.mxu0 %v2302
        %10221 = vmatpush.msra.mxu0 %v2300
        %10222 = vmatpush.msra.mxu0 %v2298
        %10223 = vmatpush.msra.mxu0 %v2296
        %10224 = vmatpush.msra.mxu0 %v2294
        %10225 = vmatpush.msra.mxu0 %v2292
        %10226 = vmatpush.msra.mxu0 %v2290
        %10227 = vmatpush.msra.mxu0 %v2288
        %10228 = vmatpush.msra.mxu0 %v2286
        %10229 = vmatpush.msra.mxu0 %v2284
        %10230 = vmatpush.msra.mxu0 %v2282
        %10231 = vmatpush.msra.mxu0 %v2280
        %10232 = vmatpush.msra.mxu0 %v2278
        %10233 = vmatpush.msra.mxu0 %v2276
        %10234 = vmatmul.f32.gmra.mxu0 %v9256
        %v10235 = vpop.f32.mrf.mxu0
        %v10236 = vadd.f32 %v10207, %v10235
        %10237 = vmatmul.f32.gmra.mxu0 %v9259
        %v10238 = vpop.f32.mrf.mxu0
        %v10239 = vadd.f32 %v10210, %v10238
        %10240 = vmatmul.f32.gmra.mxu0 %v9262
        %v10241 = vpop.f32.mrf.mxu0
        %v10242 = vadd.f32 %v10213, %v10241
        %10243 = vmatmul.f32.gmra.mxu0 %v9265
        %v10244 = vpop.f32.mrf.mxu0
        %v10245 = vadd.f32 %v10216, %v10244
        %10246 = vdwg.mxu0
        %v10247 = vadd.f32 %v10123, %v10178
        %v10248 = vadd.f32 %v10124, %v10236
        %v10249 = vadd.f32 %v10125, %v10181
        %v10250 = vadd.f32 %v10126, %v10239
        %v10251 = vadd.f32 %v10127, %v10184
        %v10252 = vadd.f32 %v10128, %v10242
        %v10253 = vadd.f32 %v10129, %v10187
        %v10254 = vadd.f32 %v10130, %v10245
        %10255 = vmatpush.msra.mxu0 %v2462
        %10256 = vmatpush.msra.mxu0 %v2460
        %10257 = vmatpush.msra.mxu0 %v2458
        %10258 = vmatpush.msra.mxu0 %v2456
        %10259 = vmatpush.msra.mxu0 %v2454
        %10260 = vmatpush.msra.mxu0 %v2452
        %10261 = vmatpush.msra.mxu0 %v2450
        %10262 = vmatpush.msra.mxu0 %v2448
        %10263 = vmatpush.msra.mxu0 %v2446
        %10264 = vmatpush.msra.mxu0 %v2444
        %10265 = vmatpush.msra.mxu0 %v2442
        %10266 = vmatpush.msra.mxu0 %v2440
        %10267 = vmatpush.msra.mxu0 %v2438
        %10268 = vmatpush.msra.mxu0 %v2436
        %10269 = vmatpush.msra.mxu0 %v2434
        %10270 = vmatpush.msra.mxu0 %v2432
        %10271 = vmatmul.f32.gmra.mxu0 %v9143
        %v10272 = vpop.f32.mrf.mxu0
        %v10273 = vadd.f32 0.0, %v10272
        %10274 = vmatmul.f32.gmra.mxu0 %v9146
        %v10275 = vpop.f32.mrf.mxu0
        %v10276 = vadd.f32 0.0, %v10275
        %10277 = vmatmul.f32.gmra.mxu0 %v9149
        %v10278 = vpop.f32.mrf.mxu0
        %v10279 = vadd.f32 0.0, %v10278
        %10280 = vmatmul.f32.gmra.mxu0 %v9152
        %v10281 = vpop.f32.mrf.mxu0
        %v10282 = vadd.f32 0.0, %v10281
        %10283 = vdwg.mxu0
        %10284 = vmatpush.msra.mxu0 %v2494
        %10285 = vmatpush.msra.mxu0 %v2492
        %10286 = vmatpush.msra.mxu0 %v2490
        %10287 = vmatpush.msra.mxu0 %v2488
        %10288 = vmatpush.msra.mxu0 %v2486
        %10289 = vmatpush.msra.mxu0 %v2484
        %10290 = vmatpush.msra.mxu0 %v2482
        %10291 = vmatpush.msra.mxu0 %v2480
        %10292 = vmatpush.msra.mxu0 %v2478
        %10293 = vmatpush.msra.mxu0 %v2476
        %10294 = vmatpush.msra.mxu0 %v2474
        %10295 = vmatpush.msra.mxu0 %v2472
        %10296 = vmatpush.msra.mxu0 %v2470
        %10297 = vmatpush.msra.mxu0 %v2468
        %10298 = vmatpush.msra.mxu0 %v2466
        %10299 = vmatpush.msra.mxu0 %v2464
        %10300 = vmatmul.f32.gmra.mxu0 %v9268
        %v10301 = vpop.f32.mrf.mxu0
        %v10302 = vadd.f32 %v10273, %v10301
        %10303 = vmatmul.f32.gmra.mxu0 %v9271
        %v10304 = vpop.f32.mrf.mxu0
        %v10305 = vadd.f32 %v10276, %v10304
        %10306 = vmatmul.f32.gmra.mxu0 %v9274
        %v10307 = vpop.f32.mrf.mxu0
        %v10308 = vadd.f32 %v10279, %v10307
        %10309 = vmatmul.f32.gmra.mxu0 %v9277
        %v10310 = vpop.f32.mrf.mxu0
        %v10311 = vadd.f32 %v10282, %v10310
        %10312 = vdwg.mxu0
        %10313 = vmatpush.msra.mxu0 %v2463
        %10314 = vmatpush.msra.mxu0 %v2461
        %10315 = vmatpush.msra.mxu0 %v2459
        %10316 = vmatpush.msra.mxu0 %v2457
        %10317 = vmatpush.msra.mxu0 %v2455
        %10318 = vmatpush.msra.mxu0 %v2453
        %10319 = vmatpush.msra.mxu0 %v2451
        %10320 = vmatpush.msra.mxu0 %v2449
        %10321 = vmatpush.msra.mxu0 %v2447
        %10322 = vmatpush.msra.mxu0 %v2445
        %10323 = vmatpush.msra.mxu0 %v2443
        %10324 = vmatpush.msra.mxu0 %v2441
        %10325 = vmatpush.msra.mxu0 %v2439
        %10326 = vmatpush.msra.mxu0 %v2437
        %10327 = vmatpush.msra.mxu0 %v2435
        %10328 = vmatpush.msra.mxu0 %v2433
        %10329 = vmatmul.f32.gmra.mxu0 %v9143
        %v10330 = vpop.f32.mrf.mxu0
        %v10331 = vadd.f32 0.0, %v10330
        %10332 = vmatmul.f32.gmra.mxu0 %v9146
        %v10333 = vpop.f32.mrf.mxu0
        %v10334 = vadd.f32 0.0, %v10333
        %10335 = vmatmul.f32.gmra.mxu0 %v9149
        %v10336 = vpop.f32.mrf.mxu0
        %v10337 = vadd.f32 0.0, %v10336
        %10338 = vmatmul.f32.gmra.mxu0 %v9152
        %v10339 = vpop.f32.mrf.mxu0
        %v10340 = vadd.f32 0.0, %v10339
        %10341 = vdwg.mxu0
        %10342 = vmatpush.msra.mxu0 %v2495
        %10343 = vmatpush.msra.mxu0 %v2493
        %10344 = vmatpush.msra.mxu0 %v2491
        %10345 = vmatpush.msra.mxu0 %v2489
        %10346 = vmatpush.msra.mxu0 %v2487
        %10347 = vmatpush.msra.mxu0 %v2485
        %10348 = vmatpush.msra.mxu0 %v2483
        %10349 = vmatpush.msra.mxu0 %v2481
        %10350 = vmatpush.msra.mxu0 %v2479
        %10351 = vmatpush.msra.mxu0 %v2477
        %10352 = vmatpush.msra.mxu0 %v2475
        %10353 = vmatpush.msra.mxu0 %v2473
        %10354 = vmatpush.msra.mxu0 %v2471
        %10355 = vmatpush.msra.mxu0 %v2469
        %10356 = vmatpush.msra.mxu0 %v2467
        %10357 = vmatpush.msra.mxu0 %v2465
        %10358 = vmatmul.f32.gmra.mxu0 %v9268
        %v10359 = vpop.f32.mrf.mxu0
        %v10360 = vadd.f32 %v10331, %v10359
        %10361 = vmatmul.f32.gmra.mxu0 %v9271
        %v10362 = vpop.f32.mrf.mxu0
        %v10363 = vadd.f32 %v10334, %v10362
        %10364 = vmatmul.f32.gmra.mxu0 %v9274
        %v10365 = vpop.f32.mrf.mxu0
        %v10366 = vadd.f32 %v10337, %v10365
        %10367 = vmatmul.f32.gmra.mxu0 %v9277
        %v10368 = vpop.f32.mrf.mxu0
        %v10369 = vadd.f32 %v10340, %v10368
        %10370 = vdwg.mxu0
        %v10371 = vadd.f32 %v10247, %v10302
        %v10372 = vadd.f32 %v10248, %v10360
        %v10373 = vadd.f32 %v10249, %v10305
        %v10374 = vadd.f32 %v10250, %v10363
        %v10375 = vadd.f32 %v10251, %v10308
        %v10376 = vadd.f32 %v10252, %v10366
        %v10377 = vadd.f32 %v10253, %v10311
        %v10378 = vadd.f32 %v10254, %v10369
        %10380 = vset.pattern.permute.xlu0 0
        %10381 = vperm.xlu0 %10380, %v8917
        %v10382 = vpop.permute.xlu0 %10381
        %10385 = vset.pattern.permute.xlu0 0
        %10386 = vperm.xlu0 %10385, %v8918
        %v10387 = vpop.permute.xlu0 %10386
        %10390 = vset.pattern.permute.xlu0 0
        %10391 = vperm.xlu0 %10390, %v8919
        %v10392 = vpop.permute.xlu0 %10391
        %10395 = vset.pattern.permute.xlu0 0
        %10396 = vperm.xlu0 %10395, %v8920
        %v10397 = vpop.permute.xlu0 %10396
        %v10399 = vadd.f32 %v10371, %v10382
        %v10400 = vadd.f32 %v10372, %v10382
        %v10401 = vadd.f32 %v10373, %v10387
        %v10402 = vadd.f32 %v10374, %v10387
        %v10403 = vadd.f32 %v10375, %v10392
        %v10404 = vadd.f32 %v10376, %v10392
        %v10405 = vadd.f32 %v10377, %v10397
        %v10406 = vadd.f32 %v10378, %v10397
        %v10407 = vmax.f32 %v10399, 0.0
        %v10408 = vmax.f32 %v10400, 0.0
        %v10409 = vmax.f32 %v10401, 0.0
        %v10410 = vmax.f32 %v10402, 0.0
        %v10411 = vmax.f32 %v10403, 0.0
        %v10412 = vmax.f32 %v10404, 0.0
        %v10413 = vmax.f32 %v10405, 0.0
        %v10414 = vmax.f32 %v10406, 0.0
        %s10415 = scalar_lea.vmem %s8, 64
        %v10416 = vld [vmem:[%s10415] sm:$0xff]
        %v10417 = vld [vmem:[%s10415 + $0x8] sm:$0xff]
        %v10418 = vld [vmem:[%s10415 + $0x10] sm:$0xff]
        %v10419 = vld [vmem:[%s10415 + $0x18] sm:$0xff]
        %10421 = vset.pattern.permute.xlu0 0
        %10422 = vperm.xlu0 %10421, %v10416
        %v10423 = vpop.permute.xlu0 %10422
        %10426 = vset.pattern.permute.xlu0 0
        %10427 = vperm.xlu0 %10426, %v10417
        %v10428 = vpop.permute.xlu0 %10427
        %10431 = vset.pattern.permute.xlu0 0
        %10432 = vperm.xlu0 %10431, %v10418
        %v10433 = vpop.permute.xlu0 %10432
        %10436 = vset.pattern.permute.xlu0 0
        %10437 = vperm.xlu0 %10436, %v10419
        %v10438 = vpop.permute.xlu0 %10437
        %v10440 = vmul.f32 %v10423, %v10407
        %v10441 = vmul.f32 %v10423, %v10408
        %v10442 = vmul.f32 %v10428, %v10409
        %v10443 = vmul.f32 %v10428, %v10410
        %v10444 = vmul.f32 %v10433, %v10411
        %v10445 = vmul.f32 %v10433, %v10412
        %v10446 = vmul.f32 %v10438, %v10413
        %v10447 = vmul.f32 %v10438, %v10414
        %v10448 = vadd.f32 %v7335, %v10440
        %v10449 = vadd.f32 %v7336, %v10441
        %v10450 = vadd.f32 %v7337, %v10442
        %v10451 = vadd.f32 %v7338, %v10443
        %v10452 = vadd.f32 %v7339, %v10444
        %v10453 = vadd.f32 %v7340, %v10445
        %v10454 = vadd.f32 %v7341, %v10446
        %v10455 = vadd.f32 %v7342, %v10447
        %v10456 = vld [vmem:[#allocation7] sm:$0xff]
        %v10457 = vld [vmem:[%s10] sm:$0xff]
        %10459 = vset.pattern.permute.xlu0 0
        %10460 = vperm.xlu0 %10459, %v10457
        %v10461 = vpop.permute.xlu0 %10460
        %v10464 = vsel %vm577, %v10456, 0
        %10466 = vmatpush.msra.mxu0 0.0
        %10467 = vmatpush.msra.mxu0 0.0
        %10468 = vmatpush.msra.mxu0 0.0
        %10469 = vmatpush.msra.mxu0 0.0
        %10470 = vmatpush.msra.mxu0 0.0
        %10471 = vmatpush.msra.mxu0 0.0
        %10472 = vmatpush.msra.mxu0 0.0
        %10473 = vmatpush.msra.mxu0 0.0
        %10474 = vmatpush.msra.mxu0 0.0
        %10475 = vmatpush.msra.mxu0 0.0
        %10476 = vmatpush.msra.mxu0 0.0
        %10477 = vmatpush.msra.mxu0 0.0
        %10478 = vmatpush.msra.mxu0 %v10454
        %10479 = vmatpush.msra.mxu0 %v10452
        %10480 = vmatpush.msra.mxu0 %v10450
        %10481 = vmatpush.msra.mxu0 %v10448
        %10482 = vmatmul.f32.gmra.mxu0 %v10464
        %v10483 = vpop.f32.mrf.mxu0
        %v10484 = vadd.f32 %v10461, %v10483
        %10485 = vdwg.mxu0
        %10486 = vmatpush.msra.mxu0 0.0
        %10487 = vmatpush.msra.mxu0 0.0
        %10488 = vmatpush.msra.mxu0 0.0
        %10489 = vmatpush.msra.mxu0 0.0
        %10490 = vmatpush.msra.mxu0 0.0
        %10491 = vmatpush.msra.mxu0 0.0
        %10492 = vmatpush.msra.mxu0 0.0
        %10493 = vmatpush.msra.mxu0 0.0
        %10494 = vmatpush.msra.mxu0 0.0
        %10495 = vmatpush.msra.mxu0 0.0
        %10496 = vmatpush.msra.mxu0 0.0
        %10497 = vmatpush.msra.mxu0 0.0
        %10498 = vmatpush.msra.mxu0 %v10455
        %10499 = vmatpush.msra.mxu0 %v10453
        %10500 = vmatpush.msra.mxu0 %v10451
        %10501 = vmatpush.msra.mxu0 %v10449
        %10502 = vmatmul.f32.gmra.mxu0 %v10464
        %v10503 = vpop.f32.mrf.mxu0
        %v10504 = vadd.f32 %v10461, %v10503
        %10505 = vdwg.mxu0
        %10506 = vst [vmem:[%s435] sm:$0xff] %v10484
        %10507 = vst [vmem:[%s435 + $0x8] sm:$0xff] %v10504
        %s10508 = sand.u32 %s273, 1
        %s10509 = scalar_lea.sflag [#allocation4], %s10508
        %s10510 = sand.u32 %s273, 1
        %s10511 = smul.addr %s10510, 16
        %s10512 = scalar_lea.vmem [#allocation8], %s10511
        // Predicated region
        $region77: #{tpu_custom_call.1} parent=63 // pred_check
          %p10513 = pneg %p283
        $region78: #{tpu_custom_call.1} parent=63 // pred_check_branch
          %10515 = sbr.rel (%p10513) target = $region80
        $region79: #{tpu_custom_call.1} parent=63 // pred_region
          %10517 = vsyncadd %s10509, 0
          %s10518 = smul.addr %s29, 2
          %s10519 = smul.addr %s10518, 8
          %s10520 = scalar_lea.hbm %s11, %s10519
          %s10522 = sshll.u32 %s10512, 4
          %s10523 = int_to_ptr.vmem [resolvable:$true] %s10522
          %s10524 = sshll.u32 %s10520, 4
          %s10525 = int_to_ptr.hbm [resolvable:$true] %s10524
          %10527 = dma.vmem_to_hbm [thread:$0]  %s10523, 256, %s10525, %s10509
        $region80: #{tpu_custom_call.1} parent=63 // pred_fallthru
          _
      $region64: #{tpu_custom_call.1} parent=5 // pred_fallthru
        _
      %p10528 = scmp.le.s32.totalorder 2, %s24
      // Predicated region
      $region81: #{tpu_custom_call.1} parent=5 // pred_check
        %p10529 = pneg %p10528
      $region82: #{tpu_custom_call.1} parent=5 // pred_check_branch
        %10531 = sbr.rel (%p10529) target = $region84
      $region83: #{tpu_custom_call.1} parent=5 // pred_region
        %s10532 = ssub.s32 %s24, 2
        // Predicated region
        $region85: #{tpu_custom_call.1} parent=83 // pred_check
          %p10533 = pneg %p289
        $region86: #{tpu_custom_call.1} parent=83 // pred_check_branch
          %10535 = sbr.rel (%p10533) target = $region88
        $region87: #{tpu_custom_call.1} parent=83 // pred_region
          %s10536 = sand.u32 %s274, 1
          %s10537 = scalar_lea.sflag [#allocation4], %s10536
          %s10538 = sand.u32 %s274, 1
          %s10539 = smul.addr %s10538, 16
          %s10540 = scalar_lea.vmem [#allocation8], %s10539
          %10542 = dma.done %s10537, 256
        $region88: #{tpu_custom_call.1} parent=83 // pred_fallthru
          _
      $region84: #{tpu_custom_call.1} parent=5 // pred_fallthru
        _
    $region6: #{tpu_custom_call.1} parent=1 // loop_footer
      %s28 = sadd.s32 1, %s24
    $region7: #{tpu_custom_call.1} parent=1 // loop_footer_branch
      %23 = sbr.rel target = $region3
    $region8: #{tpu_custom_call.1} parent=1 // loop_exit
      _
    %10543 = vsyncpa [#allocation3], 1
    %s10544 = scalar_lea.sflag [#allocation3], 1
    %10545 = vsyncpa %s10544, 1
    %10546 = vsyncpa [#allocation6], 1
    %10547 = vsyncpa [#allocation4], 1
    %s10548 = scalar_lea.sflag [#allocation4], 1
    %10549 = vsyncpa %s10548, 1

</llo_original>
